<compile_context>
chip_gen: v7x
topology: tpu7x:2x2x1
jax: 0.10.0
libtpu: 0.0.40
codegen_flags: <defaults>
</compile_context>

<pallas_src>
import functools

import jax
import jax.numpy as jnp
from jax.experimental import pallas as pl
from jax.experimental.pallas import tpu as pltpu

# Cast MXU matmul inputs to bf16 (v6e / v7x perf).  Off by default so results
# stay directly comparable to the float32 PyTorch reference; flip to True on
# v6e/v7x when ~1e-2 relative error is acceptable.  (v5e: keep False.)
USE_BF16_MXU = False
BN_EPS = 1e-5

_SINGLE_STEP = pltpu.CompilerParams(dimension_semantics=("arbitrary",))


def _apply_act(y, act):
    if act == "relu":
        return jnp.maximum(y, 0.0)
    if act == "leaky":                        # LeakyReLU(0.2)
        return jnp.where(y >= 0.0, y, 0.2 * y)
    if act == "sigmoid":
        return jax.nn.sigmoid(y)
    return y


def _maybe_bf16(x):
    return x.astype(jnp.bfloat16) if USE_BF16_MXU else x


def _group_bn_act(y, gamma, beta, groups, act):
    """Training-mode BatchNorm + activation on a (M, G*C) matrix whose columns
    are ordered (group, channel).  Per-channel stats are taken over all rows and
    all G column groups (== BN2d batch statistics over (B, H, W))."""
    M, GC = y.shape
    C = GC // groups
    inv_n = 1.0 / float(M * groups)
    # per-channel mean (sum over rows and over the G lane-aligned column groups)
    s = y[:, 0:C]
    for g in range(1, groups):
        s = s + y[:, g * C:(g + 1) * C]
    mean = jnp.sum(s, axis=0, keepdims=True) * inv_n               # (1, C)
    c = y - jnp.tile(mean, (1, groups))                            # centered
    c2 = c * c
    s2 = c2[:, 0:C]
    for g in range(1, groups):
        s2 = s2 + c2[:, g * C:(g + 1) * C]
    var = jnp.sum(s2, axis=0, keepdims=True) * inv_n               # biased, like train()
    scale = gamma * jax.lax.rsqrt(var + BN_EPS)                    # (1, C)
    out = c * jnp.tile(scale, (1, groups)) + jnp.tile(beta, (1, groups))
    return _apply_act(out, act)


# ----------------------------------------------------------------------------
# Pallas kernel 1: single-block matmul + fused activation (no bias needed)
# ----------------------------------------------------------------------------
def _mm_act_kernel(a_ref, w_ref, o_ref, *, act):
    y = jnp.dot(_maybe_bf16(a_ref[...]), _maybe_bf16(w_ref[...]),
                preferred_element_type=jnp.float32)
    o_ref[...] = _apply_act(y, act)


def matmul_act(a, w, act="none"):
    M, K = a.shape
    _, N = w.shape
    return pl.pallas_call(
        functools.partial(_mm_act_kernel, act=act),
        out_shape=jax.ShapeDtypeStruct((M, N), jnp.float32),
        grid=(1,),
        in_specs=[pl.BlockSpec((M, K), lambda i: (0, 0)),
                  pl.BlockSpec((K, N), lambda i: (0, 0))],
        out_specs=pl.BlockSpec((M, N), lambda i: (0, 0)),
        compiler_params=_SINGLE_STEP,
    )(a, w)


# ----------------------------------------------------------------------------
# Pallas kernel 2: matmul + fused (grouped) BatchNorm (batch stats) + activation.
#   groups=1 : encoder convs, output columns == channels.
#   groups=4 : decoder sub-pixel convT, output columns ordered (py,px,co).
# Valid because the whole M (= B*OH*OW) axis lives in one block, so complete
# per-channel batch statistics are available inside the kernel.
# ----------------------------------------------------------------------------
def _mm_bn_act_kernel(a_ref, w_ref, g_ref, b_ref, o_ref, *, groups, act):
    y = jnp.dot(_maybe_bf16(a_ref[...]), _maybe_bf16(w_ref[...]),
                preferred_element_type=jnp.float32)
    o_ref[...] = _group_bn_act(y, g_ref[...], b_ref[...], groups, act)


def matmul_bn_act(a, w, gamma, beta, groups, act):
    M, K = a.shape
    _, N = w.shape
    C = N // groups
    return pl.pallas_call(
        functools.partial(_mm_bn_act_kernel, groups=groups, act=act),
        out_shape=jax.ShapeDtypeStruct((M, N), jnp.float32),
        grid=(1,),
        in_specs=[pl.BlockSpec((M, K), lambda i: (0, 0)),
                  pl.BlockSpec((K, N), lambda i: (0, 0)),
                  pl.BlockSpec((1, C), lambda i: (0, 0)),
                  pl.BlockSpec((1, C), lambda i: (0, 0))],
        out_specs=pl.BlockSpec((M, N), lambda i: (0, 0)),
        compiler_params=_SINGLE_STEP,
    )(a, w, gamma, beta)


# ----------------------------------------------------------------------------
# Pallas kernel 3: fused network core
#   enc4-conv + sigmoid -> fc1+relu -> fc21 -> fc3+relu -> fc4+sigmoid
#   -> dec1 ConvTranspose(256,128,4,1,0) as one matmul -> BN(batch) + ReLU
# All weights (~4.2 MB) resident in VMEM; a single launch replaces six.
# ----------------------------------------------------------------------------
def _core_kernel(col_ref, we4_ref, w1_ref, b1_ref, w21_ref, b21_ref,
                 w3_ref, b3_ref, w4_ref, b4_ref, wd1_ref, gd1_ref, bd1_ref,
                 o_ref):
    def dot(a, b):
        return jnp.dot(_maybe_bf16(a), _maybe_bf16(b),
                       preferred_element_type=jnp.float32)

    enc = jax.nn.sigmoid(dot(col_ref[...], we4_ref[...]))          # enc4 + sigmoid
    h = jnp.maximum(dot(enc, w1_ref[...]) + b1_ref[...], 0.0)      # fc1 + relu
    e = dot(h, w21_ref[...]) + b21_ref[...]                        # fc21 (latent)
    h3 = jnp.maximum(dot(e, w3_ref[...]) + b3_ref[...], 0.0)       # fc3 + relu
    h4 = jax.nn.sigmoid(dot(h3, w4_ref[...]) + b4_ref[...])        # fc4 + sigmoid
    y = dot(h4, wd1_ref[...])                                      # dec1 convT (1x1 -> 4x4)
    # columns of y are (ky, kx, co): 16 spatial groups of 128 channels
    o_ref[...] = _group_bn_act(y, gd1_ref[...], bd1_ref[...], groups=16, act="relu")


def core_block(col, pp):
    B = col.shape[0]
    args = [col, pp["enc4_wm"],
            pp["fc1_w"], pp["fc1_b"], pp["fc21_w"], pp["fc21_b"],
            pp["fc3_w"], pp["fc3_b"], pp["fc4_w"], pp["fc4_b"],
            pp["dec1_wm"], pp["bn_d1_g"], pp["bn_d1_b"]]
    in_specs = [pl.BlockSpec(a.shape, lambda i: (0, 0)) for a in args]
    N = pp["dec1_wm"].shape[1]
    return pl.pallas_call(
        _core_kernel,
        out_shape=jax.ShapeDtypeStruct((B, N), jnp.float32),
        grid=(1,),
        in_specs=in_specs,
        out_specs=pl.BlockSpec((B, N), lambda i: (0, 0)),
        compiler_params=_SINGLE_STEP,
    )(*args)


# ----------------------------------------------------------------------------
# Layout glue (pure data movement, plain JAX): im2col / depth-to-space.
# ----------------------------------------------------------------------------
def _im2col_nhwc(x, k, stride, pad):
    # x: (B, H, W, C)  ->  (B*OH*OW, k*k*C), column order (ky, kx, ci)
    B, H, W, C = x.shape
    xp = jnp.pad(x, ((0, 0), (pad, pad), (pad, pad), (0, 0))) if pad else x
    OH = (H + 2 * pad - k) // stride + 1
    OW = (W + 2 * pad - k) // stride + 1
    cols = [xp[:, ky:ky + stride * OH:stride, kx:kx + stride * OW:stride, :]
            for ky in range(k) for kx in range(k)]
    col = jnp.concatenate(cols, axis=-1)          # (B, OH, OW, k*k*C)
    return col.reshape(B * OH * OW, k * k * C), OH, OW


def _pixel_shuffle2(m, B, IH, IW):
    # m: (B*IH*IW, 4*Cout), columns ordered (py, px, co) -> (B, 2*IH, 2*IW, Cout)
    Cout = m.shape[1] // 4
    y = m.reshape(B, IH, IW, 2, 2, Cout).transpose(0, 1, 3, 2, 4, 5)
    return y.reshape(B, 2 * IH, 2 * IW, Cout)


# ----------------------------------------------------------------------------
# Weight packing (done ONCE, outside the jitted forward).
# ----------------------------------------------------------------------------
def _conv_weight_mat(w):
    # PyTorch Conv2d weight (Cout, Cin, k, k) -> (k*k*Cin, Cout)
    Cout, Cin, k, _ = w.shape
    return w.transpose(2, 3, 1, 0).reshape(k * k * Cin, Cout)


def _convT_1x1_weight_mat(w):
    # ConvTranspose2d weight (Cin, Cout, k, k) applied to a 1x1 input
    # -> (Cin, k*k*Cout), output-column order (ky, kx, co) (== NHWC order)
    Cin, Cout, k, _ = w.shape
    return w.transpose(0, 2, 3, 1).reshape(Cin, k * k * Cout)


# ConvTranspose2d(k=4, stride=2, pad=1) sub-pixel decomposition.
# Output row oy = 2*m + py pulls exactly two kernel taps per axis:
#   py=0: (window t=0 -> ky=3), (t=1 -> ky=1);  py=1: (t=1 -> ky=2), (t=2 -> ky=0)
# so the whole layer is one 3x3/stride-1 conv on the UN-dilated input against a
# (9*Cin, 4*Cout) weight with structured zeros, plus a depth-to-space shuffle.
_TAP = {(0, 0): 3, (0, 1): 1, (1, 1): 2, (1, 2): 0}   # (phase, window_pos) -> kernel idx


def _subpixel_weight_mat(w):
    # (Cin, Cout, 4, 4) -> (9*Cin, 4*Cout); row order (ty, tx, ci), col (py, px, co)
    Cin, Cout, _, _ = w.shape
    W9 = jnp.zeros((3, 3, Cin, 2, 2, Cout), jnp.float32)
    for (py, ty), ky in _TAP.items():
        for (px, tx), kx in _TAP.items():
            W9 = W9.at[ty, tx, :, py, px, :].set(w[:, :, ky, kx])
    return W9.reshape(9 * Cin, 4 * Cout)


def prepare_params(p):
    """Pack raw (PyTorch-layout) parameters into matmul-ready matrices once."""
    q = {
        "enc1_wm": _conv_weight_mat(p["enc1_w"]),
        "enc2_wm": _conv_weight_mat(p["enc2_w"]),
        "enc3_wm": _conv_weight_mat(p["enc3_w"]),
        "enc4_wm": _conv_weight_mat(p["enc4_w"]),
        "dec1_wm": _convT_1x1_weight_mat(p["dec1_w"]),
        "dec2_wm": _subpixel_weight_mat(p["dec2_w"]),
        "dec3_wm": _subpixel_weight_mat(p["dec3_w"]),
        "dec4_wm": _subpixel_weight_mat(p["dec4_w"]),
        "fc1_w": p["fc1_w"], "fc1_b": p["fc1_b"].reshape(1, -1),
        "fc21_w": p["fc21_w"], "fc21_b": p["fc21_b"].reshape(1, -1),
        "fc3_w": p["fc3_w"], "fc3_b": p["fc3_b"].reshape(1, -1),
        "fc4_w": p["fc4_w"], "fc4_b": p["fc4_b"].reshape(1, -1),
    }
    for name in ["bn_e2", "bn_e3", "bn_d1", "bn_d2", "bn_d3"]:
        q[name + "_g"] = p[name + "_g"].reshape(1, -1)
        q[name + "_b"] = p[name + "_b"].reshape(1, -1)
    return q


# ----------------------------------------------------------------------------
# parameters (deterministic synthetic init; shapes from ae_vine2.__init__)
# ----------------------------------------------------------------------------
def init_params(key, hidden_dim=100, z_size=16, channel_num=3):
    keys = jax.random.split(key, 16)

    def w(i, shape, scale=0.05):
        return scale * jax.random.normal(keys[i], shape, jnp.float32)

    p = {}
    # encoder Conv2d weights (Cout, Cin, 4, 4), bias=False
    p["enc1_w"] = w(0, (32, channel_num, 4, 4))
    p["enc2_w"] = w(1, (64, 32, 4, 4))
    p["enc3_w"] = w(2, (128, 64, 4, 4))
    p["enc4_w"] = w(3, (256, 128, 4, 4))
    # decoder ConvTranspose2d weights (Cin, Cout, 4, 4), bias=False
    p["dec1_w"] = w(4, (256, 128, 4, 4))
    p["dec2_w"] = w(5, (128, 64, 4, 4))
    p["dec3_w"] = w(6, (64, 32, 4, 4))
    p["dec4_w"] = w(7, (32, channel_num, 4, 4))
    # fully connected layers, stored as (in, out) for direct matmul
    # (PyTorch nn.Linear stores the transpose).  fc22 is unused by forward().
    p["fc1_w"] = w(8, (256, hidden_dim));      p["fc1_b"] = w(9, (hidden_dim,))
    p["fc21_w"] = w(10, (hidden_dim, z_size)); p["fc21_b"] = w(11, (z_size,))
    p["fc3_w"] = w(12, (z_size, hidden_dim));  p["fc3_b"] = w(13, (hidden_dim,))
    p["fc4_w"] = w(14, (hidden_dim, 256));     p["fc4_b"] = w(15, (256,))
    # BatchNorm affine params.  BN uses training-mode batch statistics, matching
    # a freshly constructed nn.Module in train(); eval() running stats differ.
    for name, c in [("bn_e2", 64), ("bn_e3", 128),
                    ("bn_d1", 128), ("bn_d2", 64), ("bn_d3", 32)]:
        p[name + "_g"] = jnp.ones((c,), jnp.float32)
        p[name + "_b"] = jnp.zeros((c,), jnp.float32)
    return p


# ----------------------------------------------------------------------------
# ae_vine2.forward : returns the decoded reconstruction (NCHW), like the module
# ----------------------------------------------------------------------------
def ae_vine2_forward(pp, x_nchw):
    B = x_nchw.shape[0]
    x = jnp.transpose(x_nchw.astype(jnp.float32), (0, 2, 3, 1))   # NCHW -> NHWC, once

    # ---- encoder ----
    col, oh, ow = _im2col_nhwc(x, 4, 2, 1)                        # 32 -> 16
    h = matmul_act(col, pp["enc1_wm"], act="leaky").reshape(B, oh, ow, -1)

    col, oh, ow = _im2col_nhwc(h, 4, 2, 1)                        # 16 -> 8
    h = matmul_bn_act(col, pp["enc2_wm"], pp["bn_e2_g"], pp["bn_e2_b"],
                      groups=1, act="leaky").reshape(B, oh, ow, -1)

    col, oh, ow = _im2col_nhwc(h, 4, 2, 1)                        # 8 -> 4
    h = matmul_bn_act(col, pp["enc3_wm"], pp["bn_e3_g"], pp["bn_e3_b"],
                      groups=1, act="leaky").reshape(B, oh, ow, -1)

    col, _, _ = _im2col_nhwc(h, 4, 2, 0)                          # 4 -> 1, (B, 2048)

    # ---- fused core: enc4+sigmoid -> FC bottleneck -> dec1 convT + BN + ReLU ----
    d = core_block(col, pp)                                       # (B, 16*128), (ky,kx,co)
    d = d.reshape(B, 4, 4, 128)                                   # NHWC (B,4,4,128)

    # dec2: ConvTranspose2d(128,64,4,2,1) + BN + ReLU (fused)     4 -> 8
    col, ih, iw = _im2col_nhwc(d, 3, 1, 1)
    m = matmul_bn_act(col, pp["dec2_wm"], pp["bn_d2_g"], pp["bn_d2_b"],
                      groups=4, act="relu")
    d = _pixel_shuffle2(m, B, ih, iw)                             # (B,8,8,64)

    # dec3: ConvTranspose2d(64,32,4,2,1) + BN + ReLU (fused)      8 -> 16
    col, ih, iw = _im2col_nhwc(d, 3, 1, 1)
    m = matmul_bn_act(col, pp["dec3_wm"], pp["bn_d3_g"], pp["bn_d3_b"],
                      groups=4, act="relu")
    d = _pixel_shuffle2(m, B, ih, iw)                             # (B,16,16,32)

    # dec4: ConvTranspose2d(32,3,4,2,1) + Sigmoid (fused)         16 -> 32
    col, ih, iw = _im2col_nhwc(d, 3, 1, 1)
    m = matmul_act(col, pp["dec4_wm"], act="sigmoid")
    d = _pixel_shuffle2(m, B, ih, iw)                             # (B,32,32,3)

    return jnp.transpose(d, (0, 3, 1, 2))                         # NCHW (B,3,32,32)


if __name__ == "__main__":
    key = jax.random.PRNGKey(0)
    pkey, xkey = jax.random.split(key)
    raw_params = init_params(pkey, hidden_dim=100, z_size=16, channel_num=3)
    params = prepare_params(raw_params)     # weight packing hoisted out of forward
    # image_size must be 32 so the encoder's last 4x4/stride-2/pad-0 conv lands
    # on a 1x1 map (required by fc1's 256 input features).
    x = jax.random.uniform(xkey, (2, 3, 32, 32), jnp.float32)

    fwd = jax.jit(ae_vine2_forward)
    out = fwd(params, x)
    jax.block_until_ready(out)

    assert out.shape == (2, 3, 32, 32) and out.dtype == jnp.float32
    assert bool(jnp.all(jnp.isfinite(out)))
    print("KERNEL_OK")
</pallas_src>

<mosaic_0001>
module attributes {stable_mosaic.version = 11 : i64} {
  func.func @_mm_act_kernel(%arg0: i32, %arg1: memref<512x48xf32, #tpu.memory_space<vmem>>, %arg2: memref<48x32xf32, #tpu.memory_space<vmem>>, %arg3: memref<512x32xf32, #tpu.memory_space<vmem>>) attributes {dimension_semantics = [#tpu.dimension_semantics<arbitrary>], iteration_bounds = array<i64: 1>, scalar_prefetch = 0 : i64, scratch_operands = 0 : i64, tpu.core_type = #tpu.core_type<tc>, window_params = [{pipeline_mode = #tpu.pipeline_mode<synchronous>, transform_indices = @transform_0, window_bounds = array<i64: 512, 48>}, {pipeline_mode = #tpu.pipeline_mode<synchronous>, transform_indices = @transform_1, window_bounds = array<i64: 48, 32>}, {pipeline_mode = #tpu.pipeline_mode<synchronous>, transform_indices = @transform_2, window_bounds = array<i64: 512, 32>}]} {
    %c0 = arith.constant 0 : index
    %c0_0 = arith.constant 0 : index
    %0 = vector.load %arg1[%c0, %c0_0] : memref<512x48xf32, #tpu.memory_space<vmem>>, vector<512x48xf32>
    %c0_1 = arith.constant 0 : index
    %c0_2 = arith.constant 0 : index
    %1 = vector.load %arg2[%c0_1, %c0_2] : memref<48x32xf32, #tpu.memory_space<vmem>>, vector<48x32xf32>
    %cst = arith.constant dense<0.000000e+00> : vector<512x32xf32>
    %2 = tpu.matmul %0, %1, %cst {dimension_numbers = #tpu.dot_dimension_numbers<[1], [0], [0], [1], [0, 0, 1, 1], [], []>} : vector<512x48xf32>, vector<48x32xf32>, vector<512x32xf32> -> vector<512x32xf32>
    %cst_3 = arith.constant 0.000000e+00 : f32
    %3 = vector.broadcast %cst_3 : f32 to vector<512x32xf32>
    %4 = arith.cmpf oge, %2, %3 : vector<512x32xf32>
    %cst_4 = arith.constant 2.000000e-01 : f32
    %5 = vector.broadcast %cst_4 : f32 to vector<512x32xf32>
    %6 = arith.mulf %5, %2 : vector<512x32xf32>
    %7 = arith.select %4, %2, %6 : vector<512x32xi1>, vector<512x32xf32>
    %c0_5 = arith.constant 0 : index
    %c0_6 = arith.constant 0 : index
    %8 = vector.load %arg3[%c0_5, %c0_6] : memref<512x32xf32, #tpu.memory_space<vmem>>, vector<512x32xf32>
    tpu.vector_store %arg3[%c0_5, %c0_6], %7 {strides = array<i32>} : memref<512x32xf32, #tpu.memory_space<vmem>>, vector<512x32xf32>,
    return
  }
  func.func @transform_0(%arg0: i32) -> (i32, i32) {
    %c0_i32 = arith.constant 0 : i32
    %c0_i32_0 = arith.constant 0 : i32
    %c0_i32_1 = arith.constant 0 : i32
    return %c0_i32, %c0_i32_0 : i32, i32
  }
  func.func @transform_1(%arg0: i32) -> (i32, i32) {
    %c0_i32 = arith.constant 0 : i32
    %c0_i32_0 = arith.constant 0 : i32
    %c0_i32_1 = arith.constant 0 : i32
    return %c0_i32, %c0_i32_0 : i32, i32
  }
  func.func @transform_2(%arg0: i32) -> (i32, i32) {
    %c0_i32 = arith.constant 0 : i32
    %c0_i32_0 = arith.constant 0 : i32
    %c0_i32_1 = arith.constant 0 : i32
    return %c0_i32, %c0_i32_0 : i32, i32
  }
}

module attributes {stable_mosaic.version = 11 : i64} {
  func.func @_mm_bn_act_kernel(%arg0: i32, %arg1: memref<128x512xf32, #tpu.memory_space<vmem>>, %arg2: memref<512x64xf32, #tpu.memory_space<vmem>>, %arg3: memref<1x64xf32, #tpu.memory_space<vmem>>, %arg4: memref<1x64xf32, #tpu.memory_space<vmem>>, %arg5: memref<128x64xf32, #tpu.memory_space<vmem>>) attributes {dimension_semantics = [#tpu.dimension_semantics<arbitrary>], iteration_bounds = array<i64: 1>, scalar_prefetch = 0 : i64, scratch_operands = 0 : i64, tpu.core_type = #tpu.core_type<tc>, window_params = [{pipeline_mode = #tpu.pipeline_mode<synchronous>, transform_indices = @transform_0, window_bounds = array<i64: 128, 512>}, {pipeline_mode = #tpu.pipeline_mode<synchronous>, transform_indices = @transform_1, window_bounds = array<i64: 512, 64>}, {pipeline_mode = #tpu.pipeline_mode<synchronous>, transform_indices = @transform_2, window_bounds = array<i64: 1, 64>}, {pipeline_mode = #tpu.pipeline_mode<synchronous>, transform_indices = @transform_3, window_bounds = array<i64: 1, 64>}, {pipeline_mode = #tpu.pipeline_mode<synchronous>, transform_indices = @transform_4, window_bounds = array<i64: 128, 64>}]} {
    %c0 = arith.constant 0 : index
    %c0_0 = arith.constant 0 : index
    %0 = vector.load %arg1[%c0, %c0_0] : memref<128x512xf32, #tpu.memory_space<vmem>>, vector<128x512xf32>
    %c0_1 = arith.constant 0 : index
    %c0_2 = arith.constant 0 : index
    %1 = vector.load %arg2[%c0_1, %c0_2] : memref<512x64xf32, #tpu.memory_space<vmem>>, vector<512x64xf32>
    %cst = arith.constant dense<0.000000e+00> : vector<128x64xf32>
    %2 = tpu.matmul %0, %1, %cst {dimension_numbers = #tpu.dot_dimension_numbers<[1], [0], [0], [1], [0, 0, 1, 1], [], []>} : vector<128x512xf32>, vector<512x64xf32>, vector<128x64xf32> -> vector<128x64xf32>
    %c0_3 = arith.constant 0 : index
    %c0_4 = arith.constant 0 : index
    %3 = vector.load %arg3[%c0_3, %c0_4] : memref<1x64xf32, #tpu.memory_space<vmem>>, vector<1x64xf32>
    %c0_5 = arith.constant 0 : index
    %c0_6 = arith.constant 0 : index
    %4 = vector.load %arg4[%c0_5, %c0_6] : memref<1x64xf32, #tpu.memory_space<vmem>>, vector<1x64xf32>
    %cst_7 = arith.constant dense<0.000000e+00> : vector<64xf32>
    %5 = vector.multi_reduction <add>, %2, %cst_7 [0] : vector<128x64xf32> to vector<64xf32>
    %6 = vector.shape_cast %5 : vector<64xf32> to vector<1x64xf32>
    %cst_8 = arith.constant 7.812500e-03 : f32
    %7 = vector.broadcast %cst_8 : f32 to vector<1x64xf32>
    %8 = arith.mulf %6, %7 : vector<1x64xf32>
    %9 = vector.broadcast %8 : vector<1x64xf32> to vector<128x64xf32>
    %10 = arith.subf %2, %9 : vector<128x64xf32>
    %11 = arith.mulf %10, %10 : vector<128x64xf32>
    %cst_9 = arith.constant dense<0.000000e+00> : vector<64xf32>
    %12 = vector.multi_reduction <add>, %11, %cst_9 [0] : vector<128x64xf32> to vector<64xf32>
    %13 = vector.shape_cast %12 : vector<64xf32> to vector<1x64xf32>
    %cst_10 = arith.constant 7.812500e-03 : f32
    %14 = vector.broadcast %cst_10 : f32 to vector<1x64xf32>
    %15 = arith.mulf %13, %14 : vector<1x64xf32>
    %cst_11 = arith.constant 9.99999974E-6 : f32
    %16 = vector.broadcast %cst_11 : f32 to vector<1x64xf32>
    %17 = arith.addf %15, %16 : vector<1x64xf32>
    %18 = math.rsqrt %17 : vector<1x64xf32>
    %19 = arith.mulf %3, %18 : vector<1x64xf32>
    %20 = vector.broadcast %19 : vector<1x64xf32> to vector<128x64xf32>
    %21 = arith.mulf %10, %20 : vector<128x64xf32>
    %22 = vector.broadcast %4 : vector<1x64xf32> to vector<128x64xf32>
    %23 = arith.addf %21, %22 : vector<128x64xf32>
    %cst_12 = arith.constant 0.000000e+00 : f32
    %24 = vector.broadcast %cst_12 : f32 to vector<128x64xf32>
    %25 = arith.cmpf oge, %23, %24 : vector<128x64xf32>
    %cst_13 = arith.constant 2.000000e-01 : f32
    %26 = vector.broadcast %cst_13 : f32 to vector<128x64xf32>
    %27 = arith.mulf %26, %23 : vector<128x64xf32>
    %28 = arith.select %25, %23, %27 : vector<128x64xi1>, vector<128x64xf32>
    %c0_14 = arith.constant 0 : index
    %c0_15 = arith.constant 0 : index
    %29 = vector.load %arg5[%c0_14, %c0_15] : memref<128x64xf32, #tpu.memory_space<vmem>>, vector<128x64xf32>
    tpu.vector_store %arg5[%c0_14, %c0_15], %28 {strides = array<i32>} : memref<128x64xf32, #tpu.memory_space<vmem>>, vector<128x64xf32>,
    return
  }
  func.func @transform_0(%arg0: i32) -> (i32, i32) {
    %c0_i32 = arith.constant 0 : i32
    %c0_i32_0 = arith.constant 0 : i32
    %c0_i32_1 = arith.constant 0 : i32
    return %c0_i32, %c0_i32_0 : i32, i32
  }
  func.func @transform_1(%arg0: i32) -> (i32, i32) {
    %c0_i32 = arith.constant 0 : i32
    %c0_i32_0 = arith.constant 0 : i32
    %c0_i32_1 = arith.constant 0 : i32
    return %c0_i32, %c0_i32_0 : i32, i32
  }
  func.func @transform_2(%arg0: i32) -> (i32, i32) {
    %c0_i32 = arith.constant 0 : i32
    %c0_i32_0 = arith.constant 0 : i32
    %c0_i32_1 = arith.constant 0 : i32
    return %c0_i32, %c0_i32_0 : i32, i32
  }
  func.func @transform_3(%arg0: i32) -> (i32, i32) {
    %c0_i32 = arith.constant 0 : i32
    %c0_i32_0 = arith.constant 0 : i32
    %c0_i32_1 = arith.constant 0 : i32
    return %c0_i32, %c0_i32_0 : i32, i32
  }
  func.func @transform_4(%arg0: i32) -> (i32, i32) {
    %c0_i32 = arith.constant 0 : i32
    %c0_i32_0 = arith.constant 0 : i32
    %c0_i32_1 = arith.constant 0 : i32
    return %c0_i32, %c0_i32_0 : i32, i32
  }
}

module attributes {stable_mosaic.version = 11 : i64} {
  func.func @_mm_bn_act_kernel(%arg0: i32, %arg1: memref<32x1024xf32, #tpu.memory_space<vmem>>, %arg2: memref<1024x128xf32, #tpu.memory_space<vmem>>, %arg3: memref<1x128xf32, #tpu.memory_space<vmem>>, %arg4: memref<1x128xf32, #tpu.memory_space<vmem>>, %arg5: memref<32x128xf32, #tpu.memory_space<vmem>>) attributes {dimension_semantics = [#tpu.dimension_semantics<arbitrary>], iteration_bounds = array<i64: 1>, scalar_prefetch = 0 : i64, scratch_operands = 0 : i64, tpu.core_type = #tpu.core_type<tc>, window_params = [{pipeline_mode = #tpu.pipeline_mode<synchronous>, transform_indices = @transform_0, window_bounds = array<i64: 32, 1024>}, {pipeline_mode = #tpu.pipeline_mode<synchronous>, transform_indices = @transform_1, window_bounds = array<i64: 1024, 128>}, {pipeline_mode = #tpu.pipeline_mode<synchronous>, transform_indices = @transform_2, window_bounds = array<i64: 1, 128>}, {pipeline_mode = #tpu.pipeline_mode<synchronous>, transform_indices = @transform_3, window_bounds = array<i64: 1, 128>}, {pipeline_mode = #tpu.pipeline_mode<synchronous>, transform_indices = @transform_4, window_bounds = array<i64: 32, 128>}]} {
    %c0 = arith.constant 0 : index
    %c0_0 = arith.constant 0 : index
    %0 = vector.load %arg1[%c0, %c0_0] : memref<32x1024xf32, #tpu.memory_space<vmem>>, vector<32x1024xf32>
    %c0_1 = arith.constant 0 : index
    %c0_2 = arith.constant 0 : index
    %1 = vector.load %arg2[%c0_1, %c0_2] : memref<1024x128xf32, #tpu.memory_space<vmem>>, vector<1024x128xf32>
    %cst = arith.constant dense<0.000000e+00> : vector<32x128xf32>
    %2 = tpu.matmul %0, %1, %cst {dimension_numbers = #tpu.dot_dimension_numbers<[1], [0], [0], [1], [0, 0, 1, 1], [], []>} : vector<32x1024xf32>, vector<1024x128xf32>, vector<32x128xf32> -> vector<32x128xf32>
    %c0_3 = arith.constant 0 : index
    %c0_4 = arith.constant 0 : index
    %3 = vector.load %arg3[%c0_3, %c0_4] : memref<1x128xf32, #tpu.memory_space<vmem>>, vector<1x128xf32>
    %c0_5 = arith.constant 0 : index
    %c0_6 = arith.constant 0 : index
    %4 = vector.load %arg4[%c0_5, %c0_6] : memref<1x128xf32, #tpu.memory_space<vmem>>, vector<1x128xf32>
    %cst_7 = arith.constant dense<0.000000e+00> : vector<128xf32>
    %5 = vector.multi_reduction <add>, %2, %cst_7 [0] : vector<32x128xf32> to vector<128xf32>
    %6 = vector.shape_cast %5 : vector<128xf32> to vector<1x128xf32>
    %cst_8 = arith.constant 3.125000e-02 : f32
    %7 = vector.broadcast %cst_8 : f32 to vector<1x128xf32>
    %8 = arith.mulf %6, %7 : vector<1x128xf32>
    %9 = vector.broadcast %8 : vector<1x128xf32> to vector<32x128xf32>
    %10 = arith.subf %2, %9 : vector<32x128xf32>
    %11 = arith.mulf %10, %10 : vector<32x128xf32>
    %cst_9 = arith.constant dense<0.000000e+00> : vector<128xf32>
    %12 = vector.multi_reduction <add>, %11, %cst_9 [0] : vector<32x128xf32> to vector<128xf32>
    %13 = vector.shape_cast %12 : vector<128xf32> to vector<1x128xf32>
    %cst_10 = arith.constant 3.125000e-02 : f32
    %14 = vector.broadcast %cst_10 : f32 to vector<1x128xf32>
    %15 = arith.mulf %13, %14 : vector<1x128xf32>
    %cst_11 = arith.constant 9.99999974E-6 : f32
    %16 = vector.broadcast %cst_11 : f32 to vector<1x128xf32>
    %17 = arith.addf %15, %16 : vector<1x128xf32>
    %18 = math.rsqrt %17 : vector<1x128xf32>
    %19 = arith.mulf %3, %18 : vector<1x128xf32>
    %20 = vector.broadcast %19 : vector<1x128xf32> to vector<32x128xf32>
    %21 = arith.mulf %10, %20 : vector<32x128xf32>
    %22 = vector.broadcast %4 : vector<1x128xf32> to vector<32x128xf32>
    %23 = arith.addf %21, %22 : vector<32x128xf32>
    %cst_12 = arith.constant 0.000000e+00 : f32
    %24 = vector.broadcast %cst_12 : f32 to vector<32x128xf32>
    %25 = arith.cmpf oge, %23, %24 : vector<32x128xf32>
    %cst_13 = arith.constant 2.000000e-01 : f32
    %26 = vector.broadcast %cst_13 : f32 to vector<32x128xf32>
    %27 = arith.mulf %26, %23 : vector<32x128xf32>
    %28 = arith.select %25, %23, %27 : vector<32x128xi1>, vector<32x128xf32>
    %c0_14 = arith.constant 0 : index
    %c0_15 = arith.constant 0 : index
    %29 = vector.load %arg5[%c0_14, %c0_15] : memref<32x128xf32, #tpu.memory_space<vmem>>, vector<32x128xf32>
    tpu.vector_store %arg5[%c0_14, %c0_15], %28 {strides = array<i32>} : memref<32x128xf32, #tpu.memory_space<vmem>>, vector<32x128xf32>,
    return
  }
  func.func @transform_0(%arg0: i32) -> (i32, i32) {
    %c0_i32 = arith.constant 0 : i32
    %c0_i32_0 = arith.constant 0 : i32
    %c0_i32_1 = arith.constant 0 : i32
    return %c0_i32, %c0_i32_0 : i32, i32
  }
  func.func @transform_1(%arg0: i32) -> (i32, i32) {
    %c0_i32 = arith.constant 0 : i32
    %c0_i32_0 = arith.constant 0 : i32
    %c0_i32_1 = arith.constant 0 : i32
    return %c0_i32, %c0_i32_0 : i32, i32
  }
  func.func @transform_2(%arg0: i32) -> (i32, i32) {
    %c0_i32 = arith.constant 0 : i32
    %c0_i32_0 = arith.constant 0 : i32
    %c0_i32_1 = arith.constant 0 : i32
    return %c0_i32, %c0_i32_0 : i32, i32
  }
  func.func @transform_3(%arg0: i32) -> (i32, i32) {
    %c0_i32 = arith.constant 0 : i32
    %c0_i32_0 = arith.constant 0 : i32
    %c0_i32_1 = arith.constant 0 : i32
    return %c0_i32, %c0_i32_0 : i32, i32
  }
  func.func @transform_4(%arg0: i32) -> (i32, i32) {
    %c0_i32 = arith.constant 0 : i32
    %c0_i32_0 = arith.constant 0 : i32
    %c0_i32_1 = arith.constant 0 : i32
    return %c0_i32, %c0_i32_0 : i32, i32
  }
}

module attributes {stable_mosaic.version = 11 : i64} {
  func.func @_mm_bn_act_kernel(%arg0: i32, %arg1: memref<32x1152xf32, #tpu.memory_space<vmem>>, %arg2: memref<1152x256xf32, #tpu.memory_space<vmem>>, %arg3: memref<1x64xf32, #tpu.memory_space<vmem>>, %arg4: memref<1x64xf32, #tpu.memory_space<vmem>>, %arg5: memref<32x256xf32, #tpu.memory_space<vmem>>) attributes {dimension_semantics = [#tpu.dimension_semantics<arbitrary>], iteration_bounds = array<i64: 1>, scalar_prefetch = 0 : i64, scratch_operands = 0 : i64, tpu.core_type = #tpu.core_type<tc>, window_params = [{pipeline_mode = #tpu.pipeline_mode<synchronous>, transform_indices = @transform_0, window_bounds = array<i64: 32, 1152>}, {pipeline_mode = #tpu.pipeline_mode<synchronous>, transform_indices = @transform_1, window_bounds = array<i64: 1152, 256>}, {pipeline_mode = #tpu.pipeline_mode<synchronous>, transform_indices = @transform_2, window_bounds = array<i64: 1, 64>}, {pipeline_mode = #tpu.pipeline_mode<synchronous>, transform_indices = @transform_3, window_bounds = array<i64: 1, 64>}, {pipeline_mode = #tpu.pipeline_mode<synchronous>, transform_indices = @transform_4, window_bounds = array<i64: 32, 256>}]} {
    %c0 = arith.constant 0 : index
    %c0_0 = arith.constant 0 : index
    %0 = vector.load %arg1[%c0, %c0_0] : memref<32x1152xf32, #tpu.memory_space<vmem>>, vector<32x1152xf32>
    %c0_1 = arith.constant 0 : index
    %c0_2 = arith.constant 0 : index
    %1 = vector.load %arg2[%c0_1, %c0_2] : memref<1152x256xf32, #tpu.memory_space<vmem>>, vector<1152x256xf32>
    %cst = arith.constant dense<0.000000e+00> : vector<32x256xf32>
    %2 = tpu.matmul %0, %1, %cst {dimension_numbers = #tpu.dot_dimension_numbers<[1], [0], [0], [1], [0, 0, 1, 1], [], []>} : vector<32x1152xf32>, vector<1152x256xf32>, vector<32x256xf32> -> vector<32x256xf32>
    %c0_3 = arith.constant 0 : index
    %c0_4 = arith.constant 0 : index
    %3 = vector.load %arg3[%c0_3, %c0_4] : memref<1x64xf32, #tpu.memory_space<vmem>>, vector<1x64xf32>
    %c0_5 = arith.constant 0 : index
    %c0_6 = arith.constant 0 : index
    %4 = vector.load %arg4[%c0_5, %c0_6] : memref<1x64xf32, #tpu.memory_space<vmem>>, vector<1x64xf32>
    %5 = vector.extract_strided_slice %2 {offsets = [0, 0], sizes = [32, 64], strides = [1, 1]} : vector<32x256xf32> to vector<32x64xf32>
    %6 = vector.extract_strided_slice %2 {offsets = [0, 64], sizes = [32, 64], strides = [1, 1]} : vector<32x256xf32> to vector<32x64xf32>
    %7 = arith.addf %5, %6 : vector<32x64xf32>
    %8 = vector.extract_strided_slice %2 {offsets = [0, 128], sizes = [32, 64], strides = [1, 1]} : vector<32x256xf32> to vector<32x64xf32>
    %9 = arith.addf %7, %8 : vector<32x64xf32>
    %10 = vector.extract_strided_slice %2 {offsets = [0, 192], sizes = [32, 64], strides = [1, 1]} : vector<32x256xf32> to vector<32x64xf32>
    %11 = arith.addf %9, %10 : vector<32x64xf32>
    %cst_7 = arith.constant dense<0.000000e+00> : vector<64xf32>
    %12 = vector.multi_reduction <add>, %11, %cst_7 [0] : vector<32x64xf32> to vector<64xf32>
    %13 = vector.shape_cast %12 : vector<64xf32> to vector<1x64xf32>
    %cst_8 = arith.constant 7.812500e-03 : f32
    %14 = vector.broadcast %cst_8 : f32 to vector<1x64xf32>
    %15 = arith.mulf %13, %14 : vector<1x64xf32>
    %16 = tpu.concatenate %15, %15, %15, %15 in 1 : vector<1x64xf32>, vector<1x64xf32>, vector<1x64xf32>, vector<1x64xf32> -> vector<1x256xf32>
    %17 = vector.broadcast %16 : vector<1x256xf32> to vector<32x256xf32>
    %18 = arith.subf %2, %17 : vector<32x256xf32>
    %19 = arith.mulf %18, %18 : vector<32x256xf32>
    %20 = vector.extract_strided_slice %19 {offsets = [0, 0], sizes = [32, 64], strides = [1, 1]} : vector<32x256xf32> to vector<32x64xf32>
    %21 = vector.extract_strided_slice %19 {offsets = [0, 64], sizes = [32, 64], strides = [1, 1]} : vector<32x256xf32> to vector<32x64xf32>
    %22 = arith.addf %20, %21 : vector<32x64xf32>
    %23 = vector.extract_strided_slice %19 {offsets = [0, 128], sizes = [32, 64], strides = [1, 1]} : vector<32x256xf32> to vector<32x64xf32>
    %24 = arith.addf %22, %23 : vector<32x64xf32>
    %25 = vector.extract_strided_slice %19 {offsets = [0, 192], sizes = [32, 64], strides = [1, 1]} : vector<32x256xf32> to vector<32x64xf32>
    %26 = arith.addf %24, %25 : vector<32x64xf32>
    %cst_9 = arith.constant dense<0.000000e+00> : vector<64xf32>
    %27 = vector.multi_reduction <add>, %26, %cst_9 [0] : vector<32x64xf32> to vector<64xf32>
    %28 = vector.shape_cast %27 : vector<64xf32> to vector<1x64xf32>
    %cst_10 = arith.constant 7.812500e-03 : f32
    %29 = vector.broadcast %cst_10 : f32 to vector<1x64xf32>
    %30 = arith.mulf %28, %29 : vector<1x64xf32>
    %cst_11 = arith.constant 9.99999974E-6 : f32
    %31 = vector.broadcast %cst_11 : f32 to vector<1x64xf32>
    %32 = arith.addf %30, %31 : vector<1x64xf32>
    %33 = math.rsqrt %32 : vector<1x64xf32>
    %34 = arith.mulf %3, %33 : vector<1x64xf32>
    %35 = tpu.concatenate %34, %34, %34, %34 in 1 : vector<1x64xf32>, vector<1x64xf32>, vector<1x64xf32>, vector<1x64xf32> -> vector<1x256xf32>
    %36 = vector.broadcast %35 : vector<1x256xf32> to vector<32x256xf32>
    %37 = arith.mulf %18, %36 : vector<32x256xf32>
    %38 = tpu.concatenate %4, %4, %4, %4 in 1 : vector<1x64xf32>, vector<1x64xf32>, vector<1x64xf32>, vector<1x64xf32> -> vector<1x256xf32>
    %39 = vector.broadcast %38 : vector<1x256xf32> to vector<32x256xf32>
    %40 = arith.addf %37, %39 : vector<32x256xf32>
    %cst_12 = arith.constant 0.000000e+00 : f32
    %41 = vector.broadcast %cst_12 : f32 to vector<32x256xf32>
    %42 = arith.maximumf %40, %41 : vector<32x256xf32>
    %c0_13 = arith.constant 0 : index
    %c0_14 = arith.constant 0 : index
    %43 = vector.load %arg5[%c0_13, %c0_14] : memref<32x256xf32, #tpu.memory_space<vmem>>, vector<32x256xf32>
    tpu.vector_store %arg5[%c0_13, %c0_14], %42 {strides = array<i32>} : memref<32x256xf32, #tpu.memory_space<vmem>>, vector<32x256xf32>,
    return
  }
  func.func @transform_0(%arg0: i32) -> (i32, i32) {
    %c0_i32 = arith.constant 0 : i32
    %c0_i32_0 = arith.constant 0 : i32
    %c0_i32_1 = arith.constant 0 : i32
    return %c0_i32, %c0_i32_0 : i32, i32
  }
  func.func @transform_1(%arg0: i32) -> (i32, i32) {
    %c0_i32 = arith.constant 0 : i32
    %c0_i32_0 = arith.constant 0 : i32
    %c0_i32_1 = arith.constant 0 : i32
    return %c0_i32, %c0_i32_0 : i32, i32
  }
  func.func @transform_2(%arg0: i32) -> (i32, i32) {
    %c0_i32 = arith.constant 0 : i32
    %c0_i32_0 = arith.constant 0 : i32
    %c0_i32_1 = arith.constant 0 : i32
    return %c0_i32, %c0_i32_0 : i32, i32
  }
  func.func @transform_3(%arg0: i32) -> (i32, i32) {
    %c0_i32 = arith.constant 0 : i32
    %c0_i32_0 = arith.constant 0 : i32
    %c0_i32_1 = arith.constant 0 : i32
    return %c0_i32, %c0_i32_0 : i32, i32
  }
  func.func @transform_4(%arg0: i32) -> (i32, i32) {
    %c0_i32 = arith.constant 0 : i32
    %c0_i32_0 = arith.constant 0 : i32
    %c0_i32_1 = arith.constant 0 : i32
    return %c0_i32, %c0_i32_0 : i32, i32
  }
}

module attributes {stable_mosaic.version = 11 : i64} {
  func.func @_core_kernel(%arg0: i32, %arg1: memref<2x2048xf32, #tpu.memory_space<vmem>>, %arg2: memref<2048x256xf32, #tpu.memory_space<vmem>>, %arg3: memref<256x100xf32, #tpu.memory_space<vmem>>, %arg4: memref<1x100xf32, #tpu.memory_space<vmem>>, %arg5: memref<100x16xf32, #tpu.memory_space<vmem>>, %arg6: memref<1x16xf32, #tpu.memory_space<vmem>>, %arg7: memref<16x100xf32, #tpu.memory_space<vmem>>, %arg8: memref<1x100xf32, #tpu.memory_space<vmem>>, %arg9: memref<100x256xf32, #tpu.memory_space<vmem>>, %arg10: memref<1x256xf32, #tpu.memory_space<vmem>>, %arg11: memref<256x2048xf32, #tpu.memory_space<vmem>>, %arg12: memref<1x128xf32, #tpu.memory_space<vmem>>, %arg13: memref<1x128xf32, #tpu.memory_space<vmem>>, %arg14: memref<2x2048xf32, #tpu.memory_space<vmem>>) attributes {dimension_semantics = [#tpu.dimension_semantics<arbitrary>], iteration_bounds = array<i64: 1>, scalar_prefetch = 0 : i64, scratch_operands = 0 : i64, tpu.core_type = #tpu.core_type<tc>, window_params = [{pipeline_mode = #tpu.pipeline_mode<synchronous>, transform_indices = @transform_0, window_bounds = array<i64: 2, 2048>}, {pipeline_mode = #tpu.pipeline_mode<synchronous>, transform_indices = @transform_1, window_bounds = array<i64: 2048, 256>}, {pipeline_mode = #tpu.pipeline_mode<synchronous>, transform_indices = @transform_2, window_bounds = array<i64: 256, 100>}, {pipeline_mode = #tpu.pipeline_mode<synchronous>, transform_indices = @transform_3, window_bounds = array<i64: 1, 100>}, {pipeline_mode = #tpu.pipeline_mode<synchronous>, transform_indices = @transform_4, window_bounds = array<i64: 100, 16>}, {pipeline_mode = #tpu.pipeline_mode<synchronous>, transform_indices = @transform_5, window_bounds = array<i64: 1, 16>}, {pipeline_mode = #tpu.pipeline_mode<synchronous>, transform_indices = @transform_6, window_bounds = array<i64: 16, 100>}, {pipeline_mode = #tpu.pipeline_mode<synchronous>, transform_indices = @transform_7, window_bounds = array<i64: 1, 100>}, {pipeline_mode = #tpu.pipeline_mode<synchronous>, transform_indices = @transform_8, window_bounds = array<i64: 100, 256>}, {pipeline_mode = #tpu.pipeline_mode<synchronous>, transform_indices = @transform_9, window_bounds = array<i64: 1, 256>}, {pipeline_mode = #tpu.pipeline_mode<synchronous>, transform_indices = @transform_10, window_bounds = array<i64: 256, 2048>}, {pipeline_mode = #tpu.pipeline_mode<synchronous>, transform_indices = @transform_11, window_bounds = array<i64: 1, 128>}, {pipeline_mode = #tpu.pipeline_mode<synchronous>, transform_indices = @transform_12, window_bounds = array<i64: 1, 128>}, {pipeline_mode = #tpu.pipeline_mode<synchronous>, transform_indices = @transform_13, window_bounds = array<i64: 2, 2048>}]} {
    %c0 = arith.constant 0 : index
    %c0_0 = arith.constant 0 : index
    %0 = vector.load %arg1[%c0, %c0_0] : memref<2x2048xf32, #tpu.memory_space<vmem>>, vector<2x2048xf32>
    %c0_1 = arith.constant 0 : index
    %c0_2 = arith.constant 0 : index
    %1 = vector.load %arg2[%c0_1, %c0_2] : memref<2048x256xf32, #tpu.memory_space<vmem>>, vector<2048x256xf32>
    %cst = arith.constant dense<0.000000e+00> : vector<2x256xf32>
    %2 = tpu.matmul %0, %1, %cst {dimension_numbers = #tpu.dot_dimension_numbers<[1], [0], [0], [1], [0, 0, 1, 1], [], []>} : vector<2x2048xf32>, vector<2048x256xf32>, vector<2x256xf32> -> vector<2x256xf32>
    %3 = arith.negf %2 : vector<2x256xf32>
    %4 = math.exp %3 : vector<2x256xf32>
    %cst_3 = arith.constant 1.000000e+00 : f32
    %5 = vector.broadcast %cst_3 : f32 to vector<2x256xf32>
    %6 = arith.addf %5, %4 : vector<2x256xf32>
    %7 = arith.divf %5, %6 : vector<2x256xf32>
    %c0_4 = arith.constant 0 : index
    %c0_5 = arith.constant 0 : index
    %8 = vector.load %arg3[%c0_4, %c0_5] : memref<256x100xf32, #tpu.memory_space<vmem>>, vector<256x100xf32>
    %cst_6 = arith.constant dense<0.000000e+00> : vector<2x100xf32>
    %9 = tpu.matmul %7, %8, %cst_6 {dimension_numbers = #tpu.dot_dimension_numbers<[1], [0], [0], [1], [0, 0, 1, 1], [], []>} : vector<2x256xf32>, vector<256x100xf32>, vector<2x100xf32> -> vector<2x100xf32>
    %c0_7 = arith.constant 0 : index
    %c0_8 = arith.constant 0 : index
    %10 = vector.load %arg4[%c0_7, %c0_8] : memref<1x100xf32, #tpu.memory_space<vmem>>, vector<1x100xf32>
    %11 = vector.broadcast %10 : vector<1x100xf32> to vector<2x100xf32>
    %12 = arith.addf %9, %11 : vector<2x100xf32>
    %cst_9 = arith.constant 0.000000e+00 : f32
    %13 = vector.broadcast %cst_9 : f32 to vector<2x100xf32>
    %14 = arith.maximumf %12, %13 : vector<2x100xf32>
    %c0_10 = arith.constant 0 : index
    %c0_11 = arith.constant 0 : index
    %15 = vector.load %arg5[%c0_10, %c0_11] : memref<100x16xf32, #tpu.memory_space<vmem>>, vector<100x16xf32>
    %cst_12 = arith.constant dense<0.000000e+00> : vector<2x16xf32>
    %16 = tpu.matmul %14, %15, %cst_12 {dimension_numbers = #tpu.dot_dimension_numbers<[1], [0], [0], [1], [0, 0, 1, 1], [], []>} : vector<2x100xf32>, vector<100x16xf32>, vector<2x16xf32> -> vector<2x16xf32>
    %c0_13 = arith.constant 0 : index
    %c0_14 = arith.constant 0 : index
    %17 = vector.load %arg6[%c0_13, %c0_14] : memref<1x16xf32, #tpu.memory_space<vmem>>, vector<1x16xf32>
    %18 = vector.broadcast %17 : vector<1x16xf32> to vector<2x16xf32>
    %19 = arith.addf %16, %18 : vector<2x16xf32>
    %c0_15 = arith.constant 0 : index
    %c0_16 = arith.constant 0 : index
    %20 = vector.load %arg7[%c0_15, %c0_16] : memref<16x100xf32, #tpu.memory_space<vmem>>, vector<16x100xf32>
    %cst_17 = arith.constant dense<0.000000e+00> : vector<2x100xf32>
    %21 = tpu.matmul %19, %20, %cst_17 {dimension_numbers = #tpu.dot_dimension_numbers<[1], [0], [0], [1], [0, 0, 1, 1], [], []>} : vector<2x16xf32>, vector<16x100xf32>, vector<2x100xf32> -> vector<2x100xf32>
    %c0_18 = arith.constant 0 : index
    %c0_19 = arith.constant 0 : index
    %22 = vector.load %arg8[%c0_18, %c0_19] : memref<1x100xf32, #tpu.memory_space<vmem>>, vector<1x100xf32>
    %23 = vector.broadcast %22 : vector<1x100xf32> to vector<2x100xf32>
    %24 = arith.addf %21, %23 : vector<2x100xf32>
    %cst_20 = arith.constant 0.000000e+00 : f32
    %25 = vector.broadcast %cst_20 : f32 to vector<2x100xf32>
    %26 = arith.maximumf %24, %25 : vector<2x100xf32>
    %c0_21 = arith.constant 0 : index
    %c0_22 = arith.constant 0 : index
    %27 = vector.load %arg9[%c0_21, %c0_22] : memref<100x256xf32, #tpu.memory_space<vmem>>, vector<100x256xf32>
    %cst_23 = arith.constant dense<0.000000e+00> : vector<2x256xf32>
    %28 = tpu.matmul %26, %27, %cst_23 {dimension_numbers = #tpu.dot_dimension_numbers<[1], [0], [0], [1], [0, 0, 1, 1], [], []>} : vector<2x100xf32>, vector<100x256xf32>, vector<2x256xf32> -> vector<2x256xf32>
    %c0_24 = arith.constant 0 : index
    %c0_25 = arith.constant 0 : index
    %29 = vector.load %arg10[%c0_24, %c0_25] : memref<1x256xf32, #tpu.memory_space<vmem>>, vector<1x256xf32>
    %30 = vector.broadcast %29 : vector<1x256xf32> to vector<2x256xf32>
    %31 = arith.addf %28, %30 : vector<2x256xf32>
    %32 = arith.negf %31 : vector<2x256xf32>
    %33 = math.exp %32 : vector<2x256xf32>
    %cst_26 = arith.constant 1.000000e+00 : f32
    %34 = vector.broadcast %cst_26 : f32 to vector<2x256xf32>
    %35 = arith.addf %34, %33 : vector<2x256xf32>
    %36 = arith.divf %34, %35 : vector<2x256xf32>
    %c0_27 = arith.constant 0 : index
    %c0_28 = arith.constant 0 : index
    %37 = vector.load %arg11[%c0_27, %c0_28] : memref<256x2048xf32, #tpu.memory_space<vmem>>, vector<256x2048xf32>
    %cst_29 = arith.constant dense<0.000000e+00> : vector<2x2048xf32>
    %38 = tpu.matmul %36, %37, %cst_29 {dimension_numbers = #tpu.dot_dimension_numbers<[1], [0], [0], [1], [0, 0, 1, 1], [], []>} : vector<2x256xf32>, vector<256x2048xf32>, vector<2x2048xf32> -> vector<2x2048xf32>
    %c0_30 = arith.constant 0 : index
    %c0_31 = arith.constant 0 : index
    %39 = vector.load %arg12[%c0_30, %c0_31] : memref<1x128xf32, #tpu.memory_space<vmem>>, vector<1x128xf32>
    %c0_32 = arith.constant 0 : index
    %c0_33 = arith.constant 0 : index
    %40 = vector.load %arg13[%c0_32, %c0_33] : memref<1x128xf32, #tpu.memory_space<vmem>>, vector<1x128xf32>
    %41 = vector.extract_strided_slice %38 {offsets = [0, 0], sizes = [2, 128], strides = [1, 1]} : vector<2x2048xf32> to vector<2x128xf32>
    %42 = vector.extract_strided_slice %38 {offsets = [0, 128], sizes = [2, 128], strides = [1, 1]} : vector<2x2048xf32> to vector<2x128xf32>
    %43 = arith.addf %41, %42 : vector<2x128xf32>
    %44 = vector.extract_strided_slice %38 {offsets = [0, 256], sizes = [2, 128], strides = [1, 1]} : vector<2x2048xf32> to vector<2x128xf32>
    %45 = arith.addf %43, %44 : vector<2x128xf32>
    %46 = vector.extract_strided_slice %38 {offsets = [0, 384], sizes = [2, 128], strides = [1, 1]} : vector<2x2048xf32> to vector<2x128xf32>
    %47 = arith.addf %45, %46 : vector<2x128xf32>
    %48 = vector.extract_strided_slice %38 {offsets = [0, 512], sizes = [2, 128], strides = [1, 1]} : vector<2x2048xf32> to vector<2x128xf32>
    %49 = arith.addf %47, %48 : vector<2x128xf32>
    %50 = vector.extract_strided_slice %38 {offsets = [0, 640], sizes = [2, 128], strides = [1, 1]} : vector<2x2048xf32> to vector<2x128xf32>
    %51 = arith.addf %49, %50 : vector<2x128xf32>
    %52 = vector.extract_strided_slice %38 {offsets = [0, 768], sizes = [2, 128], strides = [1, 1]} : vector<2x2048xf32> to vector<2x128xf32>
    %53 = arith.addf %51, %52 : vector<2x128xf32>
    %54 = vector.extract_strided_slice %38 {offsets = [0, 896], sizes = [2, 128], strides = [1, 1]} : vector<2x2048xf32> to vector<2x128xf32>
    %55 = arith.addf %53, %54 : vector<2x128xf32>
    %56 = vector.extract_strided_slice %38 {offsets = [0, 1024], sizes = [2, 128], strides = [1, 1]} : vector<2x2048xf32> to vector<2x128xf32>
    %57 = arith.addf %55, %56 : vector<2x128xf32>
    %58 = vector.extract_strided_slice %38 {offsets = [0, 1152], sizes = [2, 128], strides = [1, 1]} : vector<2x2048xf32> to vector<2x128xf32>
    %59 = arith.addf %57, %58 : vector<2x128xf32>
    %60 = vector.extract_strided_slice %38 {offsets = [0, 1280], sizes = [2, 128], strides = [1, 1]} : vector<2x2048xf32> to vector<2x128xf32>
    %61 = arith.addf %59, %60 : vector<2x128xf32>
    %62 = vector.extract_strided_slice %38 {offsets = [0, 1408], sizes = [2, 128], strides = [1, 1]} : vector<2x2048xf32> to vector<2x128xf32>
    %63 = arith.addf %61, %62 : vector<2x128xf32>
    %64 = vector.extract_strided_slice %38 {offsets = [0, 1536], sizes = [2, 128], strides = [1, 1]} : vector<2x2048xf32> to vector<2x128xf32>
    %65 = arith.addf %63, %64 : vector<2x128xf32>
    %66 = vector.extract_strided_slice %38 {offsets = [0, 1664], sizes = [2, 128], strides = [1, 1]} : vector<2x2048xf32> to vector<2x128xf32>
    %67 = arith.addf %65, %66 : vector<2x128xf32>
    %68 = vector.extract_strided_slice %38 {offsets = [0, 1792], sizes = [2, 128], strides = [1, 1]} : vector<2x2048xf32> to vector<2x128xf32>
    %69 = arith.addf %67, %68 : vector<2x128xf32>
    %70 = vector.extract_strided_slice %38 {offsets = [0, 1920], sizes = [2, 128], strides = [1, 1]} : vector<2x2048xf32> to vector<2x128xf32>
    %71 = arith.addf %69, %70 : vector<2x128xf32>
    %cst_34 = arith.constant dense<0.000000e+00> : vector<128xf32>
    %72 = vector.multi_reduction <add>, %71, %cst_34 [0] : vector<2x128xf32> to vector<128xf32>
    %73 = vector.shape_cast %72 : vector<128xf32> to vector<1x128xf32>
    %cst_35 = arith.constant 3.125000e-02 : f32
    %74 = vector.broadcast %cst_35 : f32 to vector<1x128xf32>
    %75 = arith.mulf %73, %74 : vector<1x128xf32>
    %76 = tpu.concatenate %75, %75, %75, %75, %75, %75, %75, %75, %75, %75, %75, %75, %75, %75, %75, %75 in 1 : vector<1x128xf32>, vector<1x128xf32>, vector<1x128xf32>, vector<1x128xf32>, vector<1x128xf32>, vector<1x128xf32>, vector<1x128xf32>, vector<1x128xf32>, vector<1x128xf32>, vector<1x128xf32>, vector<1x128xf32>, vector<1x128xf32>, vector<1x128xf32>, vector<1x128xf32>, vector<1x128xf32>, vector<1x128xf32> -> vector<1x2048xf32>
    %77 = vector.broadcast %76 : vector<1x2048xf32> to vector<2x2048xf32>
    %78 = arith.subf %38, %77 : vector<2x2048xf32>
    %79 = arith.mulf %78, %78 : vector<2x2048xf32>
    %80 = vector.extract_strided_slice %79 {offsets = [0, 0], sizes = [2, 128], strides = [1, 1]} : vector<2x2048xf32> to vector<2x128xf32>
    %81 = vector.extract_strided_slice %79 {offsets = [0, 128], sizes = [2, 128], strides = [1, 1]} : vector<2x2048xf32> to vector<2x128xf32>
    %82 = arith.addf %80, %81 : vector<2x128xf32>
    %83 = vector.extract_strided_slice %79 {offsets = [0, 256], sizes = [2, 128], strides = [1, 1]} : vector<2x2048xf32> to vector<2x128xf32>
    %84 = arith.addf %82, %83 : vector<2x128xf32>
    %85 = vector.extract_strided_slice %79 {offsets = [0, 384], sizes = [2, 128], strides = [1, 1]} : vector<2x2048xf32> to vector<2x128xf32>
    %86 = arith.addf %84, %85 : vector<2x128xf32>
    %87 = vector.extract_strided_slice %79 {offsets = [0, 512], sizes = [2, 128], strides = [1, 1]} : vector<2x2048xf32> to vector<2x128xf32>
    %88 = arith.addf %86, %87 : vector<2x128xf32>
    %89 = vector.extract_strided_slice %79 {offsets = [0, 640], sizes = [2, 128], strides = [1, 1]} : vector<2x2048xf32> to vector<2x128xf32>
    %90 = arith.addf %88, %89 : vector<2x128xf32>
    %91 = vector.extract_strided_slice %79 {offsets = [0, 768], sizes = [2, 128], strides = [1, 1]} : vector<2x2048xf32> to vector<2x128xf32>
    %92 = arith.addf %90, %91 : vector<2x128xf32>
    %93 = vector.extract_strided_slice %79 {offsets = [0, 896], sizes = [2, 128], strides = [1, 1]} : vector<2x2048xf32> to vector<2x128xf32>
    %94 = arith.addf %92, %93 : vector<2x128xf32>
    %95 = vector.extract_strided_slice %79 {offsets = [0, 1024], sizes = [2, 128], strides = [1, 1]} : vector<2x2048xf32> to vector<2x128xf32>
    %96 = arith.addf %94, %95 : vector<2x128xf32>
    %97 = vector.extract_strided_slice %79 {offsets = [0, 1152], sizes = [2, 128], strides = [1, 1]} : vector<2x2048xf32> to vector<2x128xf32>
    %98 = arith.addf %96, %97 : vector<2x128xf32>
    %99 = vector.extract_strided_slice %79 {offsets = [0, 1280], sizes = [2, 128], strides = [1, 1]} : vector<2x2048xf32> to vector<2x128xf32>
    %100 = arith.addf %98, %99 : vector<2x128xf32>
    %101 = vector.extract_strided_slice %79 {offsets = [0, 1408], sizes = [2, 128], strides = [1, 1]} : vector<2x2048xf32> to vector<2x128xf32>
    %102 = arith.addf %100, %101 : vector<2x128xf32>
    %103 = vector.extract_strided_slice %79 {offsets = [0, 1536], sizes = [2, 128], strides = [1, 1]} : vector<2x2048xf32> to vector<2x128xf32>
    %104 = arith.addf %102, %103 : vector<2x128xf32>
    %105 = vector.extract_strided_slice %79 {offsets = [0, 1664], sizes = [2, 128], strides = [1, 1]} : vector<2x2048xf32> to vector<2x128xf32>
    %106 = arith.addf %104, %105 : vector<2x128xf32>
    %107 = vector.extract_strided_slice %79 {offsets = [0, 1792], sizes = [2, 128], strides = [1, 1]} : vector<2x2048xf32> to vector<2x128xf32>
    %108 = arith.addf %106, %107 : vector<2x128xf32>
    %109 = vector.extract_strided_slice %79 {offsets = [0, 1920], sizes = [2, 128], strides = [1, 1]} : vector<2x2048xf32> to vector<2x128xf32>
    %110 = arith.addf %108, %109 : vector<2x128xf32>
    %cst_36 = arith.constant dense<0.000000e+00> : vector<128xf32>
    %111 = vector.multi_reduction <add>, %110, %cst_36 [0] : vector<2x128xf32> to vector<128xf32>
    %112 = vector.shape_cast %111 : vector<128xf32> to vector<1x128xf32>
    %cst_37 = arith.constant 3.125000e-02 : f32
    %113 = vector.broadcast %cst_37 : f32 to vector<1x128xf32>
    %114 = arith.mulf %112, %113 : vector<1x128xf32>
    %cst_38 = arith.constant 9.99999974E-6 : f32
    %115 = vector.broadcast %cst_38 : f32 to vector<1x128xf32>
    %116 = arith.addf %114, %115 : vector<1x128xf32>
    %117 = math.rsqrt %116 : vector<1x128xf32>
    %118 = arith.mulf %39, %117 : vector<1x128xf32>
    %119 = tpu.concatenate %118, %118, %118, %118, %118, %118, %118, %118, %118, %118, %118, %118, %118, %118, %118, %118 in 1 : vector<1x128xf32>, vector<1x128xf32>, vector<1x128xf32>, vector<1x128xf32>, vector<1x128xf32>, vector<1x128xf32>, vector<1x128xf32>, vector<1x128xf32>, vector<1x128xf32>, vector<1x128xf32>, vector<1x128xf32>, vector<1x128xf32>, vector<1x128xf32>, vector<1x128xf32>, vector<1x128xf32>, vector<1x128xf32> -> vector<1x2048xf32>
    %120 = vector.broadcast %119 : vector<1x2048xf32> to vector<2x2048xf32>
    %121 = arith.mulf %78, %120 : vector<2x2048xf32>
    %122 = tpu.concatenate %40, %40, %40, %40, %40, %40, %40, %40, %40, %40, %40, %40, %40, %40, %40, %40 in 1 : vector<1x128xf32>, vector<1x128xf32>, vector<1x128xf32>, vector<1x128xf32>, vector<1x128xf32>, vector<1x128xf32>, vector<1x128xf32>, vector<1x128xf32>, vector<1x128xf32>, vector<1x128xf32>, vector<1x128xf32>, vector<1x128xf32>, vector<1x128xf32>, vector<1x128xf32>, vector<1x128xf32>, vector<1x128xf32> -> vector<1x2048xf32>
    %123 = vector.broadcast %122 : vector<1x2048xf32> to vector<2x2048xf32>
    %124 = arith.addf %121, %123 : vector<2x2048xf32>
    %cst_39 = arith.constant 0.000000e+00 : f32
    %125 = vector.broadcast %cst_39 : f32 to vector<2x2048xf32>
    %126 = arith.maximumf %124, %125 : vector<2x2048xf32>
    %c0_40 = arith.constant 0 : index
    %c0_41 = arith.constant 0 : index
    %127 = vector.load %arg14[%c0_40, %c0_41] : memref<2x2048xf32, #tpu.memory_space<vmem>>, vector<2x2048xf32>
    tpu.vector_store %arg14[%c0_40, %c0_41], %126 {strides = array<i32>} : memref<2x2048xf32, #tpu.memory_space<vmem>>, vector<2x2048xf32>,
    return
  }
  func.func @transform_0(%arg0: i32) -> (i32, i32) {
    %c0_i32 = arith.constant 0 : i32
    %c0_i32_0 = arith.constant 0 : i32
    %c0_i32_1 = arith.constant 0 : i32
    return %c0_i32, %c0_i32_0 : i32, i32
  }
  func.func @transform_1(%arg0: i32) -> (i32, i32) {
    %c0_i32 = arith.constant 0 : i32
    %c0_i32_0 = arith.constant 0 : i32
    %c0_i32_1 = arith.constant 0 : i32
    return %c0_i32, %c0_i32_0 : i32, i32
  }
  func.func @transform_2(%arg0: i32) -> (i32, i32) {
    %c0_i32 = arith.constant 0 : i32
    %c0_i32_0 = arith.constant 0 : i32
    %c0_i32_1 = arith.constant 0 : i32
    return %c0_i32, %c0_i32_0 : i32, i32
  }
  func.func @transform_3(%arg0: i32) -> (i32, i32) {
    %c0_i32 = arith.constant 0 : i32
    %c0_i32_0 = arith.constant 0 : i32
    %c0_i32_1 = arith.constant 0 : i32
    return %c0_i32, %c0_i32_0 : i32, i32
  }
  func.func @transform_4(%arg0: i32) -> (i32, i32) {
    %c0_i32 = arith.constant 0 : i32
    %c0_i32_0 = arith.constant 0 : i32
    %c0_i32_1 = arith.constant 0 : i32
    return %c0_i32, %c0_i32_0 : i32, i32
  }
  func.func @transform_5(%arg0: i32) -> (i32, i32) {
    %c0_i32 = arith.constant 0 : i32
    %c0_i32_0 = arith.constant 0 : i32
    %c0_i32_1 = arith.constant 0 : i32
    return %c0_i32, %c0_i32_0 : i32, i32
  }
  func.func @transform_6(%arg0: i32) -> (i32, i32) {
    %c0_i32 = arith.constant 0 : i32
    %c0_i32_0 = arith.constant 0 : i32
    %c0_i32_1 = arith.constant 0 : i32
    return %c0_i32, %c0_i32_0 : i32, i32
  }
  func.func @transform_7(%arg0: i32) -> (i32, i32) {
    %c0_i32 = arith.constant 0 : i32
    %c0_i32_0 = arith.constant 0 : i32
    %c0_i32_1 = arith.constant 0 : i32
    return %c0_i32, %c0_i32_0 : i32, i32
  }
  func.func @transform_8(%arg0: i32) -> (i32, i32) {
    %c0_i32 = arith.constant 0 : i32
    %c0_i32_0 = arith.constant 0 : i32
    %c0_i32_1 = arith.constant 0 : i32
    return %c0_i32, %c0_i32_0 : i32, i32
  }
  func.func @transform_9(%arg0: i32) -> (i32, i32) {
    %c0_i32 = arith.constant 0 : i32
    %c0_i32_0 = arith.constant 0 : i32
    %c0_i32_1 = arith.constant 0 : i32
    return %c0_i32, %c0_i32_0 : i32, i32
  }
  func.func @transform_10(%arg0: i32) -> (i32, i32) {
    %c0_i32 = arith.constant 0 : i32
    %c0_i32_0 = arith.constant 0 : i32
    %c0_i32_1 = arith.constant 0 : i32
    return %c0_i32, %c0_i32_0 : i32, i32
  }
  func.func @transform_11(%arg0: i32) -> (i32, i32) {
    %c0_i32 = arith.constant 0 : i32
    %c0_i32_0 = arith.constant 0 : i32
    %c0_i32_1 = arith.constant 0 : i32
    return %c0_i32, %c0_i32_0 : i32, i32
  }
  func.func @transform_12(%arg0: i32) -> (i32, i32) {
    %c0_i32 = arith.constant 0 : i32
    %c0_i32_0 = arith.constant 0 : i32
    %c0_i32_1 = arith.constant 0 : i32
    return %c0_i32, %c0_i32_0 : i32, i32
  }
  func.func @transform_13(%arg0: i32) -> (i32, i32) {
    %c0_i32 = arith.constant 0 : i32
    %c0_i32_0 = arith.constant 0 : i32
    %c0_i32_1 = arith.constant 0 : i32
    return %c0_i32, %c0_i32_0 : i32, i32
  }
}

module attributes {stable_mosaic.version = 11 : i64} {
  func.func @_mm_bn_act_kernel(%arg0: i32, %arg1: memref<128x576xf32, #tpu.memory_space<vmem>>, %arg2: memref<576x128xf32, #tpu.memory_space<vmem>>, %arg3: memref<1x32xf32, #tpu.memory_space<vmem>>, %arg4: memref<1x32xf32, #tpu.memory_space<vmem>>, %arg5: memref<128x128xf32, #tpu.memory_space<vmem>>) attributes {dimension_semantics = [#tpu.dimension_semantics<arbitrary>], iteration_bounds = array<i64: 1>, scalar_prefetch = 0 : i64, scratch_operands = 0 : i64, tpu.core_type = #tpu.core_type<tc>, window_params = [{pipeline_mode = #tpu.pipeline_mode<synchronous>, transform_indices = @transform_0, window_bounds = array<i64: 128, 576>}, {pipeline_mode = #tpu.pipeline_mode<synchronous>, transform_indices = @transform_1, window_bounds = array<i64: 576, 128>}, {pipeline_mode = #tpu.pipeline_mode<synchronous>, transform_indices = @transform_2, window_bounds = array<i64: 1, 32>}, {pipeline_mode = #tpu.pipeline_mode<synchronous>, transform_indices = @transform_3, window_bounds = array<i64: 1, 32>}, {pipeline_mode = #tpu.pipeline_mode<synchronous>, transform_indices = @transform_4, window_bounds = array<i64: 128, 128>}]} {
    %c0 = arith.constant 0 : index
    %c0_0 = arith.constant 0 : index
    %0 = vector.load %arg1[%c0, %c0_0] : memref<128x576xf32, #tpu.memory_space<vmem>>, vector<128x576xf32>
    %c0_1 = arith.constant 0 : index
    %c0_2 = arith.constant 0 : index
    %1 = vector.load %arg2[%c0_1, %c0_2] : memref<576x128xf32, #tpu.memory_space<vmem>>, vector<576x128xf32>
    %cst = arith.constant dense<0.000000e+00> : vector<128x128xf32>
    %2 = tpu.matmul %0, %1, %cst {dimension_numbers = #tpu.dot_dimension_numbers<[1], [0], [0], [1], [0, 0, 1, 1], [], []>} : vector<128x576xf32>, vector<576x128xf32>, vector<128x128xf32> -> vector<128x128xf32>
    %c0_3 = arith.constant 0 : index
    %c0_4 = arith.constant 0 : index
    %3 = vector.load %arg3[%c0_3, %c0_4] : memref<1x32xf32, #tpu.memory_space<vmem>>, vector<1x32xf32>
    %c0_5 = arith.constant 0 : index
    %c0_6 = arith.constant 0 : index
    %4 = vector.load %arg4[%c0_5, %c0_6] : memref<1x32xf32, #tpu.memory_space<vmem>>, vector<1x32xf32>
    %5 = vector.extract_strided_slice %2 {offsets = [0, 0], sizes = [128, 32], strides = [1, 1]} : vector<128x128xf32> to vector<128x32xf32>
    %6 = vector.extract_strided_slice %2 {offsets = [0, 32], sizes = [128, 32], strides = [1, 1]} : vector<128x128xf32> to vector<128x32xf32>
    %7 = arith.addf %5, %6 : vector<128x32xf32>
    %8 = vector.extract_strided_slice %2 {offsets = [0, 64], sizes = [128, 32], strides = [1, 1]} : vector<128x128xf32> to vector<128x32xf32>
    %9 = arith.addf %7, %8 : vector<128x32xf32>
    %10 = vector.extract_strided_slice %2 {offsets = [0, 96], sizes = [128, 32], strides = [1, 1]} : vector<128x128xf32> to vector<128x32xf32>
    %11 = arith.addf %9, %10 : vector<128x32xf32>
    %cst_7 = arith.constant dense<0.000000e+00> : vector<32xf32>
    %12 = vector.multi_reduction <add>, %11, %cst_7 [0] : vector<128x32xf32> to vector<32xf32>
    %13 = vector.shape_cast %12 : vector<32xf32> to vector<1x32xf32>
    %cst_8 = arith.constant 0.001953125 : f32
    %14 = vector.broadcast %cst_8 : f32 to vector<1x32xf32>
    %15 = arith.mulf %13, %14 : vector<1x32xf32>
    %16 = tpu.concatenate %15, %15, %15, %15 in 1 : vector<1x32xf32>, vector<1x32xf32>, vector<1x32xf32>, vector<1x32xf32> -> vector<1x128xf32>
    %17 = vector.broadcast %16 : vector<1x128xf32> to vector<128x128xf32>
    %18 = arith.subf %2, %17 : vector<128x128xf32>
    %19 = arith.mulf %18, %18 : vector<128x128xf32>
    %20 = vector.extract_strided_slice %19 {offsets = [0, 0], sizes = [128, 32], strides = [1, 1]} : vector<128x128xf32> to vector<128x32xf32>
    %21 = vector.extract_strided_slice %19 {offsets = [0, 32], sizes = [128, 32], strides = [1, 1]} : vector<128x128xf32> to vector<128x32xf32>
    %22 = arith.addf %20, %21 : vector<128x32xf32>
    %23 = vector.extract_strided_slice %19 {offsets = [0, 64], sizes = [128, 32], strides = [1, 1]} : vector<128x128xf32> to vector<128x32xf32>
    %24 = arith.addf %22, %23 : vector<128x32xf32>
    %25 = vector.extract_strided_slice %19 {offsets = [0, 96], sizes = [128, 32], strides = [1, 1]} : vector<128x128xf32> to vector<128x32xf32>
    %26 = arith.addf %24, %25 : vector<128x32xf32>
    %cst_9 = arith.constant dense<0.000000e+00> : vector<32xf32>
    %27 = vector.multi_reduction <add>, %26, %cst_9 [0] : vector<128x32xf32> to vector<32xf32>
    %28 = vector.shape_cast %27 : vector<32xf32> to vector<1x32xf32>
    %cst_10 = arith.constant 0.001953125 : f32
    %29 = vector.broadcast %cst_10 : f32 to vector<1x32xf32>
    %30 = arith.mulf %28, %29 : vector<1x32xf32>
    %cst_11 = arith.constant 9.99999974E-6 : f32
    %31 = vector.broadcast %cst_11 : f32 to vector<1x32xf32>
    %32 = arith.addf %30, %31 : vector<1x32xf32>
    %33 = math.rsqrt %32 : vector<1x32xf32>
    %34 = arith.mulf %3, %33 : vector<1x32xf32>
    %35 = tpu.concatenate %34, %34, %34, %34 in 1 : vector<1x32xf32>, vector<1x32xf32>, vector<1x32xf32>, vector<1x32xf32> -> vector<1x128xf32>
    %36 = vector.broadcast %35 : vector<1x128xf32> to vector<128x128xf32>
    %37 = arith.mulf %18, %36 : vector<128x128xf32>
    %38 = tpu.concatenate %4, %4, %4, %4 in 1 : vector<1x32xf32>, vector<1x32xf32>, vector<1x32xf32>, vector<1x32xf32> -> vector<1x128xf32>
    %39 = vector.broadcast %38 : vector<1x128xf32> to vector<128x128xf32>
    %40 = arith.addf %37, %39 : vector<128x128xf32>
    %cst_12 = arith.constant 0.000000e+00 : f32
    %41 = vector.broadcast %cst_12 : f32 to vector<128x128xf32>
    %42 = arith.maximumf %40, %41 : vector<128x128xf32>
    %c0_13 = arith.constant 0 : index
    %c0_14 = arith.constant 0 : index
    %43 = vector.load %arg5[%c0_13, %c0_14] : memref<128x128xf32, #tpu.memory_space<vmem>>, vector<128x128xf32>
    tpu.vector_store %arg5[%c0_13, %c0_14], %42 {strides = array<i32>} : memref<128x128xf32, #tpu.memory_space<vmem>>, vector<128x128xf32>,
    return
  }
  func.func @transform_0(%arg0: i32) -> (i32, i32) {
    %c0_i32 = arith.constant 0 : i32
    %c0_i32_0 = arith.constant 0 : i32
    %c0_i32_1 = arith.constant 0 : i32
    return %c0_i32, %c0_i32_0 : i32, i32
  }
  func.func @transform_1(%arg0: i32) -> (i32, i32) {
    %c0_i32 = arith.constant 0 : i32
    %c0_i32_0 = arith.constant 0 : i32
    %c0_i32_1 = arith.constant 0 : i32
    return %c0_i32, %c0_i32_0 : i32, i32
  }
  func.func @transform_2(%arg0: i32) -> (i32, i32) {
    %c0_i32 = arith.constant 0 : i32
    %c0_i32_0 = arith.constant 0 : i32
    %c0_i32_1 = arith.constant 0 : i32
    return %c0_i32, %c0_i32_0 : i32, i32
  }
  func.func @transform_3(%arg0: i32) -> (i32, i32) {
    %c0_i32 = arith.constant 0 : i32
    %c0_i32_0 = arith.constant 0 : i32
    %c0_i32_1 = arith.constant 0 : i32
    return %c0_i32, %c0_i32_0 : i32, i32
  }
  func.func @transform_4(%arg0: i32) -> (i32, i32) {
    %c0_i32 = arith.constant 0 : i32
    %c0_i32_0 = arith.constant 0 : i32
    %c0_i32_1 = arith.constant 0 : i32
    return %c0_i32, %c0_i32_0 : i32, i32
  }
}

module attributes {stable_mosaic.version = 11 : i64} {
  func.func @_mm_act_kernel(%arg0: i32, %arg1: memref<512x288xf32, #tpu.memory_space<vmem>>, %arg2: memref<288x12xf32, #tpu.memory_space<vmem>>, %arg3: memref<512x12xf32, #tpu.memory_space<vmem>>) attributes {dimension_semantics = [#tpu.dimension_semantics<arbitrary>], iteration_bounds = array<i64: 1>, scalar_prefetch = 0 : i64, scratch_operands = 0 : i64, tpu.core_type = #tpu.core_type<tc>, window_params = [{pipeline_mode = #tpu.pipeline_mode<synchronous>, transform_indices = @transform_0, window_bounds = array<i64: 512, 288>}, {pipeline_mode = #tpu.pipeline_mode<synchronous>, transform_indices = @transform_1, window_bounds = array<i64: 288, 12>}, {pipeline_mode = #tpu.pipeline_mode<synchronous>, transform_indices = @transform_2, window_bounds = array<i64: 512, 12>}]} {
    %c0 = arith.constant 0 : index
    %c0_0 = arith.constant 0 : index
    %0 = vector.load %arg1[%c0, %c0_0] : memref<512x288xf32, #tpu.memory_space<vmem>>, vector<512x288xf32>
    %c0_1 = arith.constant 0 : index
    %c0_2 = arith.constant 0 : index
    %1 = vector.load %arg2[%c0_1, %c0_2] : memref<288x12xf32, #tpu.memory_space<vmem>>, vector<288x12xf32>
    %cst = arith.constant dense<0.000000e+00> : vector<512x12xf32>
    %2 = tpu.matmul %0, %1, %cst {dimension_numbers = #tpu.dot_dimension_numbers<[1], [0], [0], [1], [0, 0, 1, 1], [], []>} : vector<512x288xf32>, vector<288x12xf32>, vector<512x12xf32> -> vector<512x12xf32>
    %3 = arith.negf %2 : vector<512x12xf32>
    %4 = math.exp %3 : vector<512x12xf32>
    %cst_3 = arith.constant 1.000000e+00 : f32
    %5 = vector.broadcast %cst_3 : f32 to vector<512x12xf32>
    %6 = arith.addf %5, %4 : vector<512x12xf32>
    %7 = arith.divf %5, %6 : vector<512x12xf32>
    %c0_4 = arith.constant 0 : index
    %c0_5 = arith.constant 0 : index
    %8 = vector.load %arg3[%c0_4, %c0_5] : memref<512x12xf32, #tpu.memory_space<vmem>>, vector<512x12xf32>
    tpu.vector_store %arg3[%c0_4, %c0_5], %7 {strides = array<i32>} : memref<512x12xf32, #tpu.memory_space<vmem>>, vector<512x12xf32>,
    return
  }
  func.func @transform_0(%arg0: i32) -> (i32, i32) {
    %c0_i32 = arith.constant 0 : i32
    %c0_i32_0 = arith.constant 0 : i32
    %c0_i32_1 = arith.constant 0 : i32
    return %c0_i32, %c0_i32_0 : i32, i32
  }
  func.func @transform_1(%arg0: i32) -> (i32, i32) {
    %c0_i32 = arith.constant 0 : i32
    %c0_i32_0 = arith.constant 0 : i32
    %c0_i32_1 = arith.constant 0 : i32
    return %c0_i32, %c0_i32_0 : i32, i32
  }
  func.func @transform_2(%arg0: i32) -> (i32, i32) {
    %c0_i32 = arith.constant 0 : i32
    %c0_i32_0 = arith.constant 0 : i32
    %c0_i32_1 = arith.constant 0 : i32
    return %c0_i32, %c0_i32_0 : i32, i32
  }
}

</mosaic_0001>

<llo_original>
// kernel: ae_vine2_forward.7
$region0: #{ae_vine2_forward.7}
  #allocation0 [shape = 'u32[]', space=smem, size = 0x4, offset = 0x4, fixed_abs, tag = 'smem constant byte address 0x4 - core index']
  #allocation1 [shape = 'u32[144,128]{1,0:T(1,128)}', space=vmem, size = 0x12000, scoped, tag = 'internal scratch']
  %s0 = inlined_call_operand.vmem [shape: f32[512,48], index: 0, kind: input, shape index: {}]
  %s1 = inlined_call_operand.vmem [shape: f32[48,32], index: 1, kind: input, shape index: {}]
  %s2 = inlined_call_operand.vmem [shape: f32[512,32], index: 2, kind: output, shape index: {}]
  %s3 = sld [smem:[#allocation0]]
  $region18: #{ae_vine2_forward.7} parent=0
    _
  %s5 = ssub.s32 1, %s3
  %s6 = scalar_select 0, %s5, %s3
  // Predicated region
  $region2: #{ae_vine2_forward.7} parent=0 // pred_check
    _
  $region3: #{ae_vine2_forward.7} parent=0 // pred_check_branch
    %8 = sbr.rel (0) target = $region5
  $region4: #{ae_vine2_forward.7} parent=0 // pred_region
    _
  $region5: #{ae_vine2_forward.7} parent=0 // pred_fallthru
    _
  // Predicated region
  $region6: #{ae_vine2_forward.7} parent=0 // pred_check
    _
  $region7: #{ae_vine2_forward.7} parent=0 // pred_check_branch
    %10 = sbr.rel (0) target = $region9
  $region8: #{ae_vine2_forward.7} parent=0 // pred_region
    _
  $region9: #{ae_vine2_forward.7} parent=0 // pred_fallthru
    _
  %v11 = vld [vmem:[%s0] sm:$0xff]
  %v12 = vld [vmem:[%s0 + $0x8] sm:$0xff]
  %v13 = vld [vmem:[%s0 + $0x10] sm:$0xff]
  %v14 = vld [vmem:[%s0 + $0x18] sm:$0xff]
  %v15 = vld [vmem:[%s0 + $0x20] sm:$0xff]
  %v16 = vld [vmem:[%s0 + $0x28] sm:$0xff]
  %v17 = vld [vmem:[%s0 + $0x30] sm:$0xff]
  %v18 = vld [vmem:[%s0 + $0x38] sm:$0xff]
  %v19 = vld [vmem:[%s0 + $0x40] sm:$0xff]
  %v20 = vld [vmem:[%s0 + $0x48] sm:$0xff]
  %v21 = vld [vmem:[%s0 + $0x50] sm:$0xff]
  %v22 = vld [vmem:[%s0 + $0x58] sm:$0xff]
  %v23 = vld [vmem:[%s0 + $0x60] sm:$0xff]
  %v24 = vld [vmem:[%s0 + $0x68] sm:$0xff]
  %v25 = vld [vmem:[%s0 + $0x70] sm:$0xff]
  %v26 = vld [vmem:[%s0 + $0x78] sm:$0xff]
  %v27 = vld [vmem:[%s0 + $0x80] sm:$0xff]
  %v28 = vld [vmem:[%s0 + $0x88] sm:$0xff]
  %v29 = vld [vmem:[%s0 + $0x90] sm:$0xff]
  %v30 = vld [vmem:[%s0 + $0x98] sm:$0xff]
  %v31 = vld [vmem:[%s0 + $0xa0] sm:$0xff]
  %v32 = vld [vmem:[%s0 + $0xa8] sm:$0xff]
  %v33 = vld [vmem:[%s0 + $0xb0] sm:$0xff]
  %v34 = vld [vmem:[%s0 + $0xb8] sm:$0xff]
  %v35 = vld [vmem:[%s0 + $0xc0] sm:$0xff]
  %v36 = vld [vmem:[%s0 + $0xc8] sm:$0xff]
  %v37 = vld [vmem:[%s0 + $0xd0] sm:$0xff]
  %v38 = vld [vmem:[%s0 + $0xd8] sm:$0xff]
  %v39 = vld [vmem:[%s0 + $0xe0] sm:$0xff]
  %v40 = vld [vmem:[%s0 + $0xe8] sm:$0xff]
  %v41 = vld [vmem:[%s0 + $0xf0] sm:$0xff]
  %v42 = vld [vmem:[%s0 + $0xf8] sm:$0xff]
  %v43 = vld [vmem:[%s0 + $0x100] sm:$0xff]
  %v44 = vld [vmem:[%s0 + $0x108] sm:$0xff]
  %v45 = vld [vmem:[%s0 + $0x110] sm:$0xff]
  %v46 = vld [vmem:[%s0 + $0x118] sm:$0xff]
  %v47 = vld [vmem:[%s0 + $0x120] sm:$0xff]
  %v48 = vld [vmem:[%s0 + $0x128] sm:$0xff]
  %v49 = vld [vmem:[%s0 + $0x130] sm:$0xff]
  %v50 = vld [vmem:[%s0 + $0x138] sm:$0xff]
  %v51 = vld [vmem:[%s0 + $0x140] sm:$0xff]
  %v52 = vld [vmem:[%s0 + $0x148] sm:$0xff]
  %v53 = vld [vmem:[%s0 + $0x150] sm:$0xff]
  %v54 = vld [vmem:[%s0 + $0x158] sm:$0xff]
  %v55 = vld [vmem:[%s0 + $0x160] sm:$0xff]
  %v56 = vld [vmem:[%s0 + $0x168] sm:$0xff]
  %v57 = vld [vmem:[%s0 + $0x170] sm:$0xff]
  %v58 = vld [vmem:[%s0 + $0x178] sm:$0xff]
  %v59 = vld [vmem:[%s0 + $0x180] sm:$0xff]
  %v60 = vld [vmem:[%s0 + $0x188] sm:$0xff]
  %v61 = vld [vmem:[%s0 + $0x190] sm:$0xff]
  %v62 = vld [vmem:[%s0 + $0x198] sm:$0xff]
  %v63 = vld [vmem:[%s0 + $0x1a0] sm:$0xff]
  %v64 = vld [vmem:[%s0 + $0x1a8] sm:$0xff]
  %v65 = vld [vmem:[%s0 + $0x1b0] sm:$0xff]
  %v66 = vld [vmem:[%s0 + $0x1b8] sm:$0xff]
  %v67 = vld [vmem:[%s0 + $0x1c0] sm:$0xff]
  %v68 = vld [vmem:[%s0 + $0x1c8] sm:$0xff]
  %v69 = vld [vmem:[%s0 + $0x1d0] sm:$0xff]
  %v70 = vld [vmem:[%s0 + $0x1d8] sm:$0xff]
  %v71 = vld [vmem:[%s0 + $0x1e0] sm:$0xff]
  %v72 = vld [vmem:[%s0 + $0x1e8] sm:$0xff]
  %v73 = vld [vmem:[%s0 + $0x1f0] sm:$0xff]
  %v74 = vld [vmem:[%s0 + $0x1f8] sm:$0xff]
  %v75 = vld [vmem:[%s1] sm:$0xff]
  %v76 = vld [vmem:[%s1 + $0x8] sm:$0xff]
  %v77 = vld [vmem:[%s1 + $0x10] sm:$0xff]
  %v78 = vld [vmem:[%s1 + $0x18] sm:$0xff]
  %v79 = vld [vmem:[%s1 + $0x20] sm:$0xff]
  %v80 = vld [vmem:[%s1 + $0x28] sm:$0xff]
  %vm81 = vcmask 392192
  %v83 = vsel %vm81, %v11, 0
  %v86 = vsel %vm81, %v12, 0
  %v89 = vsel %vm81, %v13, 0
  %v92 = vsel %vm81, %v14, 0
  %v95 = vsel %vm81, %v15, 0
  %v98 = vsel %vm81, %v16, 0
  %v101 = vsel %vm81, %v17, 0
  %v104 = vsel %vm81, %v18, 0
  %v107 = vsel %vm81, %v19, 0
  %v110 = vsel %vm81, %v20, 0
  %v113 = vsel %vm81, %v21, 0
  %v116 = vsel %vm81, %v22, 0
  %v119 = vsel %vm81, %v23, 0
  %v122 = vsel %vm81, %v24, 0
  %v125 = vsel %vm81, %v25, 0
  %v128 = vsel %vm81, %v26, 0
  %v131 = vsel %vm81, %v27, 0
  %v134 = vsel %vm81, %v28, 0
  %v137 = vsel %vm81, %v29, 0
  %v140 = vsel %vm81, %v30, 0
  %v143 = vsel %vm81, %v31, 0
  %v146 = vsel %vm81, %v32, 0
  %v149 = vsel %vm81, %v33, 0
  %v152 = vsel %vm81, %v34, 0
  %v155 = vsel %vm81, %v35, 0
  %v158 = vsel %vm81, %v36, 0
  %v161 = vsel %vm81, %v37, 0
  %v164 = vsel %vm81, %v38, 0
  %v167 = vsel %vm81, %v39, 0
  %v170 = vsel %vm81, %v40, 0
  %v173 = vsel %vm81, %v41, 0
  %v176 = vsel %vm81, %v42, 0
  %v179 = vsel %vm81, %v43, 0
  %v182 = vsel %vm81, %v44, 0
  %v185 = vsel %vm81, %v45, 0
  %v188 = vsel %vm81, %v46, 0
  %v191 = vsel %vm81, %v47, 0
  %v194 = vsel %vm81, %v48, 0
  %v197 = vsel %vm81, %v49, 0
  %v200 = vsel %vm81, %v50, 0
  %v203 = vsel %vm81, %v51, 0
  %v206 = vsel %vm81, %v52, 0
  %v209 = vsel %vm81, %v53, 0
  %v212 = vsel %vm81, %v54, 0
  %v215 = vsel %vm81, %v55, 0
  %v218 = vsel %vm81, %v56, 0
  %v221 = vsel %vm81, %v57, 0
  %v224 = vsel %vm81, %v58, 0
  %v227 = vsel %vm81, %v59, 0
  %v230 = vsel %vm81, %v60, 0
  %v233 = vsel %vm81, %v61, 0
  %v236 = vsel %vm81, %v62, 0
  %v239 = vsel %vm81, %v63, 0
  %v242 = vsel %vm81, %v64, 0
  %v245 = vsel %vm81, %v65, 0
  %v248 = vsel %vm81, %v66, 0
  %v251 = vsel %vm81, %v67, 0
  %v254 = vsel %vm81, %v68, 0
  %v257 = vsel %vm81, %v69, 0
  %v260 = vsel %vm81, %v70, 0
  %v263 = vsel %vm81, %v71, 0
  %v266 = vsel %vm81, %v72, 0
  %v269 = vsel %vm81, %v73, 0
  %v272 = vsel %vm81, %v74, 0
  %274 = vmatprep.subr.mxu0 0.0
  %275 = vmatpush1.msra.mxu0 %v75
  %276 = vmatprep.subr.mxu0 0.0
  %277 = vmatpush1.msra.mxu0 %v76
  %278 = vmatprep.subr.mxu0 0.0
  %279 = vmatpush1.msra.mxu0 %v77
  %280 = vmatprep.subr.mxu0 0.0
  %281 = vmatpush1.msra.mxu0 %v78
  %282 = vmatprep.subr.mxu0 0.0
  %283 = vmatpush1.msra.mxu0 %v79
  %284 = vmatprep.subr.mxu0 0.0
  %285 = vmatpush1.msra.mxu0 %v80
  %286 = vmatprep.subr.mxu0 0.0
  %287 = vmatpush1.msra.mxu0 0.0
  %288 = vmatprep.subr.mxu0 0.0
  %289 = vmatpush1.msra.mxu0 0.0
  %290 = vmatprep.subr.mxu0 0.0
  %291 = vmatpush1.msra.mxu0 0.0
  %292 = vmatprep.subr.mxu0 0.0
  %293 = vmatpush1.msra.mxu0 0.0
  %294 = vmatprep.subr.mxu0 0.0
  %295 = vmatpush1.msra.mxu0 0.0
  %296 = vmatprep.subr.mxu0 0.0
  %297 = vmatpush1.msra.mxu0 0.0
  %298 = vmatprep.subr.mxu0 0.0
  %299 = vmatpush1.msra.mxu0 0.0
  %300 = vmatprep.subr.mxu0 0.0
  %301 = vmatpush1.msra.mxu0 0.0
  %302 = vmatprep.subr.mxu0 0.0
  %303 = vmatpush1.msra.mxu0 0.0
  %304 = vmatprep.subr.mxu0 0.0
  %305 = vmatpush1.msra.mxu0 0.0
  %306 = vmatprep.subr.mxu0 0.0
  %307 = vmatpush1.msra.mxu0 0.0
  %308 = vmatprep.subr.mxu0 0.0
  %309 = vmatpush1.msra.mxu0 0.0
  %310 = vmatprep.subr.mxu0 0.0
  %311 = vmatpush1.msra.mxu0 0.0
  %312 = vmatprep.subr.mxu0 0.0
  %313 = vmatpush1.msra.mxu0 0.0
  %314 = vmatprep.subr.mxu0 0.0
  %315 = vmatpush1.msra.mxu0 0.0
  %316 = vmatprep.subr.mxu0 0.0
  %317 = vmatpush1.msra.mxu0 0.0
  %318 = vmatprep.subr.mxu0 0.0
  %319 = vmatpush1.msra.mxu0 0.0
  %320 = vmatprep.subr.mxu0 0.0
  %321 = vmatpush1.msra.mxu0 0.0
  %322 = vmatprep.subr.mxu0 0.0
  %323 = vmatpush1.msra.mxu0 0.0
  %324 = vmatprep.subr.mxu0 0.0
  %325 = vmatpush1.msra.mxu0 0.0
  %326 = vmatprep.subr.mxu0 0.0
  %327 = vmatpush1.msra.mxu0 0.0
  %328 = vmatprep.subr.mxu0 0.0
  %329 = vmatpush1.msra.mxu0 0.0
  %330 = vmatprep.subr.mxu0 0.0
  %331 = vmatpush1.msra.mxu0 0.0
  %332 = vmatprep.subr.mxu0 0.0
  %333 = vmatpush1.msra.mxu0 0.0
  %334 = vmatprep.subr.mxu0 0.0
  %335 = vmatpush1.msra.mxu0 0.0
  %336 = vmatprep.subr.mxu0 0.0
  %337 = vmatpush1.msra.mxu0 0.0
  %338 = vmatprep.mubr.f32.mxu0 0.0
  %339 = vmatmul.mubr.f32.gmra.mrb[0].mxu0 %v83
  %v340 = vpop.f32.mrb[0].mxu0
  %v341 = vadd.f32 0.0, %v340
  %v342 = vpop.f32.mrb[0].mxu0
  %343 = vmatprep.mubr.f32.mxu0 0.0
  %344 = vmatmul.mubr.f32.gmra.mrb[0].mxu0 %v86
  %v345 = vpop.f32.mrb[0].mxu0
  %v346 = vadd.f32 0.0, %v345
  %v347 = vpop.f32.mrb[0].mxu0
  %348 = vmatprep.mubr.f32.mxu0 0.0
  %349 = vmatmul.mubr.f32.gmra.mrb[0].mxu0 %v89
  %v350 = vpop.f32.mrb[0].mxu0
  %v351 = vadd.f32 0.0, %v350
  %v352 = vpop.f32.mrb[0].mxu0
  %353 = vmatprep.mubr.f32.mxu0 0.0
  %354 = vmatmul.mubr.f32.gmra.mrb[0].mxu0 %v92
  %v355 = vpop.f32.mrb[0].mxu0
  %v356 = vadd.f32 0.0, %v355
  %v357 = vpop.f32.mrb[0].mxu0
  %358 = vmatprep.mubr.f32.mxu0 0.0
  %359 = vmatmul.mubr.f32.gmra.mrb[0].mxu0 %v95
  %v360 = vpop.f32.mrb[0].mxu0
  %v361 = vadd.f32 0.0, %v360
  %v362 = vpop.f32.mrb[0].mxu0
  %363 = vmatprep.mubr.f32.mxu0 0.0
  %364 = vmatmul.mubr.f32.gmra.mrb[0].mxu0 %v98
  %v365 = vpop.f32.mrb[0].mxu0
  %v366 = vadd.f32 0.0, %v365
  %v367 = vpop.f32.mrb[0].mxu0
  %368 = vmatprep.mubr.f32.mxu0 0.0
  %369 = vmatmul.mubr.f32.gmra.mrb[0].mxu0 %v101
  %v370 = vpop.f32.mrb[0].mxu0
  %v371 = vadd.f32 0.0, %v370
  %v372 = vpop.f32.mrb[0].mxu0
  %373 = vmatprep.mubr.f32.mxu0 0.0
  %374 = vmatmul.mubr.f32.gmra.mrb[0].mxu0 %v104
  %v375 = vpop.f32.mrb[0].mxu0
  %v376 = vadd.f32 0.0, %v375
  %v377 = vpop.f32.mrb[0].mxu0
  %378 = vmatprep.mubr.f32.mxu0 0.0
  %379 = vmatmul.mubr.f32.gmra.mrb[0].mxu0 %v107
  %v380 = vpop.f32.mrb[0].mxu0
  %v381 = vadd.f32 0.0, %v380
  %v382 = vpop.f32.mrb[0].mxu0
  %383 = vmatprep.mubr.f32.mxu0 0.0
  %384 = vmatmul.mubr.f32.gmra.mrb[0].mxu0 %v110
  %v385 = vpop.f32.mrb[0].mxu0
  %v386 = vadd.f32 0.0, %v385
  %v387 = vpop.f32.mrb[0].mxu0
  %388 = vmatprep.mubr.f32.mxu0 0.0
  %389 = vmatmul.mubr.f32.gmra.mrb[0].mxu0 %v113
  %v390 = vpop.f32.mrb[0].mxu0
  %v391 = vadd.f32 0.0, %v390
  %v392 = vpop.f32.mrb[0].mxu0
  %393 = vmatprep.mubr.f32.mxu0 0.0
  %394 = vmatmul.mubr.f32.gmra.mrb[0].mxu0 %v116
  %v395 = vpop.f32.mrb[0].mxu0
  %v396 = vadd.f32 0.0, %v395
  %v397 = vpop.f32.mrb[0].mxu0
  %398 = vmatprep.mubr.f32.mxu0 0.0
  %399 = vmatmul.mubr.f32.gmra.mrb[0].mxu0 %v119
  %v400 = vpop.f32.mrb[0].mxu0
  %v401 = vadd.f32 0.0, %v400
  %v402 = vpop.f32.mrb[0].mxu0
  %403 = vmatprep.mubr.f32.mxu0 0.0
  %404 = vmatmul.mubr.f32.gmra.mrb[0].mxu0 %v122
  %v405 = vpop.f32.mrb[0].mxu0
  %v406 = vadd.f32 0.0, %v405
  %v407 = vpop.f32.mrb[0].mxu0
  %408 = vmatprep.mubr.f32.mxu0 0.0
  %409 = vmatmul.mubr.f32.gmra.mrb[0].mxu0 %v125
  %v410 = vpop.f32.mrb[0].mxu0
  %v411 = vadd.f32 0.0, %v410
  %v412 = vpop.f32.mrb[0].mxu0
  %413 = vmatprep.mubr.f32.mxu0 0.0
  %414 = vmatmul.mubr.f32.gmra.mrb[0].mxu0 %v128
  %v415 = vpop.f32.mrb[0].mxu0
  %v416 = vadd.f32 0.0, %v415
  %v417 = vpop.f32.mrb[0].mxu0
  %418 = vmatprep.mubr.f32.mxu0 0.0
  %419 = vmatmul.mubr.f32.gmra.mrb[0].mxu0 %v131
  %v420 = vpop.f32.mrb[0].mxu0
  %v421 = vadd.f32 0.0, %v420
  %v422 = vpop.f32.mrb[0].mxu0
  %423 = vmatprep.mubr.f32.mxu0 0.0
  %424 = vmatmul.mubr.f32.gmra.mrb[0].mxu0 %v134
  %v425 = vpop.f32.mrb[0].mxu0
  %v426 = vadd.f32 0.0, %v425
  %v427 = vpop.f32.mrb[0].mxu0
  %428 = vmatprep.mubr.f32.mxu0 0.0
  %429 = vmatmul.mubr.f32.gmra.mrb[0].mxu0 %v137
  %v430 = vpop.f32.mrb[0].mxu0
  %v431 = vadd.f32 0.0, %v430
  %v432 = vpop.f32.mrb[0].mxu0
  %433 = vmatprep.mubr.f32.mxu0 0.0
  %434 = vmatmul.mubr.f32.gmra.mrb[0].mxu0 %v140
  %v435 = vpop.f32.mrb[0].mxu0
  %v436 = vadd.f32 0.0, %v435
  %v437 = vpop.f32.mrb[0].mxu0
  %438 = vmatprep.mubr.f32.mxu0 0.0
  %439 = vmatmul.mubr.f32.gmra.mrb[0].mxu0 %v143
  %v440 = vpop.f32.mrb[0].mxu0
  %v441 = vadd.f32 0.0, %v440
  %v442 = vpop.f32.mrb[0].mxu0
  %443 = vmatprep.mubr.f32.mxu0 0.0
  %444 = vmatmul.mubr.f32.gmra.mrb[0].mxu0 %v146
  %v445 = vpop.f32.mrb[0].mxu0
  %v446 = vadd.f32 0.0, %v445
  %v447 = vpop.f32.mrb[0].mxu0
  %448 = vmatprep.mubr.f32.mxu0 0.0
  %449 = vmatmul.mubr.f32.gmra.mrb[0].mxu0 %v149
  %v450 = vpop.f32.mrb[0].mxu0
  %v451 = vadd.f32 0.0, %v450
  %v452 = vpop.f32.mrb[0].mxu0
  %453 = vmatprep.mubr.f32.mxu0 0.0
  %454 = vmatmul.mubr.f32.gmra.mrb[0].mxu0 %v152
  %v455 = vpop.f32.mrb[0].mxu0
  %v456 = vadd.f32 0.0, %v455
  %v457 = vpop.f32.mrb[0].mxu0
  %458 = vmatprep.mubr.f32.mxu0 0.0
  %459 = vmatmul.mubr.f32.gmra.mrb[0].mxu0 %v155
  %v460 = vpop.f32.mrb[0].mxu0
  %v461 = vadd.f32 0.0, %v460
  %v462 = vpop.f32.mrb[0].mxu0
  %463 = vmatprep.mubr.f32.mxu0 0.0
  %464 = vmatmul.mubr.f32.gmra.mrb[0].mxu0 %v158
  %v465 = vpop.f32.mrb[0].mxu0
  %v466 = vadd.f32 0.0, %v465
  %v467 = vpop.f32.mrb[0].mxu0
  %468 = vmatprep.mubr.f32.mxu0 0.0
  %469 = vmatmul.mubr.f32.gmra.mrb[0].mxu0 %v161
  %v470 = vpop.f32.mrb[0].mxu0
  %v471 = vadd.f32 0.0, %v470
  %v472 = vpop.f32.mrb[0].mxu0
  %473 = vmatprep.mubr.f32.mxu0 0.0
  %474 = vmatmul.mubr.f32.gmra.mrb[0].mxu0 %v164
  %v475 = vpop.f32.mrb[0].mxu0
  %v476 = vadd.f32 0.0, %v475
  %v477 = vpop.f32.mrb[0].mxu0
  %478 = vmatprep.mubr.f32.mxu0 0.0
  %479 = vmatmul.mubr.f32.gmra.mrb[0].mxu0 %v167
  %v480 = vpop.f32.mrb[0].mxu0
  %v481 = vadd.f32 0.0, %v480
  %v482 = vpop.f32.mrb[0].mxu0
  %483 = vmatprep.mubr.f32.mxu0 0.0
  %484 = vmatmul.mubr.f32.gmra.mrb[0].mxu0 %v170
  %v485 = vpop.f32.mrb[0].mxu0
  %v486 = vadd.f32 0.0, %v485
  %v487 = vpop.f32.mrb[0].mxu0
  %488 = vmatprep.mubr.f32.mxu0 0.0
  %489 = vmatmul.mubr.f32.gmra.mrb[0].mxu0 %v173
  %v490 = vpop.f32.mrb[0].mxu0
  %v491 = vadd.f32 0.0, %v490
  %v492 = vpop.f32.mrb[0].mxu0
  %493 = vmatprep.mubr.f32.mxu0 0.0
  %494 = vmatmul.mubr.f32.gmra.mrb[0].mxu0 %v176
  %v495 = vpop.f32.mrb[0].mxu0
  %v496 = vadd.f32 0.0, %v495
  %v497 = vpop.f32.mrb[0].mxu0
  %498 = vmatprep.mubr.f32.mxu0 0.0
  %499 = vmatmul.mubr.f32.gmra.mrb[0].mxu0 %v179
  %v500 = vpop.f32.mrb[0].mxu0
  %v501 = vadd.f32 0.0, %v500
  %v502 = vpop.f32.mrb[0].mxu0
  %503 = vmatprep.mubr.f32.mxu0 0.0
  %504 = vmatmul.mubr.f32.gmra.mrb[0].mxu0 %v182
  %v505 = vpop.f32.mrb[0].mxu0
  %v506 = vadd.f32 0.0, %v505
  %v507 = vpop.f32.mrb[0].mxu0
  %508 = vmatprep.mubr.f32.mxu0 0.0
  %509 = vmatmul.mubr.f32.gmra.mrb[0].mxu0 %v185
  %v510 = vpop.f32.mrb[0].mxu0
  %v511 = vadd.f32 0.0, %v510
  %v512 = vpop.f32.mrb[0].mxu0
  %513 = vmatprep.mubr.f32.mxu0 0.0
  %514 = vmatmul.mubr.f32.gmra.mrb[0].mxu0 %v188
  %v515 = vpop.f32.mrb[0].mxu0
  %v516 = vadd.f32 0.0, %v515
  %v517 = vpop.f32.mrb[0].mxu0
  %518 = vmatprep.mubr.f32.mxu0 0.0
  %519 = vmatmul.mubr.f32.gmra.mrb[0].mxu0 %v191
  %v520 = vpop.f32.mrb[0].mxu0
  %v521 = vadd.f32 0.0, %v520
  %v522 = vpop.f32.mrb[0].mxu0
  %523 = vmatprep.mubr.f32.mxu0 0.0
  %524 = vmatmul.mubr.f32.gmra.mrb[0].mxu0 %v194
  %v525 = vpop.f32.mrb[0].mxu0
  %v526 = vadd.f32 0.0, %v525
  %v527 = vpop.f32.mrb[0].mxu0
  %528 = vmatprep.mubr.f32.mxu0 0.0
  %529 = vmatmul.mubr.f32.gmra.mrb[0].mxu0 %v197
  %v530 = vpop.f32.mrb[0].mxu0
  %v531 = vadd.f32 0.0, %v530
  %v532 = vpop.f32.mrb[0].mxu0
  %533 = vmatprep.mubr.f32.mxu0 0.0
  %534 = vmatmul.mubr.f32.gmra.mrb[0].mxu0 %v200
  %v535 = vpop.f32.mrb[0].mxu0
  %v536 = vadd.f32 0.0, %v535
  %v537 = vpop.f32.mrb[0].mxu0
  %538 = vmatprep.mubr.f32.mxu0 0.0
  %539 = vmatmul.mubr.f32.gmra.mrb[0].mxu0 %v203
  %v540 = vpop.f32.mrb[0].mxu0
  %v541 = vadd.f32 0.0, %v540
  %v542 = vpop.f32.mrb[0].mxu0
  %543 = vmatprep.mubr.f32.mxu0 0.0
  %544 = vmatmul.mubr.f32.gmra.mrb[0].mxu0 %v206
  %v545 = vpop.f32.mrb[0].mxu0
  %v546 = vadd.f32 0.0, %v545
  %v547 = vpop.f32.mrb[0].mxu0
  %548 = vmatprep.mubr.f32.mxu0 0.0
  %549 = vmatmul.mubr.f32.gmra.mrb[0].mxu0 %v209
  %v550 = vpop.f32.mrb[0].mxu0
  %v551 = vadd.f32 0.0, %v550
  %v552 = vpop.f32.mrb[0].mxu0
  %553 = vmatprep.mubr.f32.mxu0 0.0
  %554 = vmatmul.mubr.f32.gmra.mrb[0].mxu0 %v212
  %v555 = vpop.f32.mrb[0].mxu0
  %v556 = vadd.f32 0.0, %v555
  %v557 = vpop.f32.mrb[0].mxu0
  %558 = vmatprep.mubr.f32.mxu0 0.0
  %559 = vmatmul.mubr.f32.gmra.mrb[0].mxu0 %v215
  %v560 = vpop.f32.mrb[0].mxu0
  %v561 = vadd.f32 0.0, %v560
  %v562 = vpop.f32.mrb[0].mxu0
  %563 = vmatprep.mubr.f32.mxu0 0.0
  %564 = vmatmul.mubr.f32.gmra.mrb[0].mxu0 %v218
  %v565 = vpop.f32.mrb[0].mxu0
  %v566 = vadd.f32 0.0, %v565
  %v567 = vpop.f32.mrb[0].mxu0
  %568 = vmatprep.mubr.f32.mxu0 0.0
  %569 = vmatmul.mubr.f32.gmra.mrb[0].mxu0 %v221
  %v570 = vpop.f32.mrb[0].mxu0
  %v571 = vadd.f32 0.0, %v570
  %v572 = vpop.f32.mrb[0].mxu0
  %573 = vmatprep.mubr.f32.mxu0 0.0
  %574 = vmatmul.mubr.f32.gmra.mrb[0].mxu0 %v224
  %v575 = vpop.f32.mrb[0].mxu0
  %v576 = vadd.f32 0.0, %v575
  %v577 = vpop.f32.mrb[0].mxu0
  %578 = vmatprep.mubr.f32.mxu0 0.0
  %579 = vmatmul.mubr.f32.gmra.mrb[0].mxu0 %v227
  %v580 = vpop.f32.mrb[0].mxu0
  %v581 = vadd.f32 0.0, %v580
  %v582 = vpop.f32.mrb[0].mxu0
  %583 = vmatprep.mubr.f32.mxu0 0.0
  %584 = vmatmul.mubr.f32.gmra.mrb[0].mxu0 %v230
  %v585 = vpop.f32.mrb[0].mxu0
  %v586 = vadd.f32 0.0, %v585
  %v587 = vpop.f32.mrb[0].mxu0
  %588 = vmatprep.mubr.f32.mxu0 0.0
  %589 = vmatmul.mubr.f32.gmra.mrb[0].mxu0 %v233
  %v590 = vpop.f32.mrb[0].mxu0
  %v591 = vadd.f32 0.0, %v590
  %v592 = vpop.f32.mrb[0].mxu0
  %593 = vmatprep.mubr.f32.mxu0 0.0
  %594 = vmatmul.mubr.f32.gmra.mrb[0].mxu0 %v236
  %v595 = vpop.f32.mrb[0].mxu0
  %v596 = vadd.f32 0.0, %v595
  %v597 = vpop.f32.mrb[0].mxu0
  %598 = vmatprep.mubr.f32.mxu0 0.0
  %599 = vmatmul.mubr.f32.gmra.mrb[0].mxu0 %v239
  %v600 = vpop.f32.mrb[0].mxu0
  %v601 = vadd.f32 0.0, %v600
  %v602 = vpop.f32.mrb[0].mxu0
  %603 = vmatprep.mubr.f32.mxu0 0.0
  %604 = vmatmul.mubr.f32.gmra.mrb[0].mxu0 %v242
  %v605 = vpop.f32.mrb[0].mxu0
  %v606 = vadd.f32 0.0, %v605
  %v607 = vpop.f32.mrb[0].mxu0
  %608 = vmatprep.mubr.f32.mxu0 0.0
  %609 = vmatmul.mubr.f32.gmra.mrb[0].mxu0 %v245
  %v610 = vpop.f32.mrb[0].mxu0
  %v611 = vadd.f32 0.0, %v610
  %v612 = vpop.f32.mrb[0].mxu0
  %613 = vmatprep.mubr.f32.mxu0 0.0
  %614 = vmatmul.mubr.f32.gmra.mrb[0].mxu0 %v248
  %v615 = vpop.f32.mrb[0].mxu0
  %v616 = vadd.f32 0.0, %v615
  %v617 = vpop.f32.mrb[0].mxu0
  %618 = vmatprep.mubr.f32.mxu0 0.0
  %619 = vmatmul.mubr.f32.gmra.mrb[0].mxu0 %v251
  %v620 = vpop.f32.mrb[0].mxu0
  %v621 = vadd.f32 0.0, %v620
  %v622 = vpop.f32.mrb[0].mxu0
  %623 = vmatprep.mubr.f32.mxu0 0.0
  %624 = vmatmul.mubr.f32.gmra.mrb[0].mxu0 %v254
  %v625 = vpop.f32.mrb[0].mxu0
  %v626 = vadd.f32 0.0, %v625
  %v627 = vpop.f32.mrb[0].mxu0
  %628 = vmatprep.mubr.f32.mxu0 0.0
  %629 = vmatmul.mubr.f32.gmra.mrb[0].mxu0 %v257
  %v630 = vpop.f32.mrb[0].mxu0
  %v631 = vadd.f32 0.0, %v630
  %v632 = vpop.f32.mrb[0].mxu0
  %633 = vmatprep.mubr.f32.mxu0 0.0
  %634 = vmatmul.mubr.f32.gmra.mrb[0].mxu0 %v260
  %v635 = vpop.f32.mrb[0].mxu0
  %v636 = vadd.f32 0.0, %v635
  %v637 = vpop.f32.mrb[0].mxu0
  %638 = vmatprep.mubr.f32.mxu0 0.0
  %639 = vmatmul.mubr.f32.gmra.mrb[0].mxu0 %v263
  %v640 = vpop.f32.mrb[0].mxu0
  %v641 = vadd.f32 0.0, %v640
  %v642 = vpop.f32.mrb[0].mxu0
  %643 = vmatprep.mubr.f32.mxu0 0.0
  %644 = vmatmul.mubr.f32.gmra.mrb[0].mxu0 %v266
  %v645 = vpop.f32.mrb[0].mxu0
  %v646 = vadd.f32 0.0, %v645
  %v647 = vpop.f32.mrb[0].mxu0
  %648 = vmatprep.mubr.f32.mxu0 0.0
  %649 = vmatmul.mubr.f32.gmra.mrb[0].mxu0 %v269
  %v650 = vpop.f32.mrb[0].mxu0
  %v651 = vadd.f32 0.0, %v650
  %v652 = vpop.f32.mrb[0].mxu0
  %653 = vmatprep.mubr.f32.mxu0 0.0
  %654 = vmatmul.mubr.f32.gmra.mrb[0].mxu0 %v272
  %v655 = vpop.f32.mrb[0].mxu0
  %v656 = vadd.f32 0.0, %v655
  %v657 = vpop.f32.mrb[0].mxu0
  %658 = vdwg.mxu0
  %vm659 = vcmp.ge.f32.partialorder %v341, 0.0
  %vm660 = vcmp.ge.f32.partialorder %v346, 0.0
  %vm661 = vcmp.ge.f32.partialorder %v351, 0.0
  %vm662 = vcmp.ge.f32.partialorder %v356, 0.0
  %vm663 = vcmp.ge.f32.partialorder %v361, 0.0
  %vm664 = vcmp.ge.f32.partialorder %v366, 0.0
  %vm665 = vcmp.ge.f32.partialorder %v371, 0.0
  %vm666 = vcmp.ge.f32.partialorder %v376, 0.0
  %vm667 = vcmp.ge.f32.partialorder %v381, 0.0
  %vm668 = vcmp.ge.f32.partialorder %v386, 0.0
  %vm669 = vcmp.ge.f32.partialorder %v391, 0.0
  %vm670 = vcmp.ge.f32.partialorder %v396, 0.0
  %vm671 = vcmp.ge.f32.partialorder %v401, 0.0
  %vm672 = vcmp.ge.f32.partialorder %v406, 0.0
  %vm673 = vcmp.ge.f32.partialorder %v411, 0.0
  %vm674 = vcmp.ge.f32.partialorder %v416, 0.0
  %vm675 = vcmp.ge.f32.partialorder %v421, 0.0
  %vm676 = vcmp.ge.f32.partialorder %v426, 0.0
  %vm677 = vcmp.ge.f32.partialorder %v431, 0.0
  %vm678 = vcmp.ge.f32.partialorder %v436, 0.0
  %vm679 = vcmp.ge.f32.partialorder %v441, 0.0
  %vm680 = vcmp.ge.f32.partialorder %v446, 0.0
  %vm681 = vcmp.ge.f32.partialorder %v451, 0.0
  %vm682 = vcmp.ge.f32.partialorder %v456, 0.0
  %vm683 = vcmp.ge.f32.partialorder %v461, 0.0
  %vm684 = vcmp.ge.f32.partialorder %v466, 0.0
  %vm685 = vcmp.ge.f32.partialorder %v471, 0.0
  %vm686 = vcmp.ge.f32.partialorder %v476, 0.0
  %vm687 = vcmp.ge.f32.partialorder %v481, 0.0
  %vm688 = vcmp.ge.f32.partialorder %v486, 0.0
  %vm689 = vcmp.ge.f32.partialorder %v491, 0.0
  %vm690 = vcmp.ge.f32.partialorder %v496, 0.0
  %vm691 = vcmp.ge.f32.partialorder %v501, 0.0
  %vm692 = vcmp.ge.f32.partialorder %v506, 0.0
  %vm693 = vcmp.ge.f32.partialorder %v511, 0.0
  %vm694 = vcmp.ge.f32.partialorder %v516, 0.0
  %vm695 = vcmp.ge.f32.partialorder %v521, 0.0
  %vm696 = vcmp.ge.f32.partialorder %v526, 0.0
  %vm697 = vcmp.ge.f32.partialorder %v531, 0.0
  %vm698 = vcmp.ge.f32.partialorder %v536, 0.0
  %vm699 = vcmp.ge.f32.partialorder %v541, 0.0
  %vm700 = vcmp.ge.f32.partialorder %v546, 0.0
  %vm701 = vcmp.ge.f32.partialorder %v551, 0.0
  %vm702 = vcmp.ge.f32.partialorder %v556, 0.0
  %vm703 = vcmp.ge.f32.partialorder %v561, 0.0
  %vm704 = vcmp.ge.f32.partialorder %v566, 0.0
  %vm705 = vcmp.ge.f32.partialorder %v571, 0.0
  %vm706 = vcmp.ge.f32.partialorder %v576, 0.0
  %vm707 = vcmp.ge.f32.partialorder %v581, 0.0
  %vm708 = vcmp.ge.f32.partialorder %v586, 0.0
  %vm709 = vcmp.ge.f32.partialorder %v591, 0.0
  %vm710 = vcmp.ge.f32.partialorder %v596, 0.0
  %vm711 = vcmp.ge.f32.partialorder %v601, 0.0
  %vm712 = vcmp.ge.f32.partialorder %v606, 0.0
  %vm713 = vcmp.ge.f32.partialorder %v611, 0.0
  %vm714 = vcmp.ge.f32.partialorder %v616, 0.0
  %vm715 = vcmp.ge.f32.partialorder %v621, 0.0
  %vm716 = vcmp.ge.f32.partialorder %v626, 0.0
  %vm717 = vcmp.ge.f32.partialorder %v631, 0.0
  %vm718 = vcmp.ge.f32.partialorder %v636, 0.0
  %vm719 = vcmp.ge.f32.partialorder %v641, 0.0
  %vm720 = vcmp.ge.f32.partialorder %v646, 0.0
  %vm721 = vcmp.ge.f32.partialorder %v651, 0.0
  %vm722 = vcmp.ge.f32.partialorder %v656, 0.0
  %v723 = vmul.f32 %v341, 0.2
  %v724 = vmul.f32 %v346, 0.2
  %v725 = vmul.f32 %v351, 0.2
  %v726 = vmul.f32 %v356, 0.2
  %v727 = vmul.f32 %v361, 0.2
  %v728 = vmul.f32 %v366, 0.2
  %v729 = vmul.f32 %v371, 0.2
  %v730 = vmul.f32 %v376, 0.2
  %v731 = vmul.f32 %v381, 0.2
  %v732 = vmul.f32 %v386, 0.2
  %v733 = vmul.f32 %v391, 0.2
  %v734 = vmul.f32 %v396, 0.2
  %v735 = vmul.f32 %v401, 0.2
  %v736 = vmul.f32 %v406, 0.2
  %v737 = vmul.f32 %v411, 0.2
  %v738 = vmul.f32 %v416, 0.2
  %v739 = vmul.f32 %v421, 0.2
  %v740 = vmul.f32 %v426, 0.2
  %v741 = vmul.f32 %v431, 0.2
  %v742 = vmul.f32 %v436, 0.2
  %v743 = vmul.f32 %v441, 0.2
  %v744 = vmul.f32 %v446, 0.2
  %v745 = vmul.f32 %v451, 0.2
  %v746 = vmul.f32 %v456, 0.2
  %v747 = vmul.f32 %v461, 0.2
  %v748 = vmul.f32 %v466, 0.2
  %v749 = vmul.f32 %v471, 0.2
  %v750 = vmul.f32 %v476, 0.2
  %v751 = vmul.f32 %v481, 0.2
  %v752 = vmul.f32 %v486, 0.2
  %v753 = vmul.f32 %v491, 0.2
  %v754 = vmul.f32 %v496, 0.2
  %v755 = vmul.f32 %v501, 0.2
  %v756 = vmul.f32 %v506, 0.2
  %v757 = vmul.f32 %v511, 0.2
  %v758 = vmul.f32 %v516, 0.2
  %v759 = vmul.f32 %v521, 0.2
  %v760 = vmul.f32 %v526, 0.2
  %v761 = vmul.f32 %v531, 0.2
  %v762 = vmul.f32 %v536, 0.2
  %v763 = vmul.f32 %v541, 0.2
  %v764 = vmul.f32 %v546, 0.2
  %v765 = vmul.f32 %v551, 0.2
  %v766 = vmul.f32 %v556, 0.2
  %v767 = vmul.f32 %v561, 0.2
  %v768 = vmul.f32 %v566, 0.2
  %v769 = vmul.f32 %v571, 0.2
  %v770 = vmul.f32 %v576, 0.2
  %v771 = vmul.f32 %v581, 0.2
  %v772 = vmul.f32 %v586, 0.2
  %v773 = vmul.f32 %v591, 0.2
  %v774 = vmul.f32 %v596, 0.2
  %v775 = vmul.f32 %v601, 0.2
  %v776 = vmul.f32 %v606, 0.2
  %v777 = vmul.f32 %v611, 0.2
  %v778 = vmul.f32 %v616, 0.2
  %v779 = vmul.f32 %v621, 0.2
  %v780 = vmul.f32 %v626, 0.2
  %v781 = vmul.f32 %v631, 0.2
  %v782 = vmul.f32 %v636, 0.2
  %v783 = vmul.f32 %v641, 0.2
  %v784 = vmul.f32 %v646, 0.2
  %v785 = vmul.f32 %v651, 0.2
  %v786 = vmul.f32 %v656, 0.2
  %v787 = vsel %vm659, %v341, %v723
  %v788 = vsel %vm660, %v346, %v724
  %v789 = vsel %vm661, %v351, %v725
  %v790 = vsel %vm662, %v356, %v726
  %v791 = vsel %vm663, %v361, %v727
  %v792 = vsel %vm664, %v366, %v728
  %v793 = vsel %vm665, %v371, %v729
  %v794 = vsel %vm666, %v376, %v730
  %v795 = vsel %vm667, %v381, %v731
  %v796 = vsel %vm668, %v386, %v732
  %v797 = vsel %vm669, %v391, %v733
  %v798 = vsel %vm670, %v396, %v734
  %v799 = vsel %vm671, %v401, %v735
  %v800 = vsel %vm672, %v406, %v736
  %v801 = vsel %vm673, %v411, %v737
  %v802 = vsel %vm674, %v416, %v738
  %v803 = vsel %vm675, %v421, %v739
  %v804 = vsel %vm676, %v426, %v740
  %v805 = vsel %vm677, %v431, %v741
  %v806 = vsel %vm678, %v436, %v742
  %v807 = vsel %vm679, %v441, %v743
  %v808 = vsel %vm680, %v446, %v744
  %v809 = vsel %vm681, %v451, %v745
  %v810 = vsel %vm682, %v456, %v746
  %v811 = vsel %vm683, %v461, %v747
  %v812 = vsel %vm684, %v466, %v748
  %v813 = vsel %vm685, %v471, %v749
  %v814 = vsel %vm686, %v476, %v750
  %v815 = vsel %vm687, %v481, %v751
  %v816 = vsel %vm688, %v486, %v752
  %v817 = vsel %vm689, %v491, %v753
  %v818 = vsel %vm690, %v496, %v754
  %v819 = vsel %vm691, %v501, %v755
  %v820 = vsel %vm692, %v506, %v756
  %v821 = vsel %vm693, %v511, %v757
  %v822 = vsel %vm694, %v516, %v758
  %v823 = vsel %vm695, %v521, %v759
  %v824 = vsel %vm696, %v526, %v760
  %v825 = vsel %vm697, %v531, %v761
  %v826 = vsel %vm698, %v536, %v762
  %v827 = vsel %vm699, %v541, %v763
  %v828 = vsel %vm700, %v546, %v764
  %v829 = vsel %vm701, %v551, %v765
  %v830 = vsel %vm702, %v556, %v766
  %v831 = vsel %vm703, %v561, %v767
  %v832 = vsel %vm704, %v566, %v768
  %v833 = vsel %vm705, %v571, %v769
  %v834 = vsel %vm706, %v576, %v770
  %v835 = vsel %vm707, %v581, %v771
  %v836 = vsel %vm708, %v586, %v772
  %v837 = vsel %vm709, %v591, %v773
  %v838 = vsel %vm710, %v596, %v774
  %v839 = vsel %vm711, %v601, %v775
  %v840 = vsel %vm712, %v606, %v776
  %v841 = vsel %vm713, %v611, %v777
  %v842 = vsel %vm714, %v616, %v778
  %v843 = vsel %vm715, %v621, %v779
  %v844 = vsel %vm716, %v626, %v780
  %v845 = vsel %vm717, %v631, %v781
  %v846 = vsel %vm718, %v636, %v782
  %v847 = vsel %vm719, %v641, %v783
  %v848 = vsel %vm720, %v646, %v784
  %v849 = vsel %vm721, %v651, %v785
  %v850 = vsel %vm722, %v656, %v786
  %vm851 = vcmask 261120
  %852 = vst.msk [vmem:[%s2] sm:$0xff] %vm851, %v787
  %853 = vst.msk [vmem:[%s2 + $0x8] sm:$0xff] %vm851, %v788
  %854 = vst.msk [vmem:[%s2 + $0x10] sm:$0xff] %vm851, %v789
  %855 = vst.msk [vmem:[%s2 + $0x18] sm:$0xff] %vm851, %v790
  %856 = vst.msk [vmem:[%s2 + $0x20] sm:$0xff] %vm851, %v791
  %857 = vst.msk [vmem:[%s2 + $0x28] sm:$0xff] %vm851, %v792
  %858 = vst.msk [vmem:[%s2 + $0x30] sm:$0xff] %vm851, %v793
  %859 = vst.msk [vmem:[%s2 + $0x38] sm:$0xff] %vm851, %v794
  %860 = vst.msk [vmem:[%s2 + $0x40] sm:$0xff] %vm851, %v795
  %861 = vst.msk [vmem:[%s2 + $0x48] sm:$0xff] %vm851, %v796
  %862 = vst.msk [vmem:[%s2 + $0x50] sm:$0xff] %vm851, %v797
  %863 = vst.msk [vmem:[%s2 + $0x58] sm:$0xff] %vm851, %v798
  %864 = vst.msk [vmem:[%s2 + $0x60] sm:$0xff] %vm851, %v799
  %865 = vst.msk [vmem:[%s2 + $0x68] sm:$0xff] %vm851, %v800
  %866 = vst.msk [vmem:[%s2 + $0x70] sm:$0xff] %vm851, %v801
  %867 = vst.msk [vmem:[%s2 + $0x78] sm:$0xff] %vm851, %v802
  %868 = vst.msk [vmem:[%s2 + $0x80] sm:$0xff] %vm851, %v803
  %869 = vst.msk [vmem:[%s2 + $0x88] sm:$0xff] %vm851, %v804
  %870 = vst.msk [vmem:[%s2 + $0x90] sm:$0xff] %vm851, %v805
  %871 = vst.msk [vmem:[%s2 + $0x98] sm:$0xff] %vm851, %v806
  %872 = vst.msk [vmem:[%s2 + $0xa0] sm:$0xff] %vm851, %v807
  %873 = vst.msk [vmem:[%s2 + $0xa8] sm:$0xff] %vm851, %v808
  %874 = vst.msk [vmem:[%s2 + $0xb0] sm:$0xff] %vm851, %v809
  %875 = vst.msk [vmem:[%s2 + $0xb8] sm:$0xff] %vm851, %v810
  %876 = vst.msk [vmem:[%s2 + $0xc0] sm:$0xff] %vm851, %v811
  %877 = vst.msk [vmem:[%s2 + $0xc8] sm:$0xff] %vm851, %v812
  %878 = vst.msk [vmem:[%s2 + $0xd0] sm:$0xff] %vm851, %v813
  %879 = vst.msk [vmem:[%s2 + $0xd8] sm:$0xff] %vm851, %v814
  %880 = vst.msk [vmem:[%s2 + $0xe0] sm:$0xff] %vm851, %v815
  %881 = vst.msk [vmem:[%s2 + $0xe8] sm:$0xff] %vm851, %v816
  %882 = vst.msk [vmem:[%s2 + $0xf0] sm:$0xff] %vm851, %v817
  %883 = vst.msk [vmem:[%s2 + $0xf8] sm:$0xff] %vm851, %v818
  %884 = vst.msk [vmem:[%s2 + $0x100] sm:$0xff] %vm851, %v819
  %885 = vst.msk [vmem:[%s2 + $0x108] sm:$0xff] %vm851, %v820
  %886 = vst.msk [vmem:[%s2 + $0x110] sm:$0xff] %vm851, %v821
  %887 = vst.msk [vmem:[%s2 + $0x118] sm:$0xff] %vm851, %v822
  %888 = vst.msk [vmem:[%s2 + $0x120] sm:$0xff] %vm851, %v823
  %889 = vst.msk [vmem:[%s2 + $0x128] sm:$0xff] %vm851, %v824
  %890 = vst.msk [vmem:[%s2 + $0x130] sm:$0xff] %vm851, %v825
  %891 = vst.msk [vmem:[%s2 + $0x138] sm:$0xff] %vm851, %v826
  %892 = vst.msk [vmem:[%s2 + $0x140] sm:$0xff] %vm851, %v827
  %893 = vst.msk [vmem:[%s2 + $0x148] sm:$0xff] %vm851, %v828
  %894 = vst.msk [vmem:[%s2 + $0x150] sm:$0xff] %vm851, %v829
  %895 = vst.msk [vmem:[%s2 + $0x158] sm:$0xff] %vm851, %v830
  %896 = vst.msk [vmem:[%s2 + $0x160] sm:$0xff] %vm851, %v831
  %897 = vst.msk [vmem:[%s2 + $0x168] sm:$0xff] %vm851, %v832
  %898 = vst.msk [vmem:[%s2 + $0x170] sm:$0xff] %vm851, %v833
  %899 = vst.msk [vmem:[%s2 + $0x178] sm:$0xff] %vm851, %v834
  %900 = vst.msk [vmem:[%s2 + $0x180] sm:$0xff] %vm851, %v835
  %901 = vst.msk [vmem:[%s2 + $0x188] sm:$0xff] %vm851, %v836
  %902 = vst.msk [vmem:[%s2 + $0x190] sm:$0xff] %vm851, %v837
  %903 = vst.msk [vmem:[%s2 + $0x198] sm:$0xff] %vm851, %v838
  %904 = vst.msk [vmem:[%s2 + $0x1a0] sm:$0xff] %vm851, %v839
  %905 = vst.msk [vmem:[%s2 + $0x1a8] sm:$0xff] %vm851, %v840
  %906 = vst.msk [vmem:[%s2 + $0x1b0] sm:$0xff] %vm851, %v841
  %907 = vst.msk [vmem:[%s2 + $0x1b8] sm:$0xff] %vm851, %v842
  %908 = vst.msk [vmem:[%s2 + $0x1c0] sm:$0xff] %vm851, %v843
  %909 = vst.msk [vmem:[%s2 + $0x1c8] sm:$0xff] %vm851, %v844
  %910 = vst.msk [vmem:[%s2 + $0x1d0] sm:$0xff] %vm851, %v845
  %911 = vst.msk [vmem:[%s2 + $0x1d8] sm:$0xff] %vm851, %v846
  %912 = vst.msk [vmem:[%s2 + $0x1e0] sm:$0xff] %vm851, %v847
  %913 = vst.msk [vmem:[%s2 + $0x1e8] sm:$0xff] %vm851, %v848
  %914 = vst.msk [vmem:[%s2 + $0x1f0] sm:$0xff] %vm851, %v849
  %915 = vst.msk [vmem:[%s2 + $0x1f8] sm:$0xff] %vm851, %v850
  // Predicated region
  $region10: #{ae_vine2_forward.7} parent=0 // pred_check
    _
  $region11: #{ae_vine2_forward.7} parent=0 // pred_check_branch
    %917 = sbr.rel (0) target = $region13
  $region12: #{ae_vine2_forward.7} parent=0 // pred_region
    _
  $region13: #{ae_vine2_forward.7} parent=0 // pred_fallthru
    _
  // Predicated region
  $region14: #{ae_vine2_forward.7} parent=0 // pred_check
    _
  $region15: #{ae_vine2_forward.7} parent=0 // pred_check_branch
    %919 = sbr.rel (0) target = $region17
  $region16: #{ae_vine2_forward.7} parent=0 // pred_region
    _
  $region17: #{ae_vine2_forward.7} parent=0 // pred_fallthru
    _

// kernel: ae_vine2_forward.8
$region0: #{ae_vine2_forward.8}
  #allocation0 [shape = 'u32[]', space=smem, size = 0x4, offset = 0x4, fixed_abs, tag = 'smem constant byte address 0x4 - core index']
  #allocation1 [shape = 'u32[144,128]{1,0:T(1,128)}', space=vmem, size = 0x12000, scoped, tag = 'internal scratch']
  %s0 = inlined_call_operand.vmem [shape: f32[128,512], index: 0, kind: input, shape index: {}]
  %s1 = inlined_call_operand.vmem [shape: f32[512,64], index: 1, kind: input, shape index: {}]
  %s2 = inlined_call_operand.vmem [shape: f32[1,64], index: 2, kind: input, shape index: {}]
  %s3 = inlined_call_operand.vmem [shape: f32[1,64], index: 3, kind: input, shape index: {}]
  %s4 = inlined_call_operand.vmem [shape: f32[128,64], index: 4, kind: output, shape index: {}]
  %s5 = sld [smem:[#allocation0]]
  $region26: #{ae_vine2_forward.8} parent=0
    _
  %s7 = ssub.s32 1, %s5
  %s8 = scalar_select 0, %s7, %s5
  // Predicated region
  $region2: #{ae_vine2_forward.8} parent=0 // pred_check
    _
  $region3: #{ae_vine2_forward.8} parent=0 // pred_check_branch
    %10 = sbr.rel (0) target = $region5
  $region4: #{ae_vine2_forward.8} parent=0 // pred_region
    _
  $region5: #{ae_vine2_forward.8} parent=0 // pred_fallthru
    _
  // Predicated region
  $region6: #{ae_vine2_forward.8} parent=0 // pred_check
    _
  $region7: #{ae_vine2_forward.8} parent=0 // pred_check_branch
    %12 = sbr.rel (0) target = $region9
  $region8: #{ae_vine2_forward.8} parent=0 // pred_region
    _
  $region9: #{ae_vine2_forward.8} parent=0 // pred_fallthru
    _
  // Predicated region
  $region10: #{ae_vine2_forward.8} parent=0 // pred_check
    _
  $region11: #{ae_vine2_forward.8} parent=0 // pred_check_branch
    %14 = sbr.rel (0) target = $region13
  $region12: #{ae_vine2_forward.8} parent=0 // pred_region
    _
  $region13: #{ae_vine2_forward.8} parent=0 // pred_fallthru
    _
  // Predicated region
  $region14: #{ae_vine2_forward.8} parent=0 // pred_check
    _
  $region15: #{ae_vine2_forward.8} parent=0 // pred_check_branch
    %16 = sbr.rel (0) target = $region17
  $region16: #{ae_vine2_forward.8} parent=0 // pred_region
    _
  $region17: #{ae_vine2_forward.8} parent=0 // pred_fallthru
    _
  %v17 = vld [vmem:[%s0] sm:$0xff]
  %v18 = vld [vmem:[%s0 + $0x8] sm:$0xff]
  %v19 = vld [vmem:[%s0 + $0x10] sm:$0xff]
  %v20 = vld [vmem:[%s0 + $0x18] sm:$0xff]
  %v21 = vld [vmem:[%s0 + $0x20] sm:$0xff]
  %v22 = vld [vmem:[%s0 + $0x28] sm:$0xff]
  %v23 = vld [vmem:[%s0 + $0x30] sm:$0xff]
  %v24 = vld [vmem:[%s0 + $0x38] sm:$0xff]
  %v25 = vld [vmem:[%s0 + $0x40] sm:$0xff]
  %v26 = vld [vmem:[%s0 + $0x48] sm:$0xff]
  %v27 = vld [vmem:[%s0 + $0x50] sm:$0xff]
  %v28 = vld [vmem:[%s0 + $0x58] sm:$0xff]
  %v29 = vld [vmem:[%s0 + $0x60] sm:$0xff]
  %v30 = vld [vmem:[%s0 + $0x68] sm:$0xff]
  %v31 = vld [vmem:[%s0 + $0x70] sm:$0xff]
  %v32 = vld [vmem:[%s0 + $0x78] sm:$0xff]
  %v33 = vld [vmem:[%s0 + $0x80] sm:$0xff]
  %v34 = vld [vmem:[%s0 + $0x88] sm:$0xff]
  %v35 = vld [vmem:[%s0 + $0x90] sm:$0xff]
  %v36 = vld [vmem:[%s0 + $0x98] sm:$0xff]
  %v37 = vld [vmem:[%s0 + $0xa0] sm:$0xff]
  %v38 = vld [vmem:[%s0 + $0xa8] sm:$0xff]
  %v39 = vld [vmem:[%s0 + $0xb0] sm:$0xff]
  %v40 = vld [vmem:[%s0 + $0xb8] sm:$0xff]
  %v41 = vld [vmem:[%s0 + $0xc0] sm:$0xff]
  %v42 = vld [vmem:[%s0 + $0xc8] sm:$0xff]
  %v43 = vld [vmem:[%s0 + $0xd0] sm:$0xff]
  %v44 = vld [vmem:[%s0 + $0xd8] sm:$0xff]
  %v45 = vld [vmem:[%s0 + $0xe0] sm:$0xff]
  %v46 = vld [vmem:[%s0 + $0xe8] sm:$0xff]
  %v47 = vld [vmem:[%s0 + $0xf0] sm:$0xff]
  %v48 = vld [vmem:[%s0 + $0xf8] sm:$0xff]
  %v49 = vld [vmem:[%s0 + $0x100] sm:$0xff]
  %v50 = vld [vmem:[%s0 + $0x108] sm:$0xff]
  %v51 = vld [vmem:[%s0 + $0x110] sm:$0xff]
  %v52 = vld [vmem:[%s0 + $0x118] sm:$0xff]
  %v53 = vld [vmem:[%s0 + $0x120] sm:$0xff]
  %v54 = vld [vmem:[%s0 + $0x128] sm:$0xff]
  %v55 = vld [vmem:[%s0 + $0x130] sm:$0xff]
  %v56 = vld [vmem:[%s0 + $0x138] sm:$0xff]
  %v57 = vld [vmem:[%s0 + $0x140] sm:$0xff]
  %v58 = vld [vmem:[%s0 + $0x148] sm:$0xff]
  %v59 = vld [vmem:[%s0 + $0x150] sm:$0xff]
  %v60 = vld [vmem:[%s0 + $0x158] sm:$0xff]
  %v61 = vld [vmem:[%s0 + $0x160] sm:$0xff]
  %v62 = vld [vmem:[%s0 + $0x168] sm:$0xff]
  %v63 = vld [vmem:[%s0 + $0x170] sm:$0xff]
  %v64 = vld [vmem:[%s0 + $0x178] sm:$0xff]
  %v65 = vld [vmem:[%s0 + $0x180] sm:$0xff]
  %v66 = vld [vmem:[%s0 + $0x188] sm:$0xff]
  %v67 = vld [vmem:[%s0 + $0x190] sm:$0xff]
  %v68 = vld [vmem:[%s0 + $0x198] sm:$0xff]
  %v69 = vld [vmem:[%s0 + $0x1a0] sm:$0xff]
  %v70 = vld [vmem:[%s0 + $0x1a8] sm:$0xff]
  %v71 = vld [vmem:[%s0 + $0x1b0] sm:$0xff]
  %v72 = vld [vmem:[%s0 + $0x1b8] sm:$0xff]
  %v73 = vld [vmem:[%s0 + $0x1c0] sm:$0xff]
  %v74 = vld [vmem:[%s0 + $0x1c8] sm:$0xff]
  %v75 = vld [vmem:[%s0 + $0x1d0] sm:$0xff]
  %v76 = vld [vmem:[%s0 + $0x1d8] sm:$0xff]
  %v77 = vld [vmem:[%s0 + $0x1e0] sm:$0xff]
  %v78 = vld [vmem:[%s0 + $0x1e8] sm:$0xff]
  %v79 = vld [vmem:[%s0 + $0x1f0] sm:$0xff]
  %v80 = vld [vmem:[%s0 + $0x1f8] sm:$0xff]
  %v81 = vld [vmem:[%s1] sm:$0xff]
  %v82 = vld [vmem:[%s1 + $0x8] sm:$0xff]
  %v83 = vld [vmem:[%s1 + $0x10] sm:$0xff]
  %v84 = vld [vmem:[%s1 + $0x18] sm:$0xff]
  %v85 = vld [vmem:[%s1 + $0x20] sm:$0xff]
  %v86 = vld [vmem:[%s1 + $0x28] sm:$0xff]
  %v87 = vld [vmem:[%s1 + $0x30] sm:$0xff]
  %v88 = vld [vmem:[%s1 + $0x38] sm:$0xff]
  %v89 = vld [vmem:[%s1 + $0x40] sm:$0xff]
  %v90 = vld [vmem:[%s1 + $0x48] sm:$0xff]
  %v91 = vld [vmem:[%s1 + $0x50] sm:$0xff]
  %v92 = vld [vmem:[%s1 + $0x58] sm:$0xff]
  %v93 = vld [vmem:[%s1 + $0x60] sm:$0xff]
  %v94 = vld [vmem:[%s1 + $0x68] sm:$0xff]
  %v95 = vld [vmem:[%s1 + $0x70] sm:$0xff]
  %v96 = vld [vmem:[%s1 + $0x78] sm:$0xff]
  %v97 = vld [vmem:[%s1 + $0x80] sm:$0xff]
  %v98 = vld [vmem:[%s1 + $0x88] sm:$0xff]
  %v99 = vld [vmem:[%s1 + $0x90] sm:$0xff]
  %v100 = vld [vmem:[%s1 + $0x98] sm:$0xff]
  %v101 = vld [vmem:[%s1 + $0xa0] sm:$0xff]
  %v102 = vld [vmem:[%s1 + $0xa8] sm:$0xff]
  %v103 = vld [vmem:[%s1 + $0xb0] sm:$0xff]
  %v104 = vld [vmem:[%s1 + $0xb8] sm:$0xff]
  %v105 = vld [vmem:[%s1 + $0xc0] sm:$0xff]
  %v106 = vld [vmem:[%s1 + $0xc8] sm:$0xff]
  %v107 = vld [vmem:[%s1 + $0xd0] sm:$0xff]
  %v108 = vld [vmem:[%s1 + $0xd8] sm:$0xff]
  %v109 = vld [vmem:[%s1 + $0xe0] sm:$0xff]
  %v110 = vld [vmem:[%s1 + $0xe8] sm:$0xff]
  %v111 = vld [vmem:[%s1 + $0xf0] sm:$0xff]
  %v112 = vld [vmem:[%s1 + $0xf8] sm:$0xff]
  %v113 = vld [vmem:[%s1 + $0x100] sm:$0xff]
  %v114 = vld [vmem:[%s1 + $0x108] sm:$0xff]
  %v115 = vld [vmem:[%s1 + $0x110] sm:$0xff]
  %v116 = vld [vmem:[%s1 + $0x118] sm:$0xff]
  %v117 = vld [vmem:[%s1 + $0x120] sm:$0xff]
  %v118 = vld [vmem:[%s1 + $0x128] sm:$0xff]
  %v119 = vld [vmem:[%s1 + $0x130] sm:$0xff]
  %v120 = vld [vmem:[%s1 + $0x138] sm:$0xff]
  %v121 = vld [vmem:[%s1 + $0x140] sm:$0xff]
  %v122 = vld [vmem:[%s1 + $0x148] sm:$0xff]
  %v123 = vld [vmem:[%s1 + $0x150] sm:$0xff]
  %v124 = vld [vmem:[%s1 + $0x158] sm:$0xff]
  %v125 = vld [vmem:[%s1 + $0x160] sm:$0xff]
  %v126 = vld [vmem:[%s1 + $0x168] sm:$0xff]
  %v127 = vld [vmem:[%s1 + $0x170] sm:$0xff]
  %v128 = vld [vmem:[%s1 + $0x178] sm:$0xff]
  %v129 = vld [vmem:[%s1 + $0x180] sm:$0xff]
  %v130 = vld [vmem:[%s1 + $0x188] sm:$0xff]
  %v131 = vld [vmem:[%s1 + $0x190] sm:$0xff]
  %v132 = vld [vmem:[%s1 + $0x198] sm:$0xff]
  %v133 = vld [vmem:[%s1 + $0x1a0] sm:$0xff]
  %v134 = vld [vmem:[%s1 + $0x1a8] sm:$0xff]
  %v135 = vld [vmem:[%s1 + $0x1b0] sm:$0xff]
  %v136 = vld [vmem:[%s1 + $0x1b8] sm:$0xff]
  %v137 = vld [vmem:[%s1 + $0x1c0] sm:$0xff]
  %v138 = vld [vmem:[%s1 + $0x1c8] sm:$0xff]
  %v139 = vld [vmem:[%s1 + $0x1d0] sm:$0xff]
  %v140 = vld [vmem:[%s1 + $0x1d8] sm:$0xff]
  %v141 = vld [vmem:[%s1 + $0x1e0] sm:$0xff]
  %v142 = vld [vmem:[%s1 + $0x1e8] sm:$0xff]
  %v143 = vld [vmem:[%s1 + $0x1f0] sm:$0xff]
  %v144 = vld [vmem:[%s1 + $0x1f8] sm:$0xff]
  %145 = vmatprep.subr.mxu0 0.0
  %146 = vmatpush1.msra.mxu0 %v81
  %147 = vmatprep.subr.mxu0 0.0
  %148 = vmatpush1.msra.mxu0 %v82
  %149 = vmatprep.subr.mxu0 0.0
  %150 = vmatpush1.msra.mxu0 %v83
  %151 = vmatprep.subr.mxu0 0.0
  %152 = vmatpush1.msra.mxu0 %v84
  %153 = vmatprep.subr.mxu0 0.0
  %154 = vmatpush1.msra.mxu0 %v85
  %155 = vmatprep.subr.mxu0 0.0
  %156 = vmatpush1.msra.mxu0 %v86
  %157 = vmatprep.subr.mxu0 0.0
  %158 = vmatpush1.msra.mxu0 %v87
  %159 = vmatprep.subr.mxu0 0.0
  %160 = vmatpush1.msra.mxu0 %v88
  %161 = vmatprep.subr.mxu0 0.0
  %162 = vmatpush1.msra.mxu0 %v89
  %163 = vmatprep.subr.mxu0 0.0
  %164 = vmatpush1.msra.mxu0 %v90
  %165 = vmatprep.subr.mxu0 0.0
  %166 = vmatpush1.msra.mxu0 %v91
  %167 = vmatprep.subr.mxu0 0.0
  %168 = vmatpush1.msra.mxu0 %v92
  %169 = vmatprep.subr.mxu0 0.0
  %170 = vmatpush1.msra.mxu0 %v93
  %171 = vmatprep.subr.mxu0 0.0
  %172 = vmatpush1.msra.mxu0 %v94
  %173 = vmatprep.subr.mxu0 0.0
  %174 = vmatpush1.msra.mxu0 %v95
  %175 = vmatprep.subr.mxu0 0.0
  %176 = vmatpush1.msra.mxu0 %v96
  %177 = vmatprep.subr.mxu0 0.0
  %178 = vmatpush1.msra.mxu0 %v97
  %179 = vmatprep.subr.mxu0 0.0
  %180 = vmatpush1.msra.mxu0 %v98
  %181 = vmatprep.subr.mxu0 0.0
  %182 = vmatpush1.msra.mxu0 %v99
  %183 = vmatprep.subr.mxu0 0.0
  %184 = vmatpush1.msra.mxu0 %v100
  %185 = vmatprep.subr.mxu0 0.0
  %186 = vmatpush1.msra.mxu0 %v101
  %187 = vmatprep.subr.mxu0 0.0
  %188 = vmatpush1.msra.mxu0 %v102
  %189 = vmatprep.subr.mxu0 0.0
  %190 = vmatpush1.msra.mxu0 %v103
  %191 = vmatprep.subr.mxu0 0.0
  %192 = vmatpush1.msra.mxu0 %v104
  %193 = vmatprep.subr.mxu0 0.0
  %194 = vmatpush1.msra.mxu0 %v105
  %195 = vmatprep.subr.mxu0 0.0
  %196 = vmatpush1.msra.mxu0 %v106
  %197 = vmatprep.subr.mxu0 0.0
  %198 = vmatpush1.msra.mxu0 %v107
  %199 = vmatprep.subr.mxu0 0.0
  %200 = vmatpush1.msra.mxu0 %v108
  %201 = vmatprep.subr.mxu0 0.0
  %202 = vmatpush1.msra.mxu0 %v109
  %203 = vmatprep.subr.mxu0 0.0
  %204 = vmatpush1.msra.mxu0 %v110
  %205 = vmatprep.subr.mxu0 0.0
  %206 = vmatpush1.msra.mxu0 %v111
  %207 = vmatprep.subr.mxu0 0.0
  %208 = vmatpush1.msra.mxu0 %v112
  %209 = vmatprep.mubr.f32.mxu0 %v18
  %210 = vmatmul.mubr.f32.gmra.mrb[0].mxu0 %v17
  %v211 = vpop.f32.mrb[0].mxu0
  %v212 = vadd.f32 0.0, %v211
  %v213 = vpop.f32.mrb[0].mxu0
  %214 = vmatprep.mubr.f32.mxu0 %v22
  %215 = vmatmul.mubr.f32.gmra.mrb[0].mxu0 %v21
  %v216 = vpop.f32.mrb[0].mxu0
  %v217 = vadd.f32 0.0, %v216
  %v218 = vpop.f32.mrb[0].mxu0
  %219 = vmatprep.mubr.f32.mxu0 %v26
  %220 = vmatmul.mubr.f32.gmra.mrb[0].mxu0 %v25
  %v221 = vpop.f32.mrb[0].mxu0
  %v222 = vadd.f32 0.0, %v221
  %v223 = vpop.f32.mrb[0].mxu0
  %224 = vmatprep.mubr.f32.mxu0 %v30
  %225 = vmatmul.mubr.f32.gmra.mrb[0].mxu0 %v29
  %v226 = vpop.f32.mrb[0].mxu0
  %v227 = vadd.f32 0.0, %v226
  %v228 = vpop.f32.mrb[0].mxu0
  %229 = vmatprep.mubr.f32.mxu0 %v34
  %230 = vmatmul.mubr.f32.gmra.mrb[0].mxu0 %v33
  %v231 = vpop.f32.mrb[0].mxu0
  %v232 = vadd.f32 0.0, %v231
  %v233 = vpop.f32.mrb[0].mxu0
  %234 = vmatprep.mubr.f32.mxu0 %v38
  %235 = vmatmul.mubr.f32.gmra.mrb[0].mxu0 %v37
  %v236 = vpop.f32.mrb[0].mxu0
  %v237 = vadd.f32 0.0, %v236
  %v238 = vpop.f32.mrb[0].mxu0
  %239 = vmatprep.mubr.f32.mxu0 %v42
  %240 = vmatmul.mubr.f32.gmra.mrb[0].mxu0 %v41
  %v241 = vpop.f32.mrb[0].mxu0
  %v242 = vadd.f32 0.0, %v241
  %v243 = vpop.f32.mrb[0].mxu0
  %244 = vmatprep.mubr.f32.mxu0 %v46
  %245 = vmatmul.mubr.f32.gmra.mrb[0].mxu0 %v45
  %v246 = vpop.f32.mrb[0].mxu0
  %v247 = vadd.f32 0.0, %v246
  %v248 = vpop.f32.mrb[0].mxu0
  %249 = vmatprep.mubr.f32.mxu0 %v50
  %250 = vmatmul.mubr.f32.gmra.mrb[0].mxu0 %v49
  %v251 = vpop.f32.mrb[0].mxu0
  %v252 = vadd.f32 0.0, %v251
  %v253 = vpop.f32.mrb[0].mxu0
  %254 = vmatprep.mubr.f32.mxu0 %v54
  %255 = vmatmul.mubr.f32.gmra.mrb[0].mxu0 %v53
  %v256 = vpop.f32.mrb[0].mxu0
  %v257 = vadd.f32 0.0, %v256
  %v258 = vpop.f32.mrb[0].mxu0
  %259 = vmatprep.mubr.f32.mxu0 %v58
  %260 = vmatmul.mubr.f32.gmra.mrb[0].mxu0 %v57
  %v261 = vpop.f32.mrb[0].mxu0
  %v262 = vadd.f32 0.0, %v261
  %v263 = vpop.f32.mrb[0].mxu0
  %264 = vmatprep.mubr.f32.mxu0 %v62
  %265 = vmatmul.mubr.f32.gmra.mrb[0].mxu0 %v61
  %v266 = vpop.f32.mrb[0].mxu0
  %v267 = vadd.f32 0.0, %v266
  %v268 = vpop.f32.mrb[0].mxu0
  %269 = vmatprep.mubr.f32.mxu0 %v66
  %270 = vmatmul.mubr.f32.gmra.mrb[0].mxu0 %v65
  %v271 = vpop.f32.mrb[0].mxu0
  %v272 = vadd.f32 0.0, %v271
  %v273 = vpop.f32.mrb[0].mxu0
  %274 = vmatprep.mubr.f32.mxu0 %v70
  %275 = vmatmul.mubr.f32.gmra.mrb[0].mxu0 %v69
  %v276 = vpop.f32.mrb[0].mxu0
  %v277 = vadd.f32 0.0, %v276
  %v278 = vpop.f32.mrb[0].mxu0
  %279 = vmatprep.mubr.f32.mxu0 %v74
  %280 = vmatmul.mubr.f32.gmra.mrb[0].mxu0 %v73
  %v281 = vpop.f32.mrb[0].mxu0
  %v282 = vadd.f32 0.0, %v281
  %v283 = vpop.f32.mrb[0].mxu0
  %284 = vmatprep.mubr.f32.mxu0 %v78
  %285 = vmatmul.mubr.f32.gmra.mrb[0].mxu0 %v77
  %v286 = vpop.f32.mrb[0].mxu0
  %v287 = vadd.f32 0.0, %v286
  %v288 = vpop.f32.mrb[0].mxu0
  %289 = vdwg.mxu0
  %290 = vmatprep.subr.mxu0 0.0
  %291 = vmatpush1.msra.mxu0 %v113
  %292 = vmatprep.subr.mxu0 0.0
  %293 = vmatpush1.msra.mxu0 %v114
  %294 = vmatprep.subr.mxu0 0.0
  %295 = vmatpush1.msra.mxu0 %v115
  %296 = vmatprep.subr.mxu0 0.0
  %297 = vmatpush1.msra.mxu0 %v116
  %298 = vmatprep.subr.mxu0 0.0
  %299 = vmatpush1.msra.mxu0 %v117
  %300 = vmatprep.subr.mxu0 0.0
  %301 = vmatpush1.msra.mxu0 %v118
  %302 = vmatprep.subr.mxu0 0.0
  %303 = vmatpush1.msra.mxu0 %v119
  %304 = vmatprep.subr.mxu0 0.0
  %305 = vmatpush1.msra.mxu0 %v120
  %306 = vmatprep.subr.mxu0 0.0
  %307 = vmatpush1.msra.mxu0 %v121
  %308 = vmatprep.subr.mxu0 0.0
  %309 = vmatpush1.msra.mxu0 %v122
  %310 = vmatprep.subr.mxu0 0.0
  %311 = vmatpush1.msra.mxu0 %v123
  %312 = vmatprep.subr.mxu0 0.0
  %313 = vmatpush1.msra.mxu0 %v124
  %314 = vmatprep.subr.mxu0 0.0
  %315 = vmatpush1.msra.mxu0 %v125
  %316 = vmatprep.subr.mxu0 0.0
  %317 = vmatpush1.msra.mxu0 %v126
  %318 = vmatprep.subr.mxu0 0.0
  %319 = vmatpush1.msra.mxu0 %v127
  %320 = vmatprep.subr.mxu0 0.0
  %321 = vmatpush1.msra.mxu0 %v128
  %322 = vmatprep.subr.mxu0 0.0
  %323 = vmatpush1.msra.mxu0 %v129
  %324 = vmatprep.subr.mxu0 0.0
  %325 = vmatpush1.msra.mxu0 %v130
  %326 = vmatprep.subr.mxu0 0.0
  %327 = vmatpush1.msra.mxu0 %v131
  %328 = vmatprep.subr.mxu0 0.0
  %329 = vmatpush1.msra.mxu0 %v132
  %330 = vmatprep.subr.mxu0 0.0
  %331 = vmatpush1.msra.mxu0 %v133
  %332 = vmatprep.subr.mxu0 0.0
  %333 = vmatpush1.msra.mxu0 %v134
  %334 = vmatprep.subr.mxu0 0.0
  %335 = vmatpush1.msra.mxu0 %v135
  %336 = vmatprep.subr.mxu0 0.0
  %337 = vmatpush1.msra.mxu0 %v136
  %338 = vmatprep.subr.mxu0 0.0
  %339 = vmatpush1.msra.mxu0 %v137
  %340 = vmatprep.subr.mxu0 0.0
  %341 = vmatpush1.msra.mxu0 %v138
  %342 = vmatprep.subr.mxu0 0.0
  %343 = vmatpush1.msra.mxu0 %v139
  %344 = vmatprep.subr.mxu0 0.0
  %345 = vmatpush1.msra.mxu0 %v140
  %346 = vmatprep.subr.mxu0 0.0
  %347 = vmatpush1.msra.mxu0 %v141
  %348 = vmatprep.subr.mxu0 0.0
  %349 = vmatpush1.msra.mxu0 %v142
  %350 = vmatprep.subr.mxu0 0.0
  %351 = vmatpush1.msra.mxu0 %v143
  %352 = vmatprep.subr.mxu0 0.0
  %353 = vmatpush1.msra.mxu0 %v144
  %354 = vmatprep.mubr.f32.mxu0 %v20
  %355 = vmatmul.mubr.f32.gmra.mrb[0].mxu0 %v19
  %v356 = vpop.f32.mrb[0].mxu0
  %v357 = vadd.f32 %v212, %v356
  %v358 = vpop.f32.mrb[0].mxu0
  %359 = vmatprep.mubr.f32.mxu0 %v24
  %360 = vmatmul.mubr.f32.gmra.mrb[0].mxu0 %v23
  %v361 = vpop.f32.mrb[0].mxu0
  %v362 = vadd.f32 %v217, %v361
  %v363 = vpop.f32.mrb[0].mxu0
  %364 = vmatprep.mubr.f32.mxu0 %v28
  %365 = vmatmul.mubr.f32.gmra.mrb[0].mxu0 %v27
  %v366 = vpop.f32.mrb[0].mxu0
  %v367 = vadd.f32 %v222, %v366
  %v368 = vpop.f32.mrb[0].mxu0
  %369 = vmatprep.mubr.f32.mxu0 %v32
  %370 = vmatmul.mubr.f32.gmra.mrb[0].mxu0 %v31
  %v371 = vpop.f32.mrb[0].mxu0
  %v372 = vadd.f32 %v227, %v371
  %v373 = vpop.f32.mrb[0].mxu0
  %374 = vmatprep.mubr.f32.mxu0 %v36
  %375 = vmatmul.mubr.f32.gmra.mrb[0].mxu0 %v35
  %v376 = vpop.f32.mrb[0].mxu0
  %v377 = vadd.f32 %v232, %v376
  %v378 = vpop.f32.mrb[0].mxu0
  %379 = vmatprep.mubr.f32.mxu0 %v40
  %380 = vmatmul.mubr.f32.gmra.mrb[0].mxu0 %v39
  %v381 = vpop.f32.mrb[0].mxu0
  %v382 = vadd.f32 %v237, %v381
  %v383 = vpop.f32.mrb[0].mxu0
  %384 = vmatprep.mubr.f32.mxu0 %v44
  %385 = vmatmul.mubr.f32.gmra.mrb[0].mxu0 %v43
  %v386 = vpop.f32.mrb[0].mxu0
  %v387 = vadd.f32 %v242, %v386
  %v388 = vpop.f32.mrb[0].mxu0
  %389 = vmatprep.mubr.f32.mxu0 %v48
  %390 = vmatmul.mubr.f32.gmra.mrb[0].mxu0 %v47
  %v391 = vpop.f32.mrb[0].mxu0
  %v392 = vadd.f32 %v247, %v391
  %v393 = vpop.f32.mrb[0].mxu0
  %394 = vmatprep.mubr.f32.mxu0 %v52
  %395 = vmatmul.mubr.f32.gmra.mrb[0].mxu0 %v51
  %v396 = vpop.f32.mrb[0].mxu0
  %v397 = vadd.f32 %v252, %v396
  %v398 = vpop.f32.mrb[0].mxu0
  %399 = vmatprep.mubr.f32.mxu0 %v56
  %400 = vmatmul.mubr.f32.gmra.mrb[0].mxu0 %v55
  %v401 = vpop.f32.mrb[0].mxu0
  %v402 = vadd.f32 %v257, %v401
  %v403 = vpop.f32.mrb[0].mxu0
  %404 = vmatprep.mubr.f32.mxu0 %v60
  %405 = vmatmul.mubr.f32.gmra.mrb[0].mxu0 %v59
  %v406 = vpop.f32.mrb[0].mxu0
  %v407 = vadd.f32 %v262, %v406
  %v408 = vpop.f32.mrb[0].mxu0
  %409 = vmatprep.mubr.f32.mxu0 %v64
  %410 = vmatmul.mubr.f32.gmra.mrb[0].mxu0 %v63
  %v411 = vpop.f32.mrb[0].mxu0
  %v412 = vadd.f32 %v267, %v411
  %v413 = vpop.f32.mrb[0].mxu0
  %414 = vmatprep.mubr.f32.mxu0 %v68
  %415 = vmatmul.mubr.f32.gmra.mrb[0].mxu0 %v67
  %v416 = vpop.f32.mrb[0].mxu0
  %v417 = vadd.f32 %v272, %v416
  %v418 = vpop.f32.mrb[0].mxu0
  %419 = vmatprep.mubr.f32.mxu0 %v72
  %420 = vmatmul.mubr.f32.gmra.mrb[0].mxu0 %v71
  %v421 = vpop.f32.mrb[0].mxu0
  %v422 = vadd.f32 %v277, %v421
  %v423 = vpop.f32.mrb[0].mxu0
  %424 = vmatprep.mubr.f32.mxu0 %v76
  %425 = vmatmul.mubr.f32.gmra.mrb[0].mxu0 %v75
  %v426 = vpop.f32.mrb[0].mxu0
  %v427 = vadd.f32 %v282, %v426
  %v428 = vpop.f32.mrb[0].mxu0
  %429 = vmatprep.mubr.f32.mxu0 %v80
  %430 = vmatmul.mubr.f32.gmra.mrb[0].mxu0 %v79
  %v431 = vpop.f32.mrb[0].mxu0
  %v432 = vadd.f32 %v287, %v431
  %v433 = vpop.f32.mrb[0].mxu0
  %434 = vdwg.mxu0
  %v435 = vld [vmem:[%s2] sm:$0x1]
  %v436 = vld [vmem:[%s3] sm:$0x1]
  %vm437 = vcmask 523264
  %v438 = vsel %vm437, %v357, 0.0
  %v439 = vsel %vm437, %v362, 0.0
  %v440 = vadd.f32 %v438, %v439
  %v441 = vsel %vm437, %v367, 0.0
  %v442 = vadd.f32 %v440, %v441
  %v443 = vsel %vm437, %v372, 0.0
  %v444 = vadd.f32 %v442, %v443
  %v445 = vsel %vm437, %v377, 0.0
  %v446 = vadd.f32 %v444, %v445
  %v447 = vsel %vm437, %v382, 0.0
  %v448 = vadd.f32 %v446, %v447
  %v449 = vsel %vm437, %v387, 0.0
  %v450 = vadd.f32 %v448, %v449
  %v451 = vsel %vm437, %v392, 0.0
  %v452 = vadd.f32 %v450, %v451
  %v453 = vsel %vm437, %v397, 0.0
  %v454 = vadd.f32 %v452, %v453
  %v455 = vsel %vm437, %v402, 0.0
  %v456 = vadd.f32 %v454, %v455
  %v457 = vsel %vm437, %v407, 0.0
  %v458 = vadd.f32 %v456, %v457
  %v459 = vsel %vm437, %v412, 0.0
  %v460 = vadd.f32 %v458, %v459
  %v461 = vsel %vm437, %v417, 0.0
  %v462 = vadd.f32 %v460, %v461
  %v463 = vsel %vm437, %v422, 0.0
  %v464 = vadd.f32 %v462, %v463
  %v465 = vsel %vm437, %v427, 0.0
  %v466 = vadd.f32 %v464, %v465
  %v467 = vsel %vm437, %v432, 0.0
  %v468 = vadd.f32 %v466, %v467
  %v469 = vrot.slane %v468, 4
  %v470 = vadd.f32 %v468, %v469
  %v471 = vrot.slane %v470, 2
  %v472 = vadd.f32 %v470, %v471
  %v473 = vrot.slane %v472, 1
  %v474 = vadd.f32 %v472, %v473
  %v475 = vmul.f32 %v474, 0.0078125
  %v476 = vsub.f32 %v357, %v475
  %v477 = vsub.f32 %v362, %v475
  %v478 = vsub.f32 %v367, %v475
  %v479 = vsub.f32 %v372, %v475
  %v480 = vsub.f32 %v377, %v475
  %v481 = vsub.f32 %v382, %v475
  %v482 = vsub.f32 %v387, %v475
  %v483 = vsub.f32 %v392, %v475
  %v484 = vsub.f32 %v397, %v475
  %v485 = vsub.f32 %v402, %v475
  %v486 = vsub.f32 %v407, %v475
  %v487 = vsub.f32 %v412, %v475
  %v488 = vsub.f32 %v417, %v475
  %v489 = vsub.f32 %v422, %v475
  %v490 = vsub.f32 %v427, %v475
  %v491 = vsub.f32 %v432, %v475
  %v492 = vmul.f32 %v476, %v476
  %v493 = vmul.f32 %v477, %v477
  %v494 = vmul.f32 %v478, %v478
  %v495 = vmul.f32 %v479, %v479
  %v496 = vmul.f32 %v480, %v480
  %v497 = vmul.f32 %v481, %v481
  %v498 = vmul.f32 %v482, %v482
  %v499 = vmul.f32 %v483, %v483
  %v500 = vmul.f32 %v484, %v484
  %v501 = vmul.f32 %v485, %v485
  %v502 = vmul.f32 %v486, %v486
  %v503 = vmul.f32 %v487, %v487
  %v504 = vmul.f32 %v488, %v488
  %v505 = vmul.f32 %v489, %v489
  %v506 = vmul.f32 %v490, %v490
  %v507 = vmul.f32 %v491, %v491
  %v508 = vsel %vm437, %v492, 0.0
  %v509 = vsel %vm437, %v493, 0.0
  %v510 = vadd.f32 %v508, %v509
  %v511 = vsel %vm437, %v494, 0.0
  %v512 = vadd.f32 %v510, %v511
  %v513 = vsel %vm437, %v495, 0.0
  %v514 = vadd.f32 %v512, %v513
  %v515 = vsel %vm437, %v496, 0.0
  %v516 = vadd.f32 %v514, %v515
  %v517 = vsel %vm437, %v497, 0.0
  %v518 = vadd.f32 %v516, %v517
  %v519 = vsel %vm437, %v498, 0.0
  %v520 = vadd.f32 %v518, %v519
  %v521 = vsel %vm437, %v499, 0.0
  %v522 = vadd.f32 %v520, %v521
  %v523 = vsel %vm437, %v500, 0.0
  %v524 = vadd.f32 %v522, %v523
  %v525 = vsel %vm437, %v501, 0.0
  %v526 = vadd.f32 %v524, %v525
  %v527 = vsel %vm437, %v502, 0.0
  %v528 = vadd.f32 %v526, %v527
  %v529 = vsel %vm437, %v503, 0.0
  %v530 = vadd.f32 %v528, %v529
  %v531 = vsel %vm437, %v504, 0.0
  %v532 = vadd.f32 %v530, %v531
  %v533 = vsel %vm437, %v505, 0.0
  %v534 = vadd.f32 %v532, %v533
  %v535 = vsel %vm437, %v506, 0.0
  %v536 = vadd.f32 %v534, %v535
  %v537 = vsel %vm437, %v507, 0.0
  %v538 = vadd.f32 %v536, %v537
  %v539 = vrot.slane %v538, 4
  %v540 = vadd.f32 %v538, %v539
  %v541 = vrot.slane %v540, 2
  %v542 = vadd.f32 %v540, %v541
  %v543 = vrot.slane %v542, 1
  %v544 = vadd.f32 %v542, %v543
  %v545 = vmul.f32 %v544, 0.0078125
  %v546 = vadd.f32 %v545, 1e-05
  %v547 = vrsqrt.pop %v546
  %v548 = vmul.f32 %v435, %v547
  %v550 = vlaneseq
  %v551 = vshrl.u32 %v550, 7
  %v552 = vsub.s32 0, %v551
  %v553 = vrot.slane %v548, %v552
  %v555 = vmul.f32 %v476, %v553
  %v556 = vmul.f32 %v477, %v553
  %v557 = vmul.f32 %v478, %v553
  %v558 = vmul.f32 %v479, %v553
  %v559 = vmul.f32 %v480, %v553
  %v560 = vmul.f32 %v481, %v553
  %v561 = vmul.f32 %v482, %v553
  %v562 = vmul.f32 %v483, %v553
  %v563 = vmul.f32 %v484, %v553
  %v564 = vmul.f32 %v485, %v553
  %v565 = vmul.f32 %v486, %v553
  %v566 = vmul.f32 %v487, %v553
  %v567 = vmul.f32 %v488, %v553
  %v568 = vmul.f32 %v489, %v553
  %v569 = vmul.f32 %v490, %v553
  %v570 = vmul.f32 %v491, %v553
  %v572 = vlaneseq
  %v573 = vshrl.u32 %v572, 7
  %v574 = vsub.s32 0, %v573
  %v575 = vrot.slane %v436, %v574
  %v577 = vadd.f32 %v555, %v575
  %v578 = vadd.f32 %v556, %v575
  %v579 = vadd.f32 %v557, %v575
  %v580 = vadd.f32 %v558, %v575
  %v581 = vadd.f32 %v559, %v575
  %v582 = vadd.f32 %v560, %v575
  %v583 = vadd.f32 %v561, %v575
  %v584 = vadd.f32 %v562, %v575
  %v585 = vadd.f32 %v563, %v575
  %v586 = vadd.f32 %v564, %v575
  %v587 = vadd.f32 %v565, %v575
  %v588 = vadd.f32 %v566, %v575
  %v589 = vadd.f32 %v567, %v575
  %v590 = vadd.f32 %v568, %v575
  %v591 = vadd.f32 %v569, %v575
  %v592 = vadd.f32 %v570, %v575
  %vm593 = vcmp.ge.f32.partialorder %v577, 0.0
  %vm594 = vcmp.ge.f32.partialorder %v578, 0.0
  %vm595 = vcmp.ge.f32.partialorder %v579, 0.0
  %vm596 = vcmp.ge.f32.partialorder %v580, 0.0
  %vm597 = vcmp.ge.f32.partialorder %v581, 0.0
  %vm598 = vcmp.ge.f32.partialorder %v582, 0.0
  %vm599 = vcmp.ge.f32.partialorder %v583, 0.0
  %vm600 = vcmp.ge.f32.partialorder %v584, 0.0
  %vm601 = vcmp.ge.f32.partialorder %v585, 0.0
  %vm602 = vcmp.ge.f32.partialorder %v586, 0.0
  %vm603 = vcmp.ge.f32.partialorder %v587, 0.0
  %vm604 = vcmp.ge.f32.partialorder %v588, 0.0
  %vm605 = vcmp.ge.f32.partialorder %v589, 0.0
  %vm606 = vcmp.ge.f32.partialorder %v590, 0.0
  %vm607 = vcmp.ge.f32.partialorder %v591, 0.0
  %vm608 = vcmp.ge.f32.partialorder %v592, 0.0
  %v609 = vmul.f32 %v577, 0.2
  %v610 = vmul.f32 %v578, 0.2
  %v611 = vmul.f32 %v579, 0.2
  %v612 = vmul.f32 %v580, 0.2
  %v613 = vmul.f32 %v581, 0.2
  %v614 = vmul.f32 %v582, 0.2
  %v615 = vmul.f32 %v583, 0.2
  %v616 = vmul.f32 %v584, 0.2
  %v617 = vmul.f32 %v585, 0.2
  %v618 = vmul.f32 %v586, 0.2
  %v619 = vmul.f32 %v587, 0.2
  %v620 = vmul.f32 %v588, 0.2
  %v621 = vmul.f32 %v589, 0.2
  %v622 = vmul.f32 %v590, 0.2
  %v623 = vmul.f32 %v591, 0.2
  %v624 = vmul.f32 %v592, 0.2
  %v625 = vsel %vm593, %v577, %v609
  %v626 = vsel %vm594, %v578, %v610
  %v627 = vsel %vm595, %v579, %v611
  %v628 = vsel %vm596, %v580, %v612
  %v629 = vsel %vm597, %v581, %v613
  %v630 = vsel %vm598, %v582, %v614
  %v631 = vsel %vm599, %v583, %v615
  %v632 = vsel %vm600, %v584, %v616
  %v633 = vsel %vm601, %v585, %v617
  %v634 = vsel %vm602, %v586, %v618
  %v635 = vsel %vm603, %v587, %v619
  %v636 = vsel %vm604, %v588, %v620
  %v637 = vsel %vm605, %v589, %v621
  %v638 = vsel %vm606, %v590, %v622
  %v639 = vsel %vm607, %v591, %v623
  %v640 = vsel %vm608, %v592, %v624
  %641 = vst.msk [vmem:[%s4] sm:$0xff] %vm437, %v625
  %642 = vst.msk [vmem:[%s4 + $0x8] sm:$0xff] %vm437, %v626
  %643 = vst.msk [vmem:[%s4 + $0x10] sm:$0xff] %vm437, %v627
  %644 = vst.msk [vmem:[%s4 + $0x18] sm:$0xff] %vm437, %v628
  %645 = vst.msk [vmem:[%s4 + $0x20] sm:$0xff] %vm437, %v629
  %646 = vst.msk [vmem:[%s4 + $0x28] sm:$0xff] %vm437, %v630
  %647 = vst.msk [vmem:[%s4 + $0x30] sm:$0xff] %vm437, %v631
  %648 = vst.msk [vmem:[%s4 + $0x38] sm:$0xff] %vm437, %v632
  %649 = vst.msk [vmem:[%s4 + $0x40] sm:$0xff] %vm437, %v633
  %650 = vst.msk [vmem:[%s4 + $0x48] sm:$0xff] %vm437, %v634
  %651 = vst.msk [vmem:[%s4 + $0x50] sm:$0xff] %vm437, %v635
  %652 = vst.msk [vmem:[%s4 + $0x58] sm:$0xff] %vm437, %v636
  %653 = vst.msk [vmem:[%s4 + $0x60] sm:$0xff] %vm437, %v637
  %654 = vst.msk [vmem:[%s4 + $0x68] sm:$0xff] %vm437, %v638
  %655 = vst.msk [vmem:[%s4 + $0x70] sm:$0xff] %vm437, %v639
  %656 = vst.msk [vmem:[%s4 + $0x78] sm:$0xff] %vm437, %v640
  // Predicated region
  $region18: #{ae_vine2_forward.8} parent=0 // pred_check
    _
  $region19: #{ae_vine2_forward.8} parent=0 // pred_check_branch
    %658 = sbr.rel (0) target = $region21
  $region20: #{ae_vine2_forward.8} parent=0 // pred_region
    _
  $region21: #{ae_vine2_forward.8} parent=0 // pred_fallthru
    _
  // Predicated region
  $region22: #{ae_vine2_forward.8} parent=0 // pred_check
    _
  $region23: #{ae_vine2_forward.8} parent=0 // pred_check_branch
    %660 = sbr.rel (0) target = $region25
  $region24: #{ae_vine2_forward.8} parent=0 // pred_region
    _
  $region25: #{ae_vine2_forward.8} parent=0 // pred_fallthru
    _

// kernel: ae_vine2_forward.9
$region0: #{ae_vine2_forward.9}
  #allocation0 [shape = 'u32[]', space=smem, size = 0x4, offset = 0x4, fixed_abs, tag = 'smem constant byte address 0x4 - core index']
  #allocation1 [shape = 'u32[144,128]{1,0:T(1,128)}', space=vmem, size = 0x12000, scoped, tag = 'internal scratch']
  %s0 = inlined_call_operand.vmem [shape: f32[32,1024], index: 0, kind: input, shape index: {}]
  %s1 = inlined_call_operand.vmem [shape: f32[1024,128], index: 1, kind: input, shape index: {}]
  %s2 = inlined_call_operand.vmem [shape: f32[1,128], index: 2, kind: input, shape index: {}]
  %s3 = inlined_call_operand.vmem [shape: f32[1,128], index: 3, kind: input, shape index: {}]
  %s4 = inlined_call_operand.vmem [shape: f32[32,128], index: 4, kind: output, shape index: {}]
  %s5 = sld [smem:[#allocation0]]
  $region26: #{ae_vine2_forward.9} parent=0
    _
  %s7 = ssub.s32 1, %s5
  %s8 = scalar_select 0, %s7, %s5
  // Predicated region
  $region2: #{ae_vine2_forward.9} parent=0 // pred_check
    _
  $region3: #{ae_vine2_forward.9} parent=0 // pred_check_branch
    %10 = sbr.rel (0) target = $region5
  $region4: #{ae_vine2_forward.9} parent=0 // pred_region
    _
  $region5: #{ae_vine2_forward.9} parent=0 // pred_fallthru
    _
  // Predicated region
  $region6: #{ae_vine2_forward.9} parent=0 // pred_check
    _
  $region7: #{ae_vine2_forward.9} parent=0 // pred_check_branch
    %12 = sbr.rel (0) target = $region9
  $region8: #{ae_vine2_forward.9} parent=0 // pred_region
    _
  $region9: #{ae_vine2_forward.9} parent=0 // pred_fallthru
    _
  // Predicated region
  $region10: #{ae_vine2_forward.9} parent=0 // pred_check
    _
  $region11: #{ae_vine2_forward.9} parent=0 // pred_check_branch
    %14 = sbr.rel (0) target = $region13
  $region12: #{ae_vine2_forward.9} parent=0 // pred_region
    _
  $region13: #{ae_vine2_forward.9} parent=0 // pred_fallthru
    _
  // Predicated region
  $region14: #{ae_vine2_forward.9} parent=0 // pred_check
    _
  $region15: #{ae_vine2_forward.9} parent=0 // pred_check_branch
    %16 = sbr.rel (0) target = $region17
  $region16: #{ae_vine2_forward.9} parent=0 // pred_region
    _
  $region17: #{ae_vine2_forward.9} parent=0 // pred_fallthru
    _
  %v17 = vld [vmem:[%s0] sm:$0xff]
  %v18 = vld [vmem:[%s0 + $0x8] sm:$0xff]
  %v19 = vld [vmem:[%s0 + $0x10] sm:$0xff]
  %v20 = vld [vmem:[%s0 + $0x18] sm:$0xff]
  %v21 = vld [vmem:[%s0 + $0x20] sm:$0xff]
  %v22 = vld [vmem:[%s0 + $0x28] sm:$0xff]
  %v23 = vld [vmem:[%s0 + $0x30] sm:$0xff]
  %v24 = vld [vmem:[%s0 + $0x38] sm:$0xff]
  %v25 = vld [vmem:[%s0 + $0x40] sm:$0xff]
  %v26 = vld [vmem:[%s0 + $0x48] sm:$0xff]
  %v27 = vld [vmem:[%s0 + $0x50] sm:$0xff]
  %v28 = vld [vmem:[%s0 + $0x58] sm:$0xff]
  %v29 = vld [vmem:[%s0 + $0x60] sm:$0xff]
  %v30 = vld [vmem:[%s0 + $0x68] sm:$0xff]
  %v31 = vld [vmem:[%s0 + $0x70] sm:$0xff]
  %v32 = vld [vmem:[%s0 + $0x78] sm:$0xff]
  %v33 = vld [vmem:[%s0 + $0x80] sm:$0xff]
  %v34 = vld [vmem:[%s0 + $0x88] sm:$0xff]
  %v35 = vld [vmem:[%s0 + $0x90] sm:$0xff]
  %v36 = vld [vmem:[%s0 + $0x98] sm:$0xff]
  %v37 = vld [vmem:[%s0 + $0xa0] sm:$0xff]
  %v38 = vld [vmem:[%s0 + $0xa8] sm:$0xff]
  %v39 = vld [vmem:[%s0 + $0xb0] sm:$0xff]
  %v40 = vld [vmem:[%s0 + $0xb8] sm:$0xff]
  %v41 = vld [vmem:[%s0 + $0xc0] sm:$0xff]
  %v42 = vld [vmem:[%s0 + $0xc8] sm:$0xff]
  %v43 = vld [vmem:[%s0 + $0xd0] sm:$0xff]
  %v44 = vld [vmem:[%s0 + $0xd8] sm:$0xff]
  %v45 = vld [vmem:[%s0 + $0xe0] sm:$0xff]
  %v46 = vld [vmem:[%s0 + $0xe8] sm:$0xff]
  %v47 = vld [vmem:[%s0 + $0xf0] sm:$0xff]
  %v48 = vld [vmem:[%s0 + $0xf8] sm:$0xff]
  %v49 = vld [vmem:[%s1] sm:$0xff]
  %v50 = vld [vmem:[%s1 + $0x8] sm:$0xff]
  %v51 = vld [vmem:[%s1 + $0x10] sm:$0xff]
  %v52 = vld [vmem:[%s1 + $0x18] sm:$0xff]
  %v53 = vld [vmem:[%s1 + $0x20] sm:$0xff]
  %v54 = vld [vmem:[%s1 + $0x28] sm:$0xff]
  %v55 = vld [vmem:[%s1 + $0x30] sm:$0xff]
  %v56 = vld [vmem:[%s1 + $0x38] sm:$0xff]
  %v57 = vld [vmem:[%s1 + $0x40] sm:$0xff]
  %v58 = vld [vmem:[%s1 + $0x48] sm:$0xff]
  %v59 = vld [vmem:[%s1 + $0x50] sm:$0xff]
  %v60 = vld [vmem:[%s1 + $0x58] sm:$0xff]
  %v61 = vld [vmem:[%s1 + $0x60] sm:$0xff]
  %v62 = vld [vmem:[%s1 + $0x68] sm:$0xff]
  %v63 = vld [vmem:[%s1 + $0x70] sm:$0xff]
  %v64 = vld [vmem:[%s1 + $0x78] sm:$0xff]
  %v65 = vld [vmem:[%s1 + $0x80] sm:$0xff]
  %v66 = vld [vmem:[%s1 + $0x88] sm:$0xff]
  %v67 = vld [vmem:[%s1 + $0x90] sm:$0xff]
  %v68 = vld [vmem:[%s1 + $0x98] sm:$0xff]
  %v69 = vld [vmem:[%s1 + $0xa0] sm:$0xff]
  %v70 = vld [vmem:[%s1 + $0xa8] sm:$0xff]
  %v71 = vld [vmem:[%s1 + $0xb0] sm:$0xff]
  %v72 = vld [vmem:[%s1 + $0xb8] sm:$0xff]
  %v73 = vld [vmem:[%s1 + $0xc0] sm:$0xff]
  %v74 = vld [vmem:[%s1 + $0xc8] sm:$0xff]
  %v75 = vld [vmem:[%s1 + $0xd0] sm:$0xff]
  %v76 = vld [vmem:[%s1 + $0xd8] sm:$0xff]
  %v77 = vld [vmem:[%s1 + $0xe0] sm:$0xff]
  %v78 = vld [vmem:[%s1 + $0xe8] sm:$0xff]
  %v79 = vld [vmem:[%s1 + $0xf0] sm:$0xff]
  %v80 = vld [vmem:[%s1 + $0xf8] sm:$0xff]
  %v81 = vld [vmem:[%s1 + $0x100] sm:$0xff]
  %v82 = vld [vmem:[%s1 + $0x108] sm:$0xff]
  %v83 = vld [vmem:[%s1 + $0x110] sm:$0xff]
  %v84 = vld [vmem:[%s1 + $0x118] sm:$0xff]
  %v85 = vld [vmem:[%s1 + $0x120] sm:$0xff]
  %v86 = vld [vmem:[%s1 + $0x128] sm:$0xff]
  %v87 = vld [vmem:[%s1 + $0x130] sm:$0xff]
  %v88 = vld [vmem:[%s1 + $0x138] sm:$0xff]
  %v89 = vld [vmem:[%s1 + $0x140] sm:$0xff]
  %v90 = vld [vmem:[%s1 + $0x148] sm:$0xff]
  %v91 = vld [vmem:[%s1 + $0x150] sm:$0xff]
  %v92 = vld [vmem:[%s1 + $0x158] sm:$0xff]
  %v93 = vld [vmem:[%s1 + $0x160] sm:$0xff]
  %v94 = vld [vmem:[%s1 + $0x168] sm:$0xff]
  %v95 = vld [vmem:[%s1 + $0x170] sm:$0xff]
  %v96 = vld [vmem:[%s1 + $0x178] sm:$0xff]
  %v97 = vld [vmem:[%s1 + $0x180] sm:$0xff]
  %v98 = vld [vmem:[%s1 + $0x188] sm:$0xff]
  %v99 = vld [vmem:[%s1 + $0x190] sm:$0xff]
  %v100 = vld [vmem:[%s1 + $0x198] sm:$0xff]
  %v101 = vld [vmem:[%s1 + $0x1a0] sm:$0xff]
  %v102 = vld [vmem:[%s1 + $0x1a8] sm:$0xff]
  %v103 = vld [vmem:[%s1 + $0x1b0] sm:$0xff]
  %v104 = vld [vmem:[%s1 + $0x1b8] sm:$0xff]
  %v105 = vld [vmem:[%s1 + $0x1c0] sm:$0xff]
  %v106 = vld [vmem:[%s1 + $0x1c8] sm:$0xff]
  %v107 = vld [vmem:[%s1 + $0x1d0] sm:$0xff]
  %v108 = vld [vmem:[%s1 + $0x1d8] sm:$0xff]
  %v109 = vld [vmem:[%s1 + $0x1e0] sm:$0xff]
  %v110 = vld [vmem:[%s1 + $0x1e8] sm:$0xff]
  %v111 = vld [vmem:[%s1 + $0x1f0] sm:$0xff]
  %v112 = vld [vmem:[%s1 + $0x1f8] sm:$0xff]
  %v113 = vld [vmem:[%s1 + $0x200] sm:$0xff]
  %v114 = vld [vmem:[%s1 + $0x208] sm:$0xff]
  %v115 = vld [vmem:[%s1 + $0x210] sm:$0xff]
  %v116 = vld [vmem:[%s1 + $0x218] sm:$0xff]
  %v117 = vld [vmem:[%s1 + $0x220] sm:$0xff]
  %v118 = vld [vmem:[%s1 + $0x228] sm:$0xff]
  %v119 = vld [vmem:[%s1 + $0x230] sm:$0xff]
  %v120 = vld [vmem:[%s1 + $0x238] sm:$0xff]
  %v121 = vld [vmem:[%s1 + $0x240] sm:$0xff]
  %v122 = vld [vmem:[%s1 + $0x248] sm:$0xff]
  %v123 = vld [vmem:[%s1 + $0x250] sm:$0xff]
  %v124 = vld [vmem:[%s1 + $0x258] sm:$0xff]
  %v125 = vld [vmem:[%s1 + $0x260] sm:$0xff]
  %v126 = vld [vmem:[%s1 + $0x268] sm:$0xff]
  %v127 = vld [vmem:[%s1 + $0x270] sm:$0xff]
  %v128 = vld [vmem:[%s1 + $0x278] sm:$0xff]
  %v129 = vld [vmem:[%s1 + $0x280] sm:$0xff]
  %v130 = vld [vmem:[%s1 + $0x288] sm:$0xff]
  %v131 = vld [vmem:[%s1 + $0x290] sm:$0xff]
  %v132 = vld [vmem:[%s1 + $0x298] sm:$0xff]
  %v133 = vld [vmem:[%s1 + $0x2a0] sm:$0xff]
  %v134 = vld [vmem:[%s1 + $0x2a8] sm:$0xff]
  %v135 = vld [vmem:[%s1 + $0x2b0] sm:$0xff]
  %v136 = vld [vmem:[%s1 + $0x2b8] sm:$0xff]
  %v137 = vld [vmem:[%s1 + $0x2c0] sm:$0xff]
  %v138 = vld [vmem:[%s1 + $0x2c8] sm:$0xff]
  %v139 = vld [vmem:[%s1 + $0x2d0] sm:$0xff]
  %v140 = vld [vmem:[%s1 + $0x2d8] sm:$0xff]
  %v141 = vld [vmem:[%s1 + $0x2e0] sm:$0xff]
  %v142 = vld [vmem:[%s1 + $0x2e8] sm:$0xff]
  %v143 = vld [vmem:[%s1 + $0x2f0] sm:$0xff]
  %v144 = vld [vmem:[%s1 + $0x2f8] sm:$0xff]
  %v145 = vld [vmem:[%s1 + $0x300] sm:$0xff]
  %v146 = vld [vmem:[%s1 + $0x308] sm:$0xff]
  %v147 = vld [vmem:[%s1 + $0x310] sm:$0xff]
  %v148 = vld [vmem:[%s1 + $0x318] sm:$0xff]
  %v149 = vld [vmem:[%s1 + $0x320] sm:$0xff]
  %v150 = vld [vmem:[%s1 + $0x328] sm:$0xff]
  %v151 = vld [vmem:[%s1 + $0x330] sm:$0xff]
  %v152 = vld [vmem:[%s1 + $0x338] sm:$0xff]
  %v153 = vld [vmem:[%s1 + $0x340] sm:$0xff]
  %v154 = vld [vmem:[%s1 + $0x348] sm:$0xff]
  %v155 = vld [vmem:[%s1 + $0x350] sm:$0xff]
  %v156 = vld [vmem:[%s1 + $0x358] sm:$0xff]
  %v157 = vld [vmem:[%s1 + $0x360] sm:$0xff]
  %v158 = vld [vmem:[%s1 + $0x368] sm:$0xff]
  %v159 = vld [vmem:[%s1 + $0x370] sm:$0xff]
  %v160 = vld [vmem:[%s1 + $0x378] sm:$0xff]
  %v161 = vld [vmem:[%s1 + $0x380] sm:$0xff]
  %v162 = vld [vmem:[%s1 + $0x388] sm:$0xff]
  %v163 = vld [vmem:[%s1 + $0x390] sm:$0xff]
  %v164 = vld [vmem:[%s1 + $0x398] sm:$0xff]
  %v165 = vld [vmem:[%s1 + $0x3a0] sm:$0xff]
  %v166 = vld [vmem:[%s1 + $0x3a8] sm:$0xff]
  %v167 = vld [vmem:[%s1 + $0x3b0] sm:$0xff]
  %v168 = vld [vmem:[%s1 + $0x3b8] sm:$0xff]
  %v169 = vld [vmem:[%s1 + $0x3c0] sm:$0xff]
  %v170 = vld [vmem:[%s1 + $0x3c8] sm:$0xff]
  %v171 = vld [vmem:[%s1 + $0x3d0] sm:$0xff]
  %v172 = vld [vmem:[%s1 + $0x3d8] sm:$0xff]
  %v173 = vld [vmem:[%s1 + $0x3e0] sm:$0xff]
  %v174 = vld [vmem:[%s1 + $0x3e8] sm:$0xff]
  %v175 = vld [vmem:[%s1 + $0x3f0] sm:$0xff]
  %v176 = vld [vmem:[%s1 + $0x3f8] sm:$0xff]
  %177 = vmatprep.subr.mxu0 0.0
  %178 = vmatpush1.msra.mxu0 %v49
  %179 = vmatprep.subr.mxu0 0.0
  %180 = vmatpush1.msra.mxu0 %v50
  %181 = vmatprep.subr.mxu0 0.0
  %182 = vmatpush1.msra.mxu0 %v51
  %183 = vmatprep.subr.mxu0 0.0
  %184 = vmatpush1.msra.mxu0 %v52
  %185 = vmatprep.subr.mxu0 0.0
  %186 = vmatpush1.msra.mxu0 %v53
  %187 = vmatprep.subr.mxu0 0.0
  %188 = vmatpush1.msra.mxu0 %v54
  %189 = vmatprep.subr.mxu0 0.0
  %190 = vmatpush1.msra.mxu0 %v55
  %191 = vmatprep.subr.mxu0 0.0
  %192 = vmatpush1.msra.mxu0 %v56
  %193 = vmatprep.subr.mxu0 0.0
  %194 = vmatpush1.msra.mxu0 %v57
  %195 = vmatprep.subr.mxu0 0.0
  %196 = vmatpush1.msra.mxu0 %v58
  %197 = vmatprep.subr.mxu0 0.0
  %198 = vmatpush1.msra.mxu0 %v59
  %199 = vmatprep.subr.mxu0 0.0
  %200 = vmatpush1.msra.mxu0 %v60
  %201 = vmatprep.subr.mxu0 0.0
  %202 = vmatpush1.msra.mxu0 %v61
  %203 = vmatprep.subr.mxu0 0.0
  %204 = vmatpush1.msra.mxu0 %v62
  %205 = vmatprep.subr.mxu0 0.0
  %206 = vmatpush1.msra.mxu0 %v63
  %207 = vmatprep.subr.mxu0 0.0
  %208 = vmatpush1.msra.mxu0 %v64
  %209 = vmatprep.subr.mxu0 0.0
  %210 = vmatpush1.msra.mxu0 %v65
  %211 = vmatprep.subr.mxu0 0.0
  %212 = vmatpush1.msra.mxu0 %v66
  %213 = vmatprep.subr.mxu0 0.0
  %214 = vmatpush1.msra.mxu0 %v67
  %215 = vmatprep.subr.mxu0 0.0
  %216 = vmatpush1.msra.mxu0 %v68
  %217 = vmatprep.subr.mxu0 0.0
  %218 = vmatpush1.msra.mxu0 %v69
  %219 = vmatprep.subr.mxu0 0.0
  %220 = vmatpush1.msra.mxu0 %v70
  %221 = vmatprep.subr.mxu0 0.0
  %222 = vmatpush1.msra.mxu0 %v71
  %223 = vmatprep.subr.mxu0 0.0
  %224 = vmatpush1.msra.mxu0 %v72
  %225 = vmatprep.subr.mxu0 0.0
  %226 = vmatpush1.msra.mxu0 %v73
  %227 = vmatprep.subr.mxu0 0.0
  %228 = vmatpush1.msra.mxu0 %v74
  %229 = vmatprep.subr.mxu0 0.0
  %230 = vmatpush1.msra.mxu0 %v75
  %231 = vmatprep.subr.mxu0 0.0
  %232 = vmatpush1.msra.mxu0 %v76
  %233 = vmatprep.subr.mxu0 0.0
  %234 = vmatpush1.msra.mxu0 %v77
  %235 = vmatprep.subr.mxu0 0.0
  %236 = vmatpush1.msra.mxu0 %v78
  %237 = vmatprep.subr.mxu0 0.0
  %238 = vmatpush1.msra.mxu0 %v79
  %239 = vmatprep.subr.mxu0 0.0
  %240 = vmatpush1.msra.mxu0 %v80
  %241 = vmatprep.mubr.f32.mxu0 %v18
  %242 = vmatmul.mubr.f32.gmra.mrb[0].mxu0 %v17
  %v243 = vpop.f32.mrb[0].mxu0
  %v244 = vadd.f32 0.0, %v243
  %v245 = vpop.f32.mrb[0].mxu0
  %246 = vmatprep.mubr.f32.mxu0 %v26
  %247 = vmatmul.mubr.f32.gmra.mrb[0].mxu0 %v25
  %v248 = vpop.f32.mrb[0].mxu0
  %v249 = vadd.f32 0.0, %v248
  %v250 = vpop.f32.mrb[0].mxu0
  %251 = vmatprep.mubr.f32.mxu0 %v34
  %252 = vmatmul.mubr.f32.gmra.mrb[0].mxu0 %v33
  %v253 = vpop.f32.mrb[0].mxu0
  %v254 = vadd.f32 0.0, %v253
  %v255 = vpop.f32.mrb[0].mxu0
  %256 = vmatprep.mubr.f32.mxu0 %v42
  %257 = vmatmul.mubr.f32.gmra.mrb[0].mxu0 %v41
  %v258 = vpop.f32.mrb[0].mxu0
  %v259 = vadd.f32 0.0, %v258
  %v260 = vpop.f32.mrb[0].mxu0
  %261 = vdwg.mxu0
  %262 = vmatprep.subr.mxu0 0.0
  %263 = vmatpush1.msra.mxu0 %v81
  %264 = vmatprep.subr.mxu0 0.0
  %265 = vmatpush1.msra.mxu0 %v82
  %266 = vmatprep.subr.mxu0 0.0
  %267 = vmatpush1.msra.mxu0 %v83
  %268 = vmatprep.subr.mxu0 0.0
  %269 = vmatpush1.msra.mxu0 %v84
  %270 = vmatprep.subr.mxu0 0.0
  %271 = vmatpush1.msra.mxu0 %v85
  %272 = vmatprep.subr.mxu0 0.0
  %273 = vmatpush1.msra.mxu0 %v86
  %274 = vmatprep.subr.mxu0 0.0
  %275 = vmatpush1.msra.mxu0 %v87
  %276 = vmatprep.subr.mxu0 0.0
  %277 = vmatpush1.msra.mxu0 %v88
  %278 = vmatprep.subr.mxu0 0.0
  %279 = vmatpush1.msra.mxu0 %v89
  %280 = vmatprep.subr.mxu0 0.0
  %281 = vmatpush1.msra.mxu0 %v90
  %282 = vmatprep.subr.mxu0 0.0
  %283 = vmatpush1.msra.mxu0 %v91
  %284 = vmatprep.subr.mxu0 0.0
  %285 = vmatpush1.msra.mxu0 %v92
  %286 = vmatprep.subr.mxu0 0.0
  %287 = vmatpush1.msra.mxu0 %v93
  %288 = vmatprep.subr.mxu0 0.0
  %289 = vmatpush1.msra.mxu0 %v94
  %290 = vmatprep.subr.mxu0 0.0
  %291 = vmatpush1.msra.mxu0 %v95
  %292 = vmatprep.subr.mxu0 0.0
  %293 = vmatpush1.msra.mxu0 %v96
  %294 = vmatprep.subr.mxu0 0.0
  %295 = vmatpush1.msra.mxu0 %v97
  %296 = vmatprep.subr.mxu0 0.0
  %297 = vmatpush1.msra.mxu0 %v98
  %298 = vmatprep.subr.mxu0 0.0
  %299 = vmatpush1.msra.mxu0 %v99
  %300 = vmatprep.subr.mxu0 0.0
  %301 = vmatpush1.msra.mxu0 %v100
  %302 = vmatprep.subr.mxu0 0.0
  %303 = vmatpush1.msra.mxu0 %v101
  %304 = vmatprep.subr.mxu0 0.0
  %305 = vmatpush1.msra.mxu0 %v102
  %306 = vmatprep.subr.mxu0 0.0
  %307 = vmatpush1.msra.mxu0 %v103
  %308 = vmatprep.subr.mxu0 0.0
  %309 = vmatpush1.msra.mxu0 %v104
  %310 = vmatprep.subr.mxu0 0.0
  %311 = vmatpush1.msra.mxu0 %v105
  %312 = vmatprep.subr.mxu0 0.0
  %313 = vmatpush1.msra.mxu0 %v106
  %314 = vmatprep.subr.mxu0 0.0
  %315 = vmatpush1.msra.mxu0 %v107
  %316 = vmatprep.subr.mxu0 0.0
  %317 = vmatpush1.msra.mxu0 %v108
  %318 = vmatprep.subr.mxu0 0.0
  %319 = vmatpush1.msra.mxu0 %v109
  %320 = vmatprep.subr.mxu0 0.0
  %321 = vmatpush1.msra.mxu0 %v110
  %322 = vmatprep.subr.mxu0 0.0
  %323 = vmatpush1.msra.mxu0 %v111
  %324 = vmatprep.subr.mxu0 0.0
  %325 = vmatpush1.msra.mxu0 %v112
  %326 = vmatprep.mubr.f32.mxu0 %v20
  %327 = vmatmul.mubr.f32.gmra.mrb[0].mxu0 %v19
  %v328 = vpop.f32.mrb[0].mxu0
  %v329 = vadd.f32 %v244, %v328
  %v330 = vpop.f32.mrb[0].mxu0
  %331 = vmatprep.mubr.f32.mxu0 %v28
  %332 = vmatmul.mubr.f32.gmra.mrb[0].mxu0 %v27
  %v333 = vpop.f32.mrb[0].mxu0
  %v334 = vadd.f32 %v249, %v333
  %v335 = vpop.f32.mrb[0].mxu0
  %336 = vmatprep.mubr.f32.mxu0 %v36
  %337 = vmatmul.mubr.f32.gmra.mrb[0].mxu0 %v35
  %v338 = vpop.f32.mrb[0].mxu0
  %v339 = vadd.f32 %v254, %v338
  %v340 = vpop.f32.mrb[0].mxu0
  %341 = vmatprep.mubr.f32.mxu0 %v44
  %342 = vmatmul.mubr.f32.gmra.mrb[0].mxu0 %v43
  %v343 = vpop.f32.mrb[0].mxu0
  %v344 = vadd.f32 %v259, %v343
  %v345 = vpop.f32.mrb[0].mxu0
  %346 = vdwg.mxu0
  %347 = vmatprep.subr.mxu0 0.0
  %348 = vmatpush1.msra.mxu0 %v113
  %349 = vmatprep.subr.mxu0 0.0
  %350 = vmatpush1.msra.mxu0 %v114
  %351 = vmatprep.subr.mxu0 0.0
  %352 = vmatpush1.msra.mxu0 %v115
  %353 = vmatprep.subr.mxu0 0.0
  %354 = vmatpush1.msra.mxu0 %v116
  %355 = vmatprep.subr.mxu0 0.0
  %356 = vmatpush1.msra.mxu0 %v117
  %357 = vmatprep.subr.mxu0 0.0
  %358 = vmatpush1.msra.mxu0 %v118
  %359 = vmatprep.subr.mxu0 0.0
  %360 = vmatpush1.msra.mxu0 %v119
  %361 = vmatprep.subr.mxu0 0.0
  %362 = vmatpush1.msra.mxu0 %v120
  %363 = vmatprep.subr.mxu0 0.0
  %364 = vmatpush1.msra.mxu0 %v121
  %365 = vmatprep.subr.mxu0 0.0
  %366 = vmatpush1.msra.mxu0 %v122
  %367 = vmatprep.subr.mxu0 0.0
  %368 = vmatpush1.msra.mxu0 %v123
  %369 = vmatprep.subr.mxu0 0.0
  %370 = vmatpush1.msra.mxu0 %v124
  %371 = vmatprep.subr.mxu0 0.0
  %372 = vmatpush1.msra.mxu0 %v125
  %373 = vmatprep.subr.mxu0 0.0
  %374 = vmatpush1.msra.mxu0 %v126
  %375 = vmatprep.subr.mxu0 0.0
  %376 = vmatpush1.msra.mxu0 %v127
  %377 = vmatprep.subr.mxu0 0.0
  %378 = vmatpush1.msra.mxu0 %v128
  %379 = vmatprep.subr.mxu0 0.0
  %380 = vmatpush1.msra.mxu0 %v129
  %381 = vmatprep.subr.mxu0 0.0
  %382 = vmatpush1.msra.mxu0 %v130
  %383 = vmatprep.subr.mxu0 0.0
  %384 = vmatpush1.msra.mxu0 %v131
  %385 = vmatprep.subr.mxu0 0.0
  %386 = vmatpush1.msra.mxu0 %v132
  %387 = vmatprep.subr.mxu0 0.0
  %388 = vmatpush1.msra.mxu0 %v133
  %389 = vmatprep.subr.mxu0 0.0
  %390 = vmatpush1.msra.mxu0 %v134
  %391 = vmatprep.subr.mxu0 0.0
  %392 = vmatpush1.msra.mxu0 %v135
  %393 = vmatprep.subr.mxu0 0.0
  %394 = vmatpush1.msra.mxu0 %v136
  %395 = vmatprep.subr.mxu0 0.0
  %396 = vmatpush1.msra.mxu0 %v137
  %397 = vmatprep.subr.mxu0 0.0
  %398 = vmatpush1.msra.mxu0 %v138
  %399 = vmatprep.subr.mxu0 0.0
  %400 = vmatpush1.msra.mxu0 %v139
  %401 = vmatprep.subr.mxu0 0.0
  %402 = vmatpush1.msra.mxu0 %v140
  %403 = vmatprep.subr.mxu0 0.0
  %404 = vmatpush1.msra.mxu0 %v141
  %405 = vmatprep.subr.mxu0 0.0
  %406 = vmatpush1.msra.mxu0 %v142
  %407 = vmatprep.subr.mxu0 0.0
  %408 = vmatpush1.msra.mxu0 %v143
  %409 = vmatprep.subr.mxu0 0.0
  %410 = vmatpush1.msra.mxu0 %v144
  %411 = vmatprep.mubr.f32.mxu0 %v22
  %412 = vmatmul.mubr.f32.gmra.mrb[0].mxu0 %v21
  %v413 = vpop.f32.mrb[0].mxu0
  %v414 = vadd.f32 %v329, %v413
  %v415 = vpop.f32.mrb[0].mxu0
  %416 = vmatprep.mubr.f32.mxu0 %v30
  %417 = vmatmul.mubr.f32.gmra.mrb[0].mxu0 %v29
  %v418 = vpop.f32.mrb[0].mxu0
  %v419 = vadd.f32 %v334, %v418
  %v420 = vpop.f32.mrb[0].mxu0
  %421 = vmatprep.mubr.f32.mxu0 %v38
  %422 = vmatmul.mubr.f32.gmra.mrb[0].mxu0 %v37
  %v423 = vpop.f32.mrb[0].mxu0
  %v424 = vadd.f32 %v339, %v423
  %v425 = vpop.f32.mrb[0].mxu0
  %426 = vmatprep.mubr.f32.mxu0 %v46
  %427 = vmatmul.mubr.f32.gmra.mrb[0].mxu0 %v45
  %v428 = vpop.f32.mrb[0].mxu0
  %v429 = vadd.f32 %v344, %v428
  %v430 = vpop.f32.mrb[0].mxu0
  %431 = vdwg.mxu0
  %432 = vmatprep.subr.mxu0 0.0
  %433 = vmatpush1.msra.mxu0 %v145
  %434 = vmatprep.subr.mxu0 0.0
  %435 = vmatpush1.msra.mxu0 %v146
  %436 = vmatprep.subr.mxu0 0.0
  %437 = vmatpush1.msra.mxu0 %v147
  %438 = vmatprep.subr.mxu0 0.0
  %439 = vmatpush1.msra.mxu0 %v148
  %440 = vmatprep.subr.mxu0 0.0
  %441 = vmatpush1.msra.mxu0 %v149
  %442 = vmatprep.subr.mxu0 0.0
  %443 = vmatpush1.msra.mxu0 %v150
  %444 = vmatprep.subr.mxu0 0.0
  %445 = vmatpush1.msra.mxu0 %v151
  %446 = vmatprep.subr.mxu0 0.0
  %447 = vmatpush1.msra.mxu0 %v152
  %448 = vmatprep.subr.mxu0 0.0
  %449 = vmatpush1.msra.mxu0 %v153
  %450 = vmatprep.subr.mxu0 0.0
  %451 = vmatpush1.msra.mxu0 %v154
  %452 = vmatprep.subr.mxu0 0.0
  %453 = vmatpush1.msra.mxu0 %v155
  %454 = vmatprep.subr.mxu0 0.0
  %455 = vmatpush1.msra.mxu0 %v156
  %456 = vmatprep.subr.mxu0 0.0
  %457 = vmatpush1.msra.mxu0 %v157
  %458 = vmatprep.subr.mxu0 0.0
  %459 = vmatpush1.msra.mxu0 %v158
  %460 = vmatprep.subr.mxu0 0.0
  %461 = vmatpush1.msra.mxu0 %v159
  %462 = vmatprep.subr.mxu0 0.0
  %463 = vmatpush1.msra.mxu0 %v160
  %464 = vmatprep.subr.mxu0 0.0
  %465 = vmatpush1.msra.mxu0 %v161
  %466 = vmatprep.subr.mxu0 0.0
  %467 = vmatpush1.msra.mxu0 %v162
  %468 = vmatprep.subr.mxu0 0.0
  %469 = vmatpush1.msra.mxu0 %v163
  %470 = vmatprep.subr.mxu0 0.0
  %471 = vmatpush1.msra.mxu0 %v164
  %472 = vmatprep.subr.mxu0 0.0
  %473 = vmatpush1.msra.mxu0 %v165
  %474 = vmatprep.subr.mxu0 0.0
  %475 = vmatpush1.msra.mxu0 %v166
  %476 = vmatprep.subr.mxu0 0.0
  %477 = vmatpush1.msra.mxu0 %v167
  %478 = vmatprep.subr.mxu0 0.0
  %479 = vmatpush1.msra.mxu0 %v168
  %480 = vmatprep.subr.mxu0 0.0
  %481 = vmatpush1.msra.mxu0 %v169
  %482 = vmatprep.subr.mxu0 0.0
  %483 = vmatpush1.msra.mxu0 %v170
  %484 = vmatprep.subr.mxu0 0.0
  %485 = vmatpush1.msra.mxu0 %v171
  %486 = vmatprep.subr.mxu0 0.0
  %487 = vmatpush1.msra.mxu0 %v172
  %488 = vmatprep.subr.mxu0 0.0
  %489 = vmatpush1.msra.mxu0 %v173
  %490 = vmatprep.subr.mxu0 0.0
  %491 = vmatpush1.msra.mxu0 %v174
  %492 = vmatprep.subr.mxu0 0.0
  %493 = vmatpush1.msra.mxu0 %v175
  %494 = vmatprep.subr.mxu0 0.0
  %495 = vmatpush1.msra.mxu0 %v176
  %496 = vmatprep.mubr.f32.mxu0 %v24
  %497 = vmatmul.mubr.f32.gmra.mrb[0].mxu0 %v23
  %v498 = vpop.f32.mrb[0].mxu0
  %v499 = vadd.f32 %v414, %v498
  %v500 = vpop.f32.mrb[0].mxu0
  %501 = vmatprep.mubr.f32.mxu0 %v32
  %502 = vmatmul.mubr.f32.gmra.mrb[0].mxu0 %v31
  %v503 = vpop.f32.mrb[0].mxu0
  %v504 = vadd.f32 %v419, %v503
  %v505 = vpop.f32.mrb[0].mxu0
  %506 = vmatprep.mubr.f32.mxu0 %v40
  %507 = vmatmul.mubr.f32.gmra.mrb[0].mxu0 %v39
  %v508 = vpop.f32.mrb[0].mxu0
  %v509 = vadd.f32 %v424, %v508
  %v510 = vpop.f32.mrb[0].mxu0
  %511 = vmatprep.mubr.f32.mxu0 %v48
  %512 = vmatmul.mubr.f32.gmra.mrb[0].mxu0 %v47
  %v513 = vpop.f32.mrb[0].mxu0
  %v514 = vadd.f32 %v429, %v513
  %v515 = vpop.f32.mrb[0].mxu0
  %516 = vdwg.mxu0
  %v517 = vld [vmem:[%s2] sm:$0x1]
  %v518 = vld [vmem:[%s3] sm:$0x1]
  %v519 = vadd.f32 %v499, %v504
  %v520 = vadd.f32 %v519, %v509
  %v521 = vadd.f32 %v520, %v514
  %v522 = vrot.slane %v521, 4
  %v523 = vadd.f32 %v521, %v522
  %v524 = vrot.slane %v523, 2
  %v525 = vadd.f32 %v523, %v524
  %v526 = vrot.slane %v525, 1
  %v527 = vadd.f32 %v525, %v526
  %v528 = vmul.f32 %v527, 0.03125
  %v529 = vsub.f32 %v499, %v528
  %v530 = vsub.f32 %v504, %v528
  %v531 = vsub.f32 %v509, %v528
  %v532 = vsub.f32 %v514, %v528
  %v533 = vmul.f32 %v529, %v529
  %v534 = vmul.f32 %v530, %v530
  %v535 = vmul.f32 %v531, %v531
  %v536 = vmul.f32 %v532, %v532
  %v537 = vadd.f32 %v533, %v534
  %v538 = vadd.f32 %v537, %v535
  %v539 = vadd.f32 %v538, %v536
  %v540 = vrot.slane %v539, 4
  %v541 = vadd.f32 %v539, %v540
  %v542 = vrot.slane %v541, 2
  %v543 = vadd.f32 %v541, %v542
  %v544 = vrot.slane %v543, 1
  %v545 = vadd.f32 %v543, %v544
  %v546 = vmul.f32 %v545, 0.03125
  %v547 = vadd.f32 %v546, 1e-05
  %v548 = vrsqrt.pop %v547
  %v549 = vmul.f32 %v517, %v548
  %v551 = vlaneseq
  %v552 = vshrl.u32 %v551, 7
  %v553 = vsub.s32 0, %v552
  %v554 = vrot.slane %v549, %v553
  %v556 = vmul.f32 %v529, %v554
  %v557 = vmul.f32 %v530, %v554
  %v558 = vmul.f32 %v531, %v554
  %v559 = vmul.f32 %v532, %v554
  %v561 = vlaneseq
  %v562 = vshrl.u32 %v561, 7
  %v563 = vsub.s32 0, %v562
  %v564 = vrot.slane %v518, %v563
  %v566 = vadd.f32 %v556, %v564
  %v567 = vadd.f32 %v557, %v564
  %v568 = vadd.f32 %v558, %v564
  %v569 = vadd.f32 %v559, %v564
  %vm570 = vcmp.ge.f32.partialorder %v566, 0.0
  %vm571 = vcmp.ge.f32.partialorder %v567, 0.0
  %vm572 = vcmp.ge.f32.partialorder %v568, 0.0
  %vm573 = vcmp.ge.f32.partialorder %v569, 0.0
  %v574 = vmul.f32 %v566, 0.2
  %v575 = vmul.f32 %v567, 0.2
  %v576 = vmul.f32 %v568, 0.2
  %v577 = vmul.f32 %v569, 0.2
  %v578 = vsel %vm570, %v566, %v574
  %v579 = vsel %vm571, %v567, %v575
  %v580 = vsel %vm572, %v568, %v576
  %v581 = vsel %vm573, %v569, %v577
  %582 = vst [vmem:[%s4] sm:$0xff] %v578
  %583 = vst [vmem:[%s4 + $0x8] sm:$0xff] %v579
  %584 = vst [vmem:[%s4 + $0x10] sm:$0xff] %v580
  %585 = vst [vmem:[%s4 + $0x18] sm:$0xff] %v581
  // Predicated region
  $region18: #{ae_vine2_forward.9} parent=0 // pred_check
    _
  $region19: #{ae_vine2_forward.9} parent=0 // pred_check_branch
    %587 = sbr.rel (0) target = $region21
  $region20: #{ae_vine2_forward.9} parent=0 // pred_region
    _
  $region21: #{ae_vine2_forward.9} parent=0 // pred_fallthru
    _
  // Predicated region
  $region22: #{ae_vine2_forward.9} parent=0 // pred_check
    _
  $region23: #{ae_vine2_forward.9} parent=0 // pred_check_branch
    %589 = sbr.rel (0) target = $region25
  $region24: #{ae_vine2_forward.9} parent=0 // pred_region
    _
  $region25: #{ae_vine2_forward.9} parent=0 // pred_fallthru
    _

// kernel: ae_vine2_forward.11
$region0: #{ae_vine2_forward.11}
  #allocation0 [shape = 'u32[]', space=smem, size = 0x4, offset = 0x4, fixed_abs, tag = 'smem constant byte address 0x4 - core index']
  #allocation1 [shape = 'u32[144,128]{1,0:T(1,128)}', space=vmem, size = 0x12000, scoped, tag = 'internal scratch']
  %s0 = inlined_call_operand.vmem [shape: f32[32,1152], index: 0, kind: input, shape index: {}]
  %s1 = inlined_call_operand.vmem [shape: f32[1152,256], index: 1, kind: input, shape index: {}]
  %s2 = inlined_call_operand.vmem [shape: f32[1,64], index: 2, kind: input, shape index: {}]
  %s3 = inlined_call_operand.vmem [shape: f32[1,64], index: 3, kind: input, shape index: {}]
  %s4 = inlined_call_operand.vmem [shape: f32[32,256], index: 4, kind: output, shape index: {}]
  %s5 = sld [smem:[#allocation0]]
  $region26: #{ae_vine2_forward.11} parent=0
    _
  %s7 = ssub.s32 1, %s5
  %s8 = scalar_select 0, %s7, %s5
  // Predicated region
  $region2: #{ae_vine2_forward.11} parent=0 // pred_check
    _
  $region3: #{ae_vine2_forward.11} parent=0 // pred_check_branch
    %10 = sbr.rel (0) target = $region5
  $region4: #{ae_vine2_forward.11} parent=0 // pred_region
    _
  $region5: #{ae_vine2_forward.11} parent=0 // pred_fallthru
    _
  // Predicated region
  $region6: #{ae_vine2_forward.11} parent=0 // pred_check
    _
  $region7: #{ae_vine2_forward.11} parent=0 // pred_check_branch
    %12 = sbr.rel (0) target = $region9
  $region8: #{ae_vine2_forward.11} parent=0 // pred_region
    _
  $region9: #{ae_vine2_forward.11} parent=0 // pred_fallthru
    _
  // Predicated region
  $region10: #{ae_vine2_forward.11} parent=0 // pred_check
    _
  $region11: #{ae_vine2_forward.11} parent=0 // pred_check_branch
    %14 = sbr.rel (0) target = $region13
  $region12: #{ae_vine2_forward.11} parent=0 // pred_region
    _
  $region13: #{ae_vine2_forward.11} parent=0 // pred_fallthru
    _
  // Predicated region
  $region14: #{ae_vine2_forward.11} parent=0 // pred_check
    _
  $region15: #{ae_vine2_forward.11} parent=0 // pred_check_branch
    %16 = sbr.rel (0) target = $region17
  $region16: #{ae_vine2_forward.11} parent=0 // pred_region
    _
  $region17: #{ae_vine2_forward.11} parent=0 // pred_fallthru
    _
  %v17 = vld [vmem:[%s0] sm:$0xff]
  %v18 = vld [vmem:[%s0 + $0x8] sm:$0xff]
  %v19 = vld [vmem:[%s0 + $0x10] sm:$0xff]
  %v20 = vld [vmem:[%s0 + $0x18] sm:$0xff]
  %v21 = vld [vmem:[%s0 + $0x20] sm:$0xff]
  %v22 = vld [vmem:[%s0 + $0x28] sm:$0xff]
  %v23 = vld [vmem:[%s0 + $0x30] sm:$0xff]
  %v24 = vld [vmem:[%s0 + $0x38] sm:$0xff]
  %v25 = vld [vmem:[%s0 + $0x40] sm:$0xff]
  %v26 = vld [vmem:[%s0 + $0x48] sm:$0xff]
  %v27 = vld [vmem:[%s0 + $0x50] sm:$0xff]
  %v28 = vld [vmem:[%s0 + $0x58] sm:$0xff]
  %v29 = vld [vmem:[%s0 + $0x60] sm:$0xff]
  %v30 = vld [vmem:[%s0 + $0x68] sm:$0xff]
  %v31 = vld [vmem:[%s0 + $0x70] sm:$0xff]
  %v32 = vld [vmem:[%s0 + $0x78] sm:$0xff]
  %v33 = vld [vmem:[%s0 + $0x80] sm:$0xff]
  %v34 = vld [vmem:[%s0 + $0x88] sm:$0xff]
  %v35 = vld [vmem:[%s0 + $0x90] sm:$0xff]
  %v36 = vld [vmem:[%s0 + $0x98] sm:$0xff]
  %v37 = vld [vmem:[%s0 + $0xa0] sm:$0xff]
  %v38 = vld [vmem:[%s0 + $0xa8] sm:$0xff]
  %v39 = vld [vmem:[%s0 + $0xb0] sm:$0xff]
  %v40 = vld [vmem:[%s0 + $0xb8] sm:$0xff]
  %v41 = vld [vmem:[%s0 + $0xc0] sm:$0xff]
  %v42 = vld [vmem:[%s0 + $0xc8] sm:$0xff]
  %v43 = vld [vmem:[%s0 + $0xd0] sm:$0xff]
  %v44 = vld [vmem:[%s0 + $0xd8] sm:$0xff]
  %v45 = vld [vmem:[%s0 + $0xe0] sm:$0xff]
  %v46 = vld [vmem:[%s0 + $0xe8] sm:$0xff]
  %v47 = vld [vmem:[%s0 + $0xf0] sm:$0xff]
  %v48 = vld [vmem:[%s0 + $0xf8] sm:$0xff]
  %v49 = vld [vmem:[%s0 + $0x100] sm:$0xff]
  %v50 = vld [vmem:[%s0 + $0x108] sm:$0xff]
  %v51 = vld [vmem:[%s0 + $0x110] sm:$0xff]
  %v52 = vld [vmem:[%s0 + $0x118] sm:$0xff]
  %v53 = vld [vmem:[%s1] sm:$0xff]
  %v54 = vld [vmem:[%s1 + $0x8] sm:$0xff]
  %v55 = vld [vmem:[%s1 + $0x10] sm:$0xff]
  %v56 = vld [vmem:[%s1 + $0x18] sm:$0xff]
  %v57 = vld [vmem:[%s1 + $0x20] sm:$0xff]
  %v58 = vld [vmem:[%s1 + $0x28] sm:$0xff]
  %v59 = vld [vmem:[%s1 + $0x30] sm:$0xff]
  %v60 = vld [vmem:[%s1 + $0x38] sm:$0xff]
  %v61 = vld [vmem:[%s1 + $0x40] sm:$0xff]
  %v62 = vld [vmem:[%s1 + $0x48] sm:$0xff]
  %v63 = vld [vmem:[%s1 + $0x50] sm:$0xff]
  %v64 = vld [vmem:[%s1 + $0x58] sm:$0xff]
  %v65 = vld [vmem:[%s1 + $0x60] sm:$0xff]
  %v66 = vld [vmem:[%s1 + $0x68] sm:$0xff]
  %v67 = vld [vmem:[%s1 + $0x70] sm:$0xff]
  %v68 = vld [vmem:[%s1 + $0x78] sm:$0xff]
  %v69 = vld [vmem:[%s1 + $0x80] sm:$0xff]
  %v70 = vld [vmem:[%s1 + $0x88] sm:$0xff]
  %v71 = vld [vmem:[%s1 + $0x90] sm:$0xff]
  %v72 = vld [vmem:[%s1 + $0x98] sm:$0xff]
  %v73 = vld [vmem:[%s1 + $0xa0] sm:$0xff]
  %v74 = vld [vmem:[%s1 + $0xa8] sm:$0xff]
  %v75 = vld [vmem:[%s1 + $0xb0] sm:$0xff]
  %v76 = vld [vmem:[%s1 + $0xb8] sm:$0xff]
  %v77 = vld [vmem:[%s1 + $0xc0] sm:$0xff]
  %v78 = vld [vmem:[%s1 + $0xc8] sm:$0xff]
  %v79 = vld [vmem:[%s1 + $0xd0] sm:$0xff]
  %v80 = vld [vmem:[%s1 + $0xd8] sm:$0xff]
  %v81 = vld [vmem:[%s1 + $0xe0] sm:$0xff]
  %v82 = vld [vmem:[%s1 + $0xe8] sm:$0xff]
  %v83 = vld [vmem:[%s1 + $0xf0] sm:$0xff]
  %v84 = vld [vmem:[%s1 + $0xf8] sm:$0xff]
  %v85 = vld [vmem:[%s1 + $0x100] sm:$0xff]
  %v86 = vld [vmem:[%s1 + $0x108] sm:$0xff]
  %v87 = vld [vmem:[%s1 + $0x110] sm:$0xff]
  %v88 = vld [vmem:[%s1 + $0x118] sm:$0xff]
  %v89 = vld [vmem:[%s1 + $0x120] sm:$0xff]
  %v90 = vld [vmem:[%s1 + $0x128] sm:$0xff]
  %v91 = vld [vmem:[%s1 + $0x130] sm:$0xff]
  %v92 = vld [vmem:[%s1 + $0x138] sm:$0xff]
  %v93 = vld [vmem:[%s1 + $0x140] sm:$0xff]
  %v94 = vld [vmem:[%s1 + $0x148] sm:$0xff]
  %v95 = vld [vmem:[%s1 + $0x150] sm:$0xff]
  %v96 = vld [vmem:[%s1 + $0x158] sm:$0xff]
  %v97 = vld [vmem:[%s1 + $0x160] sm:$0xff]
  %v98 = vld [vmem:[%s1 + $0x168] sm:$0xff]
  %v99 = vld [vmem:[%s1 + $0x170] sm:$0xff]
  %v100 = vld [vmem:[%s1 + $0x178] sm:$0xff]
  %v101 = vld [vmem:[%s1 + $0x180] sm:$0xff]
  %v102 = vld [vmem:[%s1 + $0x188] sm:$0xff]
  %v103 = vld [vmem:[%s1 + $0x190] sm:$0xff]
  %v104 = vld [vmem:[%s1 + $0x198] sm:$0xff]
  %v105 = vld [vmem:[%s1 + $0x1a0] sm:$0xff]
  %v106 = vld [vmem:[%s1 + $0x1a8] sm:$0xff]
  %v107 = vld [vmem:[%s1 + $0x1b0] sm:$0xff]
  %v108 = vld [vmem:[%s1 + $0x1b8] sm:$0xff]
  %v109 = vld [vmem:[%s1 + $0x1c0] sm:$0xff]
  %v110 = vld [vmem:[%s1 + $0x1c8] sm:$0xff]
  %v111 = vld [vmem:[%s1 + $0x1d0] sm:$0xff]
  %v112 = vld [vmem:[%s1 + $0x1d8] sm:$0xff]
  %v113 = vld [vmem:[%s1 + $0x1e0] sm:$0xff]
  %v114 = vld [vmem:[%s1 + $0x1e8] sm:$0xff]
  %v115 = vld [vmem:[%s1 + $0x1f0] sm:$0xff]
  %v116 = vld [vmem:[%s1 + $0x1f8] sm:$0xff]
  %v117 = vld [vmem:[%s1 + $0x200] sm:$0xff]
  %v118 = vld [vmem:[%s1 + $0x208] sm:$0xff]
  %v119 = vld [vmem:[%s1 + $0x210] sm:$0xff]
  %v120 = vld [vmem:[%s1 + $0x218] sm:$0xff]
  %v121 = vld [vmem:[%s1 + $0x220] sm:$0xff]
  %v122 = vld [vmem:[%s1 + $0x228] sm:$0xff]
  %v123 = vld [vmem:[%s1 + $0x230] sm:$0xff]
  %v124 = vld [vmem:[%s1 + $0x238] sm:$0xff]
  %v125 = vld [vmem:[%s1 + $0x240] sm:$0xff]
  %v126 = vld [vmem:[%s1 + $0x248] sm:$0xff]
  %v127 = vld [vmem:[%s1 + $0x250] sm:$0xff]
  %v128 = vld [vmem:[%s1 + $0x258] sm:$0xff]
  %v129 = vld [vmem:[%s1 + $0x260] sm:$0xff]
  %v130 = vld [vmem:[%s1 + $0x268] sm:$0xff]
  %v131 = vld [vmem:[%s1 + $0x270] sm:$0xff]
  %v132 = vld [vmem:[%s1 + $0x278] sm:$0xff]
  %v133 = vld [vmem:[%s1 + $0x280] sm:$0xff]
  %v134 = vld [vmem:[%s1 + $0x288] sm:$0xff]
  %v135 = vld [vmem:[%s1 + $0x290] sm:$0xff]
  %v136 = vld [vmem:[%s1 + $0x298] sm:$0xff]
  %v137 = vld [vmem:[%s1 + $0x2a0] sm:$0xff]
  %v138 = vld [vmem:[%s1 + $0x2a8] sm:$0xff]
  %v139 = vld [vmem:[%s1 + $0x2b0] sm:$0xff]
  %v140 = vld [vmem:[%s1 + $0x2b8] sm:$0xff]
  %v141 = vld [vmem:[%s1 + $0x2c0] sm:$0xff]
  %v142 = vld [vmem:[%s1 + $0x2c8] sm:$0xff]
  %v143 = vld [vmem:[%s1 + $0x2d0] sm:$0xff]
  %v144 = vld [vmem:[%s1 + $0x2d8] sm:$0xff]
  %v145 = vld [vmem:[%s1 + $0x2e0] sm:$0xff]
  %v146 = vld [vmem:[%s1 + $0x2e8] sm:$0xff]
  %v147 = vld [vmem:[%s1 + $0x2f0] sm:$0xff]
  %v148 = vld [vmem:[%s1 + $0x2f8] sm:$0xff]
  %v149 = vld [vmem:[%s1 + $0x300] sm:$0xff]
  %v150 = vld [vmem:[%s1 + $0x308] sm:$0xff]
  %v151 = vld [vmem:[%s1 + $0x310] sm:$0xff]
  %v152 = vld [vmem:[%s1 + $0x318] sm:$0xff]
  %v153 = vld [vmem:[%s1 + $0x320] sm:$0xff]
  %v154 = vld [vmem:[%s1 + $0x328] sm:$0xff]
  %v155 = vld [vmem:[%s1 + $0x330] sm:$0xff]
  %v156 = vld [vmem:[%s1 + $0x338] sm:$0xff]
  %v157 = vld [vmem:[%s1 + $0x340] sm:$0xff]
  %v158 = vld [vmem:[%s1 + $0x348] sm:$0xff]
  %v159 = vld [vmem:[%s1 + $0x350] sm:$0xff]
  %v160 = vld [vmem:[%s1 + $0x358] sm:$0xff]
  %v161 = vld [vmem:[%s1 + $0x360] sm:$0xff]
  %v162 = vld [vmem:[%s1 + $0x368] sm:$0xff]
  %v163 = vld [vmem:[%s1 + $0x370] sm:$0xff]
  %v164 = vld [vmem:[%s1 + $0x378] sm:$0xff]
  %v165 = vld [vmem:[%s1 + $0x380] sm:$0xff]
  %v166 = vld [vmem:[%s1 + $0x388] sm:$0xff]
  %v167 = vld [vmem:[%s1 + $0x390] sm:$0xff]
  %v168 = vld [vmem:[%s1 + $0x398] sm:$0xff]
  %v169 = vld [vmem:[%s1 + $0x3a0] sm:$0xff]
  %v170 = vld [vmem:[%s1 + $0x3a8] sm:$0xff]
  %v171 = vld [vmem:[%s1 + $0x3b0] sm:$0xff]
  %v172 = vld [vmem:[%s1 + $0x3b8] sm:$0xff]
  %v173 = vld [vmem:[%s1 + $0x3c0] sm:$0xff]
  %v174 = vld [vmem:[%s1 + $0x3c8] sm:$0xff]
  %v175 = vld [vmem:[%s1 + $0x3d0] sm:$0xff]
  %v176 = vld [vmem:[%s1 + $0x3d8] sm:$0xff]
  %v177 = vld [vmem:[%s1 + $0x3e0] sm:$0xff]
  %v178 = vld [vmem:[%s1 + $0x3e8] sm:$0xff]
  %v179 = vld [vmem:[%s1 + $0x3f0] sm:$0xff]
  %v180 = vld [vmem:[%s1 + $0x3f8] sm:$0xff]
  %v181 = vld [vmem:[%s1 + $0x400] sm:$0xff]
  %v182 = vld [vmem:[%s1 + $0x408] sm:$0xff]
  %v183 = vld [vmem:[%s1 + $0x410] sm:$0xff]
  %v184 = vld [vmem:[%s1 + $0x418] sm:$0xff]
  %v185 = vld [vmem:[%s1 + $0x420] sm:$0xff]
  %v186 = vld [vmem:[%s1 + $0x428] sm:$0xff]
  %v187 = vld [vmem:[%s1 + $0x430] sm:$0xff]
  %v188 = vld [vmem:[%s1 + $0x438] sm:$0xff]
  %v189 = vld [vmem:[%s1 + $0x440] sm:$0xff]
  %v190 = vld [vmem:[%s1 + $0x448] sm:$0xff]
  %v191 = vld [vmem:[%s1 + $0x450] sm:$0xff]
  %v192 = vld [vmem:[%s1 + $0x458] sm:$0xff]
  %v193 = vld [vmem:[%s1 + $0x460] sm:$0xff]
  %v194 = vld [vmem:[%s1 + $0x468] sm:$0xff]
  %v195 = vld [vmem:[%s1 + $0x470] sm:$0xff]
  %v196 = vld [vmem:[%s1 + $0x478] sm:$0xff]
  %v197 = vld [vmem:[%s1 + $0x480] sm:$0xff]
  %v198 = vld [vmem:[%s1 + $0x488] sm:$0xff]
  %v199 = vld [vmem:[%s1 + $0x490] sm:$0xff]
  %v200 = vld [vmem:[%s1 + $0x498] sm:$0xff]
  %v201 = vld [vmem:[%s1 + $0x4a0] sm:$0xff]
  %v202 = vld [vmem:[%s1 + $0x4a8] sm:$0xff]
  %v203 = vld [vmem:[%s1 + $0x4b0] sm:$0xff]
  %v204 = vld [vmem:[%s1 + $0x4b8] sm:$0xff]
  %v205 = vld [vmem:[%s1 + $0x4c0] sm:$0xff]
  %v206 = vld [vmem:[%s1 + $0x4c8] sm:$0xff]
  %v207 = vld [vmem:[%s1 + $0x4d0] sm:$0xff]
  %v208 = vld [vmem:[%s1 + $0x4d8] sm:$0xff]
  %v209 = vld [vmem:[%s1 + $0x4e0] sm:$0xff]
  %v210 = vld [vmem:[%s1 + $0x4e8] sm:$0xff]
  %v211 = vld [vmem:[%s1 + $0x4f0] sm:$0xff]
  %v212 = vld [vmem:[%s1 + $0x4f8] sm:$0xff]
  %v213 = vld [vmem:[%s1 + $0x500] sm:$0xff]
  %v214 = vld [vmem:[%s1 + $0x508] sm:$0xff]
  %v215 = vld [vmem:[%s1 + $0x510] sm:$0xff]
  %v216 = vld [vmem:[%s1 + $0x518] sm:$0xff]
  %v217 = vld [vmem:[%s1 + $0x520] sm:$0xff]
  %v218 = vld [vmem:[%s1 + $0x528] sm:$0xff]
  %v219 = vld [vmem:[%s1 + $0x530] sm:$0xff]
  %v220 = vld [vmem:[%s1 + $0x538] sm:$0xff]
  %v221 = vld [vmem:[%s1 + $0x540] sm:$0xff]
  %v222 = vld [vmem:[%s1 + $0x548] sm:$0xff]
  %v223 = vld [vmem:[%s1 + $0x550] sm:$0xff]
  %v224 = vld [vmem:[%s1 + $0x558] sm:$0xff]
  %v225 = vld [vmem:[%s1 + $0x560] sm:$0xff]
  %v226 = vld [vmem:[%s1 + $0x568] sm:$0xff]
  %v227 = vld [vmem:[%s1 + $0x570] sm:$0xff]
  %v228 = vld [vmem:[%s1 + $0x578] sm:$0xff]
  %v229 = vld [vmem:[%s1 + $0x580] sm:$0xff]
  %v230 = vld [vmem:[%s1 + $0x588] sm:$0xff]
  %v231 = vld [vmem:[%s1 + $0x590] sm:$0xff]
  %v232 = vld [vmem:[%s1 + $0x598] sm:$0xff]
  %v233 = vld [vmem:[%s1 + $0x5a0] sm:$0xff]
  %v234 = vld [vmem:[%s1 + $0x5a8] sm:$0xff]
  %v235 = vld [vmem:[%s1 + $0x5b0] sm:$0xff]
  %v236 = vld [vmem:[%s1 + $0x5b8] sm:$0xff]
  %v237 = vld [vmem:[%s1 + $0x5c0] sm:$0xff]
  %v238 = vld [vmem:[%s1 + $0x5c8] sm:$0xff]
  %v239 = vld [vmem:[%s1 + $0x5d0] sm:$0xff]
  %v240 = vld [vmem:[%s1 + $0x5d8] sm:$0xff]
  %v241 = vld [vmem:[%s1 + $0x5e0] sm:$0xff]
  %v242 = vld [vmem:[%s1 + $0x5e8] sm:$0xff]
  %v243 = vld [vmem:[%s1 + $0x5f0] sm:$0xff]
  %v244 = vld [vmem:[%s1 + $0x5f8] sm:$0xff]
  %v245 = vld [vmem:[%s1 + $0x600] sm:$0xff]
  %v246 = vld [vmem:[%s1 + $0x608] sm:$0xff]
  %v247 = vld [vmem:[%s1 + $0x610] sm:$0xff]
  %v248 = vld [vmem:[%s1 + $0x618] sm:$0xff]
  %v249 = vld [vmem:[%s1 + $0x620] sm:$0xff]
  %v250 = vld [vmem:[%s1 + $0x628] sm:$0xff]
  %v251 = vld [vmem:[%s1 + $0x630] sm:$0xff]
  %v252 = vld [vmem:[%s1 + $0x638] sm:$0xff]
  %v253 = vld [vmem:[%s1 + $0x640] sm:$0xff]
  %v254 = vld [vmem:[%s1 + $0x648] sm:$0xff]
  %v255 = vld [vmem:[%s1 + $0x650] sm:$0xff]
  %v256 = vld [vmem:[%s1 + $0x658] sm:$0xff]
  %v257 = vld [vmem:[%s1 + $0x660] sm:$0xff]
  %v258 = vld [vmem:[%s1 + $0x668] sm:$0xff]
  %v259 = vld [vmem:[%s1 + $0x670] sm:$0xff]
  %v260 = vld [vmem:[%s1 + $0x678] sm:$0xff]
  %v261 = vld [vmem:[%s1 + $0x680] sm:$0xff]
  %v262 = vld [vmem:[%s1 + $0x688] sm:$0xff]
  %v263 = vld [vmem:[%s1 + $0x690] sm:$0xff]
  %v264 = vld [vmem:[%s1 + $0x698] sm:$0xff]
  %v265 = vld [vmem:[%s1 + $0x6a0] sm:$0xff]
  %v266 = vld [vmem:[%s1 + $0x6a8] sm:$0xff]
  %v267 = vld [vmem:[%s1 + $0x6b0] sm:$0xff]
  %v268 = vld [vmem:[%s1 + $0x6b8] sm:$0xff]
  %v269 = vld [vmem:[%s1 + $0x6c0] sm:$0xff]
  %v270 = vld [vmem:[%s1 + $0x6c8] sm:$0xff]
  %v271 = vld [vmem:[%s1 + $0x6d0] sm:$0xff]
  %v272 = vld [vmem:[%s1 + $0x6d8] sm:$0xff]
  %v273 = vld [vmem:[%s1 + $0x6e0] sm:$0xff]
  %v274 = vld [vmem:[%s1 + $0x6e8] sm:$0xff]
  %v275 = vld [vmem:[%s1 + $0x6f0] sm:$0xff]
  %v276 = vld [vmem:[%s1 + $0x6f8] sm:$0xff]
  %v277 = vld [vmem:[%s1 + $0x700] sm:$0xff]
  %v278 = vld [vmem:[%s1 + $0x708] sm:$0xff]
  %v279 = vld [vmem:[%s1 + $0x710] sm:$0xff]
  %v280 = vld [vmem:[%s1 + $0x718] sm:$0xff]
  %v281 = vld [vmem:[%s1 + $0x720] sm:$0xff]
  %v282 = vld [vmem:[%s1 + $0x728] sm:$0xff]
  %v283 = vld [vmem:[%s1 + $0x730] sm:$0xff]
  %v284 = vld [vmem:[%s1 + $0x738] sm:$0xff]
  %v285 = vld [vmem:[%s1 + $0x740] sm:$0xff]
  %v286 = vld [vmem:[%s1 + $0x748] sm:$0xff]
  %v287 = vld [vmem:[%s1 + $0x750] sm:$0xff]
  %v288 = vld [vmem:[%s1 + $0x758] sm:$0xff]
  %v289 = vld [vmem:[%s1 + $0x760] sm:$0xff]
  %v290 = vld [vmem:[%s1 + $0x768] sm:$0xff]
  %v291 = vld [vmem:[%s1 + $0x770] sm:$0xff]
  %v292 = vld [vmem:[%s1 + $0x778] sm:$0xff]
  %v293 = vld [vmem:[%s1 + $0x780] sm:$0xff]
  %v294 = vld [vmem:[%s1 + $0x788] sm:$0xff]
  %v295 = vld [vmem:[%s1 + $0x790] sm:$0xff]
  %v296 = vld [vmem:[%s1 + $0x798] sm:$0xff]
  %v297 = vld [vmem:[%s1 + $0x7a0] sm:$0xff]
  %v298 = vld [vmem:[%s1 + $0x7a8] sm:$0xff]
  %v299 = vld [vmem:[%s1 + $0x7b0] sm:$0xff]
  %v300 = vld [vmem:[%s1 + $0x7b8] sm:$0xff]
  %v301 = vld [vmem:[%s1 + $0x7c0] sm:$0xff]
  %v302 = vld [vmem:[%s1 + $0x7c8] sm:$0xff]
  %v303 = vld [vmem:[%s1 + $0x7d0] sm:$0xff]
  %v304 = vld [vmem:[%s1 + $0x7d8] sm:$0xff]
  %v305 = vld [vmem:[%s1 + $0x7e0] sm:$0xff]
  %v306 = vld [vmem:[%s1 + $0x7e8] sm:$0xff]
  %v307 = vld [vmem:[%s1 + $0x7f0] sm:$0xff]
  %v308 = vld [vmem:[%s1 + $0x7f8] sm:$0xff]
  %v309 = vld [vmem:[%s1 + $0x800] sm:$0xff]
  %v310 = vld [vmem:[%s1 + $0x808] sm:$0xff]
  %v311 = vld [vmem:[%s1 + $0x810] sm:$0xff]
  %v312 = vld [vmem:[%s1 + $0x818] sm:$0xff]
  %v313 = vld [vmem:[%s1 + $0x820] sm:$0xff]
  %v314 = vld [vmem:[%s1 + $0x828] sm:$0xff]
  %v315 = vld [vmem:[%s1 + $0x830] sm:$0xff]
  %v316 = vld [vmem:[%s1 + $0x838] sm:$0xff]
  %v317 = vld [vmem:[%s1 + $0x840] sm:$0xff]
  %v318 = vld [vmem:[%s1 + $0x848] sm:$0xff]
  %v319 = vld [vmem:[%s1 + $0x850] sm:$0xff]
  %v320 = vld [vmem:[%s1 + $0x858] sm:$0xff]
  %v321 = vld [vmem:[%s1 + $0x860] sm:$0xff]
  %v322 = vld [vmem:[%s1 + $0x868] sm:$0xff]
  %v323 = vld [vmem:[%s1 + $0x870] sm:$0xff]
  %v324 = vld [vmem:[%s1 + $0x878] sm:$0xff]
  %v325 = vld [vmem:[%s1 + $0x880] sm:$0xff]
  %v326 = vld [vmem:[%s1 + $0x888] sm:$0xff]
  %v327 = vld [vmem:[%s1 + $0x890] sm:$0xff]
  %v328 = vld [vmem:[%s1 + $0x898] sm:$0xff]
  %v329 = vld [vmem:[%s1 + $0x8a0] sm:$0xff]
  %v330 = vld [vmem:[%s1 + $0x8a8] sm:$0xff]
  %v331 = vld [vmem:[%s1 + $0x8b0] sm:$0xff]
  %v332 = vld [vmem:[%s1 + $0x8b8] sm:$0xff]
  %v333 = vld [vmem:[%s1 + $0x8c0] sm:$0xff]
  %v334 = vld [vmem:[%s1 + $0x8c8] sm:$0xff]
  %v335 = vld [vmem:[%s1 + $0x8d0] sm:$0xff]
  %v336 = vld [vmem:[%s1 + $0x8d8] sm:$0xff]
  %v337 = vld [vmem:[%s1 + $0x8e0] sm:$0xff]
  %v338 = vld [vmem:[%s1 + $0x8e8] sm:$0xff]
  %v339 = vld [vmem:[%s1 + $0x8f0] sm:$0xff]
  %v340 = vld [vmem:[%s1 + $0x8f8] sm:$0xff]
  %341 = vmatprep.subr.mxu0 %v54
  %342 = vmatpush1.msra.mxu0 %v53
  %343 = vmatprep.subr.mxu0 %v56
  %344 = vmatpush1.msra.mxu0 %v55
  %345 = vmatprep.subr.mxu0 %v58
  %346 = vmatpush1.msra.mxu0 %v57
  %347 = vmatprep.subr.mxu0 %v60
  %348 = vmatpush1.msra.mxu0 %v59
  %349 = vmatprep.subr.mxu0 %v62
  %350 = vmatpush1.msra.mxu0 %v61
  %351 = vmatprep.subr.mxu0 %v64
  %352 = vmatpush1.msra.mxu0 %v63
  %353 = vmatprep.subr.mxu0 %v66
  %354 = vmatpush1.msra.mxu0 %v65
  %355 = vmatprep.subr.mxu0 %v68
  %356 = vmatpush1.msra.mxu0 %v67
  %357 = vmatprep.subr.mxu0 %v70
  %358 = vmatpush1.msra.mxu0 %v69
  %359 = vmatprep.subr.mxu0 %v72
  %360 = vmatpush1.msra.mxu0 %v71
  %361 = vmatprep.subr.mxu0 %v74
  %362 = vmatpush1.msra.mxu0 %v73
  %363 = vmatprep.subr.mxu0 %v76
  %364 = vmatpush1.msra.mxu0 %v75
  %365 = vmatprep.subr.mxu0 %v78
  %366 = vmatpush1.msra.mxu0 %v77
  %367 = vmatprep.subr.mxu0 %v80
  %368 = vmatpush1.msra.mxu0 %v79
  %369 = vmatprep.subr.mxu0 %v82
  %370 = vmatpush1.msra.mxu0 %v81
  %371 = vmatprep.subr.mxu0 %v84
  %372 = vmatpush1.msra.mxu0 %v83
  %373 = vmatprep.subr.mxu0 %v86
  %374 = vmatpush1.msra.mxu0 %v85
  %375 = vmatprep.subr.mxu0 %v88
  %376 = vmatpush1.msra.mxu0 %v87
  %377 = vmatprep.subr.mxu0 %v90
  %378 = vmatpush1.msra.mxu0 %v89
  %379 = vmatprep.subr.mxu0 %v92
  %380 = vmatpush1.msra.mxu0 %v91
  %381 = vmatprep.subr.mxu0 %v94
  %382 = vmatpush1.msra.mxu0 %v93
  %383 = vmatprep.subr.mxu0 %v96
  %384 = vmatpush1.msra.mxu0 %v95
  %385 = vmatprep.subr.mxu0 %v98
  %386 = vmatpush1.msra.mxu0 %v97
  %387 = vmatprep.subr.mxu0 %v100
  %388 = vmatpush1.msra.mxu0 %v99
  %389 = vmatprep.subr.mxu0 %v102
  %390 = vmatpush1.msra.mxu0 %v101
  %391 = vmatprep.subr.mxu0 %v104
  %392 = vmatpush1.msra.mxu0 %v103
  %393 = vmatprep.subr.mxu0 %v106
  %394 = vmatpush1.msra.mxu0 %v105
  %395 = vmatprep.subr.mxu0 %v108
  %396 = vmatpush1.msra.mxu0 %v107
  %397 = vmatprep.subr.mxu0 %v110
  %398 = vmatpush1.msra.mxu0 %v109
  %399 = vmatprep.subr.mxu0 %v112
  %400 = vmatpush1.msra.mxu0 %v111
  %401 = vmatprep.subr.mxu0 %v114
  %402 = vmatpush1.msra.mxu0 %v113
  %403 = vmatprep.subr.mxu0 %v116
  %404 = vmatpush1.msra.mxu0 %v115
  %405 = vmatprep.mubr.f32.mxu0 %v18
  %406 = vmatmul.mubr.f32.gmra.mrb[0].mxu0 %v17
  %v407 = vpop.f32.mrb[0].mxu0
  %v408 = vadd.f32 0.0, %v407
  %v409 = vpop.f32.mrb[0].mxu0
  %v410 = vadd.f32 0.0, %v409
  %411 = vmatprep.mubr.f32.mxu0 %v27
  %412 = vmatmul.mubr.f32.gmra.mrb[0].mxu0 %v26
  %v413 = vpop.f32.mrb[0].mxu0
  %v414 = vadd.f32 0.0, %v413
  %v415 = vpop.f32.mrb[0].mxu0
  %v416 = vadd.f32 0.0, %v415
  %417 = vmatprep.mubr.f32.mxu0 %v36
  %418 = vmatmul.mubr.f32.gmra.mrb[0].mxu0 %v35
  %v419 = vpop.f32.mrb[0].mxu0
  %v420 = vadd.f32 0.0, %v419
  %v421 = vpop.f32.mrb[0].mxu0
  %v422 = vadd.f32 0.0, %v421
  %423 = vmatprep.mubr.f32.mxu0 %v45
  %424 = vmatmul.mubr.f32.gmra.mrb[0].mxu0 %v44
  %v425 = vpop.f32.mrb[0].mxu0
  %v426 = vadd.f32 0.0, %v425
  %v427 = vpop.f32.mrb[0].mxu0
  %v428 = vadd.f32 0.0, %v427
  %429 = vdwg.mxu0
  %430 = vmatprep.subr.mxu0 %v118
  %431 = vmatpush1.msra.mxu0 %v117
  %432 = vmatprep.subr.mxu0 %v120
  %433 = vmatpush1.msra.mxu0 %v119
  %434 = vmatprep.subr.mxu0 %v122
  %435 = vmatpush1.msra.mxu0 %v121
  %436 = vmatprep.subr.mxu0 %v124
  %437 = vmatpush1.msra.mxu0 %v123
  %438 = vmatprep.subr.mxu0 %v126
  %439 = vmatpush1.msra.mxu0 %v125
  %440 = vmatprep.subr.mxu0 %v128
  %441 = vmatpush1.msra.mxu0 %v127
  %442 = vmatprep.subr.mxu0 %v130
  %443 = vmatpush1.msra.mxu0 %v129
  %444 = vmatprep.subr.mxu0 %v132
  %445 = vmatpush1.msra.mxu0 %v131
  %446 = vmatprep.subr.mxu0 %v134
  %447 = vmatpush1.msra.mxu0 %v133
  %448 = vmatprep.subr.mxu0 %v136
  %449 = vmatpush1.msra.mxu0 %v135
  %450 = vmatprep.subr.mxu0 %v138
  %451 = vmatpush1.msra.mxu0 %v137
  %452 = vmatprep.subr.mxu0 %v140
  %453 = vmatpush1.msra.mxu0 %v139
  %454 = vmatprep.subr.mxu0 %v142
  %455 = vmatpush1.msra.mxu0 %v141
  %456 = vmatprep.subr.mxu0 %v144
  %457 = vmatpush1.msra.mxu0 %v143
  %458 = vmatprep.subr.mxu0 %v146
  %459 = vmatpush1.msra.mxu0 %v145
  %460 = vmatprep.subr.mxu0 %v148
  %461 = vmatpush1.msra.mxu0 %v147
  %462 = vmatprep.subr.mxu0 %v150
  %463 = vmatpush1.msra.mxu0 %v149
  %464 = vmatprep.subr.mxu0 %v152
  %465 = vmatpush1.msra.mxu0 %v151
  %466 = vmatprep.subr.mxu0 %v154
  %467 = vmatpush1.msra.mxu0 %v153
  %468 = vmatprep.subr.mxu0 %v156
  %469 = vmatpush1.msra.mxu0 %v155
  %470 = vmatprep.subr.mxu0 %v158
  %471 = vmatpush1.msra.mxu0 %v157
  %472 = vmatprep.subr.mxu0 %v160
  %473 = vmatpush1.msra.mxu0 %v159
  %474 = vmatprep.subr.mxu0 %v162
  %475 = vmatpush1.msra.mxu0 %v161
  %476 = vmatprep.subr.mxu0 %v164
  %477 = vmatpush1.msra.mxu0 %v163
  %478 = vmatprep.subr.mxu0 %v166
  %479 = vmatpush1.msra.mxu0 %v165
  %480 = vmatprep.subr.mxu0 %v168
  %481 = vmatpush1.msra.mxu0 %v167
  %482 = vmatprep.subr.mxu0 %v170
  %483 = vmatpush1.msra.mxu0 %v169
  %484 = vmatprep.subr.mxu0 %v172
  %485 = vmatpush1.msra.mxu0 %v171
  %486 = vmatprep.subr.mxu0 %v174
  %487 = vmatpush1.msra.mxu0 %v173
  %488 = vmatprep.subr.mxu0 %v176
  %489 = vmatpush1.msra.mxu0 %v175
  %490 = vmatprep.subr.mxu0 %v178
  %491 = vmatpush1.msra.mxu0 %v177
  %492 = vmatprep.subr.mxu0 %v180
  %493 = vmatpush1.msra.mxu0 %v179
  %494 = vmatprep.mubr.f32.mxu0 %v20
  %495 = vmatmul.mubr.f32.gmra.mrb[0].mxu0 %v19
  %v496 = vpop.f32.mrb[0].mxu0
  %v497 = vadd.f32 %v408, %v496
  %v498 = vpop.f32.mrb[0].mxu0
  %v499 = vadd.f32 %v410, %v498
  %500 = vmatprep.mubr.f32.mxu0 %v29
  %501 = vmatmul.mubr.f32.gmra.mrb[0].mxu0 %v28
  %v502 = vpop.f32.mrb[0].mxu0
  %v503 = vadd.f32 %v414, %v502
  %v504 = vpop.f32.mrb[0].mxu0
  %v505 = vadd.f32 %v416, %v504
  %506 = vmatprep.mubr.f32.mxu0 %v38
  %507 = vmatmul.mubr.f32.gmra.mrb[0].mxu0 %v37
  %v508 = vpop.f32.mrb[0].mxu0
  %v509 = vadd.f32 %v420, %v508
  %v510 = vpop.f32.mrb[0].mxu0
  %v511 = vadd.f32 %v422, %v510
  %512 = vmatprep.mubr.f32.mxu0 %v47
  %513 = vmatmul.mubr.f32.gmra.mrb[0].mxu0 %v46
  %v514 = vpop.f32.mrb[0].mxu0
  %v515 = vadd.f32 %v426, %v514
  %v516 = vpop.f32.mrb[0].mxu0
  %v517 = vadd.f32 %v428, %v516
  %518 = vdwg.mxu0
  %519 = vmatprep.subr.mxu0 %v182
  %520 = vmatpush1.msra.mxu0 %v181
  %521 = vmatprep.subr.mxu0 %v184
  %522 = vmatpush1.msra.mxu0 %v183
  %523 = vmatprep.subr.mxu0 %v186
  %524 = vmatpush1.msra.mxu0 %v185
  %525 = vmatprep.subr.mxu0 %v188
  %526 = vmatpush1.msra.mxu0 %v187
  %527 = vmatprep.subr.mxu0 %v190
  %528 = vmatpush1.msra.mxu0 %v189
  %529 = vmatprep.subr.mxu0 %v192
  %530 = vmatpush1.msra.mxu0 %v191
  %531 = vmatprep.subr.mxu0 %v194
  %532 = vmatpush1.msra.mxu0 %v193
  %533 = vmatprep.subr.mxu0 %v196
  %534 = vmatpush1.msra.mxu0 %v195
  %535 = vmatprep.subr.mxu0 %v198
  %536 = vmatpush1.msra.mxu0 %v197
  %537 = vmatprep.subr.mxu0 %v200
  %538 = vmatpush1.msra.mxu0 %v199
  %539 = vmatprep.subr.mxu0 %v202
  %540 = vmatpush1.msra.mxu0 %v201
  %541 = vmatprep.subr.mxu0 %v204
  %542 = vmatpush1.msra.mxu0 %v203
  %543 = vmatprep.subr.mxu0 %v206
  %544 = vmatpush1.msra.mxu0 %v205
  %545 = vmatprep.subr.mxu0 %v208
  %546 = vmatpush1.msra.mxu0 %v207
  %547 = vmatprep.subr.mxu0 %v210
  %548 = vmatpush1.msra.mxu0 %v209
  %549 = vmatprep.subr.mxu0 %v212
  %550 = vmatpush1.msra.mxu0 %v211
  %551 = vmatprep.subr.mxu0 %v214
  %552 = vmatpush1.msra.mxu0 %v213
  %553 = vmatprep.subr.mxu0 %v216
  %554 = vmatpush1.msra.mxu0 %v215
  %555 = vmatprep.subr.mxu0 %v218
  %556 = vmatpush1.msra.mxu0 %v217
  %557 = vmatprep.subr.mxu0 %v220
  %558 = vmatpush1.msra.mxu0 %v219
  %559 = vmatprep.subr.mxu0 %v222
  %560 = vmatpush1.msra.mxu0 %v221
  %561 = vmatprep.subr.mxu0 %v224
  %562 = vmatpush1.msra.mxu0 %v223
  %563 = vmatprep.subr.mxu0 %v226
  %564 = vmatpush1.msra.mxu0 %v225
  %565 = vmatprep.subr.mxu0 %v228
  %566 = vmatpush1.msra.mxu0 %v227
  %567 = vmatprep.subr.mxu0 %v230
  %568 = vmatpush1.msra.mxu0 %v229
  %569 = vmatprep.subr.mxu0 %v232
  %570 = vmatpush1.msra.mxu0 %v231
  %571 = vmatprep.subr.mxu0 %v234
  %572 = vmatpush1.msra.mxu0 %v233
  %573 = vmatprep.subr.mxu0 %v236
  %574 = vmatpush1.msra.mxu0 %v235
  %575 = vmatprep.subr.mxu0 %v238
  %576 = vmatpush1.msra.mxu0 %v237
  %577 = vmatprep.subr.mxu0 %v240
  %578 = vmatpush1.msra.mxu0 %v239
  %579 = vmatprep.subr.mxu0 %v242
  %580 = vmatpush1.msra.mxu0 %v241
  %581 = vmatprep.subr.mxu0 %v244
  %582 = vmatpush1.msra.mxu0 %v243
  %583 = vmatprep.mubr.f32.mxu0 %v22
  %584 = vmatmul.mubr.f32.gmra.mrb[0].mxu0 %v21
  %v585 = vpop.f32.mrb[0].mxu0
  %v586 = vadd.f32 %v497, %v585
  %v587 = vpop.f32.mrb[0].mxu0
  %v588 = vadd.f32 %v499, %v587
  %589 = vmatprep.mubr.f32.mxu0 %v31
  %590 = vmatmul.mubr.f32.gmra.mrb[0].mxu0 %v30
  %v591 = vpop.f32.mrb[0].mxu0
  %v592 = vadd.f32 %v503, %v591
  %v593 = vpop.f32.mrb[0].mxu0
  %v594 = vadd.f32 %v505, %v593
  %595 = vmatprep.mubr.f32.mxu0 %v40
  %596 = vmatmul.mubr.f32.gmra.mrb[0].mxu0 %v39
  %v597 = vpop.f32.mrb[0].mxu0
  %v598 = vadd.f32 %v509, %v597
  %v599 = vpop.f32.mrb[0].mxu0
  %v600 = vadd.f32 %v511, %v599
  %601 = vmatprep.mubr.f32.mxu0 %v49
  %602 = vmatmul.mubr.f32.gmra.mrb[0].mxu0 %v48
  %v603 = vpop.f32.mrb[0].mxu0
  %v604 = vadd.f32 %v515, %v603
  %v605 = vpop.f32.mrb[0].mxu0
  %v606 = vadd.f32 %v517, %v605
  %607 = vdwg.mxu0
  %608 = vmatprep.subr.mxu0 %v246
  %609 = vmatpush1.msra.mxu0 %v245
  %610 = vmatprep.subr.mxu0 %v248
  %611 = vmatpush1.msra.mxu0 %v247
  %612 = vmatprep.subr.mxu0 %v250
  %613 = vmatpush1.msra.mxu0 %v249
  %614 = vmatprep.subr.mxu0 %v252
  %615 = vmatpush1.msra.mxu0 %v251
  %616 = vmatprep.subr.mxu0 %v254
  %617 = vmatpush1.msra.mxu0 %v253
  %618 = vmatprep.subr.mxu0 %v256
  %619 = vmatpush1.msra.mxu0 %v255
  %620 = vmatprep.subr.mxu0 %v258
  %621 = vmatpush1.msra.mxu0 %v257
  %622 = vmatprep.subr.mxu0 %v260
  %623 = vmatpush1.msra.mxu0 %v259
  %624 = vmatprep.subr.mxu0 %v262
  %625 = vmatpush1.msra.mxu0 %v261
  %626 = vmatprep.subr.mxu0 %v264
  %627 = vmatpush1.msra.mxu0 %v263
  %628 = vmatprep.subr.mxu0 %v266
  %629 = vmatpush1.msra.mxu0 %v265
  %630 = vmatprep.subr.mxu0 %v268
  %631 = vmatpush1.msra.mxu0 %v267
  %632 = vmatprep.subr.mxu0 %v270
  %633 = vmatpush1.msra.mxu0 %v269
  %634 = vmatprep.subr.mxu0 %v272
  %635 = vmatpush1.msra.mxu0 %v271
  %636 = vmatprep.subr.mxu0 %v274
  %637 = vmatpush1.msra.mxu0 %v273
  %638 = vmatprep.subr.mxu0 %v276
  %639 = vmatpush1.msra.mxu0 %v275
  %640 = vmatprep.subr.mxu0 %v278
  %641 = vmatpush1.msra.mxu0 %v277
  %642 = vmatprep.subr.mxu0 %v280
  %643 = vmatpush1.msra.mxu0 %v279
  %644 = vmatprep.subr.mxu0 %v282
  %645 = vmatpush1.msra.mxu0 %v281
  %646 = vmatprep.subr.mxu0 %v284
  %647 = vmatpush1.msra.mxu0 %v283
  %648 = vmatprep.subr.mxu0 %v286
  %649 = vmatpush1.msra.mxu0 %v285
  %650 = vmatprep.subr.mxu0 %v288
  %651 = vmatpush1.msra.mxu0 %v287
  %652 = vmatprep.subr.mxu0 %v290
  %653 = vmatpush1.msra.mxu0 %v289
  %654 = vmatprep.subr.mxu0 %v292
  %655 = vmatpush1.msra.mxu0 %v291
  %656 = vmatprep.subr.mxu0 %v294
  %657 = vmatpush1.msra.mxu0 %v293
  %658 = vmatprep.subr.mxu0 %v296
  %659 = vmatpush1.msra.mxu0 %v295
  %660 = vmatprep.subr.mxu0 %v298
  %661 = vmatpush1.msra.mxu0 %v297
  %662 = vmatprep.subr.mxu0 %v300
  %663 = vmatpush1.msra.mxu0 %v299
  %664 = vmatprep.subr.mxu0 %v302
  %665 = vmatpush1.msra.mxu0 %v301
  %666 = vmatprep.subr.mxu0 %v304
  %667 = vmatpush1.msra.mxu0 %v303
  %668 = vmatprep.subr.mxu0 %v306
  %669 = vmatpush1.msra.mxu0 %v305
  %670 = vmatprep.subr.mxu0 %v308
  %671 = vmatpush1.msra.mxu0 %v307
  %672 = vmatprep.mubr.f32.mxu0 %v24
  %673 = vmatmul.mubr.f32.gmra.mrb[0].mxu0 %v23
  %v674 = vpop.f32.mrb[0].mxu0
  %v675 = vadd.f32 %v586, %v674
  %v676 = vpop.f32.mrb[0].mxu0
  %v677 = vadd.f32 %v588, %v676
  %678 = vmatprep.mubr.f32.mxu0 %v33
  %679 = vmatmul.mubr.f32.gmra.mrb[0].mxu0 %v32
  %v680 = vpop.f32.mrb[0].mxu0
  %v681 = vadd.f32 %v592, %v680
  %v682 = vpop.f32.mrb[0].mxu0
  %v683 = vadd.f32 %v594, %v682
  %684 = vmatprep.mubr.f32.mxu0 %v42
  %685 = vmatmul.mubr.f32.gmra.mrb[0].mxu0 %v41
  %v686 = vpop.f32.mrb[0].mxu0
  %v687 = vadd.f32 %v598, %v686
  %v688 = vpop.f32.mrb[0].mxu0
  %v689 = vadd.f32 %v600, %v688
  %690 = vmatprep.mubr.f32.mxu0 %v51
  %691 = vmatmul.mubr.f32.gmra.mrb[0].mxu0 %v50
  %v692 = vpop.f32.mrb[0].mxu0
  %v693 = vadd.f32 %v604, %v692
  %v694 = vpop.f32.mrb[0].mxu0
  %v695 = vadd.f32 %v606, %v694
  %696 = vdwg.mxu0
  %697 = vmatprep.subr.mxu0 %v310
  %698 = vmatpush1.msra.mxu0 %v309
  %699 = vmatprep.subr.mxu0 %v312
  %700 = vmatpush1.msra.mxu0 %v311
  %701 = vmatprep.subr.mxu0 %v314
  %702 = vmatpush1.msra.mxu0 %v313
  %703 = vmatprep.subr.mxu0 %v316
  %704 = vmatpush1.msra.mxu0 %v315
  %705 = vmatprep.subr.mxu0 %v318
  %706 = vmatpush1.msra.mxu0 %v317
  %707 = vmatprep.subr.mxu0 %v320
  %708 = vmatpush1.msra.mxu0 %v319
  %709 = vmatprep.subr.mxu0 %v322
  %710 = vmatpush1.msra.mxu0 %v321
  %711 = vmatprep.subr.mxu0 %v324
  %712 = vmatpush1.msra.mxu0 %v323
  %713 = vmatprep.subr.mxu0 %v326
  %714 = vmatpush1.msra.mxu0 %v325
  %715 = vmatprep.subr.mxu0 %v328
  %716 = vmatpush1.msra.mxu0 %v327
  %717 = vmatprep.subr.mxu0 %v330
  %718 = vmatpush1.msra.mxu0 %v329
  %719 = vmatprep.subr.mxu0 %v332
  %720 = vmatpush1.msra.mxu0 %v331
  %721 = vmatprep.subr.mxu0 %v334
  %722 = vmatpush1.msra.mxu0 %v333
  %723 = vmatprep.subr.mxu0 %v336
  %724 = vmatpush1.msra.mxu0 %v335
  %725 = vmatprep.subr.mxu0 %v338
  %726 = vmatpush1.msra.mxu0 %v337
  %727 = vmatprep.subr.mxu0 %v340
  %728 = vmatpush1.msra.mxu0 %v339
  %729 = vmatprep.subr.mxu0 0.0
  %730 = vmatpush1.msra.mxu0 0.0
  %731 = vmatprep.subr.mxu0 0.0
  %732 = vmatpush1.msra.mxu0 0.0
  %733 = vmatprep.subr.mxu0 0.0
  %734 = vmatpush1.msra.mxu0 0.0
  %735 = vmatprep.subr.mxu0 0.0
  %736 = vmatpush1.msra.mxu0 0.0
  %737 = vmatprep.subr.mxu0 0.0
  %738 = vmatpush1.msra.mxu0 0.0
  %739 = vmatprep.subr.mxu0 0.0
  %740 = vmatpush1.msra.mxu0 0.0
  %741 = vmatprep.subr.mxu0 0.0
  %742 = vmatpush1.msra.mxu0 0.0
  %743 = vmatprep.subr.mxu0 0.0
  %744 = vmatpush1.msra.mxu0 0.0
  %745 = vmatprep.subr.mxu0 0.0
  %746 = vmatpush1.msra.mxu0 0.0
  %747 = vmatprep.subr.mxu0 0.0
  %748 = vmatpush1.msra.mxu0 0.0
  %749 = vmatprep.subr.mxu0 0.0
  %750 = vmatpush1.msra.mxu0 0.0
  %751 = vmatprep.subr.mxu0 0.0
  %752 = vmatpush1.msra.mxu0 0.0
  %753 = vmatprep.subr.mxu0 0.0
  %754 = vmatpush1.msra.mxu0 0.0
  %755 = vmatprep.subr.mxu0 0.0
  %756 = vmatpush1.msra.mxu0 0.0
  %757 = vmatprep.subr.mxu0 0.0
  %758 = vmatpush1.msra.mxu0 0.0
  %759 = vmatprep.subr.mxu0 0.0
  %760 = vmatpush1.msra.mxu0 0.0
  %761 = vmatprep.mubr.f32.mxu0 0.0
  %762 = vmatmul.mubr.f32.gmra.mrb[0].mxu0 %v25
  %v763 = vpop.f32.mrb[0].mxu0
  %v764 = vadd.f32 %v675, %v763
  %v765 = vpop.f32.mrb[0].mxu0
  %v766 = vadd.f32 %v677, %v765
  %767 = vmatprep.mubr.f32.mxu0 0.0
  %768 = vmatmul.mubr.f32.gmra.mrb[0].mxu0 %v34
  %v769 = vpop.f32.mrb[0].mxu0
  %v770 = vadd.f32 %v681, %v769
  %v771 = vpop.f32.mrb[0].mxu0
  %v772 = vadd.f32 %v683, %v771
  %773 = vmatprep.mubr.f32.mxu0 0.0
  %774 = vmatmul.mubr.f32.gmra.mrb[0].mxu0 %v43
  %v775 = vpop.f32.mrb[0].mxu0
  %v776 = vadd.f32 %v687, %v775
  %v777 = vpop.f32.mrb[0].mxu0
  %v778 = vadd.f32 %v689, %v777
  %779 = vmatprep.mubr.f32.mxu0 0.0
  %780 = vmatmul.mubr.f32.gmra.mrb[0].mxu0 %v52
  %v781 = vpop.f32.mrb[0].mxu0
  %v782 = vadd.f32 %v693, %v781
  %v783 = vpop.f32.mrb[0].mxu0
  %v784 = vadd.f32 %v695, %v783
  %785 = vdwg.mxu0
  %v786 = vld [vmem:[%s2] sm:$0x1]
  %v787 = vld [vmem:[%s3] sm:$0x1]
  %792 = vrot.lane.b32.xlu0 %v764, 64
  %v793 = vpop.permute.xlu0 %792
  %794 = vrot.lane.b32.xlu0 %v770, 64
  %v795 = vpop.permute.xlu0 %794
  %796 = vrot.lane.b32.xlu0 %v776, 64
  %v797 = vpop.permute.xlu0 %796
  %798 = vrot.lane.b32.xlu0 %v782, 64
  %v799 = vpop.permute.xlu0 %798
  %v804 = vadd.f32 %v764, %v793
  %v805 = vadd.f32 %v770, %v795
  %v806 = vadd.f32 %v776, %v797
  %v807 = vadd.f32 %v782, %v799
  %v808 = vadd.f32 %v804, %v766
  %v809 = vadd.f32 %v805, %v772
  %v810 = vadd.f32 %v806, %v778
  %v811 = vadd.f32 %v807, %v784
  %816 = vrot.lane.b32.xlu0 %v766, 64
  %v817 = vpop.permute.xlu0 %816
  %818 = vrot.lane.b32.xlu0 %v772, 64
  %v819 = vpop.permute.xlu0 %818
  %820 = vrot.lane.b32.xlu0 %v778, 64
  %v821 = vpop.permute.xlu0 %820
  %822 = vrot.lane.b32.xlu0 %v784, 64
  %v823 = vpop.permute.xlu0 %822
  %v828 = vadd.f32 %v808, %v817
  %v829 = vadd.f32 %v809, %v819
  %v830 = vadd.f32 %v810, %v821
  %v831 = vadd.f32 %v811, %v823
  %vm832 = vcmask 523264
  %v833 = vsel %vm832, %v828, 0.0
  %v834 = vsel %vm832, %v829, 0.0
  %v835 = vadd.f32 %v833, %v834
  %v836 = vsel %vm832, %v830, 0.0
  %v837 = vadd.f32 %v835, %v836
  %v838 = vsel %vm832, %v831, 0.0
  %v839 = vadd.f32 %v837, %v838
  %v840 = vrot.slane %v839, 4
  %v841 = vadd.f32 %v839, %v840
  %v842 = vrot.slane %v841, 2
  %v843 = vadd.f32 %v841, %v842
  %v844 = vrot.slane %v843, 1
  %v845 = vadd.f32 %v843, %v844
  %v846 = vmul.f32 %v845, 0.0078125
  %848 = vrot.lane.b32.xlu0 %v846, 64
  %v849 = vpop.permute.xlu0 %848
  %v851 = vsel %vm832, %v846, %v849
  %v852 = vlaneseq
  %v853 = vshrl.u32 %v852, 7
  %v854 = vsub.s32 0, %v853
  %v855 = vrot.slane %v851, %v854
  %v856 = vsub.f32 %v764, %v855
  %v857 = vsub.f32 %v766, %v855
  %v858 = vsub.f32 %v770, %v855
  %v859 = vsub.f32 %v772, %v855
  %v860 = vsub.f32 %v776, %v855
  %v861 = vsub.f32 %v778, %v855
  %v862 = vsub.f32 %v782, %v855
  %v863 = vsub.f32 %v784, %v855
  %v864 = vmul.f32 %v856, %v856
  %v865 = vmul.f32 %v857, %v857
  %v866 = vmul.f32 %v858, %v858
  %v867 = vmul.f32 %v859, %v859
  %v868 = vmul.f32 %v860, %v860
  %v869 = vmul.f32 %v861, %v861
  %v870 = vmul.f32 %v862, %v862
  %v871 = vmul.f32 %v863, %v863
  %876 = vrot.lane.b32.xlu0 %v864, 64
  %v877 = vpop.permute.xlu0 %876
  %878 = vrot.lane.b32.xlu0 %v866, 64
  %v879 = vpop.permute.xlu0 %878
  %880 = vrot.lane.b32.xlu0 %v868, 64
  %v881 = vpop.permute.xlu0 %880
  %882 = vrot.lane.b32.xlu0 %v870, 64
  %v883 = vpop.permute.xlu0 %882
  %v888 = vadd.f32 %v864, %v877
  %v889 = vadd.f32 %v866, %v879
  %v890 = vadd.f32 %v868, %v881
  %v891 = vadd.f32 %v870, %v883
  %v892 = vadd.f32 %v888, %v865
  %v893 = vadd.f32 %v889, %v867
  %v894 = vadd.f32 %v890, %v869
  %v895 = vadd.f32 %v891, %v871
  %900 = vrot.lane.b32.xlu0 %v865, 64
  %v901 = vpop.permute.xlu0 %900
  %902 = vrot.lane.b32.xlu0 %v867, 64
  %v903 = vpop.permute.xlu0 %902
  %904 = vrot.lane.b32.xlu0 %v869, 64
  %v905 = vpop.permute.xlu0 %904
  %906 = vrot.lane.b32.xlu0 %v871, 64
  %v907 = vpop.permute.xlu0 %906
  %v912 = vadd.f32 %v892, %v901
  %v913 = vadd.f32 %v893, %v903
  %v914 = vadd.f32 %v894, %v905
  %v915 = vadd.f32 %v895, %v907
  %v916 = vsel %vm832, %v912, 0.0
  %v917 = vsel %vm832, %v913, 0.0
  %v918 = vadd.f32 %v916, %v917
  %v919 = vsel %vm832, %v914, 0.0
  %v920 = vadd.f32 %v918, %v919
  %v921 = vsel %vm832, %v915, 0.0
  %v922 = vadd.f32 %v920, %v921
  %v923 = vrot.slane %v922, 4
  %v924 = vadd.f32 %v922, %v923
  %v925 = vrot.slane %v924, 2
  %v926 = vadd.f32 %v924, %v925
  %v927 = vrot.slane %v926, 1
  %v928 = vadd.f32 %v926, %v927
  %v929 = vmul.f32 %v928, 0.0078125
  %v930 = vadd.f32 %v929, 1e-05
  %v931 = vrsqrt.pop %v930
  %v932 = vmul.f32 %v786, %v931
  %v934 = vlaneseq
  %v935 = vshrl.u32 %v934, 7
  %v936 = vsub.s32 0, %v935
  %v937 = vrot.slane %v932, %v936
  %938 = vrot.lane.b32.xlu0 %v937, 64
  %v939 = vpop.permute.xlu0 %938
  %v941 = vsel %vm832, %v932, %v939
  %v942 = vlaneseq
  %v943 = vshrl.u32 %v942, 7
  %v944 = vsub.s32 0, %v943
  %v945 = vrot.slane %v941, %v944
  %v946 = vmul.f32 %v856, %v945
  %v947 = vmul.f32 %v857, %v945
  %v948 = vmul.f32 %v858, %v945
  %v949 = vmul.f32 %v859, %v945
  %v950 = vmul.f32 %v860, %v945
  %v951 = vmul.f32 %v861, %v945
  %v952 = vmul.f32 %v862, %v945
  %v953 = vmul.f32 %v863, %v945
  %v955 = vlaneseq
  %v956 = vshrl.u32 %v955, 7
  %v957 = vsub.s32 0, %v956
  %v958 = vrot.slane %v787, %v957
  %959 = vrot.lane.b32.xlu0 %v958, 64
  %v960 = vpop.permute.xlu0 %959
  %v962 = vsel %vm832, %v787, %v960
  %v963 = vlaneseq
  %v964 = vshrl.u32 %v963, 7
  %v965 = vsub.s32 0, %v964
  %v966 = vrot.slane %v962, %v965
  %v967 = vadd.f32 %v946, %v966
  %v968 = vadd.f32 %v947, %v966
  %v969 = vadd.f32 %v948, %v966
  %v970 = vadd.f32 %v949, %v966
  %v971 = vadd.f32 %v950, %v966
  %v972 = vadd.f32 %v951, %v966
  %v973 = vadd.f32 %v952, %v966
  %v974 = vadd.f32 %v953, %v966
  %v975 = vmax.f32 %v967, 0.0
  %v976 = vmax.f32 %v968, 0.0
  %v977 = vmax.f32 %v969, 0.0
  %v978 = vmax.f32 %v970, 0.0
  %v979 = vmax.f32 %v971, 0.0
  %v980 = vmax.f32 %v972, 0.0
  %v981 = vmax.f32 %v973, 0.0
  %v982 = vmax.f32 %v974, 0.0
  %983 = vst [vmem:[%s4] sm:$0xff] %v975
  %984 = vst [vmem:[%s4 + $0x8] sm:$0xff] %v976
  %985 = vst [vmem:[%s4 + $0x10] sm:$0xff] %v977
  %986 = vst [vmem:[%s4 + $0x18] sm:$0xff] %v978
  %987 = vst [vmem:[%s4 + $0x20] sm:$0xff] %v979
  %988 = vst [vmem:[%s4 + $0x28] sm:$0xff] %v980
  %989 = vst [vmem:[%s4 + $0x30] sm:$0xff] %v981
  %990 = vst [vmem:[%s4 + $0x38] sm:$0xff] %v982
  // Predicated region
  $region18: #{ae_vine2_forward.11} parent=0 // pred_check
    _
  $region19: #{ae_vine2_forward.11} parent=0 // pred_check_branch
    %992 = sbr.rel (0) target = $region21
  $region20: #{ae_vine2_forward.11} parent=0 // pred_region
    _
  $region21: #{ae_vine2_forward.11} parent=0 // pred_fallthru
    _
  // Predicated region
  $region22: #{ae_vine2_forward.11} parent=0 // pred_check
    _
  $region23: #{ae_vine2_forward.11} parent=0 // pred_check_branch
    %994 = sbr.rel (0) target = $region25
  $region24: #{ae_vine2_forward.11} parent=0 // pred_region
    _
  $region25: #{ae_vine2_forward.11} parent=0 // pred_fallthru
    _

// kernel: ae_vine2_forward.12
$region0: #{ae_vine2_forward.12}
  #allocation0 [shape = 'u32[]', space=smem, size = 0x4, offset = 0x4, fixed_abs, tag = 'smem constant byte address 0x4 - core index']
  #allocation1 [shape = 'u32[144,128]{1,0:T(1,128)}', space=vmem, size = 0x12000, scoped, tag = 'internal scratch']
  %s0 = inlined_call_operand.vmem [shape: f32[128,576], index: 0, kind: input, shape index: {}]
  %s1 = inlined_call_operand.vmem [shape: f32[576,128], index: 1, kind: input, shape index: {}]
  %s2 = inlined_call_operand.vmem [shape: f32[1,32], index: 2, kind: input, shape index: {}]
  %s3 = inlined_call_operand.vmem [shape: f32[1,32], index: 3, kind: input, shape index: {}]
  %s4 = inlined_call_operand.vmem [shape: f32[128,128], index: 4, kind: output, shape index: {}]
  %s5 = sld [smem:[#allocation0]]
  $region26: #{ae_vine2_forward.12} parent=0
    _
  %s7 = ssub.s32 1, %s5
  %s8 = scalar_select 0, %s7, %s5
  // Predicated region
  $region2: #{ae_vine2_forward.12} parent=0 // pred_check
    _
  $region3: #{ae_vine2_forward.12} parent=0 // pred_check_branch
    %10 = sbr.rel (0) target = $region5
  $region4: #{ae_vine2_forward.12} parent=0 // pred_region
    _
  $region5: #{ae_vine2_forward.12} parent=0 // pred_fallthru
    _
  // Predicated region
  $region6: #{ae_vine2_forward.12} parent=0 // pred_check
    _
  $region7: #{ae_vine2_forward.12} parent=0 // pred_check_branch
    %12 = sbr.rel (0) target = $region9
  $region8: #{ae_vine2_forward.12} parent=0 // pred_region
    _
  $region9: #{ae_vine2_forward.12} parent=0 // pred_fallthru
    _
  // Predicated region
  $region10: #{ae_vine2_forward.12} parent=0 // pred_check
    _
  $region11: #{ae_vine2_forward.12} parent=0 // pred_check_branch
    %14 = sbr.rel (0) target = $region13
  $region12: #{ae_vine2_forward.12} parent=0 // pred_region
    _
  $region13: #{ae_vine2_forward.12} parent=0 // pred_fallthru
    _
  // Predicated region
  $region14: #{ae_vine2_forward.12} parent=0 // pred_check
    _
  $region15: #{ae_vine2_forward.12} parent=0 // pred_check_branch
    %16 = sbr.rel (0) target = $region17
  $region16: #{ae_vine2_forward.12} parent=0 // pred_region
    _
  $region17: #{ae_vine2_forward.12} parent=0 // pred_fallthru
    _
  %v17 = vld [vmem:[%s0] sm:$0xff]
  %v18 = vld [vmem:[%s0 + $0x8] sm:$0xff]
  %v19 = vld [vmem:[%s0 + $0x10] sm:$0xff]
  %v20 = vld [vmem:[%s0 + $0x18] sm:$0xff]
  %v21 = vld [vmem:[%s0 + $0x20] sm:$0xff]
  %v22 = vld [vmem:[%s0 + $0x28] sm:$0xff]
  %v23 = vld [vmem:[%s0 + $0x30] sm:$0xff]
  %v24 = vld [vmem:[%s0 + $0x38] sm:$0xff]
  %v25 = vld [vmem:[%s0 + $0x40] sm:$0xff]
  %v26 = vld [vmem:[%s0 + $0x48] sm:$0xff]
  %v27 = vld [vmem:[%s0 + $0x50] sm:$0xff]
  %v28 = vld [vmem:[%s0 + $0x58] sm:$0xff]
  %v29 = vld [vmem:[%s0 + $0x60] sm:$0xff]
  %v30 = vld [vmem:[%s0 + $0x68] sm:$0xff]
  %v31 = vld [vmem:[%s0 + $0x70] sm:$0xff]
  %v32 = vld [vmem:[%s0 + $0x78] sm:$0xff]
  %v33 = vld [vmem:[%s0 + $0x80] sm:$0xff]
  %v34 = vld [vmem:[%s0 + $0x88] sm:$0xff]
  %v35 = vld [vmem:[%s0 + $0x90] sm:$0xff]
  %v36 = vld [vmem:[%s0 + $0x98] sm:$0xff]
  %v37 = vld [vmem:[%s0 + $0xa0] sm:$0xff]
  %v38 = vld [vmem:[%s0 + $0xa8] sm:$0xff]
  %v39 = vld [vmem:[%s0 + $0xb0] sm:$0xff]
  %v40 = vld [vmem:[%s0 + $0xb8] sm:$0xff]
  %v41 = vld [vmem:[%s0 + $0xc0] sm:$0xff]
  %v42 = vld [vmem:[%s0 + $0xc8] sm:$0xff]
  %v43 = vld [vmem:[%s0 + $0xd0] sm:$0xff]
  %v44 = vld [vmem:[%s0 + $0xd8] sm:$0xff]
  %v45 = vld [vmem:[%s0 + $0xe0] sm:$0xff]
  %v46 = vld [vmem:[%s0 + $0xe8] sm:$0xff]
  %v47 = vld [vmem:[%s0 + $0xf0] sm:$0xff]
  %v48 = vld [vmem:[%s0 + $0xf8] sm:$0xff]
  %v49 = vld [vmem:[%s0 + $0x100] sm:$0xff]
  %v50 = vld [vmem:[%s0 + $0x108] sm:$0xff]
  %v51 = vld [vmem:[%s0 + $0x110] sm:$0xff]
  %v52 = vld [vmem:[%s0 + $0x118] sm:$0xff]
  %v53 = vld [vmem:[%s0 + $0x120] sm:$0xff]
  %v54 = vld [vmem:[%s0 + $0x128] sm:$0xff]
  %v55 = vld [vmem:[%s0 + $0x130] sm:$0xff]
  %v56 = vld [vmem:[%s0 + $0x138] sm:$0xff]
  %v57 = vld [vmem:[%s0 + $0x140] sm:$0xff]
  %v58 = vld [vmem:[%s0 + $0x148] sm:$0xff]
  %v59 = vld [vmem:[%s0 + $0x150] sm:$0xff]
  %v60 = vld [vmem:[%s0 + $0x158] sm:$0xff]
  %v61 = vld [vmem:[%s0 + $0x160] sm:$0xff]
  %v62 = vld [vmem:[%s0 + $0x168] sm:$0xff]
  %v63 = vld [vmem:[%s0 + $0x170] sm:$0xff]
  %v64 = vld [vmem:[%s0 + $0x178] sm:$0xff]
  %v65 = vld [vmem:[%s0 + $0x180] sm:$0xff]
  %v66 = vld [vmem:[%s0 + $0x188] sm:$0xff]
  %v67 = vld [vmem:[%s0 + $0x190] sm:$0xff]
  %v68 = vld [vmem:[%s0 + $0x198] sm:$0xff]
  %v69 = vld [vmem:[%s0 + $0x1a0] sm:$0xff]
  %v70 = vld [vmem:[%s0 + $0x1a8] sm:$0xff]
  %v71 = vld [vmem:[%s0 + $0x1b0] sm:$0xff]
  %v72 = vld [vmem:[%s0 + $0x1b8] sm:$0xff]
  %v73 = vld [vmem:[%s0 + $0x1c0] sm:$0xff]
  %v74 = vld [vmem:[%s0 + $0x1c8] sm:$0xff]
  %v75 = vld [vmem:[%s0 + $0x1d0] sm:$0xff]
  %v76 = vld [vmem:[%s0 + $0x1d8] sm:$0xff]
  %v77 = vld [vmem:[%s0 + $0x1e0] sm:$0xff]
  %v78 = vld [vmem:[%s0 + $0x1e8] sm:$0xff]
  %v79 = vld [vmem:[%s0 + $0x1f0] sm:$0xff]
  %v80 = vld [vmem:[%s0 + $0x1f8] sm:$0xff]
  %v81 = vld [vmem:[%s0 + $0x200] sm:$0xff]
  %v82 = vld [vmem:[%s0 + $0x208] sm:$0xff]
  %v83 = vld [vmem:[%s0 + $0x210] sm:$0xff]
  %v84 = vld [vmem:[%s0 + $0x218] sm:$0xff]
  %v85 = vld [vmem:[%s0 + $0x220] sm:$0xff]
  %v86 = vld [vmem:[%s0 + $0x228] sm:$0xff]
  %v87 = vld [vmem:[%s0 + $0x230] sm:$0xff]
  %v88 = vld [vmem:[%s0 + $0x238] sm:$0xff]
  %v89 = vld [vmem:[%s0 + $0x240] sm:$0xff]
  %v90 = vld [vmem:[%s0 + $0x248] sm:$0xff]
  %v91 = vld [vmem:[%s0 + $0x250] sm:$0xff]
  %v92 = vld [vmem:[%s0 + $0x258] sm:$0xff]
  %v93 = vld [vmem:[%s0 + $0x260] sm:$0xff]
  %v94 = vld [vmem:[%s0 + $0x268] sm:$0xff]
  %v95 = vld [vmem:[%s0 + $0x270] sm:$0xff]
  %v96 = vld [vmem:[%s0 + $0x278] sm:$0xff]
  %v97 = vld [vmem:[%s1] sm:$0xff]
  %v98 = vld [vmem:[%s1 + $0x8] sm:$0xff]
  %v99 = vld [vmem:[%s1 + $0x10] sm:$0xff]
  %v100 = vld [vmem:[%s1 + $0x18] sm:$0xff]
  %v101 = vld [vmem:[%s1 + $0x20] sm:$0xff]
  %v102 = vld [vmem:[%s1 + $0x28] sm:$0xff]
  %v103 = vld [vmem:[%s1 + $0x30] sm:$0xff]
  %v104 = vld [vmem:[%s1 + $0x38] sm:$0xff]
  %v105 = vld [vmem:[%s1 + $0x40] sm:$0xff]
  %v106 = vld [vmem:[%s1 + $0x48] sm:$0xff]
  %v107 = vld [vmem:[%s1 + $0x50] sm:$0xff]
  %v108 = vld [vmem:[%s1 + $0x58] sm:$0xff]
  %v109 = vld [vmem:[%s1 + $0x60] sm:$0xff]
  %v110 = vld [vmem:[%s1 + $0x68] sm:$0xff]
  %v111 = vld [vmem:[%s1 + $0x70] sm:$0xff]
  %v112 = vld [vmem:[%s1 + $0x78] sm:$0xff]
  %v113 = vld [vmem:[%s1 + $0x80] sm:$0xff]
  %v114 = vld [vmem:[%s1 + $0x88] sm:$0xff]
  %v115 = vld [vmem:[%s1 + $0x90] sm:$0xff]
  %v116 = vld [vmem:[%s1 + $0x98] sm:$0xff]
  %v117 = vld [vmem:[%s1 + $0xa0] sm:$0xff]
  %v118 = vld [vmem:[%s1 + $0xa8] sm:$0xff]
  %v119 = vld [vmem:[%s1 + $0xb0] sm:$0xff]
  %v120 = vld [vmem:[%s1 + $0xb8] sm:$0xff]
  %v121 = vld [vmem:[%s1 + $0xc0] sm:$0xff]
  %v122 = vld [vmem:[%s1 + $0xc8] sm:$0xff]
  %v123 = vld [vmem:[%s1 + $0xd0] sm:$0xff]
  %v124 = vld [vmem:[%s1 + $0xd8] sm:$0xff]
  %v125 = vld [vmem:[%s1 + $0xe0] sm:$0xff]
  %v126 = vld [vmem:[%s1 + $0xe8] sm:$0xff]
  %v127 = vld [vmem:[%s1 + $0xf0] sm:$0xff]
  %v128 = vld [vmem:[%s1 + $0xf8] sm:$0xff]
  %v129 = vld [vmem:[%s1 + $0x100] sm:$0xff]
  %v130 = vld [vmem:[%s1 + $0x108] sm:$0xff]
  %v131 = vld [vmem:[%s1 + $0x110] sm:$0xff]
  %v132 = vld [vmem:[%s1 + $0x118] sm:$0xff]
  %v133 = vld [vmem:[%s1 + $0x120] sm:$0xff]
  %v134 = vld [vmem:[%s1 + $0x128] sm:$0xff]
  %v135 = vld [vmem:[%s1 + $0x130] sm:$0xff]
  %v136 = vld [vmem:[%s1 + $0x138] sm:$0xff]
  %v137 = vld [vmem:[%s1 + $0x140] sm:$0xff]
  %v138 = vld [vmem:[%s1 + $0x148] sm:$0xff]
  %v139 = vld [vmem:[%s1 + $0x150] sm:$0xff]
  %v140 = vld [vmem:[%s1 + $0x158] sm:$0xff]
  %v141 = vld [vmem:[%s1 + $0x160] sm:$0xff]
  %v142 = vld [vmem:[%s1 + $0x168] sm:$0xff]
  %v143 = vld [vmem:[%s1 + $0x170] sm:$0xff]
  %v144 = vld [vmem:[%s1 + $0x178] sm:$0xff]
  %v145 = vld [vmem:[%s1 + $0x180] sm:$0xff]
  %v146 = vld [vmem:[%s1 + $0x188] sm:$0xff]
  %v147 = vld [vmem:[%s1 + $0x190] sm:$0xff]
  %v148 = vld [vmem:[%s1 + $0x198] sm:$0xff]
  %v149 = vld [vmem:[%s1 + $0x1a0] sm:$0xff]
  %v150 = vld [vmem:[%s1 + $0x1a8] sm:$0xff]
  %v151 = vld [vmem:[%s1 + $0x1b0] sm:$0xff]
  %v152 = vld [vmem:[%s1 + $0x1b8] sm:$0xff]
  %v153 = vld [vmem:[%s1 + $0x1c0] sm:$0xff]
  %v154 = vld [vmem:[%s1 + $0x1c8] sm:$0xff]
  %v155 = vld [vmem:[%s1 + $0x1d0] sm:$0xff]
  %v156 = vld [vmem:[%s1 + $0x1d8] sm:$0xff]
  %v157 = vld [vmem:[%s1 + $0x1e0] sm:$0xff]
  %v158 = vld [vmem:[%s1 + $0x1e8] sm:$0xff]
  %v159 = vld [vmem:[%s1 + $0x1f0] sm:$0xff]
  %v160 = vld [vmem:[%s1 + $0x1f8] sm:$0xff]
  %v161 = vld [vmem:[%s1 + $0x200] sm:$0xff]
  %v162 = vld [vmem:[%s1 + $0x208] sm:$0xff]
  %v163 = vld [vmem:[%s1 + $0x210] sm:$0xff]
  %v164 = vld [vmem:[%s1 + $0x218] sm:$0xff]
  %v165 = vld [vmem:[%s1 + $0x220] sm:$0xff]
  %v166 = vld [vmem:[%s1 + $0x228] sm:$0xff]
  %v167 = vld [vmem:[%s1 + $0x230] sm:$0xff]
  %v168 = vld [vmem:[%s1 + $0x238] sm:$0xff]
  %vm169 = vcmask 523264
  %v171 = vsel %vm169, %v21, 0
  %v174 = vsel %vm169, %v26, 0
  %v177 = vsel %vm169, %v31, 0
  %v180 = vsel %vm169, %v36, 0
  %v183 = vsel %vm169, %v41, 0
  %v186 = vsel %vm169, %v46, 0
  %v189 = vsel %vm169, %v51, 0
  %v192 = vsel %vm169, %v56, 0
  %v195 = vsel %vm169, %v61, 0
  %v198 = vsel %vm169, %v66, 0
  %v201 = vsel %vm169, %v71, 0
  %v204 = vsel %vm169, %v76, 0
  %v207 = vsel %vm169, %v81, 0
  %v210 = vsel %vm169, %v86, 0
  %v213 = vsel %vm169, %v91, 0
  %v216 = vsel %vm169, %v96, 0
  %218 = vmatprep.subr.mxu0 0.0
  %219 = vmatpush1.msra.mxu0 %v97
  %220 = vmatprep.subr.mxu0 0.0
  %221 = vmatpush1.msra.mxu0 %v98
  %222 = vmatprep.subr.mxu0 0.0
  %223 = vmatpush1.msra.mxu0 %v99
  %224 = vmatprep.subr.mxu0 0.0
  %225 = vmatpush1.msra.mxu0 %v100
  %226 = vmatprep.subr.mxu0 0.0
  %227 = vmatpush1.msra.mxu0 %v101
  %228 = vmatprep.subr.mxu0 0.0
  %229 = vmatpush1.msra.mxu0 %v102
  %230 = vmatprep.subr.mxu0 0.0
  %231 = vmatpush1.msra.mxu0 %v103
  %232 = vmatprep.subr.mxu0 0.0
  %233 = vmatpush1.msra.mxu0 %v104
  %234 = vmatprep.subr.mxu0 0.0
  %235 = vmatpush1.msra.mxu0 %v105
  %236 = vmatprep.subr.mxu0 0.0
  %237 = vmatpush1.msra.mxu0 %v106
  %238 = vmatprep.subr.mxu0 0.0
  %239 = vmatpush1.msra.mxu0 %v107
  %240 = vmatprep.subr.mxu0 0.0
  %241 = vmatpush1.msra.mxu0 %v108
  %242 = vmatprep.subr.mxu0 0.0
  %243 = vmatpush1.msra.mxu0 %v109
  %244 = vmatprep.subr.mxu0 0.0
  %245 = vmatpush1.msra.mxu0 %v110
  %246 = vmatprep.subr.mxu0 0.0
  %247 = vmatpush1.msra.mxu0 %v111
  %248 = vmatprep.subr.mxu0 0.0
  %249 = vmatpush1.msra.mxu0 %v112
  %250 = vmatprep.subr.mxu0 0.0
  %251 = vmatpush1.msra.mxu0 %v113
  %252 = vmatprep.subr.mxu0 0.0
  %253 = vmatpush1.msra.mxu0 %v114
  %254 = vmatprep.subr.mxu0 0.0
  %255 = vmatpush1.msra.mxu0 %v115
  %256 = vmatprep.subr.mxu0 0.0
  %257 = vmatpush1.msra.mxu0 %v116
  %258 = vmatprep.subr.mxu0 0.0
  %259 = vmatpush1.msra.mxu0 %v117
  %260 = vmatprep.subr.mxu0 0.0
  %261 = vmatpush1.msra.mxu0 %v118
  %262 = vmatprep.subr.mxu0 0.0
  %263 = vmatpush1.msra.mxu0 %v119
  %264 = vmatprep.subr.mxu0 0.0
  %265 = vmatpush1.msra.mxu0 %v120
  %266 = vmatprep.subr.mxu0 0.0
  %267 = vmatpush1.msra.mxu0 %v121
  %268 = vmatprep.subr.mxu0 0.0
  %269 = vmatpush1.msra.mxu0 %v122
  %270 = vmatprep.subr.mxu0 0.0
  %271 = vmatpush1.msra.mxu0 %v123
  %272 = vmatprep.subr.mxu0 0.0
  %273 = vmatpush1.msra.mxu0 %v124
  %274 = vmatprep.subr.mxu0 0.0
  %275 = vmatpush1.msra.mxu0 %v125
  %276 = vmatprep.subr.mxu0 0.0
  %277 = vmatpush1.msra.mxu0 %v126
  %278 = vmatprep.subr.mxu0 0.0
  %279 = vmatpush1.msra.mxu0 %v127
  %280 = vmatprep.subr.mxu0 0.0
  %281 = vmatpush1.msra.mxu0 %v128
  %282 = vmatprep.mubr.f32.mxu0 %v18
  %283 = vmatmul.mubr.f32.gmra.mrb[0].mxu0 %v17
  %v284 = vpop.f32.mrb[0].mxu0
  %v285 = vadd.f32 0.0, %v284
  %v286 = vpop.f32.mrb[0].mxu0
  %287 = vmatprep.mubr.f32.mxu0 %v23
  %288 = vmatmul.mubr.f32.gmra.mrb[0].mxu0 %v22
  %v289 = vpop.f32.mrb[0].mxu0
  %v290 = vadd.f32 0.0, %v289
  %v291 = vpop.f32.mrb[0].mxu0
  %292 = vmatprep.mubr.f32.mxu0 %v28
  %293 = vmatmul.mubr.f32.gmra.mrb[0].mxu0 %v27
  %v294 = vpop.f32.mrb[0].mxu0
  %v295 = vadd.f32 0.0, %v294
  %v296 = vpop.f32.mrb[0].mxu0
  %297 = vmatprep.mubr.f32.mxu0 %v33
  %298 = vmatmul.mubr.f32.gmra.mrb[0].mxu0 %v32
  %v299 = vpop.f32.mrb[0].mxu0
  %v300 = vadd.f32 0.0, %v299
  %v301 = vpop.f32.mrb[0].mxu0
  %302 = vmatprep.mubr.f32.mxu0 %v38
  %303 = vmatmul.mubr.f32.gmra.mrb[0].mxu0 %v37
  %v304 = vpop.f32.mrb[0].mxu0
  %v305 = vadd.f32 0.0, %v304
  %v306 = vpop.f32.mrb[0].mxu0
  %307 = vmatprep.mubr.f32.mxu0 %v43
  %308 = vmatmul.mubr.f32.gmra.mrb[0].mxu0 %v42
  %v309 = vpop.f32.mrb[0].mxu0
  %v310 = vadd.f32 0.0, %v309
  %v311 = vpop.f32.mrb[0].mxu0
  %312 = vmatprep.mubr.f32.mxu0 %v48
  %313 = vmatmul.mubr.f32.gmra.mrb[0].mxu0 %v47
  %v314 = vpop.f32.mrb[0].mxu0
  %v315 = vadd.f32 0.0, %v314
  %v316 = vpop.f32.mrb[0].mxu0
  %317 = vmatprep.mubr.f32.mxu0 %v53
  %318 = vmatmul.mubr.f32.gmra.mrb[0].mxu0 %v52
  %v319 = vpop.f32.mrb[0].mxu0
  %v320 = vadd.f32 0.0, %v319
  %v321 = vpop.f32.mrb[0].mxu0
  %322 = vmatprep.mubr.f32.mxu0 %v58
  %323 = vmatmul.mubr.f32.gmra.mrb[0].mxu0 %v57
  %v324 = vpop.f32.mrb[0].mxu0
  %v325 = vadd.f32 0.0, %v324
  %v326 = vpop.f32.mrb[0].mxu0
  %327 = vmatprep.mubr.f32.mxu0 %v63
  %328 = vmatmul.mubr.f32.gmra.mrb[0].mxu0 %v62
  %v329 = vpop.f32.mrb[0].mxu0
  %v330 = vadd.f32 0.0, %v329
  %v331 = vpop.f32.mrb[0].mxu0
  %332 = vmatprep.mubr.f32.mxu0 %v68
  %333 = vmatmul.mubr.f32.gmra.mrb[0].mxu0 %v67
  %v334 = vpop.f32.mrb[0].mxu0
  %v335 = vadd.f32 0.0, %v334
  %v336 = vpop.f32.mrb[0].mxu0
  %337 = vmatprep.mubr.f32.mxu0 %v73
  %338 = vmatmul.mubr.f32.gmra.mrb[0].mxu0 %v72
  %v339 = vpop.f32.mrb[0].mxu0
  %v340 = vadd.f32 0.0, %v339
  %v341 = vpop.f32.mrb[0].mxu0
  %342 = vmatprep.mubr.f32.mxu0 %v78
  %343 = vmatmul.mubr.f32.gmra.mrb[0].mxu0 %v77
  %v344 = vpop.f32.mrb[0].mxu0
  %v345 = vadd.f32 0.0, %v344
  %v346 = vpop.f32.mrb[0].mxu0
  %347 = vmatprep.mubr.f32.mxu0 %v83
  %348 = vmatmul.mubr.f32.gmra.mrb[0].mxu0 %v82
  %v349 = vpop.f32.mrb[0].mxu0
  %v350 = vadd.f32 0.0, %v349
  %v351 = vpop.f32.mrb[0].mxu0
  %352 = vmatprep.mubr.f32.mxu0 %v88
  %353 = vmatmul.mubr.f32.gmra.mrb[0].mxu0 %v87
  %v354 = vpop.f32.mrb[0].mxu0
  %v355 = vadd.f32 0.0, %v354
  %v356 = vpop.f32.mrb[0].mxu0
  %357 = vmatprep.mubr.f32.mxu0 %v93
  %358 = vmatmul.mubr.f32.gmra.mrb[0].mxu0 %v92
  %v359 = vpop.f32.mrb[0].mxu0
  %v360 = vadd.f32 0.0, %v359
  %v361 = vpop.f32.mrb[0].mxu0
  %362 = vdwg.mxu0
  %363 = vmatprep.subr.mxu0 0.0
  %364 = vmatpush1.msra.mxu0 %v129
  %365 = vmatprep.subr.mxu0 0.0
  %366 = vmatpush1.msra.mxu0 %v130
  %367 = vmatprep.subr.mxu0 0.0
  %368 = vmatpush1.msra.mxu0 %v131
  %369 = vmatprep.subr.mxu0 0.0
  %370 = vmatpush1.msra.mxu0 %v132
  %371 = vmatprep.subr.mxu0 0.0
  %372 = vmatpush1.msra.mxu0 %v133
  %373 = vmatprep.subr.mxu0 0.0
  %374 = vmatpush1.msra.mxu0 %v134
  %375 = vmatprep.subr.mxu0 0.0
  %376 = vmatpush1.msra.mxu0 %v135
  %377 = vmatprep.subr.mxu0 0.0
  %378 = vmatpush1.msra.mxu0 %v136
  %379 = vmatprep.subr.mxu0 0.0
  %380 = vmatpush1.msra.mxu0 %v137
  %381 = vmatprep.subr.mxu0 0.0
  %382 = vmatpush1.msra.mxu0 %v138
  %383 = vmatprep.subr.mxu0 0.0
  %384 = vmatpush1.msra.mxu0 %v139
  %385 = vmatprep.subr.mxu0 0.0
  %386 = vmatpush1.msra.mxu0 %v140
  %387 = vmatprep.subr.mxu0 0.0
  %388 = vmatpush1.msra.mxu0 %v141
  %389 = vmatprep.subr.mxu0 0.0
  %390 = vmatpush1.msra.mxu0 %v142
  %391 = vmatprep.subr.mxu0 0.0
  %392 = vmatpush1.msra.mxu0 %v143
  %393 = vmatprep.subr.mxu0 0.0
  %394 = vmatpush1.msra.mxu0 %v144
  %395 = vmatprep.subr.mxu0 0.0
  %396 = vmatpush1.msra.mxu0 %v145
  %397 = vmatprep.subr.mxu0 0.0
  %398 = vmatpush1.msra.mxu0 %v146
  %399 = vmatprep.subr.mxu0 0.0
  %400 = vmatpush1.msra.mxu0 %v147
  %401 = vmatprep.subr.mxu0 0.0
  %402 = vmatpush1.msra.mxu0 %v148
  %403 = vmatprep.subr.mxu0 0.0
  %404 = vmatpush1.msra.mxu0 %v149
  %405 = vmatprep.subr.mxu0 0.0
  %406 = vmatpush1.msra.mxu0 %v150
  %407 = vmatprep.subr.mxu0 0.0
  %408 = vmatpush1.msra.mxu0 %v151
  %409 = vmatprep.subr.mxu0 0.0
  %410 = vmatpush1.msra.mxu0 %v152
  %411 = vmatprep.subr.mxu0 0.0
  %412 = vmatpush1.msra.mxu0 %v153
  %413 = vmatprep.subr.mxu0 0.0
  %414 = vmatpush1.msra.mxu0 %v154
  %415 = vmatprep.subr.mxu0 0.0
  %416 = vmatpush1.msra.mxu0 %v155
  %417 = vmatprep.subr.mxu0 0.0
  %418 = vmatpush1.msra.mxu0 %v156
  %419 = vmatprep.subr.mxu0 0.0
  %420 = vmatpush1.msra.mxu0 %v157
  %421 = vmatprep.subr.mxu0 0.0
  %422 = vmatpush1.msra.mxu0 %v158
  %423 = vmatprep.subr.mxu0 0.0
  %424 = vmatpush1.msra.mxu0 %v159
  %425 = vmatprep.subr.mxu0 0.0
  %426 = vmatpush1.msra.mxu0 %v160
  %427 = vmatprep.mubr.f32.mxu0 %v20
  %428 = vmatmul.mubr.f32.gmra.mrb[0].mxu0 %v19
  %v429 = vpop.f32.mrb[0].mxu0
  %v430 = vadd.f32 %v285, %v429
  %v431 = vpop.f32.mrb[0].mxu0
  %432 = vmatprep.mubr.f32.mxu0 %v25
  %433 = vmatmul.mubr.f32.gmra.mrb[0].mxu0 %v24
  %v434 = vpop.f32.mrb[0].mxu0
  %v435 = vadd.f32 %v290, %v434
  %v436 = vpop.f32.mrb[0].mxu0
  %437 = vmatprep.mubr.f32.mxu0 %v30
  %438 = vmatmul.mubr.f32.gmra.mrb[0].mxu0 %v29
  %v439 = vpop.f32.mrb[0].mxu0
  %v440 = vadd.f32 %v295, %v439
  %v441 = vpop.f32.mrb[0].mxu0
  %442 = vmatprep.mubr.f32.mxu0 %v35
  %443 = vmatmul.mubr.f32.gmra.mrb[0].mxu0 %v34
  %v444 = vpop.f32.mrb[0].mxu0
  %v445 = vadd.f32 %v300, %v444
  %v446 = vpop.f32.mrb[0].mxu0
  %447 = vmatprep.mubr.f32.mxu0 %v40
  %448 = vmatmul.mubr.f32.gmra.mrb[0].mxu0 %v39
  %v449 = vpop.f32.mrb[0].mxu0
  %v450 = vadd.f32 %v305, %v449
  %v451 = vpop.f32.mrb[0].mxu0
  %452 = vmatprep.mubr.f32.mxu0 %v45
  %453 = vmatmul.mubr.f32.gmra.mrb[0].mxu0 %v44
  %v454 = vpop.f32.mrb[0].mxu0
  %v455 = vadd.f32 %v310, %v454
  %v456 = vpop.f32.mrb[0].mxu0
  %457 = vmatprep.mubr.f32.mxu0 %v50
  %458 = vmatmul.mubr.f32.gmra.mrb[0].mxu0 %v49
  %v459 = vpop.f32.mrb[0].mxu0
  %v460 = vadd.f32 %v315, %v459
  %v461 = vpop.f32.mrb[0].mxu0
  %462 = vmatprep.mubr.f32.mxu0 %v55
  %463 = vmatmul.mubr.f32.gmra.mrb[0].mxu0 %v54
  %v464 = vpop.f32.mrb[0].mxu0
  %v465 = vadd.f32 %v320, %v464
  %v466 = vpop.f32.mrb[0].mxu0
  %467 = vmatprep.mubr.f32.mxu0 %v60
  %468 = vmatmul.mubr.f32.gmra.mrb[0].mxu0 %v59
  %v469 = vpop.f32.mrb[0].mxu0
  %v470 = vadd.f32 %v325, %v469
  %v471 = vpop.f32.mrb[0].mxu0
  %472 = vmatprep.mubr.f32.mxu0 %v65
  %473 = vmatmul.mubr.f32.gmra.mrb[0].mxu0 %v64
  %v474 = vpop.f32.mrb[0].mxu0
  %v475 = vadd.f32 %v330, %v474
  %v476 = vpop.f32.mrb[0].mxu0
  %477 = vmatprep.mubr.f32.mxu0 %v70
  %478 = vmatmul.mubr.f32.gmra.mrb[0].mxu0 %v69
  %v479 = vpop.f32.mrb[0].mxu0
  %v480 = vadd.f32 %v335, %v479
  %v481 = vpop.f32.mrb[0].mxu0
  %482 = vmatprep.mubr.f32.mxu0 %v75
  %483 = vmatmul.mubr.f32.gmra.mrb[0].mxu0 %v74
  %v484 = vpop.f32.mrb[0].mxu0
  %v485 = vadd.f32 %v340, %v484
  %v486 = vpop.f32.mrb[0].mxu0
  %487 = vmatprep.mubr.f32.mxu0 %v80
  %488 = vmatmul.mubr.f32.gmra.mrb[0].mxu0 %v79
  %v489 = vpop.f32.mrb[0].mxu0
  %v490 = vadd.f32 %v345, %v489
  %v491 = vpop.f32.mrb[0].mxu0
  %492 = vmatprep.mubr.f32.mxu0 %v85
  %493 = vmatmul.mubr.f32.gmra.mrb[0].mxu0 %v84
  %v494 = vpop.f32.mrb[0].mxu0
  %v495 = vadd.f32 %v350, %v494
  %v496 = vpop.f32.mrb[0].mxu0
  %497 = vmatprep.mubr.f32.mxu0 %v90
  %498 = vmatmul.mubr.f32.gmra.mrb[0].mxu0 %v89
  %v499 = vpop.f32.mrb[0].mxu0
  %v500 = vadd.f32 %v355, %v499
  %v501 = vpop.f32.mrb[0].mxu0
  %502 = vmatprep.mubr.f32.mxu0 %v95
  %503 = vmatmul.mubr.f32.gmra.mrb[0].mxu0 %v94
  %v504 = vpop.f32.mrb[0].mxu0
  %v505 = vadd.f32 %v360, %v504
  %v506 = vpop.f32.mrb[0].mxu0
  %507 = vdwg.mxu0
  %508 = vmatprep.subr.mxu0 0.0
  %509 = vmatpush1.msra.mxu0 %v161
  %510 = vmatprep.subr.mxu0 0.0
  %511 = vmatpush1.msra.mxu0 %v162
  %512 = vmatprep.subr.mxu0 0.0
  %513 = vmatpush1.msra.mxu0 %v163
  %514 = vmatprep.subr.mxu0 0.0
  %515 = vmatpush1.msra.mxu0 %v164
  %516 = vmatprep.subr.mxu0 0.0
  %517 = vmatpush1.msra.mxu0 %v165
  %518 = vmatprep.subr.mxu0 0.0
  %519 = vmatpush1.msra.mxu0 %v166
  %520 = vmatprep.subr.mxu0 0.0
  %521 = vmatpush1.msra.mxu0 %v167
  %522 = vmatprep.subr.mxu0 0.0
  %523 = vmatpush1.msra.mxu0 %v168
  %524 = vmatprep.subr.mxu0 0.0
  %525 = vmatpush1.msra.mxu0 0.0
  %526 = vmatprep.subr.mxu0 0.0
  %527 = vmatpush1.msra.mxu0 0.0
  %528 = vmatprep.subr.mxu0 0.0
  %529 = vmatpush1.msra.mxu0 0.0
  %530 = vmatprep.subr.mxu0 0.0
  %531 = vmatpush1.msra.mxu0 0.0
  %532 = vmatprep.subr.mxu0 0.0
  %533 = vmatpush1.msra.mxu0 0.0
  %534 = vmatprep.subr.mxu0 0.0
  %535 = vmatpush1.msra.mxu0 0.0
  %536 = vmatprep.subr.mxu0 0.0
  %537 = vmatpush1.msra.mxu0 0.0
  %538 = vmatprep.subr.mxu0 0.0
  %539 = vmatpush1.msra.mxu0 0.0
  %540 = vmatprep.subr.mxu0 0.0
  %541 = vmatpush1.msra.mxu0 0.0
  %542 = vmatprep.subr.mxu0 0.0
  %543 = vmatpush1.msra.mxu0 0.0
  %544 = vmatprep.subr.mxu0 0.0
  %545 = vmatpush1.msra.mxu0 0.0
  %546 = vmatprep.subr.mxu0 0.0
  %547 = vmatpush1.msra.mxu0 0.0
  %548 = vmatprep.subr.mxu0 0.0
  %549 = vmatpush1.msra.mxu0 0.0
  %550 = vmatprep.subr.mxu0 0.0
  %551 = vmatpush1.msra.mxu0 0.0
  %552 = vmatprep.subr.mxu0 0.0
  %553 = vmatpush1.msra.mxu0 0.0
  %554 = vmatprep.subr.mxu0 0.0
  %555 = vmatpush1.msra.mxu0 0.0
  %556 = vmatprep.subr.mxu0 0.0
  %557 = vmatpush1.msra.mxu0 0.0
  %558 = vmatprep.subr.mxu0 0.0
  %559 = vmatpush1.msra.mxu0 0.0
  %560 = vmatprep.subr.mxu0 0.0
  %561 = vmatpush1.msra.mxu0 0.0
  %562 = vmatprep.subr.mxu0 0.0
  %563 = vmatpush1.msra.mxu0 0.0
  %564 = vmatprep.subr.mxu0 0.0
  %565 = vmatpush1.msra.mxu0 0.0
  %566 = vmatprep.subr.mxu0 0.0
  %567 = vmatpush1.msra.mxu0 0.0
  %568 = vmatprep.subr.mxu0 0.0
  %569 = vmatpush1.msra.mxu0 0.0
  %570 = vmatprep.subr.mxu0 0.0
  %571 = vmatpush1.msra.mxu0 0.0
  %572 = vmatprep.mubr.f32.mxu0 0.0
  %573 = vmatmul.mubr.f32.gmra.mrb[0].mxu0 %v171
  %v574 = vpop.f32.mrb[0].mxu0
  %v575 = vadd.f32 %v430, %v574
  %v576 = vpop.f32.mrb[0].mxu0
  %577 = vmatprep.mubr.f32.mxu0 0.0
  %578 = vmatmul.mubr.f32.gmra.mrb[0].mxu0 %v174
  %v579 = vpop.f32.mrb[0].mxu0
  %v580 = vadd.f32 %v435, %v579
  %v581 = vpop.f32.mrb[0].mxu0
  %582 = vmatprep.mubr.f32.mxu0 0.0
  %583 = vmatmul.mubr.f32.gmra.mrb[0].mxu0 %v177
  %v584 = vpop.f32.mrb[0].mxu0
  %v585 = vadd.f32 %v440, %v584
  %v586 = vpop.f32.mrb[0].mxu0
  %587 = vmatprep.mubr.f32.mxu0 0.0
  %588 = vmatmul.mubr.f32.gmra.mrb[0].mxu0 %v180
  %v589 = vpop.f32.mrb[0].mxu0
  %v590 = vadd.f32 %v445, %v589
  %v591 = vpop.f32.mrb[0].mxu0
  %592 = vmatprep.mubr.f32.mxu0 0.0
  %593 = vmatmul.mubr.f32.gmra.mrb[0].mxu0 %v183
  %v594 = vpop.f32.mrb[0].mxu0
  %v595 = vadd.f32 %v450, %v594
  %v596 = vpop.f32.mrb[0].mxu0
  %597 = vmatprep.mubr.f32.mxu0 0.0
  %598 = vmatmul.mubr.f32.gmra.mrb[0].mxu0 %v186
  %v599 = vpop.f32.mrb[0].mxu0
  %v600 = vadd.f32 %v455, %v599
  %v601 = vpop.f32.mrb[0].mxu0
  %602 = vmatprep.mubr.f32.mxu0 0.0
  %603 = vmatmul.mubr.f32.gmra.mrb[0].mxu0 %v189
  %v604 = vpop.f32.mrb[0].mxu0
  %v605 = vadd.f32 %v460, %v604
  %v606 = vpop.f32.mrb[0].mxu0
  %607 = vmatprep.mubr.f32.mxu0 0.0
  %608 = vmatmul.mubr.f32.gmra.mrb[0].mxu0 %v192
  %v609 = vpop.f32.mrb[0].mxu0
  %v610 = vadd.f32 %v465, %v609
  %v611 = vpop.f32.mrb[0].mxu0
  %612 = vmatprep.mubr.f32.mxu0 0.0
  %613 = vmatmul.mubr.f32.gmra.mrb[0].mxu0 %v195
  %v614 = vpop.f32.mrb[0].mxu0
  %v615 = vadd.f32 %v470, %v614
  %v616 = vpop.f32.mrb[0].mxu0
  %617 = vmatprep.mubr.f32.mxu0 0.0
  %618 = vmatmul.mubr.f32.gmra.mrb[0].mxu0 %v198
  %v619 = vpop.f32.mrb[0].mxu0
  %v620 = vadd.f32 %v475, %v619
  %v621 = vpop.f32.mrb[0].mxu0
  %622 = vmatprep.mubr.f32.mxu0 0.0
  %623 = vmatmul.mubr.f32.gmra.mrb[0].mxu0 %v201
  %v624 = vpop.f32.mrb[0].mxu0
  %v625 = vadd.f32 %v480, %v624
  %v626 = vpop.f32.mrb[0].mxu0
  %627 = vmatprep.mubr.f32.mxu0 0.0
  %628 = vmatmul.mubr.f32.gmra.mrb[0].mxu0 %v204
  %v629 = vpop.f32.mrb[0].mxu0
  %v630 = vadd.f32 %v485, %v629
  %v631 = vpop.f32.mrb[0].mxu0
  %632 = vmatprep.mubr.f32.mxu0 0.0
  %633 = vmatmul.mubr.f32.gmra.mrb[0].mxu0 %v207
  %v634 = vpop.f32.mrb[0].mxu0
  %v635 = vadd.f32 %v490, %v634
  %v636 = vpop.f32.mrb[0].mxu0
  %637 = vmatprep.mubr.f32.mxu0 0.0
  %638 = vmatmul.mubr.f32.gmra.mrb[0].mxu0 %v210
  %v639 = vpop.f32.mrb[0].mxu0
  %v640 = vadd.f32 %v495, %v639
  %v641 = vpop.f32.mrb[0].mxu0
  %642 = vmatprep.mubr.f32.mxu0 0.0
  %643 = vmatmul.mubr.f32.gmra.mrb[0].mxu0 %v213
  %v644 = vpop.f32.mrb[0].mxu0
  %v645 = vadd.f32 %v500, %v644
  %v646 = vpop.f32.mrb[0].mxu0
  %647 = vmatprep.mubr.f32.mxu0 0.0
  %648 = vmatmul.mubr.f32.gmra.mrb[0].mxu0 %v216
  %v649 = vpop.f32.mrb[0].mxu0
  %v650 = vadd.f32 %v505, %v649
  %v651 = vpop.f32.mrb[0].mxu0
  %652 = vdwg.mxu0
  %v653 = vld [vmem:[%s2] sm:$0x1]
  %v654 = vld [vmem:[%s3] sm:$0x1]
  %671 = vrot.lane.b32.xlu0 %v575, 96
  %v672 = vpop.permute.xlu0 %671
  %673 = vrot.lane.b32.xlu0 %v580, 96
  %v674 = vpop.permute.xlu0 %673
  %675 = vrot.lane.b32.xlu0 %v585, 96
  %v676 = vpop.permute.xlu0 %675
  %677 = vrot.lane.b32.xlu0 %v590, 96
  %v678 = vpop.permute.xlu0 %677
  %679 = vrot.lane.b32.xlu0 %v595, 96
  %v680 = vpop.permute.xlu0 %679
  %681 = vrot.lane.b32.xlu0 %v600, 96
  %v682 = vpop.permute.xlu0 %681
  %683 = vrot.lane.b32.xlu0 %v605, 96
  %v684 = vpop.permute.xlu0 %683
  %685 = vrot.lane.b32.xlu0 %v610, 96
  %v686 = vpop.permute.xlu0 %685
  %687 = vrot.lane.b32.xlu0 %v615, 96
  %v688 = vpop.permute.xlu0 %687
  %689 = vrot.lane.b32.xlu0 %v620, 96
  %v690 = vpop.permute.xlu0 %689
  %691 = vrot.lane.b32.xlu0 %v625, 96
  %v692 = vpop.permute.xlu0 %691
  %693 = vrot.lane.b32.xlu0 %v630, 96
  %v694 = vpop.permute.xlu0 %693
  %695 = vrot.lane.b32.xlu0 %v635, 96
  %v696 = vpop.permute.xlu0 %695
  %697 = vrot.lane.b32.xlu0 %v640, 96
  %v698 = vpop.permute.xlu0 %697
  %699 = vrot.lane.b32.xlu0 %v645, 96
  %v700 = vpop.permute.xlu0 %699
  %701 = vrot.lane.b32.xlu0 %v650, 96
  %v702 = vpop.permute.xlu0 %701
  %v719 = vadd.f32 %v575, %v672
  %v720 = vadd.f32 %v580, %v674
  %v721 = vadd.f32 %v585, %v676
  %v722 = vadd.f32 %v590, %v678
  %v723 = vadd.f32 %v595, %v680
  %v724 = vadd.f32 %v600, %v682
  %v725 = vadd.f32 %v605, %v684
  %v726 = vadd.f32 %v610, %v686
  %v727 = vadd.f32 %v615, %v688
  %v728 = vadd.f32 %v620, %v690
  %v729 = vadd.f32 %v625, %v692
  %v730 = vadd.f32 %v630, %v694
  %v731 = vadd.f32 %v635, %v696
  %v732 = vadd.f32 %v640, %v698
  %v733 = vadd.f32 %v645, %v700
  %v734 = vadd.f32 %v650, %v702
  %735 = vrot.lane.b32.xlu0 %v575, 64
  %v736 = vpop.permute.xlu0 %735
  %737 = vrot.lane.b32.xlu0 %v580, 64
  %v738 = vpop.permute.xlu0 %737
  %739 = vrot.lane.b32.xlu0 %v585, 64
  %v740 = vpop.permute.xlu0 %739
  %741 = vrot.lane.b32.xlu0 %v590, 64
  %v742 = vpop.permute.xlu0 %741
  %743 = vrot.lane.b32.xlu0 %v595, 64
  %v744 = vpop.permute.xlu0 %743
  %745 = vrot.lane.b32.xlu0 %v600, 64
  %v746 = vpop.permute.xlu0 %745
  %747 = vrot.lane.b32.xlu0 %v605, 64
  %v748 = vpop.permute.xlu0 %747
  %749 = vrot.lane.b32.xlu0 %v610, 64
  %v750 = vpop.permute.xlu0 %749
  %751 = vrot.lane.b32.xlu0 %v615, 64
  %v752 = vpop.permute.xlu0 %751
  %753 = vrot.lane.b32.xlu0 %v620, 64
  %v754 = vpop.permute.xlu0 %753
  %755 = vrot.lane.b32.xlu0 %v625, 64
  %v756 = vpop.permute.xlu0 %755
  %757 = vrot.lane.b32.xlu0 %v630, 64
  %v758 = vpop.permute.xlu0 %757
  %759 = vrot.lane.b32.xlu0 %v635, 64
  %v760 = vpop.permute.xlu0 %759
  %761 = vrot.lane.b32.xlu0 %v640, 64
  %v762 = vpop.permute.xlu0 %761
  %763 = vrot.lane.b32.xlu0 %v645, 64
  %v764 = vpop.permute.xlu0 %763
  %765 = vrot.lane.b32.xlu0 %v650, 64
  %v766 = vpop.permute.xlu0 %765
  %v783 = vadd.f32 %v719, %v736
  %v784 = vadd.f32 %v720, %v738
  %v785 = vadd.f32 %v721, %v740
  %v786 = vadd.f32 %v722, %v742
  %v787 = vadd.f32 %v723, %v744
  %v788 = vadd.f32 %v724, %v746
  %v789 = vadd.f32 %v725, %v748
  %v790 = vadd.f32 %v726, %v750
  %v791 = vadd.f32 %v727, %v752
  %v792 = vadd.f32 %v728, %v754
  %v793 = vadd.f32 %v729, %v756
  %v794 = vadd.f32 %v730, %v758
  %v795 = vadd.f32 %v731, %v760
  %v796 = vadd.f32 %v732, %v762
  %v797 = vadd.f32 %v733, %v764
  %v798 = vadd.f32 %v734, %v766
  %799 = vrot.lane.b32.xlu0 %v575, 32
  %v800 = vpop.permute.xlu0 %799
  %801 = vrot.lane.b32.xlu0 %v580, 32
  %v802 = vpop.permute.xlu0 %801
  %803 = vrot.lane.b32.xlu0 %v585, 32
  %v804 = vpop.permute.xlu0 %803
  %805 = vrot.lane.b32.xlu0 %v590, 32
  %v806 = vpop.permute.xlu0 %805
  %807 = vrot.lane.b32.xlu0 %v595, 32
  %v808 = vpop.permute.xlu0 %807
  %809 = vrot.lane.b32.xlu0 %v600, 32
  %v810 = vpop.permute.xlu0 %809
  %811 = vrot.lane.b32.xlu0 %v605, 32
  %v812 = vpop.permute.xlu0 %811
  %813 = vrot.lane.b32.xlu0 %v610, 32
  %v814 = vpop.permute.xlu0 %813
  %815 = vrot.lane.b32.xlu0 %v615, 32
  %v816 = vpop.permute.xlu0 %815
  %817 = vrot.lane.b32.xlu0 %v620, 32
  %v818 = vpop.permute.xlu0 %817
  %819 = vrot.lane.b32.xlu0 %v625, 32
  %v820 = vpop.permute.xlu0 %819
  %821 = vrot.lane.b32.xlu0 %v630, 32
  %v822 = vpop.permute.xlu0 %821
  %823 = vrot.lane.b32.xlu0 %v635, 32
  %v824 = vpop.permute.xlu0 %823
  %825 = vrot.lane.b32.xlu0 %v640, 32
  %v826 = vpop.permute.xlu0 %825
  %827 = vrot.lane.b32.xlu0 %v645, 32
  %v828 = vpop.permute.xlu0 %827
  %829 = vrot.lane.b32.xlu0 %v650, 32
  %v830 = vpop.permute.xlu0 %829
  %v847 = vadd.f32 %v783, %v800
  %v848 = vadd.f32 %v784, %v802
  %v849 = vadd.f32 %v785, %v804
  %v850 = vadd.f32 %v786, %v806
  %v851 = vadd.f32 %v787, %v808
  %v852 = vadd.f32 %v788, %v810
  %v853 = vadd.f32 %v789, %v812
  %v854 = vadd.f32 %v790, %v814
  %v855 = vadd.f32 %v791, %v816
  %v856 = vadd.f32 %v792, %v818
  %v857 = vadd.f32 %v793, %v820
  %v858 = vadd.f32 %v794, %v822
  %v859 = vadd.f32 %v795, %v824
  %v860 = vadd.f32 %v796, %v826
  %v861 = vadd.f32 %v797, %v828
  %v862 = vadd.f32 %v798, %v830
  %vm863 = vcmask 261120
  %v864 = vsel %vm863, %v847, 0.0
  %v865 = vsel %vm863, %v848, 0.0
  %v866 = vadd.f32 %v864, %v865
  %v867 = vsel %vm863, %v849, 0.0
  %v868 = vadd.f32 %v866, %v867
  %v869 = vsel %vm863, %v850, 0.0
  %v870 = vadd.f32 %v868, %v869
  %v871 = vsel %vm863, %v851, 0.0
  %v872 = vadd.f32 %v870, %v871
  %v873 = vsel %vm863, %v852, 0.0
  %v874 = vadd.f32 %v872, %v873
  %v875 = vsel %vm863, %v853, 0.0
  %v876 = vadd.f32 %v874, %v875
  %v877 = vsel %vm863, %v854, 0.0
  %v878 = vadd.f32 %v876, %v877
  %v879 = vsel %vm863, %v855, 0.0
  %v880 = vadd.f32 %v878, %v879
  %v881 = vsel %vm863, %v856, 0.0
  %v882 = vadd.f32 %v880, %v881
  %v883 = vsel %vm863, %v857, 0.0
  %v884 = vadd.f32 %v882, %v883
  %v885 = vsel %vm863, %v858, 0.0
  %v886 = vadd.f32 %v884, %v885
  %v887 = vsel %vm863, %v859, 0.0
  %v888 = vadd.f32 %v886, %v887
  %v889 = vsel %vm863, %v860, 0.0
  %v890 = vadd.f32 %v888, %v889
  %v891 = vsel %vm863, %v861, 0.0
  %v892 = vadd.f32 %v890, %v891
  %v893 = vsel %vm863, %v862, 0.0
  %v894 = vadd.f32 %v892, %v893
  %v895 = vrot.slane %v894, 4
  %v896 = vadd.f32 %v894, %v895
  %v897 = vrot.slane %v896, 2
  %v898 = vadd.f32 %v896, %v897
  %v899 = vrot.slane %v898, 1
  %v900 = vadd.f32 %v898, %v899
  %v901 = vmul.f32 %v900, 0.001953125
  %903 = vrot.lane.b32.xlu0 %v901, 32
  %v904 = vpop.permute.xlu0 %903
  %906 = vrot.lane.b32.xlu0 %v901, 64
  %v907 = vpop.permute.xlu0 %906
  %909 = vrot.lane.b32.xlu0 %v901, 96
  %v910 = vpop.permute.xlu0 %909
  %v912 = vsel %vm863, %v901, %v904
  %v913 = vsel %vm169, %v912, %v907
  %vm914 = vcmask 785408
  %v915 = vsel %vm914, %v913, %v910
  %v916 = vlaneseq
  %v917 = vshrl.u32 %v916, 7
  %v918 = vsub.s32 0, %v917
  %v919 = vrot.slane %v915, %v918
  %v920 = vsub.f32 %v575, %v919
  %v921 = vsub.f32 %v580, %v919
  %v922 = vsub.f32 %v585, %v919
  %v923 = vsub.f32 %v590, %v919
  %v924 = vsub.f32 %v595, %v919
  %v925 = vsub.f32 %v600, %v919
  %v926 = vsub.f32 %v605, %v919
  %v927 = vsub.f32 %v610, %v919
  %v928 = vsub.f32 %v615, %v919
  %v929 = vsub.f32 %v620, %v919
  %v930 = vsub.f32 %v625, %v919
  %v931 = vsub.f32 %v630, %v919
  %v932 = vsub.f32 %v635, %v919
  %v933 = vsub.f32 %v640, %v919
  %v934 = vsub.f32 %v645, %v919
  %v935 = vsub.f32 %v650, %v919
  %v936 = vmul.f32 %v920, %v920
  %v937 = vmul.f32 %v921, %v921
  %v938 = vmul.f32 %v922, %v922
  %v939 = vmul.f32 %v923, %v923
  %v940 = vmul.f32 %v924, %v924
  %v941 = vmul.f32 %v925, %v925
  %v942 = vmul.f32 %v926, %v926
  %v943 = vmul.f32 %v927, %v927
  %v944 = vmul.f32 %v928, %v928
  %v945 = vmul.f32 %v929, %v929
  %v946 = vmul.f32 %v930, %v930
  %v947 = vmul.f32 %v931, %v931
  %v948 = vmul.f32 %v932, %v932
  %v949 = vmul.f32 %v933, %v933
  %v950 = vmul.f32 %v934, %v934
  %v951 = vmul.f32 %v935, %v935
  %968 = vrot.lane.b32.xlu0 %v936, 96
  %v969 = vpop.permute.xlu0 %968
  %970 = vrot.lane.b32.xlu0 %v937, 96
  %v971 = vpop.permute.xlu0 %970
  %972 = vrot.lane.b32.xlu0 %v938, 96
  %v973 = vpop.permute.xlu0 %972
  %974 = vrot.lane.b32.xlu0 %v939, 96
  %v975 = vpop.permute.xlu0 %974
  %976 = vrot.lane.b32.xlu0 %v940, 96
  %v977 = vpop.permute.xlu0 %976
  %978 = vrot.lane.b32.xlu0 %v941, 96
  %v979 = vpop.permute.xlu0 %978
  %980 = vrot.lane.b32.xlu0 %v942, 96
  %v981 = vpop.permute.xlu0 %980
  %982 = vrot.lane.b32.xlu0 %v943, 96
  %v983 = vpop.permute.xlu0 %982
  %984 = vrot.lane.b32.xlu0 %v944, 96
  %v985 = vpop.permute.xlu0 %984
  %986 = vrot.lane.b32.xlu0 %v945, 96
  %v987 = vpop.permute.xlu0 %986
  %988 = vrot.lane.b32.xlu0 %v946, 96
  %v989 = vpop.permute.xlu0 %988
  %990 = vrot.lane.b32.xlu0 %v947, 96
  %v991 = vpop.permute.xlu0 %990
  %992 = vrot.lane.b32.xlu0 %v948, 96
  %v993 = vpop.permute.xlu0 %992
  %994 = vrot.lane.b32.xlu0 %v949, 96
  %v995 = vpop.permute.xlu0 %994
  %996 = vrot.lane.b32.xlu0 %v950, 96
  %v997 = vpop.permute.xlu0 %996
  %998 = vrot.lane.b32.xlu0 %v951, 96
  %v999 = vpop.permute.xlu0 %998
  %v1016 = vadd.f32 %v936, %v969
  %v1017 = vadd.f32 %v937, %v971
  %v1018 = vadd.f32 %v938, %v973
  %v1019 = vadd.f32 %v939, %v975
  %v1020 = vadd.f32 %v940, %v977
  %v1021 = vadd.f32 %v941, %v979
  %v1022 = vadd.f32 %v942, %v981
  %v1023 = vadd.f32 %v943, %v983
  %v1024 = vadd.f32 %v944, %v985
  %v1025 = vadd.f32 %v945, %v987
  %v1026 = vadd.f32 %v946, %v989
  %v1027 = vadd.f32 %v947, %v991
  %v1028 = vadd.f32 %v948, %v993
  %v1029 = vadd.f32 %v949, %v995
  %v1030 = vadd.f32 %v950, %v997
  %v1031 = vadd.f32 %v951, %v999
  %1032 = vrot.lane.b32.xlu0 %v936, 64
  %v1033 = vpop.permute.xlu0 %1032
  %1034 = vrot.lane.b32.xlu0 %v937, 64
  %v1035 = vpop.permute.xlu0 %1034
  %1036 = vrot.lane.b32.xlu0 %v938, 64
  %v1037 = vpop.permute.xlu0 %1036
  %1038 = vrot.lane.b32.xlu0 %v939, 64
  %v1039 = vpop.permute.xlu0 %1038
  %1040 = vrot.lane.b32.xlu0 %v940, 64
  %v1041 = vpop.permute.xlu0 %1040
  %1042 = vrot.lane.b32.xlu0 %v941, 64
  %v1043 = vpop.permute.xlu0 %1042
  %1044 = vrot.lane.b32.xlu0 %v942, 64
  %v1045 = vpop.permute.xlu0 %1044
  %1046 = vrot.lane.b32.xlu0 %v943, 64
  %v1047 = vpop.permute.xlu0 %1046
  %1048 = vrot.lane.b32.xlu0 %v944, 64
  %v1049 = vpop.permute.xlu0 %1048
  %1050 = vrot.lane.b32.xlu0 %v945, 64
  %v1051 = vpop.permute.xlu0 %1050
  %1052 = vrot.lane.b32.xlu0 %v946, 64
  %v1053 = vpop.permute.xlu0 %1052
  %1054 = vrot.lane.b32.xlu0 %v947, 64
  %v1055 = vpop.permute.xlu0 %1054
  %1056 = vrot.lane.b32.xlu0 %v948, 64
  %v1057 = vpop.permute.xlu0 %1056
  %1058 = vrot.lane.b32.xlu0 %v949, 64
  %v1059 = vpop.permute.xlu0 %1058
  %1060 = vrot.lane.b32.xlu0 %v950, 64
  %v1061 = vpop.permute.xlu0 %1060
  %1062 = vrot.lane.b32.xlu0 %v951, 64
  %v1063 = vpop.permute.xlu0 %1062
  %v1080 = vadd.f32 %v1016, %v1033
  %v1081 = vadd.f32 %v1017, %v1035
  %v1082 = vadd.f32 %v1018, %v1037
  %v1083 = vadd.f32 %v1019, %v1039
  %v1084 = vadd.f32 %v1020, %v1041
  %v1085 = vadd.f32 %v1021, %v1043
  %v1086 = vadd.f32 %v1022, %v1045
  %v1087 = vadd.f32 %v1023, %v1047
  %v1088 = vadd.f32 %v1024, %v1049
  %v1089 = vadd.f32 %v1025, %v1051
  %v1090 = vadd.f32 %v1026, %v1053
  %v1091 = vadd.f32 %v1027, %v1055
  %v1092 = vadd.f32 %v1028, %v1057
  %v1093 = vadd.f32 %v1029, %v1059
  %v1094 = vadd.f32 %v1030, %v1061
  %v1095 = vadd.f32 %v1031, %v1063
  %1096 = vrot.lane.b32.xlu0 %v936, 32
  %v1097 = vpop.permute.xlu0 %1096
  %1098 = vrot.lane.b32.xlu0 %v937, 32
  %v1099 = vpop.permute.xlu0 %1098
  %1100 = vrot.lane.b32.xlu0 %v938, 32
  %v1101 = vpop.permute.xlu0 %1100
  %1102 = vrot.lane.b32.xlu0 %v939, 32
  %v1103 = vpop.permute.xlu0 %1102
  %1104 = vrot.lane.b32.xlu0 %v940, 32
  %v1105 = vpop.permute.xlu0 %1104
  %1106 = vrot.lane.b32.xlu0 %v941, 32
  %v1107 = vpop.permute.xlu0 %1106
  %1108 = vrot.lane.b32.xlu0 %v942, 32
  %v1109 = vpop.permute.xlu0 %1108
  %1110 = vrot.lane.b32.xlu0 %v943, 32
  %v1111 = vpop.permute.xlu0 %1110
  %1112 = vrot.lane.b32.xlu0 %v944, 32
  %v1113 = vpop.permute.xlu0 %1112
  %1114 = vrot.lane.b32.xlu0 %v945, 32
  %v1115 = vpop.permute.xlu0 %1114
  %1116 = vrot.lane.b32.xlu0 %v946, 32
  %v1117 = vpop.permute.xlu0 %1116
  %1118 = vrot.lane.b32.xlu0 %v947, 32
  %v1119 = vpop.permute.xlu0 %1118
  %1120 = vrot.lane.b32.xlu0 %v948, 32
  %v1121 = vpop.permute.xlu0 %1120
  %1122 = vrot.lane.b32.xlu0 %v949, 32
  %v1123 = vpop.permute.xlu0 %1122
  %1124 = vrot.lane.b32.xlu0 %v950, 32
  %v1125 = vpop.permute.xlu0 %1124
  %1126 = vrot.lane.b32.xlu0 %v951, 32
  %v1127 = vpop.permute.xlu0 %1126
  %v1144 = vadd.f32 %v1080, %v1097
  %v1145 = vadd.f32 %v1081, %v1099
  %v1146 = vadd.f32 %v1082, %v1101
  %v1147 = vadd.f32 %v1083, %v1103
  %v1148 = vadd.f32 %v1084, %v1105
  %v1149 = vadd.f32 %v1085, %v1107
  %v1150 = vadd.f32 %v1086, %v1109
  %v1151 = vadd.f32 %v1087, %v1111
  %v1152 = vadd.f32 %v1088, %v1113
  %v1153 = vadd.f32 %v1089, %v1115
  %v1154 = vadd.f32 %v1090, %v1117
  %v1155 = vadd.f32 %v1091, %v1119
  %v1156 = vadd.f32 %v1092, %v1121
  %v1157 = vadd.f32 %v1093, %v1123
  %v1158 = vadd.f32 %v1094, %v1125
  %v1159 = vadd.f32 %v1095, %v1127
  %v1160 = vsel %vm863, %v1144, 0.0
  %v1161 = vsel %vm863, %v1145, 0.0
  %v1162 = vadd.f32 %v1160, %v1161
  %v1163 = vsel %vm863, %v1146, 0.0
  %v1164 = vadd.f32 %v1162, %v1163
  %v1165 = vsel %vm863, %v1147, 0.0
  %v1166 = vadd.f32 %v1164, %v1165
  %v1167 = vsel %vm863, %v1148, 0.0
  %v1168 = vadd.f32 %v1166, %v1167
  %v1169 = vsel %vm863, %v1149, 0.0
  %v1170 = vadd.f32 %v1168, %v1169
  %v1171 = vsel %vm863, %v1150, 0.0
  %v1172 = vadd.f32 %v1170, %v1171
  %v1173 = vsel %vm863, %v1151, 0.0
  %v1174 = vadd.f32 %v1172, %v1173
  %v1175 = vsel %vm863, %v1152, 0.0
  %v1176 = vadd.f32 %v1174, %v1175
  %v1177 = vsel %vm863, %v1153, 0.0
  %v1178 = vadd.f32 %v1176, %v1177
  %v1179 = vsel %vm863, %v1154, 0.0
  %v1180 = vadd.f32 %v1178, %v1179
  %v1181 = vsel %vm863, %v1155, 0.0
  %v1182 = vadd.f32 %v1180, %v1181
  %v1183 = vsel %vm863, %v1156, 0.0
  %v1184 = vadd.f32 %v1182, %v1183
  %v1185 = vsel %vm863, %v1157, 0.0
  %v1186 = vadd.f32 %v1184, %v1185
  %v1187 = vsel %vm863, %v1158, 0.0
  %v1188 = vadd.f32 %v1186, %v1187
  %v1189 = vsel %vm863, %v1159, 0.0
  %v1190 = vadd.f32 %v1188, %v1189
  %v1191 = vrot.slane %v1190, 4
  %v1192 = vadd.f32 %v1190, %v1191
  %v1193 = vrot.slane %v1192, 2
  %v1194 = vadd.f32 %v1192, %v1193
  %v1195 = vrot.slane %v1194, 1
  %v1196 = vadd.f32 %v1194, %v1195
  %v1197 = vmul.f32 %v1196, 0.001953125
  %v1198 = vadd.f32 %v1197, 1e-05
  %v1199 = vrsqrt.pop %v1198
  %v1200 = vmul.f32 %v653, %v1199
  %v1202 = vlaneseq
  %v1203 = vshrl.u32 %v1202, 7
  %v1204 = vsub.s32 0, %v1203
  %v1205 = vrot.slane %v1200, %v1204
  %1206 = vrot.lane.b32.xlu0 %v1205, 32
  %v1207 = vpop.permute.xlu0 %1206
  %1209 = vrot.lane.b32.xlu0 %v1205, 64
  %v1210 = vpop.permute.xlu0 %1209
  %1212 = vrot.lane.b32.xlu0 %v1205, 96
  %v1213 = vpop.permute.xlu0 %1212
  %v1215 = vsel %vm863, %v1200, %v1207
  %v1216 = vsel %vm169, %v1215, %v1210
  %v1217 = vsel %vm914, %v1216, %v1213
  %v1218 = vlaneseq
  %v1219 = vshrl.u32 %v1218, 7
  %v1220 = vsub.s32 0, %v1219
  %v1221 = vrot.slane %v1217, %v1220
  %v1222 = vmul.f32 %v920, %v1221
  %v1223 = vmul.f32 %v921, %v1221
  %v1224 = vmul.f32 %v922, %v1221
  %v1225 = vmul.f32 %v923, %v1221
  %v1226 = vmul.f32 %v924, %v1221
  %v1227 = vmul.f32 %v925, %v1221
  %v1228 = vmul.f32 %v926, %v1221
  %v1229 = vmul.f32 %v927, %v1221
  %v1230 = vmul.f32 %v928, %v1221
  %v1231 = vmul.f32 %v929, %v1221
  %v1232 = vmul.f32 %v930, %v1221
  %v1233 = vmul.f32 %v931, %v1221
  %v1234 = vmul.f32 %v932, %v1221
  %v1235 = vmul.f32 %v933, %v1221
  %v1236 = vmul.f32 %v934, %v1221
  %v1237 = vmul.f32 %v935, %v1221
  %v1239 = vlaneseq
  %v1240 = vshrl.u32 %v1239, 7
  %v1241 = vsub.s32 0, %v1240
  %v1242 = vrot.slane %v654, %v1241
  %1243 = vrot.lane.b32.xlu0 %v1242, 32
  %v1244 = vpop.permute.xlu0 %1243
  %1246 = vrot.lane.b32.xlu0 %v1242, 64
  %v1247 = vpop.permute.xlu0 %1246
  %1249 = vrot.lane.b32.xlu0 %v1242, 96
  %v1250 = vpop.permute.xlu0 %1249
  %v1252 = vsel %vm863, %v654, %v1244
  %v1253 = vsel %vm169, %v1252, %v1247
  %v1254 = vsel %vm914, %v1253, %v1250
  %v1255 = vlaneseq
  %v1256 = vshrl.u32 %v1255, 7
  %v1257 = vsub.s32 0, %v1256
  %v1258 = vrot.slane %v1254, %v1257
  %v1259 = vadd.f32 %v1222, %v1258
  %v1260 = vadd.f32 %v1223, %v1258
  %v1261 = vadd.f32 %v1224, %v1258
  %v1262 = vadd.f32 %v1225, %v1258
  %v1263 = vadd.f32 %v1226, %v1258
  %v1264 = vadd.f32 %v1227, %v1258
  %v1265 = vadd.f32 %v1228, %v1258
  %v1266 = vadd.f32 %v1229, %v1258
  %v1267 = vadd.f32 %v1230, %v1258
  %v1268 = vadd.f32 %v1231, %v1258
  %v1269 = vadd.f32 %v1232, %v1258
  %v1270 = vadd.f32 %v1233, %v1258
  %v1271 = vadd.f32 %v1234, %v1258
  %v1272 = vadd.f32 %v1235, %v1258
  %v1273 = vadd.f32 %v1236, %v1258
  %v1274 = vadd.f32 %v1237, %v1258
  %v1275 = vmax.f32 %v1259, 0.0
  %v1276 = vmax.f32 %v1260, 0.0
  %v1277 = vmax.f32 %v1261, 0.0
  %v1278 = vmax.f32 %v1262, 0.0
  %v1279 = vmax.f32 %v1263, 0.0
  %v1280 = vmax.f32 %v1264, 0.0
  %v1281 = vmax.f32 %v1265, 0.0
  %v1282 = vmax.f32 %v1266, 0.0
  %v1283 = vmax.f32 %v1267, 0.0
  %v1284 = vmax.f32 %v1268, 0.0
  %v1285 = vmax.f32 %v1269, 0.0
  %v1286 = vmax.f32 %v1270, 0.0
  %v1287 = vmax.f32 %v1271, 0.0
  %v1288 = vmax.f32 %v1272, 0.0
  %v1289 = vmax.f32 %v1273, 0.0
  %v1290 = vmax.f32 %v1274, 0.0
  %1291 = vst [vmem:[%s4] sm:$0xff] %v1275
  %1292 = vst [vmem:[%s4 + $0x8] sm:$0xff] %v1276
  %1293 = vst [vmem:[%s4 + $0x10] sm:$0xff] %v1277
  %1294 = vst [vmem:[%s4 + $0x18] sm:$0xff] %v1278
  %1295 = vst [vmem:[%s4 + $0x20] sm:$0xff] %v1279
  %1296 = vst [vmem:[%s4 + $0x28] sm:$0xff] %v1280
  %1297 = vst [vmem:[%s4 + $0x30] sm:$0xff] %v1281
  %1298 = vst [vmem:[%s4 + $0x38] sm:$0xff] %v1282
  %1299 = vst [vmem:[%s4 + $0x40] sm:$0xff] %v1283
  %1300 = vst [vmem:[%s4 + $0x48] sm:$0xff] %v1284
  %1301 = vst [vmem:[%s4 + $0x50] sm:$0xff] %v1285
  %1302 = vst [vmem:[%s4 + $0x58] sm:$0xff] %v1286
  %1303 = vst [vmem:[%s4 + $0x60] sm:$0xff] %v1287
  %1304 = vst [vmem:[%s4 + $0x68] sm:$0xff] %v1288
  %1305 = vst [vmem:[%s4 + $0x70] sm:$0xff] %v1289
  %1306 = vst [vmem:[%s4 + $0x78] sm:$0xff] %v1290
  // Predicated region
  $region18: #{ae_vine2_forward.12} parent=0 // pred_check
    _
  $region19: #{ae_vine2_forward.12} parent=0 // pred_check_branch
    %1308 = sbr.rel (0) target = $region21
  $region20: #{ae_vine2_forward.12} parent=0 // pred_region
    _
  $region21: #{ae_vine2_forward.12} parent=0 // pred_fallthru
    _
  // Predicated region
  $region22: #{ae_vine2_forward.12} parent=0 // pred_check
    _
  $region23: #{ae_vine2_forward.12} parent=0 // pred_check_branch
    %1310 = sbr.rel (0) target = $region25
  $region24: #{ae_vine2_forward.12} parent=0 // pred_region
    _
  $region25: #{ae_vine2_forward.12} parent=0 // pred_fallthru
    _

// kernel: ae_vine2_forward.13
$region0: #{ae_vine2_forward.13}
  #allocation0 [shape = 'u32[]', space=smem, size = 0x4, offset = 0x4, fixed_abs, tag = 'smem constant byte address 0x4 - core index']
  #allocation1 [shape = 'u32[144,128]{1,0:T(1,128)}', space=vmem, size = 0x12000, scoped, tag = 'internal scratch']
  %s0 = inlined_call_operand.vmem [shape: f32[512,288], index: 0, kind: input, shape index: {}]
  %s1 = inlined_call_operand.vmem [shape: f32[288,12], index: 1, kind: input, shape index: {}]
  %s2 = inlined_call_operand.vmem [shape: f32[512,12], index: 2, kind: output, shape index: {}]
  %s3 = sld [smem:[#allocation0]]
  $region18: #{ae_vine2_forward.13} parent=0
    _
  %s5 = ssub.s32 1, %s3
  %s6 = scalar_select 0, %s5, %s3
  // Predicated region
  $region2: #{ae_vine2_forward.13} parent=0 // pred_check
    _
  $region3: #{ae_vine2_forward.13} parent=0 // pred_check_branch
    %8 = sbr.rel (0) target = $region5
  $region4: #{ae_vine2_forward.13} parent=0 // pred_region
    _
  $region5: #{ae_vine2_forward.13} parent=0 // pred_fallthru
    _
  // Predicated region
  $region6: #{ae_vine2_forward.13} parent=0 // pred_check
    _
  $region7: #{ae_vine2_forward.13} parent=0 // pred_check_branch
    %10 = sbr.rel (0) target = $region9
  $region8: #{ae_vine2_forward.13} parent=0 // pred_region
    _
  $region9: #{ae_vine2_forward.13} parent=0 // pred_fallthru
    _
  %v11 = vld [vmem:[%s0] sm:$0xff]
  %v12 = vld [vmem:[%s0 + $0x8] sm:$0xff]
  %v13 = vld [vmem:[%s0 + $0x10] sm:$0xff]
  %v14 = vld [vmem:[%s0 + $0x18] sm:$0xff]
  %v15 = vld [vmem:[%s0 + $0x20] sm:$0xff]
  %v16 = vld [vmem:[%s0 + $0x28] sm:$0xff]
  %v17 = vld [vmem:[%s0 + $0x30] sm:$0xff]
  %v18 = vld [vmem:[%s0 + $0x38] sm:$0xff]
  %v19 = vld [vmem:[%s0 + $0x40] sm:$0xff]
  %v20 = vld [vmem:[%s0 + $0x48] sm:$0xff]
  %v21 = vld [vmem:[%s0 + $0x50] sm:$0xff]
  %v22 = vld [vmem:[%s0 + $0x58] sm:$0xff]
  %v23 = vld [vmem:[%s0 + $0x60] sm:$0xff]
  %v24 = vld [vmem:[%s0 + $0x68] sm:$0xff]
  %v25 = vld [vmem:[%s0 + $0x70] sm:$0xff]
  %v26 = vld [vmem:[%s0 + $0x78] sm:$0xff]
  %v27 = vld [vmem:[%s0 + $0x80] sm:$0xff]
  %v28 = vld [vmem:[%s0 + $0x88] sm:$0xff]
  %v29 = vld [vmem:[%s0 + $0x90] sm:$0xff]
  %v30 = vld [vmem:[%s0 + $0x98] sm:$0xff]
  %v31 = vld [vmem:[%s0 + $0xa0] sm:$0xff]
  %v32 = vld [vmem:[%s0 + $0xa8] sm:$0xff]
  %v33 = vld [vmem:[%s0 + $0xb0] sm:$0xff]
  %v34 = vld [vmem:[%s0 + $0xb8] sm:$0xff]
  %v35 = vld [vmem:[%s0 + $0xc0] sm:$0xff]
  %v36 = vld [vmem:[%s0 + $0xc8] sm:$0xff]
  %v37 = vld [vmem:[%s0 + $0xd0] sm:$0xff]
  %v38 = vld [vmem:[%s0 + $0xd8] sm:$0xff]
  %v39 = vld [vmem:[%s0 + $0xe0] sm:$0xff]
  %v40 = vld [vmem:[%s0 + $0xe8] sm:$0xff]
  %v41 = vld [vmem:[%s0 + $0xf0] sm:$0xff]
  %v42 = vld [vmem:[%s0 + $0xf8] sm:$0xff]
  %v43 = vld [vmem:[%s0 + $0x100] sm:$0xff]
  %v44 = vld [vmem:[%s0 + $0x108] sm:$0xff]
  %v45 = vld [vmem:[%s0 + $0x110] sm:$0xff]
  %v46 = vld [vmem:[%s0 + $0x118] sm:$0xff]
  %v47 = vld [vmem:[%s0 + $0x120] sm:$0xff]
  %v48 = vld [vmem:[%s0 + $0x128] sm:$0xff]
  %v49 = vld [vmem:[%s0 + $0x130] sm:$0xff]
  %v50 = vld [vmem:[%s0 + $0x138] sm:$0xff]
  %v51 = vld [vmem:[%s0 + $0x140] sm:$0xff]
  %v52 = vld [vmem:[%s0 + $0x148] sm:$0xff]
  %v53 = vld [vmem:[%s0 + $0x150] sm:$0xff]
  %v54 = vld [vmem:[%s0 + $0x158] sm:$0xff]
  %v55 = vld [vmem:[%s0 + $0x160] sm:$0xff]
  %v56 = vld [vmem:[%s0 + $0x168] sm:$0xff]
  %v57 = vld [vmem:[%s0 + $0x170] sm:$0xff]
  %v58 = vld [vmem:[%s0 + $0x178] sm:$0xff]
  %v59 = vld [vmem:[%s0 + $0x180] sm:$0xff]
  %v60 = vld [vmem:[%s0 + $0x188] sm:$0xff]
  %v61 = vld [vmem:[%s0 + $0x190] sm:$0xff]
  %v62 = vld [vmem:[%s0 + $0x198] sm:$0xff]
  %v63 = vld [vmem:[%s0 + $0x1a0] sm:$0xff]
  %v64 = vld [vmem:[%s0 + $0x1a8] sm:$0xff]
  %v65 = vld [vmem:[%s0 + $0x1b0] sm:$0xff]
  %v66 = vld [vmem:[%s0 + $0x1b8] sm:$0xff]
  %v67 = vld [vmem:[%s0 + $0x1c0] sm:$0xff]
  %v68 = vld [vmem:[%s0 + $0x1c8] sm:$0xff]
  %v69 = vld [vmem:[%s0 + $0x1d0] sm:$0xff]
  %v70 = vld [vmem:[%s0 + $0x1d8] sm:$0xff]
  %v71 = vld [vmem:[%s0 + $0x1e0] sm:$0xff]
  %v72 = vld [vmem:[%s0 + $0x1e8] sm:$0xff]
  %v73 = vld [vmem:[%s0 + $0x1f0] sm:$0xff]
  %v74 = vld [vmem:[%s0 + $0x1f8] sm:$0xff]
  %v75 = vld [vmem:[%s0 + $0x200] sm:$0xff]
  %v76 = vld [vmem:[%s0 + $0x208] sm:$0xff]
  %v77 = vld [vmem:[%s0 + $0x210] sm:$0xff]
  %v78 = vld [vmem:[%s0 + $0x218] sm:$0xff]
  %v79 = vld [vmem:[%s0 + $0x220] sm:$0xff]
  %v80 = vld [vmem:[%s0 + $0x228] sm:$0xff]
  %v81 = vld [vmem:[%s0 + $0x230] sm:$0xff]
  %v82 = vld [vmem:[%s0 + $0x238] sm:$0xff]
  %v83 = vld [vmem:[%s0 + $0x240] sm:$0xff]
  %v84 = vld [vmem:[%s0 + $0x248] sm:$0xff]
  %v85 = vld [vmem:[%s0 + $0x250] sm:$0xff]
  %v86 = vld [vmem:[%s0 + $0x258] sm:$0xff]
  %v87 = vld [vmem:[%s0 + $0x260] sm:$0xff]
  %v88 = vld [vmem:[%s0 + $0x268] sm:$0xff]
  %v89 = vld [vmem:[%s0 + $0x270] sm:$0xff]
  %v90 = vld [vmem:[%s0 + $0x278] sm:$0xff]
  %v91 = vld [vmem:[%s0 + $0x280] sm:$0xff]
  %v92 = vld [vmem:[%s0 + $0x288] sm:$0xff]
  %v93 = vld [vmem:[%s0 + $0x290] sm:$0xff]
  %v94 = vld [vmem:[%s0 + $0x298] sm:$0xff]
  %v95 = vld [vmem:[%s0 + $0x2a0] sm:$0xff]
  %v96 = vld [vmem:[%s0 + $0x2a8] sm:$0xff]
  %v97 = vld [vmem:[%s0 + $0x2b0] sm:$0xff]
  %v98 = vld [vmem:[%s0 + $0x2b8] sm:$0xff]
  %v99 = vld [vmem:[%s0 + $0x2c0] sm:$0xff]
  %v100 = vld [vmem:[%s0 + $0x2c8] sm:$0xff]
  %v101 = vld [vmem:[%s0 + $0x2d0] sm:$0xff]
  %v102 = vld [vmem:[%s0 + $0x2d8] sm:$0xff]
  %v103 = vld [vmem:[%s0 + $0x2e0] sm:$0xff]
  %v104 = vld [vmem:[%s0 + $0x2e8] sm:$0xff]
  %v105 = vld [vmem:[%s0 + $0x2f0] sm:$0xff]
  %v106 = vld [vmem:[%s0 + $0x2f8] sm:$0xff]
  %v107 = vld [vmem:[%s0 + $0x300] sm:$0xff]
  %v108 = vld [vmem:[%s0 + $0x308] sm:$0xff]
  %v109 = vld [vmem:[%s0 + $0x310] sm:$0xff]
  %v110 = vld [vmem:[%s0 + $0x318] sm:$0xff]
  %v111 = vld [vmem:[%s0 + $0x320] sm:$0xff]
  %v112 = vld [vmem:[%s0 + $0x328] sm:$0xff]
  %v113 = vld [vmem:[%s0 + $0x330] sm:$0xff]
  %v114 = vld [vmem:[%s0 + $0x338] sm:$0xff]
  %v115 = vld [vmem:[%s0 + $0x340] sm:$0xff]
  %v116 = vld [vmem:[%s0 + $0x348] sm:$0xff]
  %v117 = vld [vmem:[%s0 + $0x350] sm:$0xff]
  %v118 = vld [vmem:[%s0 + $0x358] sm:$0xff]
  %v119 = vld [vmem:[%s0 + $0x360] sm:$0xff]
  %v120 = vld [vmem:[%s0 + $0x368] sm:$0xff]
  %v121 = vld [vmem:[%s0 + $0x370] sm:$0xff]
  %v122 = vld [vmem:[%s0 + $0x378] sm:$0xff]
  %v123 = vld [vmem:[%s0 + $0x380] sm:$0xff]
  %v124 = vld [vmem:[%s0 + $0x388] sm:$0xff]
  %v125 = vld [vmem:[%s0 + $0x390] sm:$0xff]
  %v126 = vld [vmem:[%s0 + $0x398] sm:$0xff]
  %v127 = vld [vmem:[%s0 + $0x3a0] sm:$0xff]
  %v128 = vld [vmem:[%s0 + $0x3a8] sm:$0xff]
  %v129 = vld [vmem:[%s0 + $0x3b0] sm:$0xff]
  %v130 = vld [vmem:[%s0 + $0x3b8] sm:$0xff]
  %v131 = vld [vmem:[%s0 + $0x3c0] sm:$0xff]
  %v132 = vld [vmem:[%s0 + $0x3c8] sm:$0xff]
  %v133 = vld [vmem:[%s0 + $0x3d0] sm:$0xff]
  %v134 = vld [vmem:[%s0 + $0x3d8] sm:$0xff]
  %v135 = vld [vmem:[%s0 + $0x3e0] sm:$0xff]
  %v136 = vld [vmem:[%s0 + $0x3e8] sm:$0xff]
  %v137 = vld [vmem:[%s0 + $0x3f0] sm:$0xff]
  %v138 = vld [vmem:[%s0 + $0x3f8] sm:$0xff]
  %v139 = vld [vmem:[%s0 + $0x400] sm:$0xff]
  %v140 = vld [vmem:[%s0 + $0x408] sm:$0xff]
  %v141 = vld [vmem:[%s0 + $0x410] sm:$0xff]
  %v142 = vld [vmem:[%s0 + $0x418] sm:$0xff]
  %v143 = vld [vmem:[%s0 + $0x420] sm:$0xff]
  %v144 = vld [vmem:[%s0 + $0x428] sm:$0xff]
  %v145 = vld [vmem:[%s0 + $0x430] sm:$0xff]
  %v146 = vld [vmem:[%s0 + $0x438] sm:$0xff]
  %v147 = vld [vmem:[%s0 + $0x440] sm:$0xff]
  %v148 = vld [vmem:[%s0 + $0x448] sm:$0xff]
  %v149 = vld [vmem:[%s0 + $0x450] sm:$0xff]
  %v150 = vld [vmem:[%s0 + $0x458] sm:$0xff]
  %v151 = vld [vmem:[%s0 + $0x460] sm:$0xff]
  %v152 = vld [vmem:[%s0 + $0x468] sm:$0xff]
  %v153 = vld [vmem:[%s0 + $0x470] sm:$0xff]
  %v154 = vld [vmem:[%s0 + $0x478] sm:$0xff]
  %v155 = vld [vmem:[%s0 + $0x480] sm:$0xff]
  %v156 = vld [vmem:[%s0 + $0x488] sm:$0xff]
  %v157 = vld [vmem:[%s0 + $0x490] sm:$0xff]
  %v158 = vld [vmem:[%s0 + $0x498] sm:$0xff]
  %v159 = vld [vmem:[%s0 + $0x4a0] sm:$0xff]
  %v160 = vld [vmem:[%s0 + $0x4a8] sm:$0xff]
  %v161 = vld [vmem:[%s0 + $0x4b0] sm:$0xff]
  %v162 = vld [vmem:[%s0 + $0x4b8] sm:$0xff]
  %v163 = vld [vmem:[%s0 + $0x4c0] sm:$0xff]
  %v164 = vld [vmem:[%s0 + $0x4c8] sm:$0xff]
  %v165 = vld [vmem:[%s0 + $0x4d0] sm:$0xff]
  %v166 = vld [vmem:[%s0 + $0x4d8] sm:$0xff]
  %v167 = vld [vmem:[%s0 + $0x4e0] sm:$0xff]
  %v168 = vld [vmem:[%s0 + $0x4e8] sm:$0xff]
  %v169 = vld [vmem:[%s0 + $0x4f0] sm:$0xff]
  %v170 = vld [vmem:[%s0 + $0x4f8] sm:$0xff]
  %v171 = vld [vmem:[%s0 + $0x500] sm:$0xff]
  %v172 = vld [vmem:[%s0 + $0x508] sm:$0xff]
  %v173 = vld [vmem:[%s0 + $0x510] sm:$0xff]
  %v174 = vld [vmem:[%s0 + $0x518] sm:$0xff]
  %v175 = vld [vmem:[%s0 + $0x520] sm:$0xff]
  %v176 = vld [vmem:[%s0 + $0x528] sm:$0xff]
  %v177 = vld [vmem:[%s0 + $0x530] sm:$0xff]
  %v178 = vld [vmem:[%s0 + $0x538] sm:$0xff]
  %v179 = vld [vmem:[%s0 + $0x540] sm:$0xff]
  %v180 = vld [vmem:[%s0 + $0x548] sm:$0xff]
  %v181 = vld [vmem:[%s0 + $0x550] sm:$0xff]
  %v182 = vld [vmem:[%s0 + $0x558] sm:$0xff]
  %v183 = vld [vmem:[%s0 + $0x560] sm:$0xff]
  %v184 = vld [vmem:[%s0 + $0x568] sm:$0xff]
  %v185 = vld [vmem:[%s0 + $0x570] sm:$0xff]
  %v186 = vld [vmem:[%s0 + $0x578] sm:$0xff]
  %v187 = vld [vmem:[%s0 + $0x580] sm:$0xff]
  %v188 = vld [vmem:[%s0 + $0x588] sm:$0xff]
  %v189 = vld [vmem:[%s0 + $0x590] sm:$0xff]
  %v190 = vld [vmem:[%s0 + $0x598] sm:$0xff]
  %v191 = vld [vmem:[%s0 + $0x5a0] sm:$0xff]
  %v192 = vld [vmem:[%s0 + $0x5a8] sm:$0xff]
  %v193 = vld [vmem:[%s0 + $0x5b0] sm:$0xff]
  %v194 = vld [vmem:[%s0 + $0x5b8] sm:$0xff]
  %v195 = vld [vmem:[%s0 + $0x5c0] sm:$0xff]
  %v196 = vld [vmem:[%s0 + $0x5c8] sm:$0xff]
  %v197 = vld [vmem:[%s0 + $0x5d0] sm:$0xff]
  %v198 = vld [vmem:[%s0 + $0x5d8] sm:$0xff]
  %v199 = vld [vmem:[%s0 + $0x5e0] sm:$0xff]
  %v200 = vld [vmem:[%s0 + $0x5e8] sm:$0xff]
  %v201 = vld [vmem:[%s0 + $0x5f0] sm:$0xff]
  %v202 = vld [vmem:[%s0 + $0x5f8] sm:$0xff]
  %v203 = vld [vmem:[%s1] sm:$0xff]
  %v204 = vld [vmem:[%s1 + $0x8] sm:$0xff]
  %v205 = vld [vmem:[%s1 + $0x10] sm:$0xff]
  %v206 = vld [vmem:[%s1 + $0x18] sm:$0xff]
  %v207 = vld [vmem:[%s1 + $0x20] sm:$0xff]
  %v208 = vld [vmem:[%s1 + $0x28] sm:$0xff]
  %v209 = vld [vmem:[%s1 + $0x30] sm:$0xff]
  %v210 = vld [vmem:[%s1 + $0x38] sm:$0xff]
  %v211 = vld [vmem:[%s1 + $0x40] sm:$0xff]
  %v212 = vld [vmem:[%s1 + $0x48] sm:$0xff]
  %v213 = vld [vmem:[%s1 + $0x50] sm:$0xff]
  %v214 = vld [vmem:[%s1 + $0x58] sm:$0xff]
  %v215 = vld [vmem:[%s1 + $0x60] sm:$0xff]
  %v216 = vld [vmem:[%s1 + $0x68] sm:$0xff]
  %v217 = vld [vmem:[%s1 + $0x70] sm:$0xff]
  %v218 = vld [vmem:[%s1 + $0x78] sm:$0xff]
  %v219 = vld [vmem:[%s1 + $0x80] sm:$0xff]
  %v220 = vld [vmem:[%s1 + $0x88] sm:$0xff]
  %v221 = vld [vmem:[%s1 + $0x90] sm:$0xff]
  %v222 = vld [vmem:[%s1 + $0x98] sm:$0xff]
  %v223 = vld [vmem:[%s1 + $0xa0] sm:$0xff]
  %v224 = vld [vmem:[%s1 + $0xa8] sm:$0xff]
  %v225 = vld [vmem:[%s1 + $0xb0] sm:$0xff]
  %v226 = vld [vmem:[%s1 + $0xb8] sm:$0xff]
  %v227 = vld [vmem:[%s1 + $0xc0] sm:$0xff]
  %v228 = vld [vmem:[%s1 + $0xc8] sm:$0xff]
  %v229 = vld [vmem:[%s1 + $0xd0] sm:$0xff]
  %v230 = vld [vmem:[%s1 + $0xd8] sm:$0xff]
  %v231 = vld [vmem:[%s1 + $0xe0] sm:$0xff]
  %v232 = vld [vmem:[%s1 + $0xe8] sm:$0xff]
  %v233 = vld [vmem:[%s1 + $0xf0] sm:$0xff]
  %v234 = vld [vmem:[%s1 + $0xf8] sm:$0xff]
  %v235 = vld [vmem:[%s1 + $0x100] sm:$0xff]
  %v236 = vld [vmem:[%s1 + $0x108] sm:$0xff]
  %v237 = vld [vmem:[%s1 + $0x110] sm:$0xff]
  %v238 = vld [vmem:[%s1 + $0x118] sm:$0xff]
  %vm239 = vcmask 261120
  %v241 = vsel %vm239, %v13, 0
  %v244 = vsel %vm239, %v16, 0
  %v247 = vsel %vm239, %v19, 0
  %v250 = vsel %vm239, %v22, 0
  %v253 = vsel %vm239, %v25, 0
  %v256 = vsel %vm239, %v28, 0
  %v259 = vsel %vm239, %v31, 0
  %v262 = vsel %vm239, %v34, 0
  %v265 = vsel %vm239, %v37, 0
  %v268 = vsel %vm239, %v40, 0
  %v271 = vsel %vm239, %v43, 0
  %v274 = vsel %vm239, %v46, 0
  %v277 = vsel %vm239, %v49, 0
  %v280 = vsel %vm239, %v52, 0
  %v283 = vsel %vm239, %v55, 0
  %v286 = vsel %vm239, %v58, 0
  %v289 = vsel %vm239, %v61, 0
  %v292 = vsel %vm239, %v64, 0
  %v295 = vsel %vm239, %v67, 0
  %v298 = vsel %vm239, %v70, 0
  %v301 = vsel %vm239, %v73, 0
  %v304 = vsel %vm239, %v76, 0
  %v307 = vsel %vm239, %v79, 0
  %v310 = vsel %vm239, %v82, 0
  %v313 = vsel %vm239, %v85, 0
  %v316 = vsel %vm239, %v88, 0
  %v319 = vsel %vm239, %v91, 0
  %v322 = vsel %vm239, %v94, 0
  %v325 = vsel %vm239, %v97, 0
  %v328 = vsel %vm239, %v100, 0
  %v331 = vsel %vm239, %v103, 0
  %v334 = vsel %vm239, %v106, 0
  %v337 = vsel %vm239, %v109, 0
  %v340 = vsel %vm239, %v112, 0
  %v343 = vsel %vm239, %v115, 0
  %v346 = vsel %vm239, %v118, 0
  %v349 = vsel %vm239, %v121, 0
  %v352 = vsel %vm239, %v124, 0
  %v355 = vsel %vm239, %v127, 0
  %v358 = vsel %vm239, %v130, 0
  %v361 = vsel %vm239, %v133, 0
  %v364 = vsel %vm239, %v136, 0
  %v367 = vsel %vm239, %v139, 0
  %v370 = vsel %vm239, %v142, 0
  %v373 = vsel %vm239, %v145, 0
  %v376 = vsel %vm239, %v148, 0
  %v379 = vsel %vm239, %v151, 0
  %v382 = vsel %vm239, %v154, 0
  %v385 = vsel %vm239, %v157, 0
  %v388 = vsel %vm239, %v160, 0
  %v391 = vsel %vm239, %v163, 0
  %v394 = vsel %vm239, %v166, 0
  %v397 = vsel %vm239, %v169, 0
  %v400 = vsel %vm239, %v172, 0
  %v403 = vsel %vm239, %v175, 0
  %v406 = vsel %vm239, %v178, 0
  %v409 = vsel %vm239, %v181, 0
  %v412 = vsel %vm239, %v184, 0
  %v415 = vsel %vm239, %v187, 0
  %v418 = vsel %vm239, %v190, 0
  %v421 = vsel %vm239, %v193, 0
  %v424 = vsel %vm239, %v196, 0
  %v427 = vsel %vm239, %v199, 0
  %v430 = vsel %vm239, %v202, 0
  %432 = vmatprep.subr.mxu0 0.0
  %433 = vmatpush1.msra.mxu0 %v203
  %434 = vmatprep.subr.mxu0 0.0
  %435 = vmatpush1.msra.mxu0 %v204
  %436 = vmatprep.subr.mxu0 0.0
  %437 = vmatpush1.msra.mxu0 %v205
  %438 = vmatprep.subr.mxu0 0.0
  %439 = vmatpush1.msra.mxu0 %v206
  %440 = vmatprep.subr.mxu0 0.0
  %441 = vmatpush1.msra.mxu0 %v207
  %442 = vmatprep.subr.mxu0 0.0
  %443 = vmatpush1.msra.mxu0 %v208
  %444 = vmatprep.subr.mxu0 0.0
  %445 = vmatpush1.msra.mxu0 %v209
  %446 = vmatprep.subr.mxu0 0.0
  %447 = vmatpush1.msra.mxu0 %v210
  %448 = vmatprep.subr.mxu0 0.0
  %449 = vmatpush1.msra.mxu0 %v211
  %450 = vmatprep.subr.mxu0 0.0
  %451 = vmatpush1.msra.mxu0 %v212
  %452 = vmatprep.subr.mxu0 0.0
  %453 = vmatpush1.msra.mxu0 %v213
  %454 = vmatprep.subr.mxu0 0.0
  %455 = vmatpush1.msra.mxu0 %v214
  %456 = vmatprep.subr.mxu0 0.0
  %457 = vmatpush1.msra.mxu0 %v215
  %458 = vmatprep.subr.mxu0 0.0
  %459 = vmatpush1.msra.mxu0 %v216
  %460 = vmatprep.subr.mxu0 0.0
  %461 = vmatpush1.msra.mxu0 %v217
  %462 = vmatprep.subr.mxu0 0.0
  %463 = vmatpush1.msra.mxu0 %v218
  %464 = vmatprep.subr.mxu0 0.0
  %465 = vmatpush1.msra.mxu0 %v219
  %466 = vmatprep.subr.mxu0 0.0
  %467 = vmatpush1.msra.mxu0 %v220
  %468 = vmatprep.subr.mxu0 0.0
  %469 = vmatpush1.msra.mxu0 %v221
  %470 = vmatprep.subr.mxu0 0.0
  %471 = vmatpush1.msra.mxu0 %v222
  %472 = vmatprep.subr.mxu0 0.0
  %473 = vmatpush1.msra.mxu0 %v223
  %474 = vmatprep.subr.mxu0 0.0
  %475 = vmatpush1.msra.mxu0 %v224
  %476 = vmatprep.subr.mxu0 0.0
  %477 = vmatpush1.msra.mxu0 %v225
  %478 = vmatprep.subr.mxu0 0.0
  %479 = vmatpush1.msra.mxu0 %v226
  %480 = vmatprep.subr.mxu0 0.0
  %481 = vmatpush1.msra.mxu0 %v227
  %482 = vmatprep.subr.mxu0 0.0
  %483 = vmatpush1.msra.mxu0 %v228
  %484 = vmatprep.subr.mxu0 0.0
  %485 = vmatpush1.msra.mxu0 %v229
  %486 = vmatprep.subr.mxu0 0.0
  %487 = vmatpush1.msra.mxu0 %v230
  %488 = vmatprep.subr.mxu0 0.0
  %489 = vmatpush1.msra.mxu0 %v231
  %490 = vmatprep.subr.mxu0 0.0
  %491 = vmatpush1.msra.mxu0 %v232
  %492 = vmatprep.subr.mxu0 0.0
  %493 = vmatpush1.msra.mxu0 %v233
  %494 = vmatprep.subr.mxu0 0.0
  %495 = vmatpush1.msra.mxu0 %v234
  %496 = vmatprep.mubr.f32.mxu0 %v12
  %497 = vmatmul.mubr.f32.gmra.mrb[0].mxu0 %v11
  %v498 = vpop.f32.mrb[0].mxu0
  %v499 = vadd.f32 0.0, %v498
  %v500 = vpop.f32.mrb[0].mxu0
  %501 = vmatprep.mubr.f32.mxu0 %v15
  %502 = vmatmul.mubr.f32.gmra.mrb[0].mxu0 %v14
  %v503 = vpop.f32.mrb[0].mxu0
  %v504 = vadd.f32 0.0, %v503
  %v505 = vpop.f32.mrb[0].mxu0
  %506 = vmatprep.mubr.f32.mxu0 %v18
  %507 = vmatmul.mubr.f32.gmra.mrb[0].mxu0 %v17
  %v508 = vpop.f32.mrb[0].mxu0
  %v509 = vadd.f32 0.0, %v508
  %v510 = vpop.f32.mrb[0].mxu0
  %511 = vmatprep.mubr.f32.mxu0 %v21
  %512 = vmatmul.mubr.f32.gmra.mrb[0].mxu0 %v20
  %v513 = vpop.f32.mrb[0].mxu0
  %v514 = vadd.f32 0.0, %v513
  %v515 = vpop.f32.mrb[0].mxu0
  %516 = vmatprep.mubr.f32.mxu0 %v24
  %517 = vmatmul.mubr.f32.gmra.mrb[0].mxu0 %v23
  %v518 = vpop.f32.mrb[0].mxu0
  %v519 = vadd.f32 0.0, %v518
  %v520 = vpop.f32.mrb[0].mxu0
  %521 = vmatprep.mubr.f32.mxu0 %v27
  %522 = vmatmul.mubr.f32.gmra.mrb[0].mxu0 %v26
  %v523 = vpop.f32.mrb[0].mxu0
  %v524 = vadd.f32 0.0, %v523
  %v525 = vpop.f32.mrb[0].mxu0
  %526 = vmatprep.mubr.f32.mxu0 %v30
  %527 = vmatmul.mubr.f32.gmra.mrb[0].mxu0 %v29
  %v528 = vpop.f32.mrb[0].mxu0
  %v529 = vadd.f32 0.0, %v528
  %v530 = vpop.f32.mrb[0].mxu0
  %531 = vmatprep.mubr.f32.mxu0 %v33
  %532 = vmatmul.mubr.f32.gmra.mrb[0].mxu0 %v32
  %v533 = vpop.f32.mrb[0].mxu0
  %v534 = vadd.f32 0.0, %v533
  %v535 = vpop.f32.mrb[0].mxu0
  %536 = vmatprep.mubr.f32.mxu0 %v36
  %537 = vmatmul.mubr.f32.gmra.mrb[0].mxu0 %v35
  %v538 = vpop.f32.mrb[0].mxu0
  %v539 = vadd.f32 0.0, %v538
  %v540 = vpop.f32.mrb[0].mxu0
  %541 = vmatprep.mubr.f32.mxu0 %v39
  %542 = vmatmul.mubr.f32.gmra.mrb[0].mxu0 %v38
  %v543 = vpop.f32.mrb[0].mxu0
  %v544 = vadd.f32 0.0, %v543
  %v545 = vpop.f32.mrb[0].mxu0
  %546 = vmatprep.mubr.f32.mxu0 %v42
  %547 = vmatmul.mubr.f32.gmra.mrb[0].mxu0 %v41
  %v548 = vpop.f32.mrb[0].mxu0
  %v549 = vadd.f32 0.0, %v548
  %v550 = vpop.f32.mrb[0].mxu0
  %551 = vmatprep.mubr.f32.mxu0 %v45
  %552 = vmatmul.mubr.f32.gmra.mrb[0].mxu0 %v44
  %v553 = vpop.f32.mrb[0].mxu0
  %v554 = vadd.f32 0.0, %v553
  %v555 = vpop.f32.mrb[0].mxu0
  %556 = vmatprep.mubr.f32.mxu0 %v48
  %557 = vmatmul.mubr.f32.gmra.mrb[0].mxu0 %v47
  %v558 = vpop.f32.mrb[0].mxu0
  %v559 = vadd.f32 0.0, %v558
  %v560 = vpop.f32.mrb[0].mxu0
  %561 = vmatprep.mubr.f32.mxu0 %v51
  %562 = vmatmul.mubr.f32.gmra.mrb[0].mxu0 %v50
  %v563 = vpop.f32.mrb[0].mxu0
  %v564 = vadd.f32 0.0, %v563
  %v565 = vpop.f32.mrb[0].mxu0
  %566 = vmatprep.mubr.f32.mxu0 %v54
  %567 = vmatmul.mubr.f32.gmra.mrb[0].mxu0 %v53
  %v568 = vpop.f32.mrb[0].mxu0
  %v569 = vadd.f32 0.0, %v568
  %v570 = vpop.f32.mrb[0].mxu0
  %571 = vmatprep.mubr.f32.mxu0 %v57
  %572 = vmatmul.mubr.f32.gmra.mrb[0].mxu0 %v56
  %v573 = vpop.f32.mrb[0].mxu0
  %v574 = vadd.f32 0.0, %v573
  %v575 = vpop.f32.mrb[0].mxu0
  %576 = vmatprep.mubr.f32.mxu0 %v60
  %577 = vmatmul.mubr.f32.gmra.mrb[0].mxu0 %v59
  %v578 = vpop.f32.mrb[0].mxu0
  %v579 = vadd.f32 0.0, %v578
  %v580 = vpop.f32.mrb[0].mxu0
  %581 = vmatprep.mubr.f32.mxu0 %v63
  %582 = vmatmul.mubr.f32.gmra.mrb[0].mxu0 %v62
  %v583 = vpop.f32.mrb[0].mxu0
  %v584 = vadd.f32 0.0, %v583
  %v585 = vpop.f32.mrb[0].mxu0
  %586 = vmatprep.mubr.f32.mxu0 %v66
  %587 = vmatmul.mubr.f32.gmra.mrb[0].mxu0 %v65
  %v588 = vpop.f32.mrb[0].mxu0
  %v589 = vadd.f32 0.0, %v588
  %v590 = vpop.f32.mrb[0].mxu0
  %591 = vmatprep.mubr.f32.mxu0 %v69
  %592 = vmatmul.mubr.f32.gmra.mrb[0].mxu0 %v68
  %v593 = vpop.f32.mrb[0].mxu0
  %v594 = vadd.f32 0.0, %v593
  %v595 = vpop.f32.mrb[0].mxu0
  %596 = vmatprep.mubr.f32.mxu0 %v72
  %597 = vmatmul.mubr.f32.gmra.mrb[0].mxu0 %v71
  %v598 = vpop.f32.mrb[0].mxu0
  %v599 = vadd.f32 0.0, %v598
  %v600 = vpop.f32.mrb[0].mxu0
  %601 = vmatprep.mubr.f32.mxu0 %v75
  %602 = vmatmul.mubr.f32.gmra.mrb[0].mxu0 %v74
  %v603 = vpop.f32.mrb[0].mxu0
  %v604 = vadd.f32 0.0, %v603
  %v605 = vpop.f32.mrb[0].mxu0
  %606 = vmatprep.mubr.f32.mxu0 %v78
  %607 = vmatmul.mubr.f32.gmra.mrb[0].mxu0 %v77
  %v608 = vpop.f32.mrb[0].mxu0
  %v609 = vadd.f32 0.0, %v608
  %v610 = vpop.f32.mrb[0].mxu0
  %611 = vmatprep.mubr.f32.mxu0 %v81
  %612 = vmatmul.mubr.f32.gmra.mrb[0].mxu0 %v80
  %v613 = vpop.f32.mrb[0].mxu0
  %v614 = vadd.f32 0.0, %v613
  %v615 = vpop.f32.mrb[0].mxu0
  %616 = vmatprep.mubr.f32.mxu0 %v84
  %617 = vmatmul.mubr.f32.gmra.mrb[0].mxu0 %v83
  %v618 = vpop.f32.mrb[0].mxu0
  %v619 = vadd.f32 0.0, %v618
  %v620 = vpop.f32.mrb[0].mxu0
  %621 = vmatprep.mubr.f32.mxu0 %v87
  %622 = vmatmul.mubr.f32.gmra.mrb[0].mxu0 %v86
  %v623 = vpop.f32.mrb[0].mxu0
  %v624 = vadd.f32 0.0, %v623
  %v625 = vpop.f32.mrb[0].mxu0
  %626 = vmatprep.mubr.f32.mxu0 %v90
  %627 = vmatmul.mubr.f32.gmra.mrb[0].mxu0 %v89
  %v628 = vpop.f32.mrb[0].mxu0
  %v629 = vadd.f32 0.0, %v628
  %v630 = vpop.f32.mrb[0].mxu0
  %631 = vmatprep.mubr.f32.mxu0 %v93
  %632 = vmatmul.mubr.f32.gmra.mrb[0].mxu0 %v92
  %v633 = vpop.f32.mrb[0].mxu0
  %v634 = vadd.f32 0.0, %v633
  %v635 = vpop.f32.mrb[0].mxu0
  %636 = vmatprep.mubr.f32.mxu0 %v96
  %637 = vmatmul.mubr.f32.gmra.mrb[0].mxu0 %v95
  %v638 = vpop.f32.mrb[0].mxu0
  %v639 = vadd.f32 0.0, %v638
  %v640 = vpop.f32.mrb[0].mxu0
  %641 = vmatprep.mubr.f32.mxu0 %v99
  %642 = vmatmul.mubr.f32.gmra.mrb[0].mxu0 %v98
  %v643 = vpop.f32.mrb[0].mxu0
  %v644 = vadd.f32 0.0, %v643
  %v645 = vpop.f32.mrb[0].mxu0
  %646 = vmatprep.mubr.f32.mxu0 %v102
  %647 = vmatmul.mubr.f32.gmra.mrb[0].mxu0 %v101
  %v648 = vpop.f32.mrb[0].mxu0
  %v649 = vadd.f32 0.0, %v648
  %v650 = vpop.f32.mrb[0].mxu0
  %651 = vmatprep.mubr.f32.mxu0 %v105
  %652 = vmatmul.mubr.f32.gmra.mrb[0].mxu0 %v104
  %v653 = vpop.f32.mrb[0].mxu0
  %v654 = vadd.f32 0.0, %v653
  %v655 = vpop.f32.mrb[0].mxu0
  %656 = vmatprep.mubr.f32.mxu0 %v108
  %657 = vmatmul.mubr.f32.gmra.mrb[0].mxu0 %v107
  %v658 = vpop.f32.mrb[0].mxu0
  %v659 = vadd.f32 0.0, %v658
  %v660 = vpop.f32.mrb[0].mxu0
  %661 = vmatprep.mubr.f32.mxu0 %v111
  %662 = vmatmul.mubr.f32.gmra.mrb[0].mxu0 %v110
  %v663 = vpop.f32.mrb[0].mxu0
  %v664 = vadd.f32 0.0, %v663
  %v665 = vpop.f32.mrb[0].mxu0
  %666 = vmatprep.mubr.f32.mxu0 %v114
  %667 = vmatmul.mubr.f32.gmra.mrb[0].mxu0 %v113
  %v668 = vpop.f32.mrb[0].mxu0
  %v669 = vadd.f32 0.0, %v668
  %v670 = vpop.f32.mrb[0].mxu0
  %671 = vmatprep.mubr.f32.mxu0 %v117
  %672 = vmatmul.mubr.f32.gmra.mrb[0].mxu0 %v116
  %v673 = vpop.f32.mrb[0].mxu0
  %v674 = vadd.f32 0.0, %v673
  %v675 = vpop.f32.mrb[0].mxu0
  %676 = vmatprep.mubr.f32.mxu0 %v120
  %677 = vmatmul.mubr.f32.gmra.mrb[0].mxu0 %v119
  %v678 = vpop.f32.mrb[0].mxu0
  %v679 = vadd.f32 0.0, %v678
  %v680 = vpop.f32.mrb[0].mxu0
  %681 = vmatprep.mubr.f32.mxu0 %v123
  %682 = vmatmul.mubr.f32.gmra.mrb[0].mxu0 %v122
  %v683 = vpop.f32.mrb[0].mxu0
  %v684 = vadd.f32 0.0, %v683
  %v685 = vpop.f32.mrb[0].mxu0
  %686 = vmatprep.mubr.f32.mxu0 %v126
  %687 = vmatmul.mubr.f32.gmra.mrb[0].mxu0 %v125
  %v688 = vpop.f32.mrb[0].mxu0
  %v689 = vadd.f32 0.0, %v688
  %v690 = vpop.f32.mrb[0].mxu0
  %691 = vmatprep.mubr.f32.mxu0 %v129
  %692 = vmatmul.mubr.f32.gmra.mrb[0].mxu0 %v128
  %v693 = vpop.f32.mrb[0].mxu0
  %v694 = vadd.f32 0.0, %v693
  %v695 = vpop.f32.mrb[0].mxu0
  %696 = vmatprep.mubr.f32.mxu0 %v132
  %697 = vmatmul.mubr.f32.gmra.mrb[0].mxu0 %v131
  %v698 = vpop.f32.mrb[0].mxu0
  %v699 = vadd.f32 0.0, %v698
  %v700 = vpop.f32.mrb[0].mxu0
  %701 = vmatprep.mubr.f32.mxu0 %v135
  %702 = vmatmul.mubr.f32.gmra.mrb[0].mxu0 %v134
  %v703 = vpop.f32.mrb[0].mxu0
  %v704 = vadd.f32 0.0, %v703
  %v705 = vpop.f32.mrb[0].mxu0
  %706 = vmatprep.mubr.f32.mxu0 %v138
  %707 = vmatmul.mubr.f32.gmra.mrb[0].mxu0 %v137
  %v708 = vpop.f32.mrb[0].mxu0
  %v709 = vadd.f32 0.0, %v708
  %v710 = vpop.f32.mrb[0].mxu0
  %711 = vmatprep.mubr.f32.mxu0 %v141
  %712 = vmatmul.mubr.f32.gmra.mrb[0].mxu0 %v140
  %v713 = vpop.f32.mrb[0].mxu0
  %v714 = vadd.f32 0.0, %v713
  %v715 = vpop.f32.mrb[0].mxu0
  %716 = vmatprep.mubr.f32.mxu0 %v144
  %717 = vmatmul.mubr.f32.gmra.mrb[0].mxu0 %v143
  %v718 = vpop.f32.mrb[0].mxu0
  %v719 = vadd.f32 0.0, %v718
  %v720 = vpop.f32.mrb[0].mxu0
  %721 = vmatprep.mubr.f32.mxu0 %v147
  %722 = vmatmul.mubr.f32.gmra.mrb[0].mxu0 %v146
  %v723 = vpop.f32.mrb[0].mxu0
  %v724 = vadd.f32 0.0, %v723
  %v725 = vpop.f32.mrb[0].mxu0
  %726 = vmatprep.mubr.f32.mxu0 %v150
  %727 = vmatmul.mubr.f32.gmra.mrb[0].mxu0 %v149
  %v728 = vpop.f32.mrb[0].mxu0
  %v729 = vadd.f32 0.0, %v728
  %v730 = vpop.f32.mrb[0].mxu0
  %731 = vmatprep.mubr.f32.mxu0 %v153
  %732 = vmatmul.mubr.f32.gmra.mrb[0].mxu0 %v152
  %v733 = vpop.f32.mrb[0].mxu0
  %v734 = vadd.f32 0.0, %v733
  %v735 = vpop.f32.mrb[0].mxu0
  %736 = vmatprep.mubr.f32.mxu0 %v156
  %737 = vmatmul.mubr.f32.gmra.mrb[0].mxu0 %v155
  %v738 = vpop.f32.mrb[0].mxu0
  %v739 = vadd.f32 0.0, %v738
  %v740 = vpop.f32.mrb[0].mxu0
  %741 = vmatprep.mubr.f32.mxu0 %v159
  %742 = vmatmul.mubr.f32.gmra.mrb[0].mxu0 %v158
  %v743 = vpop.f32.mrb[0].mxu0
  %v744 = vadd.f32 0.0, %v743
  %v745 = vpop.f32.mrb[0].mxu0
  %746 = vmatprep.mubr.f32.mxu0 %v162
  %747 = vmatmul.mubr.f32.gmra.mrb[0].mxu0 %v161
  %v748 = vpop.f32.mrb[0].mxu0
  %v749 = vadd.f32 0.0, %v748
  %v750 = vpop.f32.mrb[0].mxu0
  %751 = vmatprep.mubr.f32.mxu0 %v165
  %752 = vmatmul.mubr.f32.gmra.mrb[0].mxu0 %v164
  %v753 = vpop.f32.mrb[0].mxu0
  %v754 = vadd.f32 0.0, %v753
  %v755 = vpop.f32.mrb[0].mxu0
  %756 = vmatprep.mubr.f32.mxu0 %v168
  %757 = vmatmul.mubr.f32.gmra.mrb[0].mxu0 %v167
  %v758 = vpop.f32.mrb[0].mxu0
  %v759 = vadd.f32 0.0, %v758
  %v760 = vpop.f32.mrb[0].mxu0
  %761 = vmatprep.mubr.f32.mxu0 %v171
  %762 = vmatmul.mubr.f32.gmra.mrb[0].mxu0 %v170
  %v763 = vpop.f32.mrb[0].mxu0
  %v764 = vadd.f32 0.0, %v763
  %v765 = vpop.f32.mrb[0].mxu0
  %766 = vmatprep.mubr.f32.mxu0 %v174
  %767 = vmatmul.mubr.f32.gmra.mrb[0].mxu0 %v173
  %v768 = vpop.f32.mrb[0].mxu0
  %v769 = vadd.f32 0.0, %v768
  %v770 = vpop.f32.mrb[0].mxu0
  %771 = vmatprep.mubr.f32.mxu0 %v177
  %772 = vmatmul.mubr.f32.gmra.mrb[0].mxu0 %v176
  %v773 = vpop.f32.mrb[0].mxu0
  %v774 = vadd.f32 0.0, %v773
  %v775 = vpop.f32.mrb[0].mxu0
  %776 = vmatprep.mubr.f32.mxu0 %v180
  %777 = vmatmul.mubr.f32.gmra.mrb[0].mxu0 %v179
  %v778 = vpop.f32.mrb[0].mxu0
  %v779 = vadd.f32 0.0, %v778
  %v780 = vpop.f32.mrb[0].mxu0
  %781 = vmatprep.mubr.f32.mxu0 %v183
  %782 = vmatmul.mubr.f32.gmra.mrb[0].mxu0 %v182
  %v783 = vpop.f32.mrb[0].mxu0
  %v784 = vadd.f32 0.0, %v783
  %v785 = vpop.f32.mrb[0].mxu0
  %786 = vmatprep.mubr.f32.mxu0 %v186
  %787 = vmatmul.mubr.f32.gmra.mrb[0].mxu0 %v185
  %v788 = vpop.f32.mrb[0].mxu0
  %v789 = vadd.f32 0.0, %v788
  %v790 = vpop.f32.mrb[0].mxu0
  %791 = vmatprep.mubr.f32.mxu0 %v189
  %792 = vmatmul.mubr.f32.gmra.mrb[0].mxu0 %v188
  %v793 = vpop.f32.mrb[0].mxu0
  %v794 = vadd.f32 0.0, %v793
  %v795 = vpop.f32.mrb[0].mxu0
  %796 = vmatprep.mubr.f32.mxu0 %v192
  %797 = vmatmul.mubr.f32.gmra.mrb[0].mxu0 %v191
  %v798 = vpop.f32.mrb[0].mxu0
  %v799 = vadd.f32 0.0, %v798
  %v800 = vpop.f32.mrb[0].mxu0
  %801 = vmatprep.mubr.f32.mxu0 %v195
  %802 = vmatmul.mubr.f32.gmra.mrb[0].mxu0 %v194
  %v803 = vpop.f32.mrb[0].mxu0
  %v804 = vadd.f32 0.0, %v803
  %v805 = vpop.f32.mrb[0].mxu0
  %806 = vmatprep.mubr.f32.mxu0 %v198
  %807 = vmatmul.mubr.f32.gmra.mrb[0].mxu0 %v197
  %v808 = vpop.f32.mrb[0].mxu0
  %v809 = vadd.f32 0.0, %v808
  %v810 = vpop.f32.mrb[0].mxu0
  %811 = vmatprep.mubr.f32.mxu0 %v201
  %812 = vmatmul.mubr.f32.gmra.mrb[0].mxu0 %v200
  %v813 = vpop.f32.mrb[0].mxu0
  %v814 = vadd.f32 0.0, %v813
  %v815 = vpop.f32.mrb[0].mxu0
  %816 = vdwg.mxu0
  %817 = vmatprep.subr.mxu0 0.0
  %818 = vmatpush1.msra.mxu0 %v235
  %819 = vmatprep.subr.mxu0 0.0
  %820 = vmatpush1.msra.mxu0 %v236
  %821 = vmatprep.subr.mxu0 0.0
  %822 = vmatpush1.msra.mxu0 %v237
  %823 = vmatprep.subr.mxu0 0.0
  %824 = vmatpush1.msra.mxu0 %v238
  %825 = vmatprep.subr.mxu0 0.0
  %826 = vmatpush1.msra.mxu0 0.0
  %827 = vmatprep.subr.mxu0 0.0
  %828 = vmatpush1.msra.mxu0 0.0
  %829 = vmatprep.subr.mxu0 0.0
  %830 = vmatpush1.msra.mxu0 0.0
  %831 = vmatprep.subr.mxu0 0.0
  %832 = vmatpush1.msra.mxu0 0.0
  %833 = vmatprep.subr.mxu0 0.0
  %834 = vmatpush1.msra.mxu0 0.0
  %835 = vmatprep.subr.mxu0 0.0
  %836 = vmatpush1.msra.mxu0 0.0
  %837 = vmatprep.subr.mxu0 0.0
  %838 = vmatpush1.msra.mxu0 0.0
  %839 = vmatprep.subr.mxu0 0.0
  %840 = vmatpush1.msra.mxu0 0.0
  %841 = vmatprep.subr.mxu0 0.0
  %842 = vmatpush1.msra.mxu0 0.0
  %843 = vmatprep.subr.mxu0 0.0
  %844 = vmatpush1.msra.mxu0 0.0
  %845 = vmatprep.subr.mxu0 0.0
  %846 = vmatpush1.msra.mxu0 0.0
  %847 = vmatprep.subr.mxu0 0.0
  %848 = vmatpush1.msra.mxu0 0.0
  %849 = vmatprep.subr.mxu0 0.0
  %850 = vmatpush1.msra.mxu0 0.0
  %851 = vmatprep.subr.mxu0 0.0
  %852 = vmatpush1.msra.mxu0 0.0
  %853 = vmatprep.subr.mxu0 0.0
  %854 = vmatpush1.msra.mxu0 0.0
  %855 = vmatprep.subr.mxu0 0.0
  %856 = vmatpush1.msra.mxu0 0.0
  %857 = vmatprep.subr.mxu0 0.0
  %858 = vmatpush1.msra.mxu0 0.0
  %859 = vmatprep.subr.mxu0 0.0
  %860 = vmatpush1.msra.mxu0 0.0
  %861 = vmatprep.subr.mxu0 0.0
  %862 = vmatpush1.msra.mxu0 0.0
  %863 = vmatprep.subr.mxu0 0.0
  %864 = vmatpush1.msra.mxu0 0.0
  %865 = vmatprep.subr.mxu0 0.0
  %866 = vmatpush1.msra.mxu0 0.0
  %867 = vmatprep.subr.mxu0 0.0
  %868 = vmatpush1.msra.mxu0 0.0
  %869 = vmatprep.subr.mxu0 0.0
  %870 = vmatpush1.msra.mxu0 0.0
  %871 = vmatprep.subr.mxu0 0.0
  %872 = vmatpush1.msra.mxu0 0.0
  %873 = vmatprep.subr.mxu0 0.0
  %874 = vmatpush1.msra.mxu0 0.0
  %875 = vmatprep.subr.mxu0 0.0
  %876 = vmatpush1.msra.mxu0 0.0
  %877 = vmatprep.subr.mxu0 0.0
  %878 = vmatpush1.msra.mxu0 0.0
  %879 = vmatprep.subr.mxu0 0.0
  %880 = vmatpush1.msra.mxu0 0.0
  %881 = vmatprep.mubr.f32.mxu0 0.0
  %882 = vmatmul.mubr.f32.gmra.mrb[0].mxu0 %v241
  %v883 = vpop.f32.mrb[0].mxu0
  %v884 = vadd.f32 %v499, %v883
  %v885 = vpop.f32.mrb[0].mxu0
  %886 = vmatprep.mubr.f32.mxu0 0.0
  %887 = vmatmul.mubr.f32.gmra.mrb[0].mxu0 %v244
  %v888 = vpop.f32.mrb[0].mxu0
  %v889 = vadd.f32 %v504, %v888
  %v890 = vpop.f32.mrb[0].mxu0
  %891 = vmatprep.mubr.f32.mxu0 0.0
  %892 = vmatmul.mubr.f32.gmra.mrb[0].mxu0 %v247
  %v893 = vpop.f32.mrb[0].mxu0
  %v894 = vadd.f32 %v509, %v893
  %v895 = vpop.f32.mrb[0].mxu0
  %896 = vmatprep.mubr.f32.mxu0 0.0
  %897 = vmatmul.mubr.f32.gmra.mrb[0].mxu0 %v250
  %v898 = vpop.f32.mrb[0].mxu0
  %v899 = vadd.f32 %v514, %v898
  %v900 = vpop.f32.mrb[0].mxu0
  %901 = vmatprep.mubr.f32.mxu0 0.0
  %902 = vmatmul.mubr.f32.gmra.mrb[0].mxu0 %v253
  %v903 = vpop.f32.mrb[0].mxu0
  %v904 = vadd.f32 %v519, %v903
  %v905 = vpop.f32.mrb[0].mxu0
  %906 = vmatprep.mubr.f32.mxu0 0.0
  %907 = vmatmul.mubr.f32.gmra.mrb[0].mxu0 %v256
  %v908 = vpop.f32.mrb[0].mxu0
  %v909 = vadd.f32 %v524, %v908
  %v910 = vpop.f32.mrb[0].mxu0
  %911 = vmatprep.mubr.f32.mxu0 0.0
  %912 = vmatmul.mubr.f32.gmra.mrb[0].mxu0 %v259
  %v913 = vpop.f32.mrb[0].mxu0
  %v914 = vadd.f32 %v529, %v913
  %v915 = vpop.f32.mrb[0].mxu0
  %916 = vmatprep.mubr.f32.mxu0 0.0
  %917 = vmatmul.mubr.f32.gmra.mrb[0].mxu0 %v262
  %v918 = vpop.f32.mrb[0].mxu0
  %v919 = vadd.f32 %v534, %v918
  %v920 = vpop.f32.mrb[0].mxu0
  %921 = vmatprep.mubr.f32.mxu0 0.0
  %922 = vmatmul.mubr.f32.gmra.mrb[0].mxu0 %v265
  %v923 = vpop.f32.mrb[0].mxu0
  %v924 = vadd.f32 %v539, %v923
  %v925 = vpop.f32.mrb[0].mxu0
  %926 = vmatprep.mubr.f32.mxu0 0.0
  %927 = vmatmul.mubr.f32.gmra.mrb[0].mxu0 %v268
  %v928 = vpop.f32.mrb[0].mxu0
  %v929 = vadd.f32 %v544, %v928
  %v930 = vpop.f32.mrb[0].mxu0
  %931 = vmatprep.mubr.f32.mxu0 0.0
  %932 = vmatmul.mubr.f32.gmra.mrb[0].mxu0 %v271
  %v933 = vpop.f32.mrb[0].mxu0
  %v934 = vadd.f32 %v549, %v933
  %v935 = vpop.f32.mrb[0].mxu0
  %936 = vmatprep.mubr.f32.mxu0 0.0
  %937 = vmatmul.mubr.f32.gmra.mrb[0].mxu0 %v274
  %v938 = vpop.f32.mrb[0].mxu0
  %v939 = vadd.f32 %v554, %v938
  %v940 = vpop.f32.mrb[0].mxu0
  %941 = vmatprep.mubr.f32.mxu0 0.0
  %942 = vmatmul.mubr.f32.gmra.mrb[0].mxu0 %v277
  %v943 = vpop.f32.mrb[0].mxu0
  %v944 = vadd.f32 %v559, %v943
  %v945 = vpop.f32.mrb[0].mxu0
  %946 = vmatprep.mubr.f32.mxu0 0.0
  %947 = vmatmul.mubr.f32.gmra.mrb[0].mxu0 %v280
  %v948 = vpop.f32.mrb[0].mxu0
  %v949 = vadd.f32 %v564, %v948
  %v950 = vpop.f32.mrb[0].mxu0
  %951 = vmatprep.mubr.f32.mxu0 0.0
  %952 = vmatmul.mubr.f32.gmra.mrb[0].mxu0 %v283
  %v953 = vpop.f32.mrb[0].mxu0
  %v954 = vadd.f32 %v569, %v953
  %v955 = vpop.f32.mrb[0].mxu0
  %956 = vmatprep.mubr.f32.mxu0 0.0
  %957 = vmatmul.mubr.f32.gmra.mrb[0].mxu0 %v286
  %v958 = vpop.f32.mrb[0].mxu0
  %v959 = vadd.f32 %v574, %v958
  %v960 = vpop.f32.mrb[0].mxu0
  %961 = vmatprep.mubr.f32.mxu0 0.0
  %962 = vmatmul.mubr.f32.gmra.mrb[0].mxu0 %v289
  %v963 = vpop.f32.mrb[0].mxu0
  %v964 = vadd.f32 %v579, %v963
  %v965 = vpop.f32.mrb[0].mxu0
  %966 = vmatprep.mubr.f32.mxu0 0.0
  %967 = vmatmul.mubr.f32.gmra.mrb[0].mxu0 %v292
  %v968 = vpop.f32.mrb[0].mxu0
  %v969 = vadd.f32 %v584, %v968
  %v970 = vpop.f32.mrb[0].mxu0
  %971 = vmatprep.mubr.f32.mxu0 0.0
  %972 = vmatmul.mubr.f32.gmra.mrb[0].mxu0 %v295
  %v973 = vpop.f32.mrb[0].mxu0
  %v974 = vadd.f32 %v589, %v973
  %v975 = vpop.f32.mrb[0].mxu0
  %976 = vmatprep.mubr.f32.mxu0 0.0
  %977 = vmatmul.mubr.f32.gmra.mrb[0].mxu0 %v298
  %v978 = vpop.f32.mrb[0].mxu0
  %v979 = vadd.f32 %v594, %v978
  %v980 = vpop.f32.mrb[0].mxu0
  %981 = vmatprep.mubr.f32.mxu0 0.0
  %982 = vmatmul.mubr.f32.gmra.mrb[0].mxu0 %v301
  %v983 = vpop.f32.mrb[0].mxu0
  %v984 = vadd.f32 %v599, %v983
  %v985 = vpop.f32.mrb[0].mxu0
  %986 = vmatprep.mubr.f32.mxu0 0.0
  %987 = vmatmul.mubr.f32.gmra.mrb[0].mxu0 %v304
  %v988 = vpop.f32.mrb[0].mxu0
  %v989 = vadd.f32 %v604, %v988
  %v990 = vpop.f32.mrb[0].mxu0
  %991 = vmatprep.mubr.f32.mxu0 0.0
  %992 = vmatmul.mubr.f32.gmra.mrb[0].mxu0 %v307
  %v993 = vpop.f32.mrb[0].mxu0
  %v994 = vadd.f32 %v609, %v993
  %v995 = vpop.f32.mrb[0].mxu0
  %996 = vmatprep.mubr.f32.mxu0 0.0
  %997 = vmatmul.mubr.f32.gmra.mrb[0].mxu0 %v310
  %v998 = vpop.f32.mrb[0].mxu0
  %v999 = vadd.f32 %v614, %v998
  %v1000 = vpop.f32.mrb[0].mxu0
  %1001 = vmatprep.mubr.f32.mxu0 0.0
  %1002 = vmatmul.mubr.f32.gmra.mrb[0].mxu0 %v313
  %v1003 = vpop.f32.mrb[0].mxu0
  %v1004 = vadd.f32 %v619, %v1003
  %v1005 = vpop.f32.mrb[0].mxu0
  %1006 = vmatprep.mubr.f32.mxu0 0.0
  %1007 = vmatmul.mubr.f32.gmra.mrb[0].mxu0 %v316
  %v1008 = vpop.f32.mrb[0].mxu0
  %v1009 = vadd.f32 %v624, %v1008
  %v1010 = vpop.f32.mrb[0].mxu0
  %1011 = vmatprep.mubr.f32.mxu0 0.0
  %1012 = vmatmul.mubr.f32.gmra.mrb[0].mxu0 %v319
  %v1013 = vpop.f32.mrb[0].mxu0
  %v1014 = vadd.f32 %v629, %v1013
  %v1015 = vpop.f32.mrb[0].mxu0
  %1016 = vmatprep.mubr.f32.mxu0 0.0
  %1017 = vmatmul.mubr.f32.gmra.mrb[0].mxu0 %v322
  %v1018 = vpop.f32.mrb[0].mxu0
  %v1019 = vadd.f32 %v634, %v1018
  %v1020 = vpop.f32.mrb[0].mxu0
  %1021 = vmatprep.mubr.f32.mxu0 0.0
  %1022 = vmatmul.mubr.f32.gmra.mrb[0].mxu0 %v325
  %v1023 = vpop.f32.mrb[0].mxu0
  %v1024 = vadd.f32 %v639, %v1023
  %v1025 = vpop.f32.mrb[0].mxu0
  %1026 = vmatprep.mubr.f32.mxu0 0.0
  %1027 = vmatmul.mubr.f32.gmra.mrb[0].mxu0 %v328
  %v1028 = vpop.f32.mrb[0].mxu0
  %v1029 = vadd.f32 %v644, %v1028
  %v1030 = vpop.f32.mrb[0].mxu0
  %1031 = vmatprep.mubr.f32.mxu0 0.0
  %1032 = vmatmul.mubr.f32.gmra.mrb[0].mxu0 %v331
  %v1033 = vpop.f32.mrb[0].mxu0
  %v1034 = vadd.f32 %v649, %v1033
  %v1035 = vpop.f32.mrb[0].mxu0
  %1036 = vmatprep.mubr.f32.mxu0 0.0
  %1037 = vmatmul.mubr.f32.gmra.mrb[0].mxu0 %v334
  %v1038 = vpop.f32.mrb[0].mxu0
  %v1039 = vadd.f32 %v654, %v1038
  %v1040 = vpop.f32.mrb[0].mxu0
  %1041 = vmatprep.mubr.f32.mxu0 0.0
  %1042 = vmatmul.mubr.f32.gmra.mrb[0].mxu0 %v337
  %v1043 = vpop.f32.mrb[0].mxu0
  %v1044 = vadd.f32 %v659, %v1043
  %v1045 = vpop.f32.mrb[0].mxu0
  %1046 = vmatprep.mubr.f32.mxu0 0.0
  %1047 = vmatmul.mubr.f32.gmra.mrb[0].mxu0 %v340
  %v1048 = vpop.f32.mrb[0].mxu0
  %v1049 = vadd.f32 %v664, %v1048
  %v1050 = vpop.f32.mrb[0].mxu0
  %1051 = vmatprep.mubr.f32.mxu0 0.0
  %1052 = vmatmul.mubr.f32.gmra.mrb[0].mxu0 %v343
  %v1053 = vpop.f32.mrb[0].mxu0
  %v1054 = vadd.f32 %v669, %v1053
  %v1055 = vpop.f32.mrb[0].mxu0
  %1056 = vmatprep.mubr.f32.mxu0 0.0
  %1057 = vmatmul.mubr.f32.gmra.mrb[0].mxu0 %v346
  %v1058 = vpop.f32.mrb[0].mxu0
  %v1059 = vadd.f32 %v674, %v1058
  %v1060 = vpop.f32.mrb[0].mxu0
  %1061 = vmatprep.mubr.f32.mxu0 0.0
  %1062 = vmatmul.mubr.f32.gmra.mrb[0].mxu0 %v349
  %v1063 = vpop.f32.mrb[0].mxu0
  %v1064 = vadd.f32 %v679, %v1063
  %v1065 = vpop.f32.mrb[0].mxu0
  %1066 = vmatprep.mubr.f32.mxu0 0.0
  %1067 = vmatmul.mubr.f32.gmra.mrb[0].mxu0 %v352
  %v1068 = vpop.f32.mrb[0].mxu0
  %v1069 = vadd.f32 %v684, %v1068
  %v1070 = vpop.f32.mrb[0].mxu0
  %1071 = vmatprep.mubr.f32.mxu0 0.0
  %1072 = vmatmul.mubr.f32.gmra.mrb[0].mxu0 %v355
  %v1073 = vpop.f32.mrb[0].mxu0
  %v1074 = vadd.f32 %v689, %v1073
  %v1075 = vpop.f32.mrb[0].mxu0
  %1076 = vmatprep.mubr.f32.mxu0 0.0
  %1077 = vmatmul.mubr.f32.gmra.mrb[0].mxu0 %v358
  %v1078 = vpop.f32.mrb[0].mxu0
  %v1079 = vadd.f32 %v694, %v1078
  %v1080 = vpop.f32.mrb[0].mxu0
  %1081 = vmatprep.mubr.f32.mxu0 0.0
  %1082 = vmatmul.mubr.f32.gmra.mrb[0].mxu0 %v361
  %v1083 = vpop.f32.mrb[0].mxu0
  %v1084 = vadd.f32 %v699, %v1083
  %v1085 = vpop.f32.mrb[0].mxu0
  %1086 = vmatprep.mubr.f32.mxu0 0.0
  %1087 = vmatmul.mubr.f32.gmra.mrb[0].mxu0 %v364
  %v1088 = vpop.f32.mrb[0].mxu0
  %v1089 = vadd.f32 %v704, %v1088
  %v1090 = vpop.f32.mrb[0].mxu0
  %1091 = vmatprep.mubr.f32.mxu0 0.0
  %1092 = vmatmul.mubr.f32.gmra.mrb[0].mxu0 %v367
  %v1093 = vpop.f32.mrb[0].mxu0
  %v1094 = vadd.f32 %v709, %v1093
  %v1095 = vpop.f32.mrb[0].mxu0
  %1096 = vmatprep.mubr.f32.mxu0 0.0
  %1097 = vmatmul.mubr.f32.gmra.mrb[0].mxu0 %v370
  %v1098 = vpop.f32.mrb[0].mxu0
  %v1099 = vadd.f32 %v714, %v1098
  %v1100 = vpop.f32.mrb[0].mxu0
  %1101 = vmatprep.mubr.f32.mxu0 0.0
  %1102 = vmatmul.mubr.f32.gmra.mrb[0].mxu0 %v373
  %v1103 = vpop.f32.mrb[0].mxu0
  %v1104 = vadd.f32 %v719, %v1103
  %v1105 = vpop.f32.mrb[0].mxu0
  %1106 = vmatprep.mubr.f32.mxu0 0.0
  %1107 = vmatmul.mubr.f32.gmra.mrb[0].mxu0 %v376
  %v1108 = vpop.f32.mrb[0].mxu0
  %v1109 = vadd.f32 %v724, %v1108
  %v1110 = vpop.f32.mrb[0].mxu0
  %1111 = vmatprep.mubr.f32.mxu0 0.0
  %1112 = vmatmul.mubr.f32.gmra.mrb[0].mxu0 %v379
  %v1113 = vpop.f32.mrb[0].mxu0
  %v1114 = vadd.f32 %v729, %v1113
  %v1115 = vpop.f32.mrb[0].mxu0
  %1116 = vmatprep.mubr.f32.mxu0 0.0
  %1117 = vmatmul.mubr.f32.gmra.mrb[0].mxu0 %v382
  %v1118 = vpop.f32.mrb[0].mxu0
  %v1119 = vadd.f32 %v734, %v1118
  %v1120 = vpop.f32.mrb[0].mxu0
  %1121 = vmatprep.mubr.f32.mxu0 0.0
  %1122 = vmatmul.mubr.f32.gmra.mrb[0].mxu0 %v385
  %v1123 = vpop.f32.mrb[0].mxu0
  %v1124 = vadd.f32 %v739, %v1123
  %v1125 = vpop.f32.mrb[0].mxu0
  %1126 = vmatprep.mubr.f32.mxu0 0.0
  %1127 = vmatmul.mubr.f32.gmra.mrb[0].mxu0 %v388
  %v1128 = vpop.f32.mrb[0].mxu0
  %v1129 = vadd.f32 %v744, %v1128
  %v1130 = vpop.f32.mrb[0].mxu0
  %1131 = vmatprep.mubr.f32.mxu0 0.0
  %1132 = vmatmul.mubr.f32.gmra.mrb[0].mxu0 %v391
  %v1133 = vpop.f32.mrb[0].mxu0
  %v1134 = vadd.f32 %v749, %v1133
  %v1135 = vpop.f32.mrb[0].mxu0
  %1136 = vmatprep.mubr.f32.mxu0 0.0
  %1137 = vmatmul.mubr.f32.gmra.mrb[0].mxu0 %v394
  %v1138 = vpop.f32.mrb[0].mxu0
  %v1139 = vadd.f32 %v754, %v1138
  %v1140 = vpop.f32.mrb[0].mxu0
  %1141 = vmatprep.mubr.f32.mxu0 0.0
  %1142 = vmatmul.mubr.f32.gmra.mrb[0].mxu0 %v397
  %v1143 = vpop.f32.mrb[0].mxu0
  %v1144 = vadd.f32 %v759, %v1143
  %v1145 = vpop.f32.mrb[0].mxu0
  %1146 = vmatprep.mubr.f32.mxu0 0.0
  %1147 = vmatmul.mubr.f32.gmra.mrb[0].mxu0 %v400
  %v1148 = vpop.f32.mrb[0].mxu0
  %v1149 = vadd.f32 %v764, %v1148
  %v1150 = vpop.f32.mrb[0].mxu0
  %1151 = vmatprep.mubr.f32.mxu0 0.0
  %1152 = vmatmul.mubr.f32.gmra.mrb[0].mxu0 %v403
  %v1153 = vpop.f32.mrb[0].mxu0
  %v1154 = vadd.f32 %v769, %v1153
  %v1155 = vpop.f32.mrb[0].mxu0
  %1156 = vmatprep.mubr.f32.mxu0 0.0
  %1157 = vmatmul.mubr.f32.gmra.mrb[0].mxu0 %v406
  %v1158 = vpop.f32.mrb[0].mxu0
  %v1159 = vadd.f32 %v774, %v1158
  %v1160 = vpop.f32.mrb[0].mxu0
  %1161 = vmatprep.mubr.f32.mxu0 0.0
  %1162 = vmatmul.mubr.f32.gmra.mrb[0].mxu0 %v409
  %v1163 = vpop.f32.mrb[0].mxu0
  %v1164 = vadd.f32 %v779, %v1163
  %v1165 = vpop.f32.mrb[0].mxu0
  %1166 = vmatprep.mubr.f32.mxu0 0.0
  %1167 = vmatmul.mubr.f32.gmra.mrb[0].mxu0 %v412
  %v1168 = vpop.f32.mrb[0].mxu0
  %v1169 = vadd.f32 %v784, %v1168
  %v1170 = vpop.f32.mrb[0].mxu0
  %1171 = vmatprep.mubr.f32.mxu0 0.0
  %1172 = vmatmul.mubr.f32.gmra.mrb[0].mxu0 %v415
  %v1173 = vpop.f32.mrb[0].mxu0
  %v1174 = vadd.f32 %v789, %v1173
  %v1175 = vpop.f32.mrb[0].mxu0
  %1176 = vmatprep.mubr.f32.mxu0 0.0
  %1177 = vmatmul.mubr.f32.gmra.mrb[0].mxu0 %v418
  %v1178 = vpop.f32.mrb[0].mxu0
  %v1179 = vadd.f32 %v794, %v1178
  %v1180 = vpop.f32.mrb[0].mxu0
  %1181 = vmatprep.mubr.f32.mxu0 0.0
  %1182 = vmatmul.mubr.f32.gmra.mrb[0].mxu0 %v421
  %v1183 = vpop.f32.mrb[0].mxu0
  %v1184 = vadd.f32 %v799, %v1183
  %v1185 = vpop.f32.mrb[0].mxu0
  %1186 = vmatprep.mubr.f32.mxu0 0.0
  %1187 = vmatmul.mubr.f32.gmra.mrb[0].mxu0 %v424
  %v1188 = vpop.f32.mrb[0].mxu0
  %v1189 = vadd.f32 %v804, %v1188
  %v1190 = vpop.f32.mrb[0].mxu0
  %1191 = vmatprep.mubr.f32.mxu0 0.0
  %1192 = vmatmul.mubr.f32.gmra.mrb[0].mxu0 %v427
  %v1193 = vpop.f32.mrb[0].mxu0
  %v1194 = vadd.f32 %v809, %v1193
  %v1195 = vpop.f32.mrb[0].mxu0
  %1196 = vmatprep.mubr.f32.mxu0 0.0
  %1197 = vmatmul.mubr.f32.gmra.mrb[0].mxu0 %v430
  %v1198 = vpop.f32.mrb[0].mxu0
  %v1199 = vadd.f32 %v814, %v1198
  %v1200 = vpop.f32.mrb[0].mxu0
  %1201 = vdwg.mxu0
  %v1202 = vxor.u32 %v884, 2147483648
  %v1203 = vxor.u32 %v889, 2147483648
  %v1204 = vxor.u32 %v894, 2147483648
  %v1205 = vxor.u32 %v899, 2147483648
  %v1206 = vxor.u32 %v904, 2147483648
  %v1207 = vxor.u32 %v909, 2147483648
  %v1208 = vxor.u32 %v914, 2147483648
  %v1209 = vxor.u32 %v919, 2147483648
  %v1210 = vxor.u32 %v924, 2147483648
  %v1211 = vxor.u32 %v929, 2147483648
  %v1212 = vxor.u32 %v934, 2147483648
  %v1213 = vxor.u32 %v939, 2147483648
  %v1214 = vxor.u32 %v944, 2147483648
  %v1215 = vxor.u32 %v949, 2147483648
  %v1216 = vxor.u32 %v954, 2147483648
  %v1217 = vxor.u32 %v959, 2147483648
  %v1218 = vxor.u32 %v964, 2147483648
  %v1219 = vxor.u32 %v969, 2147483648
  %v1220 = vxor.u32 %v974, 2147483648
  %v1221 = vxor.u32 %v979, 2147483648
  %v1222 = vxor.u32 %v984, 2147483648
  %v1223 = vxor.u32 %v989, 2147483648
  %v1224 = vxor.u32 %v994, 2147483648
  %v1225 = vxor.u32 %v999, 2147483648
  %v1226 = vxor.u32 %v1004, 2147483648
  %v1227 = vxor.u32 %v1009, 2147483648
  %v1228 = vxor.u32 %v1014, 2147483648
  %v1229 = vxor.u32 %v1019, 2147483648
  %v1230 = vxor.u32 %v1024, 2147483648
  %v1231 = vxor.u32 %v1029, 2147483648
  %v1232 = vxor.u32 %v1034, 2147483648
  %v1233 = vxor.u32 %v1039, 2147483648
  %v1234 = vxor.u32 %v1044, 2147483648
  %v1235 = vxor.u32 %v1049, 2147483648
  %v1236 = vxor.u32 %v1054, 2147483648
  %v1237 = vxor.u32 %v1059, 2147483648
  %v1238 = vxor.u32 %v1064, 2147483648
  %v1239 = vxor.u32 %v1069, 2147483648
  %v1240 = vxor.u32 %v1074, 2147483648
  %v1241 = vxor.u32 %v1079, 2147483648
  %v1242 = vxor.u32 %v1084, 2147483648
  %v1243 = vxor.u32 %v1089, 2147483648
  %v1244 = vxor.u32 %v1094, 2147483648
  %v1245 = vxor.u32 %v1099, 2147483648
  %v1246 = vxor.u32 %v1104, 2147483648
  %v1247 = vxor.u32 %v1109, 2147483648
  %v1248 = vxor.u32 %v1114, 2147483648
  %v1249 = vxor.u32 %v1119, 2147483648
  %v1250 = vxor.u32 %v1124, 2147483648
  %v1251 = vxor.u32 %v1129, 2147483648
  %v1252 = vxor.u32 %v1134, 2147483648
  %v1253 = vxor.u32 %v1139, 2147483648
  %v1254 = vxor.u32 %v1144, 2147483648
  %v1255 = vxor.u32 %v1149, 2147483648
  %v1256 = vxor.u32 %v1154, 2147483648
  %v1257 = vxor.u32 %v1159, 2147483648
  %v1258 = vxor.u32 %v1164, 2147483648
  %v1259 = vxor.u32 %v1169, 2147483648
  %v1260 = vxor.u32 %v1174, 2147483648
  %v1261 = vxor.u32 %v1179, 2147483648
  %v1262 = vxor.u32 %v1184, 2147483648
  %v1263 = vxor.u32 %v1189, 2147483648
  %v1264 = vxor.u32 %v1194, 2147483648
  %v1265 = vxor.u32 %v1199, 2147483648
  %v1266 = vmul.f32 %v1202, 1.442695
  %v1267 = vpow.pop %v1266
  %v1268 = vmul.f32 %v1203, 1.442695
  %v1269 = vpow.pop %v1268
  %v1270 = vmul.f32 %v1204, 1.442695
  %v1271 = vpow.pop %v1270
  %v1272 = vmul.f32 %v1205, 1.442695
  %v1273 = vpow.pop %v1272
  %v1274 = vmul.f32 %v1206, 1.442695
  %v1275 = vpow.pop %v1274
  %v1276 = vmul.f32 %v1207, 1.442695
  %v1277 = vpow.pop %v1276
  %v1278 = vmul.f32 %v1208, 1.442695
  %v1279 = vpow.pop %v1278
  %v1280 = vmul.f32 %v1209, 1.442695
  %v1281 = vpow.pop %v1280
  %v1282 = vmul.f32 %v1210, 1.442695
  %v1283 = vpow.pop %v1282
  %v1284 = vmul.f32 %v1211, 1.442695
  %v1285 = vpow.pop %v1284
  %v1286 = vmul.f32 %v1212, 1.442695
  %v1287 = vpow.pop %v1286
  %v1288 = vmul.f32 %v1213, 1.442695
  %v1289 = vpow.pop %v1288
  %v1290 = vmul.f32 %v1214, 1.442695
  %v1291 = vpow.pop %v1290
  %v1292 = vmul.f32 %v1215, 1.442695
  %v1293 = vpow.pop %v1292
  %v1294 = vmul.f32 %v1216, 1.442695
  %v1295 = vpow.pop %v1294
  %v1296 = vmul.f32 %v1217, 1.442695
  %v1297 = vpow.pop %v1296
  %v1298 = vmul.f32 %v1218, 1.442695
  %v1299 = vpow.pop %v1298
  %v1300 = vmul.f32 %v1219, 1.442695
  %v1301 = vpow.pop %v1300
  %v1302 = vmul.f32 %v1220, 1.442695
  %v1303 = vpow.pop %v1302
  %v1304 = vmul.f32 %v1221, 1.442695
  %v1305 = vpow.pop %v1304
  %v1306 = vmul.f32 %v1222, 1.442695
  %v1307 = vpow.pop %v1306
  %v1308 = vmul.f32 %v1223, 1.442695
  %v1309 = vpow.pop %v1308
  %v1310 = vmul.f32 %v1224, 1.442695
  %v1311 = vpow.pop %v1310
  %v1312 = vmul.f32 %v1225, 1.442695
  %v1313 = vpow.pop %v1312
  %v1314 = vmul.f32 %v1226, 1.442695
  %v1315 = vpow.pop %v1314
  %v1316 = vmul.f32 %v1227, 1.442695
  %v1317 = vpow.pop %v1316
  %v1318 = vmul.f32 %v1228, 1.442695
  %v1319 = vpow.pop %v1318
  %v1320 = vmul.f32 %v1229, 1.442695
  %v1321 = vpow.pop %v1320
  %v1322 = vmul.f32 %v1230, 1.442695
  %v1323 = vpow.pop %v1322
  %v1324 = vmul.f32 %v1231, 1.442695
  %v1325 = vpow.pop %v1324
  %v1326 = vmul.f32 %v1232, 1.442695
  %v1327 = vpow.pop %v1326
  %v1328 = vmul.f32 %v1233, 1.442695
  %v1329 = vpow.pop %v1328
  %v1330 = vmul.f32 %v1234, 1.442695
  %v1331 = vpow.pop %v1330
  %v1332 = vmul.f32 %v1235, 1.442695
  %v1333 = vpow.pop %v1332
  %v1334 = vmul.f32 %v1236, 1.442695
  %v1335 = vpow.pop %v1334
  %v1336 = vmul.f32 %v1237, 1.442695
  %v1337 = vpow.pop %v1336
  %v1338 = vmul.f32 %v1238, 1.442695
  %v1339 = vpow.pop %v1338
  %v1340 = vmul.f32 %v1239, 1.442695
  %v1341 = vpow.pop %v1340
  %v1342 = vmul.f32 %v1240, 1.442695
  %v1343 = vpow.pop %v1342
  %v1344 = vmul.f32 %v1241, 1.442695
  %v1345 = vpow.pop %v1344
  %v1346 = vmul.f32 %v1242, 1.442695
  %v1347 = vpow.pop %v1346
  %v1348 = vmul.f32 %v1243, 1.442695
  %v1349 = vpow.pop %v1348
  %v1350 = vmul.f32 %v1244, 1.442695
  %v1351 = vpow.pop %v1350
  %v1352 = vmul.f32 %v1245, 1.442695
  %v1353 = vpow.pop %v1352
  %v1354 = vmul.f32 %v1246, 1.442695
  %v1355 = vpow.pop %v1354
  %v1356 = vmul.f32 %v1247, 1.442695
  %v1357 = vpow.pop %v1356
  %v1358 = vmul.f32 %v1248, 1.442695
  %v1359 = vpow.pop %v1358
  %v1360 = vmul.f32 %v1249, 1.442695
  %v1361 = vpow.pop %v1360
  %v1362 = vmul.f32 %v1250, 1.442695
  %v1363 = vpow.pop %v1362
  %v1364 = vmul.f32 %v1251, 1.442695
  %v1365 = vpow.pop %v1364
  %v1366 = vmul.f32 %v1252, 1.442695
  %v1367 = vpow.pop %v1366
  %v1368 = vmul.f32 %v1253, 1.442695
  %v1369 = vpow.pop %v1368
  %v1370 = vmul.f32 %v1254, 1.442695
  %v1371 = vpow.pop %v1370
  %v1372 = vmul.f32 %v1255, 1.442695
  %v1373 = vpow.pop %v1372
  %v1374 = vmul.f32 %v1256, 1.442695
  %v1375 = vpow.pop %v1374
  %v1376 = vmul.f32 %v1257, 1.442695
  %v1377 = vpow.pop %v1376
  %v1378 = vmul.f32 %v1258, 1.442695
  %v1379 = vpow.pop %v1378
  %v1380 = vmul.f32 %v1259, 1.442695
  %v1381 = vpow.pop %v1380
  %v1382 = vmul.f32 %v1260, 1.442695
  %v1383 = vpow.pop %v1382
  %v1384 = vmul.f32 %v1261, 1.442695
  %v1385 = vpow.pop %v1384
  %v1386 = vmul.f32 %v1262, 1.442695
  %v1387 = vpow.pop %v1386
  %v1388 = vmul.f32 %v1263, 1.442695
  %v1389 = vpow.pop %v1388
  %v1390 = vmul.f32 %v1264, 1.442695
  %v1391 = vpow.pop %v1390
  %v1392 = vmul.f32 %v1265, 1.442695
  %v1393 = vpow.pop %v1392
  %v1394 = vadd.f32 %v1267, 1.0
  %v1395 = vadd.f32 %v1269, 1.0
  %v1396 = vadd.f32 %v1271, 1.0
  %v1397 = vadd.f32 %v1273, 1.0
  %v1398 = vadd.f32 %v1275, 1.0
  %v1399 = vadd.f32 %v1277, 1.0
  %v1400 = vadd.f32 %v1279, 1.0
  %v1401 = vadd.f32 %v1281, 1.0
  %v1402 = vadd.f32 %v1283, 1.0
  %v1403 = vadd.f32 %v1285, 1.0
  %v1404 = vadd.f32 %v1287, 1.0
  %v1405 = vadd.f32 %v1289, 1.0
  %v1406 = vadd.f32 %v1291, 1.0
  %v1407 = vadd.f32 %v1293, 1.0
  %v1408 = vadd.f32 %v1295, 1.0
  %v1409 = vadd.f32 %v1297, 1.0
  %v1410 = vadd.f32 %v1299, 1.0
  %v1411 = vadd.f32 %v1301, 1.0
  %v1412 = vadd.f32 %v1303, 1.0
  %v1413 = vadd.f32 %v1305, 1.0
  %v1414 = vadd.f32 %v1307, 1.0
  %v1415 = vadd.f32 %v1309, 1.0
  %v1416 = vadd.f32 %v1311, 1.0
  %v1417 = vadd.f32 %v1313, 1.0
  %v1418 = vadd.f32 %v1315, 1.0
  %v1419 = vadd.f32 %v1317, 1.0
  %v1420 = vadd.f32 %v1319, 1.0
  %v1421 = vadd.f32 %v1321, 1.0
  %v1422 = vadd.f32 %v1323, 1.0
  %v1423 = vadd.f32 %v1325, 1.0
  %v1424 = vadd.f32 %v1327, 1.0
  %v1425 = vadd.f32 %v1329, 1.0
  %v1426 = vadd.f32 %v1331, 1.0
  %v1427 = vadd.f32 %v1333, 1.0
  %v1428 = vadd.f32 %v1335, 1.0
  %v1429 = vadd.f32 %v1337, 1.0
  %v1430 = vadd.f32 %v1339, 1.0
  %v1431 = vadd.f32 %v1341, 1.0
  %v1432 = vadd.f32 %v1343, 1.0
  %v1433 = vadd.f32 %v1345, 1.0
  %v1434 = vadd.f32 %v1347, 1.0
  %v1435 = vadd.f32 %v1349, 1.0
  %v1436 = vadd.f32 %v1351, 1.0
  %v1437 = vadd.f32 %v1353, 1.0
  %v1438 = vadd.f32 %v1355, 1.0
  %v1439 = vadd.f32 %v1357, 1.0
  %v1440 = vadd.f32 %v1359, 1.0
  %v1441 = vadd.f32 %v1361, 1.0
  %v1442 = vadd.f32 %v1363, 1.0
  %v1443 = vadd.f32 %v1365, 1.0
  %v1444 = vadd.f32 %v1367, 1.0
  %v1445 = vadd.f32 %v1369, 1.0
  %v1446 = vadd.f32 %v1371, 1.0
  %v1447 = vadd.f32 %v1373, 1.0
  %v1448 = vadd.f32 %v1375, 1.0
  %v1449 = vadd.f32 %v1377, 1.0
  %v1450 = vadd.f32 %v1379, 1.0
  %v1451 = vadd.f32 %v1381, 1.0
  %v1452 = vadd.f32 %v1383, 1.0
  %v1453 = vadd.f32 %v1385, 1.0
  %v1454 = vadd.f32 %v1387, 1.0
  %v1455 = vadd.f32 %v1389, 1.0
  %v1456 = vadd.f32 %v1391, 1.0
  %v1457 = vadd.f32 %v1393, 1.0
  %v1458 = vrcp.pop %v1394
  %v1459 = vmul.f32 1.0, %v1458
  %v1460 = vrcp.pop %v1395
  %v1461 = vmul.f32 1.0, %v1460
  %v1462 = vrcp.pop %v1396
  %v1463 = vmul.f32 1.0, %v1462
  %v1464 = vrcp.pop %v1397
  %v1465 = vmul.f32 1.0, %v1464
  %v1466 = vrcp.pop %v1398
  %v1467 = vmul.f32 1.0, %v1466
  %v1468 = vrcp.pop %v1399
  %v1469 = vmul.f32 1.0, %v1468
  %v1470 = vrcp.pop %v1400
  %v1471 = vmul.f32 1.0, %v1470
  %v1472 = vrcp.pop %v1401
  %v1473 = vmul.f32 1.0, %v1472
  %v1474 = vrcp.pop %v1402
  %v1475 = vmul.f32 1.0, %v1474
  %v1476 = vrcp.pop %v1403
  %v1477 = vmul.f32 1.0, %v1476
  %v1478 = vrcp.pop %v1404
  %v1479 = vmul.f32 1.0, %v1478
  %v1480 = vrcp.pop %v1405
  %v1481 = vmul.f32 1.0, %v1480
  %v1482 = vrcp.pop %v1406
  %v1483 = vmul.f32 1.0, %v1482
  %v1484 = vrcp.pop %v1407
  %v1485 = vmul.f32 1.0, %v1484
  %v1486 = vrcp.pop %v1408
  %v1487 = vmul.f32 1.0, %v1486
  %v1488 = vrcp.pop %v1409
  %v1489 = vmul.f32 1.0, %v1488
  %v1490 = vrcp.pop %v1410
  %v1491 = vmul.f32 1.0, %v1490
  %v1492 = vrcp.pop %v1411
  %v1493 = vmul.f32 1.0, %v1492
  %v1494 = vrcp.pop %v1412
  %v1495 = vmul.f32 1.0, %v1494
  %v1496 = vrcp.pop %v1413
  %v1497 = vmul.f32 1.0, %v1496
  %v1498 = vrcp.pop %v1414
  %v1499 = vmul.f32 1.0, %v1498
  %v1500 = vrcp.pop %v1415
  %v1501 = vmul.f32 1.0, %v1500
  %v1502 = vrcp.pop %v1416
  %v1503 = vmul.f32 1.0, %v1502
  %v1504 = vrcp.pop %v1417
  %v1505 = vmul.f32 1.0, %v1504
  %v1506 = vrcp.pop %v1418
  %v1507 = vmul.f32 1.0, %v1506
  %v1508 = vrcp.pop %v1419
  %v1509 = vmul.f32 1.0, %v1508
  %v1510 = vrcp.pop %v1420
  %v1511 = vmul.f32 1.0, %v1510
  %v1512 = vrcp.pop %v1421
  %v1513 = vmul.f32 1.0, %v1512
  %v1514 = vrcp.pop %v1422
  %v1515 = vmul.f32 1.0, %v1514
  %v1516 = vrcp.pop %v1423
  %v1517 = vmul.f32 1.0, %v1516
  %v1518 = vrcp.pop %v1424
  %v1519 = vmul.f32 1.0, %v1518
  %v1520 = vrcp.pop %v1425
  %v1521 = vmul.f32 1.0, %v1520
  %v1522 = vrcp.pop %v1426
  %v1523 = vmul.f32 1.0, %v1522
  %v1524 = vrcp.pop %v1427
  %v1525 = vmul.f32 1.0, %v1524
  %v1526 = vrcp.pop %v1428
  %v1527 = vmul.f32 1.0, %v1526
  %v1528 = vrcp.pop %v1429
  %v1529 = vmul.f32 1.0, %v1528
  %v1530 = vrcp.pop %v1430
  %v1531 = vmul.f32 1.0, %v1530
  %v1532 = vrcp.pop %v1431
  %v1533 = vmul.f32 1.0, %v1532
  %v1534 = vrcp.pop %v1432
  %v1535 = vmul.f32 1.0, %v1534
  %v1536 = vrcp.pop %v1433
  %v1537 = vmul.f32 1.0, %v1536
  %v1538 = vrcp.pop %v1434
  %v1539 = vmul.f32 1.0, %v1538
  %v1540 = vrcp.pop %v1435
  %v1541 = vmul.f32 1.0, %v1540
  %v1542 = vrcp.pop %v1436
  %v1543 = vmul.f32 1.0, %v1542
  %v1544 = vrcp.pop %v1437
  %v1545 = vmul.f32 1.0, %v1544
  %v1546 = vrcp.pop %v1438
  %v1547 = vmul.f32 1.0, %v1546
  %v1548 = vrcp.pop %v1439
  %v1549 = vmul.f32 1.0, %v1548
  %v1550 = vrcp.pop %v1440
  %v1551 = vmul.f32 1.0, %v1550
  %v1552 = vrcp.pop %v1441
  %v1553 = vmul.f32 1.0, %v1552
  %v1554 = vrcp.pop %v1442
  %v1555 = vmul.f32 1.0, %v1554
  %v1556 = vrcp.pop %v1443
  %v1557 = vmul.f32 1.0, %v1556
  %v1558 = vrcp.pop %v1444
  %v1559 = vmul.f32 1.0, %v1558
  %v1560 = vrcp.pop %v1445
  %v1561 = vmul.f32 1.0, %v1560
  %v1562 = vrcp.pop %v1446
  %v1563 = vmul.f32 1.0, %v1562
  %v1564 = vrcp.pop %v1447
  %v1565 = vmul.f32 1.0, %v1564
  %v1566 = vrcp.pop %v1448
  %v1567 = vmul.f32 1.0, %v1566
  %v1568 = vrcp.pop %v1449
  %v1569 = vmul.f32 1.0, %v1568
  %v1570 = vrcp.pop %v1450
  %v1571 = vmul.f32 1.0, %v1570
  %v1572 = vrcp.pop %v1451
  %v1573 = vmul.f32 1.0, %v1572
  %v1574 = vrcp.pop %v1452
  %v1575 = vmul.f32 1.0, %v1574
  %v1576 = vrcp.pop %v1453
  %v1577 = vmul.f32 1.0, %v1576
  %v1578 = vrcp.pop %v1454
  %v1579 = vmul.f32 1.0, %v1578
  %v1580 = vrcp.pop %v1455
  %v1581 = vmul.f32 1.0, %v1580
  %v1582 = vrcp.pop %v1456
  %v1583 = vmul.f32 1.0, %v1582
  %v1584 = vrcp.pop %v1457
  %v1585 = vmul.f32 1.0, %v1584
  %vm1586 = vcmask 97280
  %1587 = vst.msk [vmem:[%s2] sm:$0xff] %vm1586, %v1459
  %1588 = vst.msk [vmem:[%s2 + $0x8] sm:$0xff] %vm1586, %v1461
  %1589 = vst.msk [vmem:[%s2 + $0x10] sm:$0xff] %vm1586, %v1463
  %1590 = vst.msk [vmem:[%s2 + $0x18] sm:$0xff] %vm1586, %v1465
  %1591 = vst.msk [vmem:[%s2 + $0x20] sm:$0xff] %vm1586, %v1467
  %1592 = vst.msk [vmem:[%s2 + $0x28] sm:$0xff] %vm1586, %v1469
  %1593 = vst.msk [vmem:[%s2 + $0x30] sm:$0xff] %vm1586, %v1471
  %1594 = vst.msk [vmem:[%s2 + $0x38] sm:$0xff] %vm1586, %v1473
  %1595 = vst.msk [vmem:[%s2 + $0x40] sm:$0xff] %vm1586, %v1475
  %1596 = vst.msk [vmem:[%s2 + $0x48] sm:$0xff] %vm1586, %v1477
  %1597 = vst.msk [vmem:[%s2 + $0x50] sm:$0xff] %vm1586, %v1479
  %1598 = vst.msk [vmem:[%s2 + $0x58] sm:$0xff] %vm1586, %v1481
  %1599 = vst.msk [vmem:[%s2 + $0x60] sm:$0xff] %vm1586, %v1483
  %1600 = vst.msk [vmem:[%s2 + $0x68] sm:$0xff] %vm1586, %v1485
  %1601 = vst.msk [vmem:[%s2 + $0x70] sm:$0xff] %vm1586, %v1487
  %1602 = vst.msk [vmem:[%s2 + $0x78] sm:$0xff] %vm1586, %v1489
  %1603 = vst.msk [vmem:[%s2 + $0x80] sm:$0xff] %vm1586, %v1491
  %1604 = vst.msk [vmem:[%s2 + $0x88] sm:$0xff] %vm1586, %v1493
  %1605 = vst.msk [vmem:[%s2 + $0x90] sm:$0xff] %vm1586, %v1495
  %1606 = vst.msk [vmem:[%s2 + $0x98] sm:$0xff] %vm1586, %v1497
  %1607 = vst.msk [vmem:[%s2 + $0xa0] sm:$0xff] %vm1586, %v1499
  %1608 = vst.msk [vmem:[%s2 + $0xa8] sm:$0xff] %vm1586, %v1501
  %1609 = vst.msk [vmem:[%s2 + $0xb0] sm:$0xff] %vm1586, %v1503
  %1610 = vst.msk [vmem:[%s2 + $0xb8] sm:$0xff] %vm1586, %v1505
  %1611 = vst.msk [vmem:[%s2 + $0xc0] sm:$0xff] %vm1586, %v1507
  %1612 = vst.msk [vmem:[%s2 + $0xc8] sm:$0xff] %vm1586, %v1509
  %1613 = vst.msk [vmem:[%s2 + $0xd0] sm:$0xff] %vm1586, %v1511
  %1614 = vst.msk [vmem:[%s2 + $0xd8] sm:$0xff] %vm1586, %v1513
  %1615 = vst.msk [vmem:[%s2 + $0xe0] sm:$0xff] %vm1586, %v1515
  %1616 = vst.msk [vmem:[%s2 + $0xe8] sm:$0xff] %vm1586, %v1517
  %1617 = vst.msk [vmem:[%s2 + $0xf0] sm:$0xff] %vm1586, %v1519
  %1618 = vst.msk [vmem:[%s2 + $0xf8] sm:$0xff] %vm1586, %v1521
  %1619 = vst.msk [vmem:[%s2 + $0x100] sm:$0xff] %vm1586, %v1523
  %1620 = vst.msk [vmem:[%s2 + $0x108] sm:$0xff] %vm1586, %v1525
  %1621 = vst.msk [vmem:[%s2 + $0x110] sm:$0xff] %vm1586, %v1527
  %1622 = vst.msk [vmem:[%s2 + $0x118] sm:$0xff] %vm1586, %v1529
  %1623 = vst.msk [vmem:[%s2 + $0x120] sm:$0xff] %vm1586, %v1531
  %1624 = vst.msk [vmem:[%s2 + $0x128] sm:$0xff] %vm1586, %v1533
  %1625 = vst.msk [vmem:[%s2 + $0x130] sm:$0xff] %vm1586, %v1535
  %1626 = vst.msk [vmem:[%s2 + $0x138] sm:$0xff] %vm1586, %v1537
  %1627 = vst.msk [vmem:[%s2 + $0x140] sm:$0xff] %vm1586, %v1539
  %1628 = vst.msk [vmem:[%s2 + $0x148] sm:$0xff] %vm1586, %v1541
  %1629 = vst.msk [vmem:[%s2 + $0x150] sm:$0xff] %vm1586, %v1543
  %1630 = vst.msk [vmem:[%s2 + $0x158] sm:$0xff] %vm1586, %v1545
  %1631 = vst.msk [vmem:[%s2 + $0x160] sm:$0xff] %vm1586, %v1547
  %1632 = vst.msk [vmem:[%s2 + $0x168] sm:$0xff] %vm1586, %v1549
  %1633 = vst.msk [vmem:[%s2 + $0x170] sm:$0xff] %vm1586, %v1551
  %1634 = vst.msk [vmem:[%s2 + $0x178] sm:$0xff] %vm1586, %v1553
  %1635 = vst.msk [vmem:[%s2 + $0x180] sm:$0xff] %vm1586, %v1555
  %1636 = vst.msk [vmem:[%s2 + $0x188] sm:$0xff] %vm1586, %v1557
  %1637 = vst.msk [vmem:[%s2 + $0x190] sm:$0xff] %vm1586, %v1559
  %1638 = vst.msk [vmem:[%s2 + $0x198] sm:$0xff] %vm1586, %v1561
  %1639 = vst.msk [vmem:[%s2 + $0x1a0] sm:$0xff] %vm1586, %v1563
  %1640 = vst.msk [vmem:[%s2 + $0x1a8] sm:$0xff] %vm1586, %v1565
  %1641 = vst.msk [vmem:[%s2 + $0x1b0] sm:$0xff] %vm1586, %v1567
  %1642 = vst.msk [vmem:[%s2 + $0x1b8] sm:$0xff] %vm1586, %v1569
  %1643 = vst.msk [vmem:[%s2 + $0x1c0] sm:$0xff] %vm1586, %v1571
  %1644 = vst.msk [vmem:[%s2 + $0x1c8] sm:$0xff] %vm1586, %v1573
  %1645 = vst.msk [vmem:[%s2 + $0x1d0] sm:$0xff] %vm1586, %v1575
  %1646 = vst.msk [vmem:[%s2 + $0x1d8] sm:$0xff] %vm1586, %v1577
  %1647 = vst.msk [vmem:[%s2 + $0x1e0] sm:$0xff] %vm1586, %v1579
  %1648 = vst.msk [vmem:[%s2 + $0x1e8] sm:$0xff] %vm1586, %v1581
  %1649 = vst.msk [vmem:[%s2 + $0x1f0] sm:$0xff] %vm1586, %v1583
  %1650 = vst.msk [vmem:[%s2 + $0x1f8] sm:$0xff] %vm1586, %v1585
  // Predicated region
  $region10: #{ae_vine2_forward.13} parent=0 // pred_check
    _
  $region11: #{ae_vine2_forward.13} parent=0 // pred_check_branch
    %1652 = sbr.rel (0) target = $region13
  $region12: #{ae_vine2_forward.13} parent=0 // pred_region
    _
  $region13: #{ae_vine2_forward.13} parent=0 // pred_fallthru
    _
  // Predicated region
  $region14: #{ae_vine2_forward.13} parent=0 // pred_check
    _
  $region15: #{ae_vine2_forward.13} parent=0 // pred_check_branch
    %1654 = sbr.rel (0) target = $region17
  $region16: #{ae_vine2_forward.13} parent=0 // pred_region
    _
  $region17: #{ae_vine2_forward.13} parent=0 // pred_fallthru
    _

// kernel: ae_vine2_forward.10
$region0: #{ae_vine2_forward.10}
  #allocation0 [shape = 'u32[]', space=smem, size = 0x4, offset = 0x4, fixed_abs, tag = 'smem constant byte address 0x4 - core index']
  #allocation1 [shape = 'u32[144,128]{1,0:T(1,128)}', space=vmem, size = 0x12000, scoped, tag = 'internal scratch']
  %s0 = inlined_call_operand.vmem [shape: f32[2,2048], index: 0, kind: input, shape index: {}]
  %s1 = inlined_call_operand.vmem [shape: f32[2048,256], index: 1, kind: input, shape index: {}]
  %s2 = inlined_call_operand.vmem [shape: f32[256,100], index: 2, kind: input, shape index: {}]
  %s3 = inlined_call_operand.vmem [shape: f32[1,100], index: 3, kind: input, shape index: {}]
  %s4 = inlined_call_operand.vmem [shape: f32[100,16], index: 4, kind: input, shape index: {}]
  %s5 = inlined_call_operand.vmem [shape: f32[1,16], index: 5, kind: input, shape index: {}]
  %s6 = inlined_call_operand.vmem [shape: f32[16,100], index: 6, kind: input, shape index: {}]
  %s7 = inlined_call_operand.vmem [shape: f32[1,100], index: 7, kind: input, shape index: {}]
  %s8 = inlined_call_operand.vmem [shape: f32[100,256], index: 8, kind: input, shape index: {}]
  %s9 = inlined_call_operand.vmem [shape: f32[1,256], index: 9, kind: input, shape index: {}]
  %s10 = inlined_call_operand.vmem [shape: f32[256,2048], index: 10, kind: input, shape index: {}]
  %s11 = inlined_call_operand.vmem [shape: f32[1,128], index: 11, kind: input, shape index: {}]
  %s12 = inlined_call_operand.vmem [shape: f32[1,128], index: 12, kind: input, shape index: {}]
  %s13 = inlined_call_operand.vmem [shape: f32[2,2048], index: 13, kind: output, shape index: {}]
  %s14 = sld [smem:[#allocation0]]
  $region62: #{ae_vine2_forward.10} parent=0
    _
  %s16 = ssub.s32 1, %s14
  %s17 = scalar_select 0, %s16, %s14
  // Predicated region
  $region2: #{ae_vine2_forward.10} parent=0 // pred_check
    _
  $region3: #{ae_vine2_forward.10} parent=0 // pred_check_branch
    %19 = sbr.rel (0) target = $region5
  $region4: #{ae_vine2_forward.10} parent=0 // pred_region
    _
  $region5: #{ae_vine2_forward.10} parent=0 // pred_fallthru
    _
  // Predicated region
  $region6: #{ae_vine2_forward.10} parent=0 // pred_check
    _
  $region7: #{ae_vine2_forward.10} parent=0 // pred_check_branch
    %21 = sbr.rel (0) target = $region9
  $region8: #{ae_vine2_forward.10} parent=0 // pred_region
    _
  $region9: #{ae_vine2_forward.10} parent=0 // pred_fallthru
    _
  // Predicated region
  $region10: #{ae_vine2_forward.10} parent=0 // pred_check
    _
  $region11: #{ae_vine2_forward.10} parent=0 // pred_check_branch
    %23 = sbr.rel (0) target = $region13
  $region12: #{ae_vine2_forward.10} parent=0 // pred_region
    _
  $region13: #{ae_vine2_forward.10} parent=0 // pred_fallthru
    _
  // Predicated region
  $region14: #{ae_vine2_forward.10} parent=0 // pred_check
    _
  $region15: #{ae_vine2_forward.10} parent=0 // pred_check_branch
    %25 = sbr.rel (0) target = $region17
  $region16: #{ae_vine2_forward.10} parent=0 // pred_region
    _
  $region17: #{ae_vine2_forward.10} parent=0 // pred_fallthru
    _
  // Predicated region
  $region18: #{ae_vine2_forward.10} parent=0 // pred_check
    _
  $region19: #{ae_vine2_forward.10} parent=0 // pred_check_branch
    %27 = sbr.rel (0) target = $region21
  $region20: #{ae_vine2_forward.10} parent=0 // pred_region
    _
  $region21: #{ae_vine2_forward.10} parent=0 // pred_fallthru
    _
  // Predicated region
  $region22: #{ae_vine2_forward.10} parent=0 // pred_check
    _
  $region23: #{ae_vine2_forward.10} parent=0 // pred_check_branch
    %29 = sbr.rel (0) target = $region25
  $region24: #{ae_vine2_forward.10} parent=0 // pred_region
    _
  $region25: #{ae_vine2_forward.10} parent=0 // pred_fallthru
    _
  // Predicated region
  $region26: #{ae_vine2_forward.10} parent=0 // pred_check
    _
  $region27: #{ae_vine2_forward.10} parent=0 // pred_check_branch
    %31 = sbr.rel (0) target = $region29
  $region28: #{ae_vine2_forward.10} parent=0 // pred_region
    _
  $region29: #{ae_vine2_forward.10} parent=0 // pred_fallthru
    _
  // Predicated region
  $region30: #{ae_vine2_forward.10} parent=0 // pred_check
    _
  $region31: #{ae_vine2_forward.10} parent=0 // pred_check_branch
    %33 = sbr.rel (0) target = $region33
  $region32: #{ae_vine2_forward.10} parent=0 // pred_region
    _
  $region33: #{ae_vine2_forward.10} parent=0 // pred_fallthru
    _
  // Predicated region
  $region34: #{ae_vine2_forward.10} parent=0 // pred_check
    _
  $region35: #{ae_vine2_forward.10} parent=0 // pred_check_branch
    %35 = sbr.rel (0) target = $region37
  $region36: #{ae_vine2_forward.10} parent=0 // pred_region
    _
  $region37: #{ae_vine2_forward.10} parent=0 // pred_fallthru
    _
  // Predicated region
  $region38: #{ae_vine2_forward.10} parent=0 // pred_check
    _
  $region39: #{ae_vine2_forward.10} parent=0 // pred_check_branch
    %37 = sbr.rel (0) target = $region41
  $region40: #{ae_vine2_forward.10} parent=0 // pred_region
    _
  $region41: #{ae_vine2_forward.10} parent=0 // pred_fallthru
    _
  // Predicated region
  $region42: #{ae_vine2_forward.10} parent=0 // pred_check
    _
  $region43: #{ae_vine2_forward.10} parent=0 // pred_check_branch
    %39 = sbr.rel (0) target = $region45
  $region44: #{ae_vine2_forward.10} parent=0 // pred_region
    _
  $region45: #{ae_vine2_forward.10} parent=0 // pred_fallthru
    _
  // Predicated region
  $region46: #{ae_vine2_forward.10} parent=0 // pred_check
    _
  $region47: #{ae_vine2_forward.10} parent=0 // pred_check_branch
    %41 = sbr.rel (0) target = $region49
  $region48: #{ae_vine2_forward.10} parent=0 // pred_region
    _
  $region49: #{ae_vine2_forward.10} parent=0 // pred_fallthru
    _
  // Predicated region
  $region50: #{ae_vine2_forward.10} parent=0 // pred_check
    _
  $region51: #{ae_vine2_forward.10} parent=0 // pred_check_branch
    %43 = sbr.rel (0) target = $region53
  $region52: #{ae_vine2_forward.10} parent=0 // pred_region
    _
  $region53: #{ae_vine2_forward.10} parent=0 // pred_fallthru
    _
  %v44 = vld [vmem:[%s0] sm:$0xff]
  %v45 = vld [vmem:[%s0 + $0x8] sm:$0xff]
  %v46 = vld [vmem:[%s0 + $0x10] sm:$0xff]
  %v47 = vld [vmem:[%s0 + $0x18] sm:$0xff]
  %v48 = vld [vmem:[%s1] sm:$0xff]
  %v49 = vld [vmem:[%s1 + $0x8] sm:$0xff]
  %v50 = vld [vmem:[%s1 + $0x10] sm:$0xff]
  %v51 = vld [vmem:[%s1 + $0x18] sm:$0xff]
  %v52 = vld [vmem:[%s1 + $0x20] sm:$0xff]
  %v53 = vld [vmem:[%s1 + $0x28] sm:$0xff]
  %v54 = vld [vmem:[%s1 + $0x30] sm:$0xff]
  %v55 = vld [vmem:[%s1 + $0x38] sm:$0xff]
  %v56 = vld [vmem:[%s1 + $0x40] sm:$0xff]
  %v57 = vld [vmem:[%s1 + $0x48] sm:$0xff]
  %v58 = vld [vmem:[%s1 + $0x50] sm:$0xff]
  %v59 = vld [vmem:[%s1 + $0x58] sm:$0xff]
  %v60 = vld [vmem:[%s1 + $0x60] sm:$0xff]
  %v61 = vld [vmem:[%s1 + $0x68] sm:$0xff]
  %v62 = vld [vmem:[%s1 + $0x70] sm:$0xff]
  %v63 = vld [vmem:[%s1 + $0x78] sm:$0xff]
  %v64 = vld [vmem:[%s1 + $0x80] sm:$0xff]
  %v65 = vld [vmem:[%s1 + $0x88] sm:$0xff]
  %v66 = vld [vmem:[%s1 + $0x90] sm:$0xff]
  %v67 = vld [vmem:[%s1 + $0x98] sm:$0xff]
  %v68 = vld [vmem:[%s1 + $0xa0] sm:$0xff]
  %v69 = vld [vmem:[%s1 + $0xa8] sm:$0xff]
  %v70 = vld [vmem:[%s1 + $0xb0] sm:$0xff]
  %v71 = vld [vmem:[%s1 + $0xb8] sm:$0xff]
  %v72 = vld [vmem:[%s1 + $0xc0] sm:$0xff]
  %v73 = vld [vmem:[%s1 + $0xc8] sm:$0xff]
  %v74 = vld [vmem:[%s1 + $0xd0] sm:$0xff]
  %v75 = vld [vmem:[%s1 + $0xd8] sm:$0xff]
  %v76 = vld [vmem:[%s1 + $0xe0] sm:$0xff]
  %v77 = vld [vmem:[%s1 + $0xe8] sm:$0xff]
  %v78 = vld [vmem:[%s1 + $0xf0] sm:$0xff]
  %v79 = vld [vmem:[%s1 + $0xf8] sm:$0xff]
  %v80 = vld [vmem:[%s1 + $0x100] sm:$0xff]
  %v81 = vld [vmem:[%s1 + $0x108] sm:$0xff]
  %v82 = vld [vmem:[%s1 + $0x110] sm:$0xff]
  %v83 = vld [vmem:[%s1 + $0x118] sm:$0xff]
  %v84 = vld [vmem:[%s1 + $0x120] sm:$0xff]
  %v85 = vld [vmem:[%s1 + $0x128] sm:$0xff]
  %v86 = vld [vmem:[%s1 + $0x130] sm:$0xff]
  %v87 = vld [vmem:[%s1 + $0x138] sm:$0xff]
  %v88 = vld [vmem:[%s1 + $0x140] sm:$0xff]
  %v89 = vld [vmem:[%s1 + $0x148] sm:$0xff]
  %v90 = vld [vmem:[%s1 + $0x150] sm:$0xff]
  %v91 = vld [vmem:[%s1 + $0x158] sm:$0xff]
  %v92 = vld [vmem:[%s1 + $0x160] sm:$0xff]
  %v93 = vld [vmem:[%s1 + $0x168] sm:$0xff]
  %v94 = vld [vmem:[%s1 + $0x170] sm:$0xff]
  %v95 = vld [vmem:[%s1 + $0x178] sm:$0xff]
  %v96 = vld [vmem:[%s1 + $0x180] sm:$0xff]
  %v97 = vld [vmem:[%s1 + $0x188] sm:$0xff]
  %v98 = vld [vmem:[%s1 + $0x190] sm:$0xff]
  %v99 = vld [vmem:[%s1 + $0x198] sm:$0xff]
  %v100 = vld [vmem:[%s1 + $0x1a0] sm:$0xff]
  %v101 = vld [vmem:[%s1 + $0x1a8] sm:$0xff]
  %v102 = vld [vmem:[%s1 + $0x1b0] sm:$0xff]
  %v103 = vld [vmem:[%s1 + $0x1b8] sm:$0xff]
  %v104 = vld [vmem:[%s1 + $0x1c0] sm:$0xff]
  %v105 = vld [vmem:[%s1 + $0x1c8] sm:$0xff]
  %v106 = vld [vmem:[%s1 + $0x1d0] sm:$0xff]
  %v107 = vld [vmem:[%s1 + $0x1d8] sm:$0xff]
  %v108 = vld [vmem:[%s1 + $0x1e0] sm:$0xff]
  %v109 = vld [vmem:[%s1 + $0x1e8] sm:$0xff]
  %v110 = vld [vmem:[%s1 + $0x1f0] sm:$0xff]
  %v111 = vld [vmem:[%s1 + $0x1f8] sm:$0xff]
  %v112 = vld [vmem:[%s1 + $0x200] sm:$0xff]
  %v113 = vld [vmem:[%s1 + $0x208] sm:$0xff]
  %v114 = vld [vmem:[%s1 + $0x210] sm:$0xff]
  %v115 = vld [vmem:[%s1 + $0x218] sm:$0xff]
  %v116 = vld [vmem:[%s1 + $0x220] sm:$0xff]
  %v117 = vld [vmem:[%s1 + $0x228] sm:$0xff]
  %v118 = vld [vmem:[%s1 + $0x230] sm:$0xff]
  %v119 = vld [vmem:[%s1 + $0x238] sm:$0xff]
  %v120 = vld [vmem:[%s1 + $0x240] sm:$0xff]
  %v121 = vld [vmem:[%s1 + $0x248] sm:$0xff]
  %v122 = vld [vmem:[%s1 + $0x250] sm:$0xff]
  %v123 = vld [vmem:[%s1 + $0x258] sm:$0xff]
  %v124 = vld [vmem:[%s1 + $0x260] sm:$0xff]
  %v125 = vld [vmem:[%s1 + $0x268] sm:$0xff]
  %v126 = vld [vmem:[%s1 + $0x270] sm:$0xff]
  %v127 = vld [vmem:[%s1 + $0x278] sm:$0xff]
  %v128 = vld [vmem:[%s1 + $0x280] sm:$0xff]
  %v129 = vld [vmem:[%s1 + $0x288] sm:$0xff]
  %v130 = vld [vmem:[%s1 + $0x290] sm:$0xff]
  %v131 = vld [vmem:[%s1 + $0x298] sm:$0xff]
  %v132 = vld [vmem:[%s1 + $0x2a0] sm:$0xff]
  %v133 = vld [vmem:[%s1 + $0x2a8] sm:$0xff]
  %v134 = vld [vmem:[%s1 + $0x2b0] sm:$0xff]
  %v135 = vld [vmem:[%s1 + $0x2b8] sm:$0xff]
  %v136 = vld [vmem:[%s1 + $0x2c0] sm:$0xff]
  %v137 = vld [vmem:[%s1 + $0x2c8] sm:$0xff]
  %v138 = vld [vmem:[%s1 + $0x2d0] sm:$0xff]
  %v139 = vld [vmem:[%s1 + $0x2d8] sm:$0xff]
  %v140 = vld [vmem:[%s1 + $0x2e0] sm:$0xff]
  %v141 = vld [vmem:[%s1 + $0x2e8] sm:$0xff]
  %v142 = vld [vmem:[%s1 + $0x2f0] sm:$0xff]
  %v143 = vld [vmem:[%s1 + $0x2f8] sm:$0xff]
  %v144 = vld [vmem:[%s1 + $0x300] sm:$0xff]
  %v145 = vld [vmem:[%s1 + $0x308] sm:$0xff]
  %v146 = vld [vmem:[%s1 + $0x310] sm:$0xff]
  %v147 = vld [vmem:[%s1 + $0x318] sm:$0xff]
  %v148 = vld [vmem:[%s1 + $0x320] sm:$0xff]
  %v149 = vld [vmem:[%s1 + $0x328] sm:$0xff]
  %v150 = vld [vmem:[%s1 + $0x330] sm:$0xff]
  %v151 = vld [vmem:[%s1 + $0x338] sm:$0xff]
  %v152 = vld [vmem:[%s1 + $0x340] sm:$0xff]
  %v153 = vld [vmem:[%s1 + $0x348] sm:$0xff]
  %v154 = vld [vmem:[%s1 + $0x350] sm:$0xff]
  %v155 = vld [vmem:[%s1 + $0x358] sm:$0xff]
  %v156 = vld [vmem:[%s1 + $0x360] sm:$0xff]
  %v157 = vld [vmem:[%s1 + $0x368] sm:$0xff]
  %v158 = vld [vmem:[%s1 + $0x370] sm:$0xff]
  %v159 = vld [vmem:[%s1 + $0x378] sm:$0xff]
  %v160 = vld [vmem:[%s1 + $0x380] sm:$0xff]
  %v161 = vld [vmem:[%s1 + $0x388] sm:$0xff]
  %v162 = vld [vmem:[%s1 + $0x390] sm:$0xff]
  %v163 = vld [vmem:[%s1 + $0x398] sm:$0xff]
  %v164 = vld [vmem:[%s1 + $0x3a0] sm:$0xff]
  %v165 = vld [vmem:[%s1 + $0x3a8] sm:$0xff]
  %v166 = vld [vmem:[%s1 + $0x3b0] sm:$0xff]
  %v167 = vld [vmem:[%s1 + $0x3b8] sm:$0xff]
  %v168 = vld [vmem:[%s1 + $0x3c0] sm:$0xff]
  %v169 = vld [vmem:[%s1 + $0x3c8] sm:$0xff]
  %v170 = vld [vmem:[%s1 + $0x3d0] sm:$0xff]
  %v171 = vld [vmem:[%s1 + $0x3d8] sm:$0xff]
  %v172 = vld [vmem:[%s1 + $0x3e0] sm:$0xff]
  %v173 = vld [vmem:[%s1 + $0x3e8] sm:$0xff]
  %v174 = vld [vmem:[%s1 + $0x3f0] sm:$0xff]
  %v175 = vld [vmem:[%s1 + $0x3f8] sm:$0xff]
  %v176 = vld [vmem:[%s1 + $0x400] sm:$0xff]
  %v177 = vld [vmem:[%s1 + $0x408] sm:$0xff]
  %v178 = vld [vmem:[%s1 + $0x410] sm:$0xff]
  %v179 = vld [vmem:[%s1 + $0x418] sm:$0xff]
  %v180 = vld [vmem:[%s1 + $0x420] sm:$0xff]
  %v181 = vld [vmem:[%s1 + $0x428] sm:$0xff]
  %v182 = vld [vmem:[%s1 + $0x430] sm:$0xff]
  %v183 = vld [vmem:[%s1 + $0x438] sm:$0xff]
  %v184 = vld [vmem:[%s1 + $0x440] sm:$0xff]
  %v185 = vld [vmem:[%s1 + $0x448] sm:$0xff]
  %v186 = vld [vmem:[%s1 + $0x450] sm:$0xff]
  %v187 = vld [vmem:[%s1 + $0x458] sm:$0xff]
  %v188 = vld [vmem:[%s1 + $0x460] sm:$0xff]
  %v189 = vld [vmem:[%s1 + $0x468] sm:$0xff]
  %v190 = vld [vmem:[%s1 + $0x470] sm:$0xff]
  %v191 = vld [vmem:[%s1 + $0x478] sm:$0xff]
  %v192 = vld [vmem:[%s1 + $0x480] sm:$0xff]
  %v193 = vld [vmem:[%s1 + $0x488] sm:$0xff]
  %v194 = vld [vmem:[%s1 + $0x490] sm:$0xff]
  %v195 = vld [vmem:[%s1 + $0x498] sm:$0xff]
  %v196 = vld [vmem:[%s1 + $0x4a0] sm:$0xff]
  %v197 = vld [vmem:[%s1 + $0x4a8] sm:$0xff]
  %v198 = vld [vmem:[%s1 + $0x4b0] sm:$0xff]
  %v199 = vld [vmem:[%s1 + $0x4b8] sm:$0xff]
  %v200 = vld [vmem:[%s1 + $0x4c0] sm:$0xff]
  %v201 = vld [vmem:[%s1 + $0x4c8] sm:$0xff]
  %v202 = vld [vmem:[%s1 + $0x4d0] sm:$0xff]
  %v203 = vld [vmem:[%s1 + $0x4d8] sm:$0xff]
  %v204 = vld [vmem:[%s1 + $0x4e0] sm:$0xff]
  %v205 = vld [vmem:[%s1 + $0x4e8] sm:$0xff]
  %v206 = vld [vmem:[%s1 + $0x4f0] sm:$0xff]
  %v207 = vld [vmem:[%s1 + $0x4f8] sm:$0xff]
  %v208 = vld [vmem:[%s1 + $0x500] sm:$0xff]
  %v209 = vld [vmem:[%s1 + $0x508] sm:$0xff]
  %v210 = vld [vmem:[%s1 + $0x510] sm:$0xff]
  %v211 = vld [vmem:[%s1 + $0x518] sm:$0xff]
  %v212 = vld [vmem:[%s1 + $0x520] sm:$0xff]
  %v213 = vld [vmem:[%s1 + $0x528] sm:$0xff]
  %v214 = vld [vmem:[%s1 + $0x530] sm:$0xff]
  %v215 = vld [vmem:[%s1 + $0x538] sm:$0xff]
  %v216 = vld [vmem:[%s1 + $0x540] sm:$0xff]
  %v217 = vld [vmem:[%s1 + $0x548] sm:$0xff]
  %v218 = vld [vmem:[%s1 + $0x550] sm:$0xff]
  %v219 = vld [vmem:[%s1 + $0x558] sm:$0xff]
  %v220 = vld [vmem:[%s1 + $0x560] sm:$0xff]
  %v221 = vld [vmem:[%s1 + $0x568] sm:$0xff]
  %v222 = vld [vmem:[%s1 + $0x570] sm:$0xff]
  %v223 = vld [vmem:[%s1 + $0x578] sm:$0xff]
  %v224 = vld [vmem:[%s1 + $0x580] sm:$0xff]
  %v225 = vld [vmem:[%s1 + $0x588] sm:$0xff]
  %v226 = vld [vmem:[%s1 + $0x590] sm:$0xff]
  %v227 = vld [vmem:[%s1 + $0x598] sm:$0xff]
  %v228 = vld [vmem:[%s1 + $0x5a0] sm:$0xff]
  %v229 = vld [vmem:[%s1 + $0x5a8] sm:$0xff]
  %v230 = vld [vmem:[%s1 + $0x5b0] sm:$0xff]
  %v231 = vld [vmem:[%s1 + $0x5b8] sm:$0xff]
  %v232 = vld [vmem:[%s1 + $0x5c0] sm:$0xff]
  %v233 = vld [vmem:[%s1 + $0x5c8] sm:$0xff]
  %v234 = vld [vmem:[%s1 + $0x5d0] sm:$0xff]
  %v235 = vld [vmem:[%s1 + $0x5d8] sm:$0xff]
  %v236 = vld [vmem:[%s1 + $0x5e0] sm:$0xff]
  %v237 = vld [vmem:[%s1 + $0x5e8] sm:$0xff]
  %v238 = vld [vmem:[%s1 + $0x5f0] sm:$0xff]
  %v239 = vld [vmem:[%s1 + $0x5f8] sm:$0xff]
  %v240 = vld [vmem:[%s1 + $0x600] sm:$0xff]
  %v241 = vld [vmem:[%s1 + $0x608] sm:$0xff]
  %v242 = vld [vmem:[%s1 + $0x610] sm:$0xff]
  %v243 = vld [vmem:[%s1 + $0x618] sm:$0xff]
  %v244 = vld [vmem:[%s1 + $0x620] sm:$0xff]
  %v245 = vld [vmem:[%s1 + $0x628] sm:$0xff]
  %v246 = vld [vmem:[%s1 + $0x630] sm:$0xff]
  %v247 = vld [vmem:[%s1 + $0x638] sm:$0xff]
  %v248 = vld [vmem:[%s1 + $0x640] sm:$0xff]
  %v249 = vld [vmem:[%s1 + $0x648] sm:$0xff]
  %v250 = vld [vmem:[%s1 + $0x650] sm:$0xff]
  %v251 = vld [vmem:[%s1 + $0x658] sm:$0xff]
  %v252 = vld [vmem:[%s1 + $0x660] sm:$0xff]
  %v253 = vld [vmem:[%s1 + $0x668] sm:$0xff]
  %v254 = vld [vmem:[%s1 + $0x670] sm:$0xff]
  %v255 = vld [vmem:[%s1 + $0x678] sm:$0xff]
  %v256 = vld [vmem:[%s1 + $0x680] sm:$0xff]
  %v257 = vld [vmem:[%s1 + $0x688] sm:$0xff]
  %v258 = vld [vmem:[%s1 + $0x690] sm:$0xff]
  %v259 = vld [vmem:[%s1 + $0x698] sm:$0xff]
  %v260 = vld [vmem:[%s1 + $0x6a0] sm:$0xff]
  %v261 = vld [vmem:[%s1 + $0x6a8] sm:$0xff]
  %v262 = vld [vmem:[%s1 + $0x6b0] sm:$0xff]
  %v263 = vld [vmem:[%s1 + $0x6b8] sm:$0xff]
  %v264 = vld [vmem:[%s1 + $0x6c0] sm:$0xff]
  %v265 = vld [vmem:[%s1 + $0x6c8] sm:$0xff]
  %v266 = vld [vmem:[%s1 + $0x6d0] sm:$0xff]
  %v267 = vld [vmem:[%s1 + $0x6d8] sm:$0xff]
  %v268 = vld [vmem:[%s1 + $0x6e0] sm:$0xff]
  %v269 = vld [vmem:[%s1 + $0x6e8] sm:$0xff]
  %v270 = vld [vmem:[%s1 + $0x6f0] sm:$0xff]
  %v271 = vld [vmem:[%s1 + $0x6f8] sm:$0xff]
  %v272 = vld [vmem:[%s1 + $0x700] sm:$0xff]
  %v273 = vld [vmem:[%s1 + $0x708] sm:$0xff]
  %v274 = vld [vmem:[%s1 + $0x710] sm:$0xff]
  %v275 = vld [vmem:[%s1 + $0x718] sm:$0xff]
  %v276 = vld [vmem:[%s1 + $0x720] sm:$0xff]
  %v277 = vld [vmem:[%s1 + $0x728] sm:$0xff]
  %v278 = vld [vmem:[%s1 + $0x730] sm:$0xff]
  %v279 = vld [vmem:[%s1 + $0x738] sm:$0xff]
  %v280 = vld [vmem:[%s1 + $0x740] sm:$0xff]
  %v281 = vld [vmem:[%s1 + $0x748] sm:$0xff]
  %v282 = vld [vmem:[%s1 + $0x750] sm:$0xff]
  %v283 = vld [vmem:[%s1 + $0x758] sm:$0xff]
  %v284 = vld [vmem:[%s1 + $0x760] sm:$0xff]
  %v285 = vld [vmem:[%s1 + $0x768] sm:$0xff]
  %v286 = vld [vmem:[%s1 + $0x770] sm:$0xff]
  %v287 = vld [vmem:[%s1 + $0x778] sm:$0xff]
  %v288 = vld [vmem:[%s1 + $0x780] sm:$0xff]
  %v289 = vld [vmem:[%s1 + $0x788] sm:$0xff]
  %v290 = vld [vmem:[%s1 + $0x790] sm:$0xff]
  %v291 = vld [vmem:[%s1 + $0x798] sm:$0xff]
  %v292 = vld [vmem:[%s1 + $0x7a0] sm:$0xff]
  %v293 = vld [vmem:[%s1 + $0x7a8] sm:$0xff]
  %v294 = vld [vmem:[%s1 + $0x7b0] sm:$0xff]
  %v295 = vld [vmem:[%s1 + $0x7b8] sm:$0xff]
  %v296 = vld [vmem:[%s1 + $0x7c0] sm:$0xff]
  %v297 = vld [vmem:[%s1 + $0x7c8] sm:$0xff]
  %v298 = vld [vmem:[%s1 + $0x7d0] sm:$0xff]
  %v299 = vld [vmem:[%s1 + $0x7d8] sm:$0xff]
  %v300 = vld [vmem:[%s1 + $0x7e0] sm:$0xff]
  %v301 = vld [vmem:[%s1 + $0x7e8] sm:$0xff]
  %v302 = vld [vmem:[%s1 + $0x7f0] sm:$0xff]
  %v303 = vld [vmem:[%s1 + $0x7f8] sm:$0xff]
  %v304 = vld [vmem:[%s1 + $0x800] sm:$0xff]
  %v305 = vld [vmem:[%s1 + $0x808] sm:$0xff]
  %v306 = vld [vmem:[%s1 + $0x810] sm:$0xff]
  %v307 = vld [vmem:[%s1 + $0x818] sm:$0xff]
  %v308 = vld [vmem:[%s1 + $0x820] sm:$0xff]
  %v309 = vld [vmem:[%s1 + $0x828] sm:$0xff]
  %v310 = vld [vmem:[%s1 + $0x830] sm:$0xff]
  %v311 = vld [vmem:[%s1 + $0x838] sm:$0xff]
  %v312 = vld [vmem:[%s1 + $0x840] sm:$0xff]
  %v313 = vld [vmem:[%s1 + $0x848] sm:$0xff]
  %v314 = vld [vmem:[%s1 + $0x850] sm:$0xff]
  %v315 = vld [vmem:[%s1 + $0x858] sm:$0xff]
  %v316 = vld [vmem:[%s1 + $0x860] sm:$0xff]
  %v317 = vld [vmem:[%s1 + $0x868] sm:$0xff]
  %v318 = vld [vmem:[%s1 + $0x870] sm:$0xff]
  %v319 = vld [vmem:[%s1 + $0x878] sm:$0xff]
  %v320 = vld [vmem:[%s1 + $0x880] sm:$0xff]
  %v321 = vld [vmem:[%s1 + $0x888] sm:$0xff]
  %v322 = vld [vmem:[%s1 + $0x890] sm:$0xff]
  %v323 = vld [vmem:[%s1 + $0x898] sm:$0xff]
  %v324 = vld [vmem:[%s1 + $0x8a0] sm:$0xff]
  %v325 = vld [vmem:[%s1 + $0x8a8] sm:$0xff]
  %v326 = vld [vmem:[%s1 + $0x8b0] sm:$0xff]
  %v327 = vld [vmem:[%s1 + $0x8b8] sm:$0xff]
  %v328 = vld [vmem:[%s1 + $0x8c0] sm:$0xff]
  %v329 = vld [vmem:[%s1 + $0x8c8] sm:$0xff]
  %v330 = vld [vmem:[%s1 + $0x8d0] sm:$0xff]
  %v331 = vld [vmem:[%s1 + $0x8d8] sm:$0xff]
  %v332 = vld [vmem:[%s1 + $0x8e0] sm:$0xff]
  %v333 = vld [vmem:[%s1 + $0x8e8] sm:$0xff]
  %v334 = vld [vmem:[%s1 + $0x8f0] sm:$0xff]
  %v335 = vld [vmem:[%s1 + $0x8f8] sm:$0xff]
  %v336 = vld [vmem:[%s1 + $0x900] sm:$0xff]
  %v337 = vld [vmem:[%s1 + $0x908] sm:$0xff]
  %v338 = vld [vmem:[%s1 + $0x910] sm:$0xff]
  %v339 = vld [vmem:[%s1 + $0x918] sm:$0xff]
  %v340 = vld [vmem:[%s1 + $0x920] sm:$0xff]
  %v341 = vld [vmem:[%s1 + $0x928] sm:$0xff]
  %v342 = vld [vmem:[%s1 + $0x930] sm:$0xff]
  %v343 = vld [vmem:[%s1 + $0x938] sm:$0xff]
  %v344 = vld [vmem:[%s1 + $0x940] sm:$0xff]
  %v345 = vld [vmem:[%s1 + $0x948] sm:$0xff]
  %v346 = vld [vmem:[%s1 + $0x950] sm:$0xff]
  %v347 = vld [vmem:[%s1 + $0x958] sm:$0xff]
  %v348 = vld [vmem:[%s1 + $0x960] sm:$0xff]
  %v349 = vld [vmem:[%s1 + $0x968] sm:$0xff]
  %v350 = vld [vmem:[%s1 + $0x970] sm:$0xff]
  %v351 = vld [vmem:[%s1 + $0x978] sm:$0xff]
  %v352 = vld [vmem:[%s1 + $0x980] sm:$0xff]
  %v353 = vld [vmem:[%s1 + $0x988] sm:$0xff]
  %v354 = vld [vmem:[%s1 + $0x990] sm:$0xff]
  %v355 = vld [vmem:[%s1 + $0x998] sm:$0xff]
  %v356 = vld [vmem:[%s1 + $0x9a0] sm:$0xff]
  %v357 = vld [vmem:[%s1 + $0x9a8] sm:$0xff]
  %v358 = vld [vmem:[%s1 + $0x9b0] sm:$0xff]
  %v359 = vld [vmem:[%s1 + $0x9b8] sm:$0xff]
  %v360 = vld [vmem:[%s1 + $0x9c0] sm:$0xff]
  %v361 = vld [vmem:[%s1 + $0x9c8] sm:$0xff]
  %v362 = vld [vmem:[%s1 + $0x9d0] sm:$0xff]
  %v363 = vld [vmem:[%s1 + $0x9d8] sm:$0xff]
  %v364 = vld [vmem:[%s1 + $0x9e0] sm:$0xff]
  %v365 = vld [vmem:[%s1 + $0x9e8] sm:$0xff]
  %v366 = vld [vmem:[%s1 + $0x9f0] sm:$0xff]
  %v367 = vld [vmem:[%s1 + $0x9f8] sm:$0xff]
  %v368 = vld [vmem:[%s1 + $0xa00] sm:$0xff]
  %v369 = vld [vmem:[%s1 + $0xa08] sm:$0xff]
  %v370 = vld [vmem:[%s1 + $0xa10] sm:$0xff]
  %v371 = vld [vmem:[%s1 + $0xa18] sm:$0xff]
  %v372 = vld [vmem:[%s1 + $0xa20] sm:$0xff]
  %v373 = vld [vmem:[%s1 + $0xa28] sm:$0xff]
  %v374 = vld [vmem:[%s1 + $0xa30] sm:$0xff]
  %v375 = vld [vmem:[%s1 + $0xa38] sm:$0xff]
  %v376 = vld [vmem:[%s1 + $0xa40] sm:$0xff]
  %v377 = vld [vmem:[%s1 + $0xa48] sm:$0xff]
  %v378 = vld [vmem:[%s1 + $0xa50] sm:$0xff]
  %v379 = vld [vmem:[%s1 + $0xa58] sm:$0xff]
  %v380 = vld [vmem:[%s1 + $0xa60] sm:$0xff]
  %v381 = vld [vmem:[%s1 + $0xa68] sm:$0xff]
  %v382 = vld [vmem:[%s1 + $0xa70] sm:$0xff]
  %v383 = vld [vmem:[%s1 + $0xa78] sm:$0xff]
  %v384 = vld [vmem:[%s1 + $0xa80] sm:$0xff]
  %v385 = vld [vmem:[%s1 + $0xa88] sm:$0xff]
  %v386 = vld [vmem:[%s1 + $0xa90] sm:$0xff]
  %v387 = vld [vmem:[%s1 + $0xa98] sm:$0xff]
  %v388 = vld [vmem:[%s1 + $0xaa0] sm:$0xff]
  %v389 = vld [vmem:[%s1 + $0xaa8] sm:$0xff]
  %v390 = vld [vmem:[%s1 + $0xab0] sm:$0xff]
  %v391 = vld [vmem:[%s1 + $0xab8] sm:$0xff]
  %v392 = vld [vmem:[%s1 + $0xac0] sm:$0xff]
  %v393 = vld [vmem:[%s1 + $0xac8] sm:$0xff]
  %v394 = vld [vmem:[%s1 + $0xad0] sm:$0xff]
  %v395 = vld [vmem:[%s1 + $0xad8] sm:$0xff]
  %v396 = vld [vmem:[%s1 + $0xae0] sm:$0xff]
  %v397 = vld [vmem:[%s1 + $0xae8] sm:$0xff]
  %v398 = vld [vmem:[%s1 + $0xaf0] sm:$0xff]
  %v399 = vld [vmem:[%s1 + $0xaf8] sm:$0xff]
  %v400 = vld [vmem:[%s1 + $0xb00] sm:$0xff]
  %v401 = vld [vmem:[%s1 + $0xb08] sm:$0xff]
  %v402 = vld [vmem:[%s1 + $0xb10] sm:$0xff]
  %v403 = vld [vmem:[%s1 + $0xb18] sm:$0xff]
  %v404 = vld [vmem:[%s1 + $0xb20] sm:$0xff]
  %v405 = vld [vmem:[%s1 + $0xb28] sm:$0xff]
  %v406 = vld [vmem:[%s1 + $0xb30] sm:$0xff]
  %v407 = vld [vmem:[%s1 + $0xb38] sm:$0xff]
  %v408 = vld [vmem:[%s1 + $0xb40] sm:$0xff]
  %v409 = vld [vmem:[%s1 + $0xb48] sm:$0xff]
  %v410 = vld [vmem:[%s1 + $0xb50] sm:$0xff]
  %v411 = vld [vmem:[%s1 + $0xb58] sm:$0xff]
  %v412 = vld [vmem:[%s1 + $0xb60] sm:$0xff]
  %v413 = vld [vmem:[%s1 + $0xb68] sm:$0xff]
  %v414 = vld [vmem:[%s1 + $0xb70] sm:$0xff]
  %v415 = vld [vmem:[%s1 + $0xb78] sm:$0xff]
  %v416 = vld [vmem:[%s1 + $0xb80] sm:$0xff]
  %v417 = vld [vmem:[%s1 + $0xb88] sm:$0xff]
  %v418 = vld [vmem:[%s1 + $0xb90] sm:$0xff]
  %v419 = vld [vmem:[%s1 + $0xb98] sm:$0xff]
  %v420 = vld [vmem:[%s1 + $0xba0] sm:$0xff]
  %v421 = vld [vmem:[%s1 + $0xba8] sm:$0xff]
  %v422 = vld [vmem:[%s1 + $0xbb0] sm:$0xff]
  %v423 = vld [vmem:[%s1 + $0xbb8] sm:$0xff]
  %v424 = vld [vmem:[%s1 + $0xbc0] sm:$0xff]
  %v425 = vld [vmem:[%s1 + $0xbc8] sm:$0xff]
  %v426 = vld [vmem:[%s1 + $0xbd0] sm:$0xff]
  %v427 = vld [vmem:[%s1 + $0xbd8] sm:$0xff]
  %v428 = vld [vmem:[%s1 + $0xbe0] sm:$0xff]
  %v429 = vld [vmem:[%s1 + $0xbe8] sm:$0xff]
  %v430 = vld [vmem:[%s1 + $0xbf0] sm:$0xff]
  %v431 = vld [vmem:[%s1 + $0xbf8] sm:$0xff]
  %v432 = vld [vmem:[%s1 + $0xc00] sm:$0xff]
  %v433 = vld [vmem:[%s1 + $0xc08] sm:$0xff]
  %v434 = vld [vmem:[%s1 + $0xc10] sm:$0xff]
  %v435 = vld [vmem:[%s1 + $0xc18] sm:$0xff]
  %v436 = vld [vmem:[%s1 + $0xc20] sm:$0xff]
  %v437 = vld [vmem:[%s1 + $0xc28] sm:$0xff]
  %v438 = vld [vmem:[%s1 + $0xc30] sm:$0xff]
  %v439 = vld [vmem:[%s1 + $0xc38] sm:$0xff]
  %v440 = vld [vmem:[%s1 + $0xc40] sm:$0xff]
  %v441 = vld [vmem:[%s1 + $0xc48] sm:$0xff]
  %v442 = vld [vmem:[%s1 + $0xc50] sm:$0xff]
  %v443 = vld [vmem:[%s1 + $0xc58] sm:$0xff]
  %v444 = vld [vmem:[%s1 + $0xc60] sm:$0xff]
  %v445 = vld [vmem:[%s1 + $0xc68] sm:$0xff]
  %v446 = vld [vmem:[%s1 + $0xc70] sm:$0xff]
  %v447 = vld [vmem:[%s1 + $0xc78] sm:$0xff]
  %v448 = vld [vmem:[%s1 + $0xc80] sm:$0xff]
  %v449 = vld [vmem:[%s1 + $0xc88] sm:$0xff]
  %v450 = vld [vmem:[%s1 + $0xc90] sm:$0xff]
  %v451 = vld [vmem:[%s1 + $0xc98] sm:$0xff]
  %v452 = vld [vmem:[%s1 + $0xca0] sm:$0xff]
  %v453 = vld [vmem:[%s1 + $0xca8] sm:$0xff]
  %v454 = vld [vmem:[%s1 + $0xcb0] sm:$0xff]
  %v455 = vld [vmem:[%s1 + $0xcb8] sm:$0xff]
  %v456 = vld [vmem:[%s1 + $0xcc0] sm:$0xff]
  %v457 = vld [vmem:[%s1 + $0xcc8] sm:$0xff]
  %v458 = vld [vmem:[%s1 + $0xcd0] sm:$0xff]
  %v459 = vld [vmem:[%s1 + $0xcd8] sm:$0xff]
  %v460 = vld [vmem:[%s1 + $0xce0] sm:$0xff]
  %v461 = vld [vmem:[%s1 + $0xce8] sm:$0xff]
  %v462 = vld [vmem:[%s1 + $0xcf0] sm:$0xff]
  %v463 = vld [vmem:[%s1 + $0xcf8] sm:$0xff]
  %v464 = vld [vmem:[%s1 + $0xd00] sm:$0xff]
  %v465 = vld [vmem:[%s1 + $0xd08] sm:$0xff]
  %v466 = vld [vmem:[%s1 + $0xd10] sm:$0xff]
  %v467 = vld [vmem:[%s1 + $0xd18] sm:$0xff]
  %v468 = vld [vmem:[%s1 + $0xd20] sm:$0xff]
  %v469 = vld [vmem:[%s1 + $0xd28] sm:$0xff]
  %v470 = vld [vmem:[%s1 + $0xd30] sm:$0xff]
  %v471 = vld [vmem:[%s1 + $0xd38] sm:$0xff]
  %v472 = vld [vmem:[%s1 + $0xd40] sm:$0xff]
  %v473 = vld [vmem:[%s1 + $0xd48] sm:$0xff]
  %v474 = vld [vmem:[%s1 + $0xd50] sm:$0xff]
  %v475 = vld [vmem:[%s1 + $0xd58] sm:$0xff]
  %v476 = vld [vmem:[%s1 + $0xd60] sm:$0xff]
  %v477 = vld [vmem:[%s1 + $0xd68] sm:$0xff]
  %v478 = vld [vmem:[%s1 + $0xd70] sm:$0xff]
  %v479 = vld [vmem:[%s1 + $0xd78] sm:$0xff]
  %v480 = vld [vmem:[%s1 + $0xd80] sm:$0xff]
  %v481 = vld [vmem:[%s1 + $0xd88] sm:$0xff]
  %v482 = vld [vmem:[%s1 + $0xd90] sm:$0xff]
  %v483 = vld [vmem:[%s1 + $0xd98] sm:$0xff]
  %v484 = vld [vmem:[%s1 + $0xda0] sm:$0xff]
  %v485 = vld [vmem:[%s1 + $0xda8] sm:$0xff]
  %v486 = vld [vmem:[%s1 + $0xdb0] sm:$0xff]
  %v487 = vld [vmem:[%s1 + $0xdb8] sm:$0xff]
  %v488 = vld [vmem:[%s1 + $0xdc0] sm:$0xff]
  %v489 = vld [vmem:[%s1 + $0xdc8] sm:$0xff]
  %v490 = vld [vmem:[%s1 + $0xdd0] sm:$0xff]
  %v491 = vld [vmem:[%s1 + $0xdd8] sm:$0xff]
  %v492 = vld [vmem:[%s1 + $0xde0] sm:$0xff]
  %v493 = vld [vmem:[%s1 + $0xde8] sm:$0xff]
  %v494 = vld [vmem:[%s1 + $0xdf0] sm:$0xff]
  %v495 = vld [vmem:[%s1 + $0xdf8] sm:$0xff]
  %v496 = vld [vmem:[%s1 + $0xe00] sm:$0xff]
  %v497 = vld [vmem:[%s1 + $0xe08] sm:$0xff]
  %v498 = vld [vmem:[%s1 + $0xe10] sm:$0xff]
  %v499 = vld [vmem:[%s1 + $0xe18] sm:$0xff]
  %v500 = vld [vmem:[%s1 + $0xe20] sm:$0xff]
  %v501 = vld [vmem:[%s1 + $0xe28] sm:$0xff]
  %v502 = vld [vmem:[%s1 + $0xe30] sm:$0xff]
  %v503 = vld [vmem:[%s1 + $0xe38] sm:$0xff]
  %v504 = vld [vmem:[%s1 + $0xe40] sm:$0xff]
  %v505 = vld [vmem:[%s1 + $0xe48] sm:$0xff]
  %v506 = vld [vmem:[%s1 + $0xe50] sm:$0xff]
  %v507 = vld [vmem:[%s1 + $0xe58] sm:$0xff]
  %v508 = vld [vmem:[%s1 + $0xe60] sm:$0xff]
  %v509 = vld [vmem:[%s1 + $0xe68] sm:$0xff]
  %v510 = vld [vmem:[%s1 + $0xe70] sm:$0xff]
  %v511 = vld [vmem:[%s1 + $0xe78] sm:$0xff]
  %v512 = vld [vmem:[%s1 + $0xe80] sm:$0xff]
  %v513 = vld [vmem:[%s1 + $0xe88] sm:$0xff]
  %v514 = vld [vmem:[%s1 + $0xe90] sm:$0xff]
  %v515 = vld [vmem:[%s1 + $0xe98] sm:$0xff]
  %v516 = vld [vmem:[%s1 + $0xea0] sm:$0xff]
  %v517 = vld [vmem:[%s1 + $0xea8] sm:$0xff]
  %v518 = vld [vmem:[%s1 + $0xeb0] sm:$0xff]
  %v519 = vld [vmem:[%s1 + $0xeb8] sm:$0xff]
  %v520 = vld [vmem:[%s1 + $0xec0] sm:$0xff]
  %v521 = vld [vmem:[%s1 + $0xec8] sm:$0xff]
  %v522 = vld [vmem:[%s1 + $0xed0] sm:$0xff]
  %v523 = vld [vmem:[%s1 + $0xed8] sm:$0xff]
  %v524 = vld [vmem:[%s1 + $0xee0] sm:$0xff]
  %v525 = vld [vmem:[%s1 + $0xee8] sm:$0xff]
  %v526 = vld [vmem:[%s1 + $0xef0] sm:$0xff]
  %v527 = vld [vmem:[%s1 + $0xef8] sm:$0xff]
  %v528 = vld [vmem:[%s1 + $0xf00] sm:$0xff]
  %v529 = vld [vmem:[%s1 + $0xf08] sm:$0xff]
  %v530 = vld [vmem:[%s1 + $0xf10] sm:$0xff]
  %v531 = vld [vmem:[%s1 + $0xf18] sm:$0xff]
  %v532 = vld [vmem:[%s1 + $0xf20] sm:$0xff]
  %v533 = vld [vmem:[%s1 + $0xf28] sm:$0xff]
  %v534 = vld [vmem:[%s1 + $0xf30] sm:$0xff]
  %v535 = vld [vmem:[%s1 + $0xf38] sm:$0xff]
  %v536 = vld [vmem:[%s1 + $0xf40] sm:$0xff]
  %v537 = vld [vmem:[%s1 + $0xf48] sm:$0xff]
  %v538 = vld [vmem:[%s1 + $0xf50] sm:$0xff]
  %v539 = vld [vmem:[%s1 + $0xf58] sm:$0xff]
  %v540 = vld [vmem:[%s1 + $0xf60] sm:$0xff]
  %v541 = vld [vmem:[%s1 + $0xf68] sm:$0xff]
  %v542 = vld [vmem:[%s1 + $0xf70] sm:$0xff]
  %v543 = vld [vmem:[%s1 + $0xf78] sm:$0xff]
  %v544 = vld [vmem:[%s1 + $0xf80] sm:$0xff]
  %v545 = vld [vmem:[%s1 + $0xf88] sm:$0xff]
  %v546 = vld [vmem:[%s1 + $0xf90] sm:$0xff]
  %v547 = vld [vmem:[%s1 + $0xf98] sm:$0xff]
  %v548 = vld [vmem:[%s1 + $0xfa0] sm:$0xff]
  %v549 = vld [vmem:[%s1 + $0xfa8] sm:$0xff]
  %v550 = vld [vmem:[%s1 + $0xfb0] sm:$0xff]
  %v551 = vld [vmem:[%s1 + $0xfb8] sm:$0xff]
  %v552 = vld [vmem:[%s1 + $0xfc0] sm:$0xff]
  %v553 = vld [vmem:[%s1 + $0xfc8] sm:$0xff]
  %v554 = vld [vmem:[%s1 + $0xfd0] sm:$0xff]
  %v555 = vld [vmem:[%s1 + $0xfd8] sm:$0xff]
  %v556 = vld [vmem:[%s1 + $0xfe0] sm:$0xff]
  %v557 = vld [vmem:[%s1 + $0xfe8] sm:$0xff]
  %v558 = vld [vmem:[%s1 + $0xff0] sm:$0xff]
  %v559 = vld [vmem:[%s1 + $0xff8] sm:$0xff]
  %v564 = vcombine.high %v44, %v44
  %v566 = vunpack.c.l.s4 1983009808
  %v567 = vunpack.c.0.s8 %v566
  %v568 = vlaneseq
  %v569 = vshrl.u32 %v568, 7
  %v570 = vsub.s32 %v567, %v569
  %v571 = vrot.slane %v44, %v570
  %v573 = vunpack.c.l.s4 1983009808
  %v574 = vunpack.c.0.s8 %v573
  %v575 = vlaneseq
  %v576 = vshrl.u32 %v575, 7
  %v577 = vsub.s32 %v574, %v576
  %v578 = vrot.slane %v564, %v577
  %v579 = vcombine.high %v571, %v571
  %v580 = vcombine.high %v578, %v578
  %v581 = vcombine.high %v45, %v45
  %v583 = vunpack.c.l.s4 1983009808
  %v584 = vunpack.c.0.s8 %v583
  %v585 = vlaneseq
  %v586 = vshrl.u32 %v585, 7
  %v587 = vsub.s32 %v584, %v586
  %v588 = vrot.slane %v45, %v587
  %v590 = vunpack.c.l.s4 1983009808
  %v591 = vunpack.c.0.s8 %v590
  %v592 = vlaneseq
  %v593 = vshrl.u32 %v592, 7
  %v594 = vsub.s32 %v591, %v593
  %v595 = vrot.slane %v581, %v594
  %v596 = vcombine.high %v588, %v588
  %v597 = vcombine.high %v595, %v595
  %v598 = vcombine.high %v46, %v46
  %v600 = vunpack.c.l.s4 1983009808
  %v601 = vunpack.c.0.s8 %v600
  %v602 = vlaneseq
  %v603 = vshrl.u32 %v602, 7
  %v604 = vsub.s32 %v601, %v603
  %v605 = vrot.slane %v46, %v604
  %v607 = vunpack.c.l.s4 1983009808
  %v608 = vunpack.c.0.s8 %v607
  %v609 = vlaneseq
  %v610 = vshrl.u32 %v609, 7
  %v611 = vsub.s32 %v608, %v610
  %v612 = vrot.slane %v598, %v611
  %v613 = vcombine.high %v605, %v605
  %v614 = vcombine.high %v612, %v612
  %v615 = vcombine.high %v47, %v47
  %v617 = vunpack.c.l.s4 1983009808
  %v618 = vunpack.c.0.s8 %v617
  %v619 = vlaneseq
  %v620 = vshrl.u32 %v619, 7
  %v621 = vsub.s32 %v618, %v620
  %v622 = vrot.slane %v47, %v621
  %v624 = vunpack.c.l.s4 1983009808
  %v625 = vunpack.c.0.s8 %v624
  %v626 = vlaneseq
  %v627 = vshrl.u32 %v626, 7
  %v628 = vsub.s32 %v625, %v627
  %v629 = vrot.slane %v615, %v628
  %v630 = vcombine.high %v622, %v622
  %v631 = vcombine.high %v629, %v629
  %648 = vmatprep.subr.mxu0 %v49
  %649 = vmatpush1.msra.mxu0 %v48
  %650 = vmatprep.subr.mxu0 %v51
  %651 = vmatpush1.msra.mxu0 %v50
  %652 = vmatprep.subr.mxu0 %v53
  %653 = vmatpush1.msra.mxu0 %v52
  %654 = vmatprep.subr.mxu0 %v55
  %655 = vmatpush1.msra.mxu0 %v54
  %656 = vmatprep.subr.mxu0 %v57
  %657 = vmatpush1.msra.mxu0 %v56
  %658 = vmatprep.subr.mxu0 %v59
  %659 = vmatpush1.msra.mxu0 %v58
  %660 = vmatprep.subr.mxu0 %v61
  %661 = vmatpush1.msra.mxu0 %v60
  %662 = vmatprep.subr.mxu0 %v63
  %663 = vmatpush1.msra.mxu0 %v62
  %664 = vmatprep.subr.mxu0 %v65
  %665 = vmatpush1.msra.mxu0 %v64
  %666 = vmatprep.subr.mxu0 %v67
  %667 = vmatpush1.msra.mxu0 %v66
  %668 = vmatprep.subr.mxu0 %v69
  %669 = vmatpush1.msra.mxu0 %v68
  %670 = vmatprep.subr.mxu0 %v71
  %671 = vmatpush1.msra.mxu0 %v70
  %672 = vmatprep.subr.mxu0 %v73
  %673 = vmatpush1.msra.mxu0 %v72
  %674 = vmatprep.subr.mxu0 %v75
  %675 = vmatpush1.msra.mxu0 %v74
  %676 = vmatprep.subr.mxu0 %v77
  %677 = vmatpush1.msra.mxu0 %v76
  %678 = vmatprep.subr.mxu0 %v79
  %679 = vmatpush1.msra.mxu0 %v78
  %680 = vmatprep.subr.mxu0 %v81
  %681 = vmatpush1.msra.mxu0 %v80
  %682 = vmatprep.subr.mxu0 %v83
  %683 = vmatpush1.msra.mxu0 %v82
  %684 = vmatprep.subr.mxu0 %v85
  %685 = vmatpush1.msra.mxu0 %v84
  %686 = vmatprep.subr.mxu0 %v87
  %687 = vmatpush1.msra.mxu0 %v86
  %688 = vmatprep.subr.mxu0 %v89
  %689 = vmatpush1.msra.mxu0 %v88
  %690 = vmatprep.subr.mxu0 %v91
  %691 = vmatpush1.msra.mxu0 %v90
  %692 = vmatprep.subr.mxu0 %v93
  %693 = vmatpush1.msra.mxu0 %v92
  %694 = vmatprep.subr.mxu0 %v95
  %695 = vmatpush1.msra.mxu0 %v94
  %696 = vmatprep.subr.mxu0 %v97
  %697 = vmatpush1.msra.mxu0 %v96
  %698 = vmatprep.subr.mxu0 %v99
  %699 = vmatpush1.msra.mxu0 %v98
  %700 = vmatprep.subr.mxu0 %v101
  %701 = vmatpush1.msra.mxu0 %v100
  %702 = vmatprep.subr.mxu0 %v103
  %703 = vmatpush1.msra.mxu0 %v102
  %704 = vmatprep.subr.mxu0 %v105
  %705 = vmatpush1.msra.mxu0 %v104
  %706 = vmatprep.subr.mxu0 %v107
  %707 = vmatpush1.msra.mxu0 %v106
  %708 = vmatprep.subr.mxu0 %v109
  %709 = vmatpush1.msra.mxu0 %v108
  %710 = vmatprep.subr.mxu0 %v111
  %711 = vmatpush1.msra.mxu0 %v110
  %712 = vmatprep.mubr.f32.mxu0 %v579
  %713 = vmatmul.mubr.f32.gmra.mrb[0].mxu0 %v571
  %v714 = vpop.f32.mrb[0].mxu0
  %v715 = vadd.f32 0.0, %v714
  %v716 = vpop.f32.mrb[0].mxu0
  %v717 = vadd.f32 0.0, %v716
  %718 = vdwg.mxu0
  %719 = vmatprep.subr.mxu0 %v113
  %720 = vmatpush1.msra.mxu0 %v112
  %721 = vmatprep.subr.mxu0 %v115
  %722 = vmatpush1.msra.mxu0 %v114
  %723 = vmatprep.subr.mxu0 %v117
  %724 = vmatpush1.msra.mxu0 %v116
  %725 = vmatprep.subr.mxu0 %v119
  %726 = vmatpush1.msra.mxu0 %v118
  %727 = vmatprep.subr.mxu0 %v121
  %728 = vmatpush1.msra.mxu0 %v120
  %729 = vmatprep.subr.mxu0 %v123
  %730 = vmatpush1.msra.mxu0 %v122
  %731 = vmatprep.subr.mxu0 %v125
  %732 = vmatpush1.msra.mxu0 %v124
  %733 = vmatprep.subr.mxu0 %v127
  %734 = vmatpush1.msra.mxu0 %v126
  %735 = vmatprep.subr.mxu0 %v129
  %736 = vmatpush1.msra.mxu0 %v128
  %737 = vmatprep.subr.mxu0 %v131
  %738 = vmatpush1.msra.mxu0 %v130
  %739 = vmatprep.subr.mxu0 %v133
  %740 = vmatpush1.msra.mxu0 %v132
  %741 = vmatprep.subr.mxu0 %v135
  %742 = vmatpush1.msra.mxu0 %v134
  %743 = vmatprep.subr.mxu0 %v137
  %744 = vmatpush1.msra.mxu0 %v136
  %745 = vmatprep.subr.mxu0 %v139
  %746 = vmatpush1.msra.mxu0 %v138
  %747 = vmatprep.subr.mxu0 %v141
  %748 = vmatpush1.msra.mxu0 %v140
  %749 = vmatprep.subr.mxu0 %v143
  %750 = vmatpush1.msra.mxu0 %v142
  %751 = vmatprep.subr.mxu0 %v145
  %752 = vmatpush1.msra.mxu0 %v144
  %753 = vmatprep.subr.mxu0 %v147
  %754 = vmatpush1.msra.mxu0 %v146
  %755 = vmatprep.subr.mxu0 %v149
  %756 = vmatpush1.msra.mxu0 %v148
  %757 = vmatprep.subr.mxu0 %v151
  %758 = vmatpush1.msra.mxu0 %v150
  %759 = vmatprep.subr.mxu0 %v153
  %760 = vmatpush1.msra.mxu0 %v152
  %761 = vmatprep.subr.mxu0 %v155
  %762 = vmatpush1.msra.mxu0 %v154
  %763 = vmatprep.subr.mxu0 %v157
  %764 = vmatpush1.msra.mxu0 %v156
  %765 = vmatprep.subr.mxu0 %v159
  %766 = vmatpush1.msra.mxu0 %v158
  %767 = vmatprep.subr.mxu0 %v161
  %768 = vmatpush1.msra.mxu0 %v160
  %769 = vmatprep.subr.mxu0 %v163
  %770 = vmatpush1.msra.mxu0 %v162
  %771 = vmatprep.subr.mxu0 %v165
  %772 = vmatpush1.msra.mxu0 %v164
  %773 = vmatprep.subr.mxu0 %v167
  %774 = vmatpush1.msra.mxu0 %v166
  %775 = vmatprep.subr.mxu0 %v169
  %776 = vmatpush1.msra.mxu0 %v168
  %777 = vmatprep.subr.mxu0 %v171
  %778 = vmatpush1.msra.mxu0 %v170
  %779 = vmatprep.subr.mxu0 %v173
  %780 = vmatpush1.msra.mxu0 %v172
  %781 = vmatprep.subr.mxu0 %v175
  %782 = vmatpush1.msra.mxu0 %v174
  %783 = vmatprep.mubr.f32.mxu0 %v580
  %784 = vmatmul.mubr.f32.gmra.mrb[0].mxu0 %v578
  %v785 = vpop.f32.mrb[0].mxu0
  %v786 = vadd.f32 %v715, %v785
  %v787 = vpop.f32.mrb[0].mxu0
  %v788 = vadd.f32 %v717, %v787
  %789 = vdwg.mxu0
  %790 = vmatprep.subr.mxu0 %v177
  %791 = vmatpush1.msra.mxu0 %v176
  %792 = vmatprep.subr.mxu0 %v179
  %793 = vmatpush1.msra.mxu0 %v178
  %794 = vmatprep.subr.mxu0 %v181
  %795 = vmatpush1.msra.mxu0 %v180
  %796 = vmatprep.subr.mxu0 %v183
  %797 = vmatpush1.msra.mxu0 %v182
  %798 = vmatprep.subr.mxu0 %v185
  %799 = vmatpush1.msra.mxu0 %v184
  %800 = vmatprep.subr.mxu0 %v187
  %801 = vmatpush1.msra.mxu0 %v186
  %802 = vmatprep.subr.mxu0 %v189
  %803 = vmatpush1.msra.mxu0 %v188
  %804 = vmatprep.subr.mxu0 %v191
  %805 = vmatpush1.msra.mxu0 %v190
  %806 = vmatprep.subr.mxu0 %v193
  %807 = vmatpush1.msra.mxu0 %v192
  %808 = vmatprep.subr.mxu0 %v195
  %809 = vmatpush1.msra.mxu0 %v194
  %810 = vmatprep.subr.mxu0 %v197
  %811 = vmatpush1.msra.mxu0 %v196
  %812 = vmatprep.subr.mxu0 %v199
  %813 = vmatpush1.msra.mxu0 %v198
  %814 = vmatprep.subr.mxu0 %v201
  %815 = vmatpush1.msra.mxu0 %v200
  %816 = vmatprep.subr.mxu0 %v203
  %817 = vmatpush1.msra.mxu0 %v202
  %818 = vmatprep.subr.mxu0 %v205
  %819 = vmatpush1.msra.mxu0 %v204
  %820 = vmatprep.subr.mxu0 %v207
  %821 = vmatpush1.msra.mxu0 %v206
  %822 = vmatprep.subr.mxu0 %v209
  %823 = vmatpush1.msra.mxu0 %v208
  %824 = vmatprep.subr.mxu0 %v211
  %825 = vmatpush1.msra.mxu0 %v210
  %826 = vmatprep.subr.mxu0 %v213
  %827 = vmatpush1.msra.mxu0 %v212
  %828 = vmatprep.subr.mxu0 %v215
  %829 = vmatpush1.msra.mxu0 %v214
  %830 = vmatprep.subr.mxu0 %v217
  %831 = vmatpush1.msra.mxu0 %v216
  %832 = vmatprep.subr.mxu0 %v219
  %833 = vmatpush1.msra.mxu0 %v218
  %834 = vmatprep.subr.mxu0 %v221
  %835 = vmatpush1.msra.mxu0 %v220
  %836 = vmatprep.subr.mxu0 %v223
  %837 = vmatpush1.msra.mxu0 %v222
  %838 = vmatprep.subr.mxu0 %v225
  %839 = vmatpush1.msra.mxu0 %v224
  %840 = vmatprep.subr.mxu0 %v227
  %841 = vmatpush1.msra.mxu0 %v226
  %842 = vmatprep.subr.mxu0 %v229
  %843 = vmatpush1.msra.mxu0 %v228
  %844 = vmatprep.subr.mxu0 %v231
  %845 = vmatpush1.msra.mxu0 %v230
  %846 = vmatprep.subr.mxu0 %v233
  %847 = vmatpush1.msra.mxu0 %v232
  %848 = vmatprep.subr.mxu0 %v235
  %849 = vmatpush1.msra.mxu0 %v234
  %850 = vmatprep.subr.mxu0 %v237
  %851 = vmatpush1.msra.mxu0 %v236
  %852 = vmatprep.subr.mxu0 %v239
  %853 = vmatpush1.msra.mxu0 %v238
  %854 = vmatprep.mubr.f32.mxu0 %v596
  %855 = vmatmul.mubr.f32.gmra.mrb[0].mxu0 %v588
  %v856 = vpop.f32.mrb[0].mxu0
  %v857 = vadd.f32 %v786, %v856
  %v858 = vpop.f32.mrb[0].mxu0
  %v859 = vadd.f32 %v788, %v858
  %860 = vdwg.mxu0
  %861 = vmatprep.subr.mxu0 %v241
  %862 = vmatpush1.msra.mxu0 %v240
  %863 = vmatprep.subr.mxu0 %v243
  %864 = vmatpush1.msra.mxu0 %v242
  %865 = vmatprep.subr.mxu0 %v245
  %866 = vmatpush1.msra.mxu0 %v244
  %867 = vmatprep.subr.mxu0 %v247
  %868 = vmatpush1.msra.mxu0 %v246
  %869 = vmatprep.subr.mxu0 %v249
  %870 = vmatpush1.msra.mxu0 %v248
  %871 = vmatprep.subr.mxu0 %v251
  %872 = vmatpush1.msra.mxu0 %v250
  %873 = vmatprep.subr.mxu0 %v253
  %874 = vmatpush1.msra.mxu0 %v252
  %875 = vmatprep.subr.mxu0 %v255
  %876 = vmatpush1.msra.mxu0 %v254
  %877 = vmatprep.subr.mxu0 %v257
  %878 = vmatpush1.msra.mxu0 %v256
  %879 = vmatprep.subr.mxu0 %v259
  %880 = vmatpush1.msra.mxu0 %v258
  %881 = vmatprep.subr.mxu0 %v261
  %882 = vmatpush1.msra.mxu0 %v260
  %883 = vmatprep.subr.mxu0 %v263
  %884 = vmatpush1.msra.mxu0 %v262
  %885 = vmatprep.subr.mxu0 %v265
  %886 = vmatpush1.msra.mxu0 %v264
  %887 = vmatprep.subr.mxu0 %v267
  %888 = vmatpush1.msra.mxu0 %v266
  %889 = vmatprep.subr.mxu0 %v269
  %890 = vmatpush1.msra.mxu0 %v268
  %891 = vmatprep.subr.mxu0 %v271
  %892 = vmatpush1.msra.mxu0 %v270
  %893 = vmatprep.subr.mxu0 %v273
  %894 = vmatpush1.msra.mxu0 %v272
  %895 = vmatprep.subr.mxu0 %v275
  %896 = vmatpush1.msra.mxu0 %v274
  %897 = vmatprep.subr.mxu0 %v277
  %898 = vmatpush1.msra.mxu0 %v276
  %899 = vmatprep.subr.mxu0 %v279
  %900 = vmatpush1.msra.mxu0 %v278
  %901 = vmatprep.subr.mxu0 %v281
  %902 = vmatpush1.msra.mxu0 %v280
  %903 = vmatprep.subr.mxu0 %v283
  %904 = vmatpush1.msra.mxu0 %v282
  %905 = vmatprep.subr.mxu0 %v285
  %906 = vmatpush1.msra.mxu0 %v284
  %907 = vmatprep.subr.mxu0 %v287
  %908 = vmatpush1.msra.mxu0 %v286
  %909 = vmatprep.subr.mxu0 %v289
  %910 = vmatpush1.msra.mxu0 %v288
  %911 = vmatprep.subr.mxu0 %v291
  %912 = vmatpush1.msra.mxu0 %v290
  %913 = vmatprep.subr.mxu0 %v293
  %914 = vmatpush1.msra.mxu0 %v292
  %915 = vmatprep.subr.mxu0 %v295
  %916 = vmatpush1.msra.mxu0 %v294
  %917 = vmatprep.subr.mxu0 %v297
  %918 = vmatpush1.msra.mxu0 %v296
  %919 = vmatprep.subr.mxu0 %v299
  %920 = vmatpush1.msra.mxu0 %v298
  %921 = vmatprep.subr.mxu0 %v301
  %922 = vmatpush1.msra.mxu0 %v300
  %923 = vmatprep.subr.mxu0 %v303
  %924 = vmatpush1.msra.mxu0 %v302
  %925 = vmatprep.mubr.f32.mxu0 %v597
  %926 = vmatmul.mubr.f32.gmra.mrb[0].mxu0 %v595
  %v927 = vpop.f32.mrb[0].mxu0
  %v928 = vadd.f32 %v857, %v927
  %v929 = vpop.f32.mrb[0].mxu0
  %v930 = vadd.f32 %v859, %v929
  %931 = vdwg.mxu0
  %932 = vmatprep.subr.mxu0 %v305
  %933 = vmatpush1.msra.mxu0 %v304
  %934 = vmatprep.subr.mxu0 %v307
  %935 = vmatpush1.msra.mxu0 %v306
  %936 = vmatprep.subr.mxu0 %v309
  %937 = vmatpush1.msra.mxu0 %v308
  %938 = vmatprep.subr.mxu0 %v311
  %939 = vmatpush1.msra.mxu0 %v310
  %940 = vmatprep.subr.mxu0 %v313
  %941 = vmatpush1.msra.mxu0 %v312
  %942 = vmatprep.subr.mxu0 %v315
  %943 = vmatpush1.msra.mxu0 %v314
  %944 = vmatprep.subr.mxu0 %v317
  %945 = vmatpush1.msra.mxu0 %v316
  %946 = vmatprep.subr.mxu0 %v319
  %947 = vmatpush1.msra.mxu0 %v318
  %948 = vmatprep.subr.mxu0 %v321
  %949 = vmatpush1.msra.mxu0 %v320
  %950 = vmatprep.subr.mxu0 %v323
  %951 = vmatpush1.msra.mxu0 %v322
  %952 = vmatprep.subr.mxu0 %v325
  %953 = vmatpush1.msra.mxu0 %v324
  %954 = vmatprep.subr.mxu0 %v327
  %955 = vmatpush1.msra.mxu0 %v326
  %956 = vmatprep.subr.mxu0 %v329
  %957 = vmatpush1.msra.mxu0 %v328
  %958 = vmatprep.subr.mxu0 %v331
  %959 = vmatpush1.msra.mxu0 %v330
  %960 = vmatprep.subr.mxu0 %v333
  %961 = vmatpush1.msra.mxu0 %v332
  %962 = vmatprep.subr.mxu0 %v335
  %963 = vmatpush1.msra.mxu0 %v334
  %964 = vmatprep.subr.mxu0 %v337
  %965 = vmatpush1.msra.mxu0 %v336
  %966 = vmatprep.subr.mxu0 %v339
  %967 = vmatpush1.msra.mxu0 %v338
  %968 = vmatprep.subr.mxu0 %v341
  %969 = vmatpush1.msra.mxu0 %v340
  %970 = vmatprep.subr.mxu0 %v343
  %971 = vmatpush1.msra.mxu0 %v342
  %972 = vmatprep.subr.mxu0 %v345
  %973 = vmatpush1.msra.mxu0 %v344
  %974 = vmatprep.subr.mxu0 %v347
  %975 = vmatpush1.msra.mxu0 %v346
  %976 = vmatprep.subr.mxu0 %v349
  %977 = vmatpush1.msra.mxu0 %v348
  %978 = vmatprep.subr.mxu0 %v351
  %979 = vmatpush1.msra.mxu0 %v350
  %980 = vmatprep.subr.mxu0 %v353
  %981 = vmatpush1.msra.mxu0 %v352
  %982 = vmatprep.subr.mxu0 %v355
  %983 = vmatpush1.msra.mxu0 %v354
  %984 = vmatprep.subr.mxu0 %v357
  %985 = vmatpush1.msra.mxu0 %v356
  %986 = vmatprep.subr.mxu0 %v359
  %987 = vmatpush1.msra.mxu0 %v358
  %988 = vmatprep.subr.mxu0 %v361
  %989 = vmatpush1.msra.mxu0 %v360
  %990 = vmatprep.subr.mxu0 %v363
  %991 = vmatpush1.msra.mxu0 %v362
  %992 = vmatprep.subr.mxu0 %v365
  %993 = vmatpush1.msra.mxu0 %v364
  %994 = vmatprep.subr.mxu0 %v367
  %995 = vmatpush1.msra.mxu0 %v366
  %996 = vmatprep.mubr.f32.mxu0 %v613
  %997 = vmatmul.mubr.f32.gmra.mrb[0].mxu0 %v605
  %v998 = vpop.f32.mrb[0].mxu0
  %v999 = vadd.f32 %v928, %v998
  %v1000 = vpop.f32.mrb[0].mxu0
  %v1001 = vadd.f32 %v930, %v1000
  %1002 = vdwg.mxu0
  %1003 = vmatprep.subr.mxu0 %v369
  %1004 = vmatpush1.msra.mxu0 %v368
  %1005 = vmatprep.subr.mxu0 %v371
  %1006 = vmatpush1.msra.mxu0 %v370
  %1007 = vmatprep.subr.mxu0 %v373
  %1008 = vmatpush1.msra.mxu0 %v372
  %1009 = vmatprep.subr.mxu0 %v375
  %1010 = vmatpush1.msra.mxu0 %v374
  %1011 = vmatprep.subr.mxu0 %v377
  %1012 = vmatpush1.msra.mxu0 %v376
  %1013 = vmatprep.subr.mxu0 %v379
  %1014 = vmatpush1.msra.mxu0 %v378
  %1015 = vmatprep.subr.mxu0 %v381
  %1016 = vmatpush1.msra.mxu0 %v380
  %1017 = vmatprep.subr.mxu0 %v383
  %1018 = vmatpush1.msra.mxu0 %v382
  %1019 = vmatprep.subr.mxu0 %v385
  %1020 = vmatpush1.msra.mxu0 %v384
  %1021 = vmatprep.subr.mxu0 %v387
  %1022 = vmatpush1.msra.mxu0 %v386
  %1023 = vmatprep.subr.mxu0 %v389
  %1024 = vmatpush1.msra.mxu0 %v388
  %1025 = vmatprep.subr.mxu0 %v391
  %1026 = vmatpush1.msra.mxu0 %v390
  %1027 = vmatprep.subr.mxu0 %v393
  %1028 = vmatpush1.msra.mxu0 %v392
  %1029 = vmatprep.subr.mxu0 %v395
  %1030 = vmatpush1.msra.mxu0 %v394
  %1031 = vmatprep.subr.mxu0 %v397
  %1032 = vmatpush1.msra.mxu0 %v396
  %1033 = vmatprep.subr.mxu0 %v399
  %1034 = vmatpush1.msra.mxu0 %v398
  %1035 = vmatprep.subr.mxu0 %v401
  %1036 = vmatpush1.msra.mxu0 %v400
  %1037 = vmatprep.subr.mxu0 %v403
  %1038 = vmatpush1.msra.mxu0 %v402
  %1039 = vmatprep.subr.mxu0 %v405
  %1040 = vmatpush1.msra.mxu0 %v404
  %1041 = vmatprep.subr.mxu0 %v407
  %1042 = vmatpush1.msra.mxu0 %v406
  %1043 = vmatprep.subr.mxu0 %v409
  %1044 = vmatpush1.msra.mxu0 %v408
  %1045 = vmatprep.subr.mxu0 %v411
  %1046 = vmatpush1.msra.mxu0 %v410
  %1047 = vmatprep.subr.mxu0 %v413
  %1048 = vmatpush1.msra.mxu0 %v412
  %1049 = vmatprep.subr.mxu0 %v415
  %1050 = vmatpush1.msra.mxu0 %v414
  %1051 = vmatprep.subr.mxu0 %v417
  %1052 = vmatpush1.msra.mxu0 %v416
  %1053 = vmatprep.subr.mxu0 %v419
  %1054 = vmatpush1.msra.mxu0 %v418
  %1055 = vmatprep.subr.mxu0 %v421
  %1056 = vmatpush1.msra.mxu0 %v420
  %1057 = vmatprep.subr.mxu0 %v423
  %1058 = vmatpush1.msra.mxu0 %v422
  %1059 = vmatprep.subr.mxu0 %v425
  %1060 = vmatpush1.msra.mxu0 %v424
  %1061 = vmatprep.subr.mxu0 %v427
  %1062 = vmatpush1.msra.mxu0 %v426
  %1063 = vmatprep.subr.mxu0 %v429
  %1064 = vmatpush1.msra.mxu0 %v428
  %1065 = vmatprep.subr.mxu0 %v431
  %1066 = vmatpush1.msra.mxu0 %v430
  %1067 = vmatprep.mubr.f32.mxu0 %v614
  %1068 = vmatmul.mubr.f32.gmra.mrb[0].mxu0 %v612
  %v1069 = vpop.f32.mrb[0].mxu0
  %v1070 = vadd.f32 %v999, %v1069
  %v1071 = vpop.f32.mrb[0].mxu0
  %v1072 = vadd.f32 %v1001, %v1071
  %1073 = vdwg.mxu0
  %1074 = vmatprep.subr.mxu0 %v433
  %1075 = vmatpush1.msra.mxu0 %v432
  %1076 = vmatprep.subr.mxu0 %v435
  %1077 = vmatpush1.msra.mxu0 %v434
  %1078 = vmatprep.subr.mxu0 %v437
  %1079 = vmatpush1.msra.mxu0 %v436
  %1080 = vmatprep.subr.mxu0 %v439
  %1081 = vmatpush1.msra.mxu0 %v438
  %1082 = vmatprep.subr.mxu0 %v441
  %1083 = vmatpush1.msra.mxu0 %v440
  %1084 = vmatprep.subr.mxu0 %v443
  %1085 = vmatpush1.msra.mxu0 %v442
  %1086 = vmatprep.subr.mxu0 %v445
  %1087 = vmatpush1.msra.mxu0 %v444
  %1088 = vmatprep.subr.mxu0 %v447
  %1089 = vmatpush1.msra.mxu0 %v446
  %1090 = vmatprep.subr.mxu0 %v449
  %1091 = vmatpush1.msra.mxu0 %v448
  %1092 = vmatprep.subr.mxu0 %v451
  %1093 = vmatpush1.msra.mxu0 %v450
  %1094 = vmatprep.subr.mxu0 %v453
  %1095 = vmatpush1.msra.mxu0 %v452
  %1096 = vmatprep.subr.mxu0 %v455
  %1097 = vmatpush1.msra.mxu0 %v454
  %1098 = vmatprep.subr.mxu0 %v457
  %1099 = vmatpush1.msra.mxu0 %v456
  %1100 = vmatprep.subr.mxu0 %v459
  %1101 = vmatpush1.msra.mxu0 %v458
  %1102 = vmatprep.subr.mxu0 %v461
  %1103 = vmatpush1.msra.mxu0 %v460
  %1104 = vmatprep.subr.mxu0 %v463
  %1105 = vmatpush1.msra.mxu0 %v462
  %1106 = vmatprep.subr.mxu0 %v465
  %1107 = vmatpush1.msra.mxu0 %v464
  %1108 = vmatprep.subr.mxu0 %v467
  %1109 = vmatpush1.msra.mxu0 %v466
  %1110 = vmatprep.subr.mxu0 %v469
  %1111 = vmatpush1.msra.mxu0 %v468
  %1112 = vmatprep.subr.mxu0 %v471
  %1113 = vmatpush1.msra.mxu0 %v470
  %1114 = vmatprep.subr.mxu0 %v473
  %1115 = vmatpush1.msra.mxu0 %v472
  %1116 = vmatprep.subr.mxu0 %v475
  %1117 = vmatpush1.msra.mxu0 %v474
  %1118 = vmatprep.subr.mxu0 %v477
  %1119 = vmatpush1.msra.mxu0 %v476
  %1120 = vmatprep.subr.mxu0 %v479
  %1121 = vmatpush1.msra.mxu0 %v478
  %1122 = vmatprep.subr.mxu0 %v481
  %1123 = vmatpush1.msra.mxu0 %v480
  %1124 = vmatprep.subr.mxu0 %v483
  %1125 = vmatpush1.msra.mxu0 %v482
  %1126 = vmatprep.subr.mxu0 %v485
  %1127 = vmatpush1.msra.mxu0 %v484
  %1128 = vmatprep.subr.mxu0 %v487
  %1129 = vmatpush1.msra.mxu0 %v486
  %1130 = vmatprep.subr.mxu0 %v489
  %1131 = vmatpush1.msra.mxu0 %v488
  %1132 = vmatprep.subr.mxu0 %v491
  %1133 = vmatpush1.msra.mxu0 %v490
  %1134 = vmatprep.subr.mxu0 %v493
  %1135 = vmatpush1.msra.mxu0 %v492
  %1136 = vmatprep.subr.mxu0 %v495
  %1137 = vmatpush1.msra.mxu0 %v494
  %1138 = vmatprep.mubr.f32.mxu0 %v630
  %1139 = vmatmul.mubr.f32.gmra.mrb[0].mxu0 %v622
  %v1140 = vpop.f32.mrb[0].mxu0
  %v1141 = vadd.f32 %v1070, %v1140
  %v1142 = vpop.f32.mrb[0].mxu0
  %v1143 = vadd.f32 %v1072, %v1142
  %1144 = vdwg.mxu0
  %1145 = vmatprep.subr.mxu0 %v497
  %1146 = vmatpush1.msra.mxu0 %v496
  %1147 = vmatprep.subr.mxu0 %v499
  %1148 = vmatpush1.msra.mxu0 %v498
  %1149 = vmatprep.subr.mxu0 %v501
  %1150 = vmatpush1.msra.mxu0 %v500
  %1151 = vmatprep.subr.mxu0 %v503
  %1152 = vmatpush1.msra.mxu0 %v502
  %1153 = vmatprep.subr.mxu0 %v505
  %1154 = vmatpush1.msra.mxu0 %v504
  %1155 = vmatprep.subr.mxu0 %v507
  %1156 = vmatpush1.msra.mxu0 %v506
  %1157 = vmatprep.subr.mxu0 %v509
  %1158 = vmatpush1.msra.mxu0 %v508
  %1159 = vmatprep.subr.mxu0 %v511
  %1160 = vmatpush1.msra.mxu0 %v510
  %1161 = vmatprep.subr.mxu0 %v513
  %1162 = vmatpush1.msra.mxu0 %v512
  %1163 = vmatprep.subr.mxu0 %v515
  %1164 = vmatpush1.msra.mxu0 %v514
  %1165 = vmatprep.subr.mxu0 %v517
  %1166 = vmatpush1.msra.mxu0 %v516
  %1167 = vmatprep.subr.mxu0 %v519
  %1168 = vmatpush1.msra.mxu0 %v518
  %1169 = vmatprep.subr.mxu0 %v521
  %1170 = vmatpush1.msra.mxu0 %v520
  %1171 = vmatprep.subr.mxu0 %v523
  %1172 = vmatpush1.msra.mxu0 %v522
  %1173 = vmatprep.subr.mxu0 %v525
  %1174 = vmatpush1.msra.mxu0 %v524
  %1175 = vmatprep.subr.mxu0 %v527
  %1176 = vmatpush1.msra.mxu0 %v526
  %1177 = vmatprep.subr.mxu0 %v529
  %1178 = vmatpush1.msra.mxu0 %v528
  %1179 = vmatprep.subr.mxu0 %v531
  %1180 = vmatpush1.msra.mxu0 %v530
  %1181 = vmatprep.subr.mxu0 %v533
  %1182 = vmatpush1.msra.mxu0 %v532
  %1183 = vmatprep.subr.mxu0 %v535
  %1184 = vmatpush1.msra.mxu0 %v534
  %1185 = vmatprep.subr.mxu0 %v537
  %1186 = vmatpush1.msra.mxu0 %v536
  %1187 = vmatprep.subr.mxu0 %v539
  %1188 = vmatpush1.msra.mxu0 %v538
  %1189 = vmatprep.subr.mxu0 %v541
  %1190 = vmatpush1.msra.mxu0 %v540
  %1191 = vmatprep.subr.mxu0 %v543
  %1192 = vmatpush1.msra.mxu0 %v542
  %1193 = vmatprep.subr.mxu0 %v545
  %1194 = vmatpush1.msra.mxu0 %v544
  %1195 = vmatprep.subr.mxu0 %v547
  %1196 = vmatpush1.msra.mxu0 %v546
  %1197 = vmatprep.subr.mxu0 %v549
  %1198 = vmatpush1.msra.mxu0 %v548
  %1199 = vmatprep.subr.mxu0 %v551
  %1200 = vmatpush1.msra.mxu0 %v550
  %1201 = vmatprep.subr.mxu0 %v553
  %1202 = vmatpush1.msra.mxu0 %v552
  %1203 = vmatprep.subr.mxu0 %v555
  %1204 = vmatpush1.msra.mxu0 %v554
  %1205 = vmatprep.subr.mxu0 %v557
  %1206 = vmatpush1.msra.mxu0 %v556
  %1207 = vmatprep.subr.mxu0 %v559
  %1208 = vmatpush1.msra.mxu0 %v558
  %1209 = vmatprep.mubr.f32.mxu0 %v631
  %1210 = vmatmul.mubr.f32.gmra.mrb[0].mxu0 %v629
  %v1211 = vpop.f32.mrb[0].mxu0
  %v1212 = vadd.f32 %v1141, %v1211
  %v1213 = vpop.f32.mrb[0].mxu0
  %v1214 = vadd.f32 %v1143, %v1213
  %1215 = vdwg.mxu0
  %v1216 = vxor.u32 %v1212, 2147483648
  %v1217 = vxor.u32 %v1214, 2147483648
  %v1218 = vmul.f32 %v1216, 1.442695
  %v1219 = vpow.pop %v1218
  %v1220 = vmul.f32 %v1217, 1.442695
  %v1221 = vpow.pop %v1220
  %v1222 = vadd.f32 %v1219, 1.0
  %v1223 = vadd.f32 %v1221, 1.0
  %v1224 = vrcp.pop %v1222
  %v1225 = vmul.f32 1.0, %v1224
  %v1226 = vrcp.pop %v1223
  %v1227 = vmul.f32 1.0, %v1226
  %v1228 = vld [vmem:[%s2] sm:$0xff]
  %v1229 = vld [vmem:[%s2 + $0x8] sm:$0xff]
  %v1230 = vld [vmem:[%s2 + $0x10] sm:$0xff]
  %v1231 = vld [vmem:[%s2 + $0x18] sm:$0xff]
  %v1232 = vld [vmem:[%s2 + $0x20] sm:$0xff]
  %v1233 = vld [vmem:[%s2 + $0x28] sm:$0xff]
  %v1234 = vld [vmem:[%s2 + $0x30] sm:$0xff]
  %v1235 = vld [vmem:[%s2 + $0x38] sm:$0xff]
  %v1236 = vld [vmem:[%s2 + $0x40] sm:$0xff]
  %v1237 = vld [vmem:[%s2 + $0x48] sm:$0xff]
  %v1238 = vld [vmem:[%s2 + $0x50] sm:$0xff]
  %v1239 = vld [vmem:[%s2 + $0x58] sm:$0xff]
  %v1240 = vld [vmem:[%s2 + $0x60] sm:$0xff]
  %v1241 = vld [vmem:[%s2 + $0x68] sm:$0xff]
  %v1242 = vld [vmem:[%s2 + $0x70] sm:$0xff]
  %v1243 = vld [vmem:[%s2 + $0x78] sm:$0xff]
  %v1244 = vld [vmem:[%s2 + $0x80] sm:$0xff]
  %v1245 = vld [vmem:[%s2 + $0x88] sm:$0xff]
  %v1246 = vld [vmem:[%s2 + $0x90] sm:$0xff]
  %v1247 = vld [vmem:[%s2 + $0x98] sm:$0xff]
  %v1248 = vld [vmem:[%s2 + $0xa0] sm:$0xff]
  %v1249 = vld [vmem:[%s2 + $0xa8] sm:$0xff]
  %v1250 = vld [vmem:[%s2 + $0xb0] sm:$0xff]
  %v1251 = vld [vmem:[%s2 + $0xb8] sm:$0xff]
  %v1252 = vld [vmem:[%s2 + $0xc0] sm:$0xff]
  %v1253 = vld [vmem:[%s2 + $0xc8] sm:$0xff]
  %v1254 = vld [vmem:[%s2 + $0xd0] sm:$0xff]
  %v1255 = vld [vmem:[%s2 + $0xd8] sm:$0xff]
  %v1256 = vld [vmem:[%s2 + $0xe0] sm:$0xff]
  %v1257 = vld [vmem:[%s2 + $0xe8] sm:$0xff]
  %v1258 = vld [vmem:[%s2 + $0xf0] sm:$0xff]
  %v1259 = vld [vmem:[%s2 + $0xf8] sm:$0xff]
  %v1260 = vld [vmem:[%s3] sm:$0x1]
  %v1262 = vlaneseq
  %v1263 = vshrl.u32 %v1262, 7
  %v1264 = vsub.s32 0, %v1263
  %v1265 = vrot.slane %v1260, %v1264
  %1267 = vmatprep.subr.mxu0 0.0
  %1268 = vmatpush1.msra.mxu0 %v1228
  %1269 = vmatprep.subr.mxu0 0.0
  %1270 = vmatpush1.msra.mxu0 %v1229
  %1271 = vmatprep.subr.mxu0 0.0
  %1272 = vmatpush1.msra.mxu0 %v1230
  %1273 = vmatprep.subr.mxu0 0.0
  %1274 = vmatpush1.msra.mxu0 %v1231
  %1275 = vmatprep.subr.mxu0 0.0
  %1276 = vmatpush1.msra.mxu0 %v1232
  %1277 = vmatprep.subr.mxu0 0.0
  %1278 = vmatpush1.msra.mxu0 %v1233
  %1279 = vmatprep.subr.mxu0 0.0
  %1280 = vmatpush1.msra.mxu0 %v1234
  %1281 = vmatprep.subr.mxu0 0.0
  %1282 = vmatpush1.msra.mxu0 %v1235
  %1283 = vmatprep.subr.mxu0 0.0
  %1284 = vmatpush1.msra.mxu0 %v1236
  %1285 = vmatprep.subr.mxu0 0.0
  %1286 = vmatpush1.msra.mxu0 %v1237
  %1287 = vmatprep.subr.mxu0 0.0
  %1288 = vmatpush1.msra.mxu0 %v1238
  %1289 = vmatprep.subr.mxu0 0.0
  %1290 = vmatpush1.msra.mxu0 %v1239
  %1291 = vmatprep.subr.mxu0 0.0
  %1292 = vmatpush1.msra.mxu0 %v1240
  %1293 = vmatprep.subr.mxu0 0.0
  %1294 = vmatpush1.msra.mxu0 %v1241
  %1295 = vmatprep.subr.mxu0 0.0
  %1296 = vmatpush1.msra.mxu0 %v1242
  %1297 = vmatprep.subr.mxu0 0.0
  %1298 = vmatpush1.msra.mxu0 %v1243
  %1299 = vmatprep.subr.mxu0 0.0
  %1300 = vmatpush1.msra.mxu0 %v1244
  %1301 = vmatprep.subr.mxu0 0.0
  %1302 = vmatpush1.msra.mxu0 %v1245
  %1303 = vmatprep.subr.mxu0 0.0
  %1304 = vmatpush1.msra.mxu0 %v1246
  %1305 = vmatprep.subr.mxu0 0.0
  %1306 = vmatpush1.msra.mxu0 %v1247
  %1307 = vmatprep.subr.mxu0 0.0
  %1308 = vmatpush1.msra.mxu0 %v1248
  %1309 = vmatprep.subr.mxu0 0.0
  %1310 = vmatpush1.msra.mxu0 %v1249
  %1311 = vmatprep.subr.mxu0 0.0
  %1312 = vmatpush1.msra.mxu0 %v1250
  %1313 = vmatprep.subr.mxu0 0.0
  %1314 = vmatpush1.msra.mxu0 %v1251
  %1315 = vmatprep.subr.mxu0 0.0
  %1316 = vmatpush1.msra.mxu0 %v1252
  %1317 = vmatprep.subr.mxu0 0.0
  %1318 = vmatpush1.msra.mxu0 %v1253
  %1319 = vmatprep.subr.mxu0 0.0
  %1320 = vmatpush1.msra.mxu0 %v1254
  %1321 = vmatprep.subr.mxu0 0.0
  %1322 = vmatpush1.msra.mxu0 %v1255
  %1323 = vmatprep.subr.mxu0 0.0
  %1324 = vmatpush1.msra.mxu0 %v1256
  %1325 = vmatprep.subr.mxu0 0.0
  %1326 = vmatpush1.msra.mxu0 %v1257
  %1327 = vmatprep.subr.mxu0 0.0
  %1328 = vmatpush1.msra.mxu0 %v1258
  %1329 = vmatprep.subr.mxu0 0.0
  %1330 = vmatpush1.msra.mxu0 %v1259
  %1331 = vmatprep.mubr.f32.mxu0 %v1227
  %1332 = vmatmul.mubr.f32.gmra.mrb[0].mxu0 %v1225
  %v1333 = vpop.f32.mrb[0].mxu0
  %v1334 = vadd.f32 %v1265, %v1333
  %v1335 = vpop.f32.mrb[0].mxu0
  %1336 = vdwg.mxu0
  %v1337 = vmax.f32 %v1334, 0.0
  %v1338 = vld [vmem:[%s4] sm:$0xff]
  %v1339 = vld [vmem:[%s4 + $0x8] sm:$0xff]
  %v1340 = vld [vmem:[%s4 + $0x10] sm:$0xff]
  %v1341 = vld [vmem:[%s4 + $0x18] sm:$0xff]
  %v1342 = vld [vmem:[%s4 + $0x20] sm:$0xff]
  %v1343 = vld [vmem:[%s4 + $0x28] sm:$0xff]
  %v1344 = vld [vmem:[%s4 + $0x30] sm:$0xff]
  %v1345 = vld [vmem:[%s4 + $0x38] sm:$0xff]
  %v1346 = vld [vmem:[%s4 + $0x40] sm:$0xff]
  %v1347 = vld [vmem:[%s4 + $0x48] sm:$0xff]
  %v1348 = vld [vmem:[%s4 + $0x50] sm:$0xff]
  %v1349 = vld [vmem:[%s4 + $0x58] sm:$0xff]
  %v1350 = vld [vmem:[%s4 + $0x60] sm:$0xf]
  %v1351 = vld [vmem:[%s5] sm:$0x1]
  %v1353 = vlaneseq
  %v1354 = vshrl.u32 %v1353, 7
  %v1355 = vsub.s32 0, %v1354
  %v1356 = vrot.slane %v1351, %v1355
  %vm1358 = vcmask 818176
  %v1360 = vsel %vm1358, %v1337, 0
  %vm1362 = vcmask 1043456
  %v1364 = vsel %vm1362, %v1350, 0
  %1366 = vmatprep.subr.mxu0 0.0
  %1367 = vmatpush1.msra.mxu0 %v1338
  %1368 = vmatprep.subr.mxu0 0.0
  %1369 = vmatpush1.msra.mxu0 %v1339
  %1370 = vmatprep.subr.mxu0 0.0
  %1371 = vmatpush1.msra.mxu0 %v1340
  %1372 = vmatprep.subr.mxu0 0.0
  %1373 = vmatpush1.msra.mxu0 %v1341
  %1374 = vmatprep.subr.mxu0 0.0
  %1375 = vmatpush1.msra.mxu0 %v1342
  %1376 = vmatprep.subr.mxu0 0.0
  %1377 = vmatpush1.msra.mxu0 %v1343
  %1378 = vmatprep.subr.mxu0 0.0
  %1379 = vmatpush1.msra.mxu0 %v1344
  %1380 = vmatprep.subr.mxu0 0.0
  %1381 = vmatpush1.msra.mxu0 %v1345
  %1382 = vmatprep.subr.mxu0 0.0
  %1383 = vmatpush1.msra.mxu0 %v1346
  %1384 = vmatprep.subr.mxu0 0.0
  %1385 = vmatpush1.msra.mxu0 %v1347
  %1386 = vmatprep.subr.mxu0 0.0
  %1387 = vmatpush1.msra.mxu0 %v1348
  %1388 = vmatprep.subr.mxu0 0.0
  %1389 = vmatpush1.msra.mxu0 %v1349
  %1390 = vmatprep.subr.mxu0 0.0
  %1391 = vmatpush1.msra.mxu0 %v1364
  %1392 = vmatprep.subr.mxu0 0.0
  %1393 = vmatpush1.msra.mxu0 0.0
  %1394 = vmatprep.subr.mxu0 0.0
  %1395 = vmatpush1.msra.mxu0 0.0
  %1396 = vmatprep.subr.mxu0 0.0
  %1397 = vmatpush1.msra.mxu0 0.0
  %1398 = vmatprep.subr.mxu0 0.0
  %1399 = vmatpush1.msra.mxu0 0.0
  %1400 = vmatprep.subr.mxu0 0.0
  %1401 = vmatpush1.msra.mxu0 0.0
  %1402 = vmatprep.subr.mxu0 0.0
  %1403 = vmatpush1.msra.mxu0 0.0
  %1404 = vmatprep.subr.mxu0 0.0
  %1405 = vmatpush1.msra.mxu0 0.0
  %1406 = vmatprep.subr.mxu0 0.0
  %1407 = vmatpush1.msra.mxu0 0.0
  %1408 = vmatprep.subr.mxu0 0.0
  %1409 = vmatpush1.msra.mxu0 0.0
  %1410 = vmatprep.subr.mxu0 0.0
  %1411 = vmatpush1.msra.mxu0 0.0
  %1412 = vmatprep.subr.mxu0 0.0
  %1413 = vmatpush1.msra.mxu0 0.0
  %1414 = vmatprep.subr.mxu0 0.0
  %1415 = vmatpush1.msra.mxu0 0.0
  %1416 = vmatprep.subr.mxu0 0.0
  %1417 = vmatpush1.msra.mxu0 0.0
  %1418 = vmatprep.subr.mxu0 0.0
  %1419 = vmatpush1.msra.mxu0 0.0
  %1420 = vmatprep.subr.mxu0 0.0
  %1421 = vmatpush1.msra.mxu0 0.0
  %1422 = vmatprep.subr.mxu0 0.0
  %1423 = vmatpush1.msra.mxu0 0.0
  %1424 = vmatprep.subr.mxu0 0.0
  %1425 = vmatpush1.msra.mxu0 0.0
  %1426 = vmatprep.subr.mxu0 0.0
  %1427 = vmatpush1.msra.mxu0 0.0
  %1428 = vmatprep.subr.mxu0 0.0
  %1429 = vmatpush1.msra.mxu0 0.0
  %1430 = vmatprep.mubr.f32.mxu0 0.0
  %1431 = vmatmul.mubr.f32.gmra.mrb[0].mxu0 %v1360
  %v1432 = vpop.f32.mrb[0].mxu0
  %v1433 = vadd.f32 %v1356, %v1432
  %v1434 = vpop.f32.mrb[0].mxu0
  %1435 = vdwg.mxu0
  %v1436 = vld [vmem:[%s6] sm:$0xff]
  %v1437 = vld [vmem:[%s6 + $0x8] sm:$0xff]
  %v1438 = vld [vmem:[%s7] sm:$0x1]
  %v1440 = vlaneseq
  %v1441 = vshrl.u32 %v1440, 7
  %v1442 = vsub.s32 0, %v1441
  %v1443 = vrot.slane %v1438, %v1442
  %vm1445 = vcmask 130048
  %v1447 = vsel %vm1445, %v1433, 0
  %1449 = vmatprep.subr.mxu0 0.0
  %1450 = vmatpush1.msra.mxu0 %v1436
  %1451 = vmatprep.subr.mxu0 0.0
  %1452 = vmatpush1.msra.mxu0 %v1437
  %1453 = vmatprep.subr.mxu0 0.0
  %1454 = vmatpush1.msra.mxu0 0.0
  %1455 = vmatprep.subr.mxu0 0.0
  %1456 = vmatpush1.msra.mxu0 0.0
  %1457 = vmatprep.subr.mxu0 0.0
  %1458 = vmatpush1.msra.mxu0 0.0
  %1459 = vmatprep.subr.mxu0 0.0
  %1460 = vmatpush1.msra.mxu0 0.0
  %1461 = vmatprep.subr.mxu0 0.0
  %1462 = vmatpush1.msra.mxu0 0.0
  %1463 = vmatprep.subr.mxu0 0.0
  %1464 = vmatpush1.msra.mxu0 0.0
  %1465 = vmatprep.subr.mxu0 0.0
  %1466 = vmatpush1.msra.mxu0 0.0
  %1467 = vmatprep.subr.mxu0 0.0
  %1468 = vmatpush1.msra.mxu0 0.0
  %1469 = vmatprep.subr.mxu0 0.0
  %1470 = vmatpush1.msra.mxu0 0.0
  %1471 = vmatprep.subr.mxu0 0.0
  %1472 = vmatpush1.msra.mxu0 0.0
  %1473 = vmatprep.subr.mxu0 0.0
  %1474 = vmatpush1.msra.mxu0 0.0
  %1475 = vmatprep.subr.mxu0 0.0
  %1476 = vmatpush1.msra.mxu0 0.0
  %1477 = vmatprep.subr.mxu0 0.0
  %1478 = vmatpush1.msra.mxu0 0.0
  %1479 = vmatprep.subr.mxu0 0.0
  %1480 = vmatpush1.msra.mxu0 0.0
  %1481 = vmatprep.subr.mxu0 0.0
  %1482 = vmatpush1.msra.mxu0 0.0
  %1483 = vmatprep.subr.mxu0 0.0
  %1484 = vmatpush1.msra.mxu0 0.0
  %1485 = vmatprep.subr.mxu0 0.0
  %1486 = vmatpush1.msra.mxu0 0.0
  %1487 = vmatprep.subr.mxu0 0.0
  %1488 = vmatpush1.msra.mxu0 0.0
  %1489 = vmatprep.subr.mxu0 0.0
  %1490 = vmatpush1.msra.mxu0 0.0
  %1491 = vmatprep.subr.mxu0 0.0
  %1492 = vmatpush1.msra.mxu0 0.0
  %1493 = vmatprep.subr.mxu0 0.0
  %1494 = vmatpush1.msra.mxu0 0.0
  %1495 = vmatprep.subr.mxu0 0.0
  %1496 = vmatpush1.msra.mxu0 0.0
  %1497 = vmatprep.subr.mxu0 0.0
  %1498 = vmatpush1.msra.mxu0 0.0
  %1499 = vmatprep.subr.mxu0 0.0
  %1500 = vmatpush1.msra.mxu0 0.0
  %1501 = vmatprep.subr.mxu0 0.0
  %1502 = vmatpush1.msra.mxu0 0.0
  %1503 = vmatprep.subr.mxu0 0.0
  %1504 = vmatpush1.msra.mxu0 0.0
  %1505 = vmatprep.subr.mxu0 0.0
  %1506 = vmatpush1.msra.mxu0 0.0
  %1507 = vmatprep.subr.mxu0 0.0
  %1508 = vmatpush1.msra.mxu0 0.0
  %1509 = vmatprep.subr.mxu0 0.0
  %1510 = vmatpush1.msra.mxu0 0.0
  %1511 = vmatprep.subr.mxu0 0.0
  %1512 = vmatpush1.msra.mxu0 0.0
  %1513 = vmatprep.mubr.f32.mxu0 0.0
  %1514 = vmatmul.mubr.f32.gmra.mrb[0].mxu0 %v1447
  %v1515 = vpop.f32.mrb[0].mxu0
  %v1516 = vadd.f32 %v1443, %v1515
  %v1517 = vpop.f32.mrb[0].mxu0
  %1518 = vdwg.mxu0
  %v1519 = vmax.f32 %v1516, 0.0
  %v1520 = vld [vmem:[%s8] sm:$0xff]
  %v1521 = vld [vmem:[%s8 + $0x8] sm:$0xff]
  %v1522 = vld [vmem:[%s8 + $0x10] sm:$0xff]
  %v1523 = vld [vmem:[%s8 + $0x18] sm:$0xff]
  %v1524 = vld [vmem:[%s8 + $0x20] sm:$0xff]
  %v1525 = vld [vmem:[%s8 + $0x28] sm:$0xff]
  %v1526 = vld [vmem:[%s8 + $0x30] sm:$0xff]
  %v1527 = vld [vmem:[%s8 + $0x38] sm:$0xff]
  %v1528 = vld [vmem:[%s8 + $0x40] sm:$0xff]
  %v1529 = vld [vmem:[%s8 + $0x48] sm:$0xff]
  %v1530 = vld [vmem:[%s8 + $0x50] sm:$0xff]
  %v1531 = vld [vmem:[%s8 + $0x58] sm:$0xff]
  %v1532 = vld [vmem:[%s8 + $0x60] sm:$0xff]
  %v1533 = vld [vmem:[%s8 + $0x68] sm:$0xff]
  %v1534 = vld [vmem:[%s8 + $0x70] sm:$0xff]
  %v1535 = vld [vmem:[%s8 + $0x78] sm:$0xff]
  %v1536 = vld [vmem:[%s8 + $0x80] sm:$0xff]
  %v1537 = vld [vmem:[%s8 + $0x88] sm:$0xff]
  %v1538 = vld [vmem:[%s8 + $0x90] sm:$0xff]
  %v1539 = vld [vmem:[%s8 + $0x98] sm:$0xff]
  %v1540 = vld [vmem:[%s8 + $0xa0] sm:$0xff]
  %v1541 = vld [vmem:[%s8 + $0xa8] sm:$0xff]
  %v1542 = vld [vmem:[%s8 + $0xb0] sm:$0xff]
  %v1543 = vld [vmem:[%s8 + $0xb8] sm:$0xff]
  %v1544 = vld [vmem:[%s8 + $0xc0] sm:$0xf]
  %v1545 = vld [vmem:[%s8 + $0xc8] sm:$0xf]
  %v1546 = vld [vmem:[%s9] sm:$0x3]
  %v1548 = vlaneseq
  %v1549 = vshrl.u32 %v1548, 7
  %v1550 = vsub.s32 0, %v1549
  %v1551 = vrot.slane %v1546, %v1550
  %v1552 = vlaneseq
  %v1553 = vshrl.u32 %v1552, 7
  %v1554 = vsub.s32 1, %v1553
  %v1555 = vrot.slane %v1546, %v1554
  %v1559 = vsel %vm1358, %v1519, 0
  %v1562 = vsel %vm1362, %v1544, 0
  %v1565 = vsel %vm1362, %v1545, 0
  %1567 = vmatprep.subr.mxu0 %v1521
  %1568 = vmatpush1.msra.mxu0 %v1520
  %1569 = vmatprep.subr.mxu0 %v1523
  %1570 = vmatpush1.msra.mxu0 %v1522
  %1571 = vmatprep.subr.mxu0 %v1525
  %1572 = vmatpush1.msra.mxu0 %v1524
  %1573 = vmatprep.subr.mxu0 %v1527
  %1574 = vmatpush1.msra.mxu0 %v1526
  %1575 = vmatprep.subr.mxu0 %v1529
  %1576 = vmatpush1.msra.mxu0 %v1528
  %1577 = vmatprep.subr.mxu0 %v1531
  %1578 = vmatpush1.msra.mxu0 %v1530
  %1579 = vmatprep.subr.mxu0 %v1533
  %1580 = vmatpush1.msra.mxu0 %v1532
  %1581 = vmatprep.subr.mxu0 %v1535
  %1582 = vmatpush1.msra.mxu0 %v1534
  %1583 = vmatprep.subr.mxu0 %v1537
  %1584 = vmatpush1.msra.mxu0 %v1536
  %1585 = vmatprep.subr.mxu0 %v1539
  %1586 = vmatpush1.msra.mxu0 %v1538
  %1587 = vmatprep.subr.mxu0 %v1541
  %1588 = vmatpush1.msra.mxu0 %v1540
  %1589 = vmatprep.subr.mxu0 %v1543
  %1590 = vmatpush1.msra.mxu0 %v1542
  %1591 = vmatprep.subr.mxu0 %v1565
  %1592 = vmatpush1.msra.mxu0 %v1562
  %1593 = vmatprep.subr.mxu0 0.0
  %1594 = vmatpush1.msra.mxu0 0.0
  %1595 = vmatprep.subr.mxu0 0.0
  %1596 = vmatpush1.msra.mxu0 0.0
  %1597 = vmatprep.subr.mxu0 0.0
  %1598 = vmatpush1.msra.mxu0 0.0
  %1599 = vmatprep.subr.mxu0 0.0
  %1600 = vmatpush1.msra.mxu0 0.0
  %1601 = vmatprep.subr.mxu0 0.0
  %1602 = vmatpush1.msra.mxu0 0.0
  %1603 = vmatprep.subr.mxu0 0.0
  %1604 = vmatpush1.msra.mxu0 0.0
  %1605 = vmatprep.subr.mxu0 0.0
  %1606 = vmatpush1.msra.mxu0 0.0
  %1607 = vmatprep.subr.mxu0 0.0
  %1608 = vmatpush1.msra.mxu0 0.0
  %1609 = vmatprep.subr.mxu0 0.0
  %1610 = vmatpush1.msra.mxu0 0.0
  %1611 = vmatprep.subr.mxu0 0.0
  %1612 = vmatpush1.msra.mxu0 0.0
  %1613 = vmatprep.subr.mxu0 0.0
  %1614 = vmatpush1.msra.mxu0 0.0
  %1615 = vmatprep.subr.mxu0 0.0
  %1616 = vmatpush1.msra.mxu0 0.0
  %1617 = vmatprep.subr.mxu0 0.0
  %1618 = vmatpush1.msra.mxu0 0.0
  %1619 = vmatprep.subr.mxu0 0.0
  %1620 = vmatpush1.msra.mxu0 0.0
  %1621 = vmatprep.subr.mxu0 0.0
  %1622 = vmatpush1.msra.mxu0 0.0
  %1623 = vmatprep.subr.mxu0 0.0
  %1624 = vmatpush1.msra.mxu0 0.0
  %1625 = vmatprep.subr.mxu0 0.0
  %1626 = vmatpush1.msra.mxu0 0.0
  %1627 = vmatprep.subr.mxu0 0.0
  %1628 = vmatpush1.msra.mxu0 0.0
  %1629 = vmatprep.subr.mxu0 0.0
  %1630 = vmatpush1.msra.mxu0 0.0
  %1631 = vmatprep.mubr.f32.mxu0 0.0
  %1632 = vmatmul.mubr.f32.gmra.mrb[0].mxu0 %v1559
  %v1633 = vpop.f32.mrb[0].mxu0
  %v1634 = vadd.f32 %v1551, %v1633
  %v1635 = vpop.f32.mrb[0].mxu0
  %v1636 = vadd.f32 %v1555, %v1635
  %1637 = vdwg.mxu0
  %v1638 = vxor.u32 %v1634, 2147483648
  %v1639 = vxor.u32 %v1636, 2147483648
  %v1640 = vmul.f32 %v1638, 1.442695
  %v1641 = vpow.pop %v1640
  %v1642 = vmul.f32 %v1639, 1.442695
  %v1643 = vpow.pop %v1642
  %v1644 = vadd.f32 %v1641, 1.0
  %v1645 = vadd.f32 %v1643, 1.0
  %v1646 = vrcp.pop %v1644
  %v1647 = vmul.f32 1.0, %v1646
  %v1648 = vrcp.pop %v1645
  %v1649 = vmul.f32 1.0, %v1648
  %v1650 = vld [vmem:[%s10] sm:$0xff]
  %v1651 = vld [vmem:[%s10 + $0x8] sm:$0xff]
  %v1652 = vld [vmem:[%s10 + $0x10] sm:$0xff]
  %v1653 = vld [vmem:[%s10 + $0x18] sm:$0xff]
  %v1654 = vld [vmem:[%s10 + $0x20] sm:$0xff]
  %v1655 = vld [vmem:[%s10 + $0x28] sm:$0xff]
  %v1656 = vld [vmem:[%s10 + $0x30] sm:$0xff]
  %v1657 = vld [vmem:[%s10 + $0x38] sm:$0xff]
  %v1658 = vld [vmem:[%s10 + $0x40] sm:$0xff]
  %v1659 = vld [vmem:[%s10 + $0x48] sm:$0xff]
  %v1660 = vld [vmem:[%s10 + $0x50] sm:$0xff]
  %v1661 = vld [vmem:[%s10 + $0x58] sm:$0xff]
  %v1662 = vld [vmem:[%s10 + $0x60] sm:$0xff]
  %v1663 = vld [vmem:[%s10 + $0x68] sm:$0xff]
  %v1664 = vld [vmem:[%s10 + $0x70] sm:$0xff]
  %v1665 = vld [vmem:[%s10 + $0x78] sm:$0xff]
  %v1666 = vld [vmem:[%s10 + $0x80] sm:$0xff]
  %v1667 = vld [vmem:[%s10 + $0x88] sm:$0xff]
  %v1668 = vld [vmem:[%s10 + $0x90] sm:$0xff]
  %v1669 = vld [vmem:[%s10 + $0x98] sm:$0xff]
  %v1670 = vld [vmem:[%s10 + $0xa0] sm:$0xff]
  %v1671 = vld [vmem:[%s10 + $0xa8] sm:$0xff]
  %v1672 = vld [vmem:[%s10 + $0xb0] sm:$0xff]
  %v1673 = vld [vmem:[%s10 + $0xb8] sm:$0xff]
  %v1674 = vld [vmem:[%s10 + $0xc0] sm:$0xff]
  %v1675 = vld [vmem:[%s10 + $0xc8] sm:$0xff]
  %v1676 = vld [vmem:[%s10 + $0xd0] sm:$0xff]
  %v1677 = vld [vmem:[%s10 + $0xd8] sm:$0xff]
  %v1678 = vld [vmem:[%s10 + $0xe0] sm:$0xff]
  %v1679 = vld [vmem:[%s10 + $0xe8] sm:$0xff]
  %v1680 = vld [vmem:[%s10 + $0xf0] sm:$0xff]
  %v1681 = vld [vmem:[%s10 + $0xf8] sm:$0xff]
  %v1682 = vld [vmem:[%s10 + $0x100] sm:$0xff]
  %v1683 = vld [vmem:[%s10 + $0x108] sm:$0xff]
  %v1684 = vld [vmem:[%s10 + $0x110] sm:$0xff]
  %v1685 = vld [vmem:[%s10 + $0x118] sm:$0xff]
  %v1686 = vld [vmem:[%s10 + $0x120] sm:$0xff]
  %v1687 = vld [vmem:[%s10 + $0x128] sm:$0xff]
  %v1688 = vld [vmem:[%s10 + $0x130] sm:$0xff]
  %v1689 = vld [vmem:[%s10 + $0x138] sm:$0xff]
  %v1690 = vld [vmem:[%s10 + $0x140] sm:$0xff]
  %v1691 = vld [vmem:[%s10 + $0x148] sm:$0xff]
  %v1692 = vld [vmem:[%s10 + $0x150] sm:$0xff]
  %v1693 = vld [vmem:[%s10 + $0x158] sm:$0xff]
  %v1694 = vld [vmem:[%s10 + $0x160] sm:$0xff]
  %v1695 = vld [vmem:[%s10 + $0x168] sm:$0xff]
  %v1696 = vld [vmem:[%s10 + $0x170] sm:$0xff]
  %v1697 = vld [vmem:[%s10 + $0x178] sm:$0xff]
  %v1698 = vld [vmem:[%s10 + $0x180] sm:$0xff]
  %v1699 = vld [vmem:[%s10 + $0x188] sm:$0xff]
  %v1700 = vld [vmem:[%s10 + $0x190] sm:$0xff]
  %v1701 = vld [vmem:[%s10 + $0x198] sm:$0xff]
  %v1702 = vld [vmem:[%s10 + $0x1a0] sm:$0xff]
  %v1703 = vld [vmem:[%s10 + $0x1a8] sm:$0xff]
  %v1704 = vld [vmem:[%s10 + $0x1b0] sm:$0xff]
  %v1705 = vld [vmem:[%s10 + $0x1b8] sm:$0xff]
  %v1706 = vld [vmem:[%s10 + $0x1c0] sm:$0xff]
  %v1707 = vld [vmem:[%s10 + $0x1c8] sm:$0xff]
  %v1708 = vld [vmem:[%s10 + $0x1d0] sm:$0xff]
  %v1709 = vld [vmem:[%s10 + $0x1d8] sm:$0xff]
  %v1710 = vld [vmem:[%s10 + $0x1e0] sm:$0xff]
  %v1711 = vld [vmem:[%s10 + $0x1e8] sm:$0xff]
  %v1712 = vld [vmem:[%s10 + $0x1f0] sm:$0xff]
  %v1713 = vld [vmem:[%s10 + $0x1f8] sm:$0xff]
  %v1714 = vld [vmem:[%s10 + $0x200] sm:$0xff]
  %v1715 = vld [vmem:[%s10 + $0x208] sm:$0xff]
  %v1716 = vld [vmem:[%s10 + $0x210] sm:$0xff]
  %v1717 = vld [vmem:[%s10 + $0x218] sm:$0xff]
  %v1718 = vld [vmem:[%s10 + $0x220] sm:$0xff]
  %v1719 = vld [vmem:[%s10 + $0x228] sm:$0xff]
  %v1720 = vld [vmem:[%s10 + $0x230] sm:$0xff]
  %v1721 = vld [vmem:[%s10 + $0x238] sm:$0xff]
  %v1722 = vld [vmem:[%s10 + $0x240] sm:$0xff]
  %v1723 = vld [vmem:[%s10 + $0x248] sm:$0xff]
  %v1724 = vld [vmem:[%s10 + $0x250] sm:$0xff]
  %v1725 = vld [vmem:[%s10 + $0x258] sm:$0xff]
  %v1726 = vld [vmem:[%s10 + $0x260] sm:$0xff]
  %v1727 = vld [vmem:[%s10 + $0x268] sm:$0xff]
  %v1728 = vld [vmem:[%s10 + $0x270] sm:$0xff]
  %v1729 = vld [vmem:[%s10 + $0x278] sm:$0xff]
  %v1730 = vld [vmem:[%s10 + $0x280] sm:$0xff]
  %v1731 = vld [vmem:[%s10 + $0x288] sm:$0xff]
  %v1732 = vld [vmem:[%s10 + $0x290] sm:$0xff]
  %v1733 = vld [vmem:[%s10 + $0x298] sm:$0xff]
  %v1734 = vld [vmem:[%s10 + $0x2a0] sm:$0xff]
  %v1735 = vld [vmem:[%s10 + $0x2a8] sm:$0xff]
  %v1736 = vld [vmem:[%s10 + $0x2b0] sm:$0xff]
  %v1737 = vld [vmem:[%s10 + $0x2b8] sm:$0xff]
  %v1738 = vld [vmem:[%s10 + $0x2c0] sm:$0xff]
  %v1739 = vld [vmem:[%s10 + $0x2c8] sm:$0xff]
  %v1740 = vld [vmem:[%s10 + $0x2d0] sm:$0xff]
  %v1741 = vld [vmem:[%s10 + $0x2d8] sm:$0xff]
  %v1742 = vld [vmem:[%s10 + $0x2e0] sm:$0xff]
  %v1743 = vld [vmem:[%s10 + $0x2e8] sm:$0xff]
  %v1744 = vld [vmem:[%s10 + $0x2f0] sm:$0xff]
  %v1745 = vld [vmem:[%s10 + $0x2f8] sm:$0xff]
  %v1746 = vld [vmem:[%s10 + $0x300] sm:$0xff]
  %v1747 = vld [vmem:[%s10 + $0x308] sm:$0xff]
  %v1748 = vld [vmem:[%s10 + $0x310] sm:$0xff]
  %v1749 = vld [vmem:[%s10 + $0x318] sm:$0xff]
  %v1750 = vld [vmem:[%s10 + $0x320] sm:$0xff]
  %v1751 = vld [vmem:[%s10 + $0x328] sm:$0xff]
  %v1752 = vld [vmem:[%s10 + $0x330] sm:$0xff]
  %v1753 = vld [vmem:[%s10 + $0x338] sm:$0xff]
  %v1754 = vld [vmem:[%s10 + $0x340] sm:$0xff]
  %v1755 = vld [vmem:[%s10 + $0x348] sm:$0xff]
  %v1756 = vld [vmem:[%s10 + $0x350] sm:$0xff]
  %v1757 = vld [vmem:[%s10 + $0x358] sm:$0xff]
  %v1758 = vld [vmem:[%s10 + $0x360] sm:$0xff]
  %v1759 = vld [vmem:[%s10 + $0x368] sm:$0xff]
  %v1760 = vld [vmem:[%s10 + $0x370] sm:$0xff]
  %v1761 = vld [vmem:[%s10 + $0x378] sm:$0xff]
  %v1762 = vld [vmem:[%s10 + $0x380] sm:$0xff]
  %v1763 = vld [vmem:[%s10 + $0x388] sm:$0xff]
  %v1764 = vld [vmem:[%s10 + $0x390] sm:$0xff]
  %v1765 = vld [vmem:[%s10 + $0x398] sm:$0xff]
  %v1766 = vld [vmem:[%s10 + $0x3a0] sm:$0xff]
  %v1767 = vld [vmem:[%s10 + $0x3a8] sm:$0xff]
  %v1768 = vld [vmem:[%s10 + $0x3b0] sm:$0xff]
  %v1769 = vld [vmem:[%s10 + $0x3b8] sm:$0xff]
  %v1770 = vld [vmem:[%s10 + $0x3c0] sm:$0xff]
  %v1771 = vld [vmem:[%s10 + $0x3c8] sm:$0xff]
  %v1772 = vld [vmem:[%s10 + $0x3d0] sm:$0xff]
  %v1773 = vld [vmem:[%s10 + $0x3d8] sm:$0xff]
  %v1774 = vld [vmem:[%s10 + $0x3e0] sm:$0xff]
  %v1775 = vld [vmem:[%s10 + $0x3e8] sm:$0xff]
  %v1776 = vld [vmem:[%s10 + $0x3f0] sm:$0xff]
  %v1777 = vld [vmem:[%s10 + $0x3f8] sm:$0xff]
  %v1778 = vld [vmem:[%s10 + $0x400] sm:$0xff]
  %v1779 = vld [vmem:[%s10 + $0x408] sm:$0xff]
  %v1780 = vld [vmem:[%s10 + $0x410] sm:$0xff]
  %v1781 = vld [vmem:[%s10 + $0x418] sm:$0xff]
  %v1782 = vld [vmem:[%s10 + $0x420] sm:$0xff]
  %v1783 = vld [vmem:[%s10 + $0x428] sm:$0xff]
  %v1784 = vld [vmem:[%s10 + $0x430] sm:$0xff]
  %v1785 = vld [vmem:[%s10 + $0x438] sm:$0xff]
  %v1786 = vld [vmem:[%s10 + $0x440] sm:$0xff]
  %v1787 = vld [vmem:[%s10 + $0x448] sm:$0xff]
  %v1788 = vld [vmem:[%s10 + $0x450] sm:$0xff]
  %v1789 = vld [vmem:[%s10 + $0x458] sm:$0xff]
  %v1790 = vld [vmem:[%s10 + $0x460] sm:$0xff]
  %v1791 = vld [vmem:[%s10 + $0x468] sm:$0xff]
  %v1792 = vld [vmem:[%s10 + $0x470] sm:$0xff]
  %v1793 = vld [vmem:[%s10 + $0x478] sm:$0xff]
  %v1794 = vld [vmem:[%s10 + $0x480] sm:$0xff]
  %v1795 = vld [vmem:[%s10 + $0x488] sm:$0xff]
  %v1796 = vld [vmem:[%s10 + $0x490] sm:$0xff]
  %v1797 = vld [vmem:[%s10 + $0x498] sm:$0xff]
  %v1798 = vld [vmem:[%s10 + $0x4a0] sm:$0xff]
  %v1799 = vld [vmem:[%s10 + $0x4a8] sm:$0xff]
  %v1800 = vld [vmem:[%s10 + $0x4b0] sm:$0xff]
  %v1801 = vld [vmem:[%s10 + $0x4b8] sm:$0xff]
  %v1802 = vld [vmem:[%s10 + $0x4c0] sm:$0xff]
  %v1803 = vld [vmem:[%s10 + $0x4c8] sm:$0xff]
  %v1804 = vld [vmem:[%s10 + $0x4d0] sm:$0xff]
  %v1805 = vld [vmem:[%s10 + $0x4d8] sm:$0xff]
  %v1806 = vld [vmem:[%s10 + $0x4e0] sm:$0xff]
  %v1807 = vld [vmem:[%s10 + $0x4e8] sm:$0xff]
  %v1808 = vld [vmem:[%s10 + $0x4f0] sm:$0xff]
  %v1809 = vld [vmem:[%s10 + $0x4f8] sm:$0xff]
  %v1810 = vld [vmem:[%s10 + $0x500] sm:$0xff]
  %v1811 = vld [vmem:[%s10 + $0x508] sm:$0xff]
  %v1812 = vld [vmem:[%s10 + $0x510] sm:$0xff]
  %v1813 = vld [vmem:[%s10 + $0x518] sm:$0xff]
  %v1814 = vld [vmem:[%s10 + $0x520] sm:$0xff]
  %v1815 = vld [vmem:[%s10 + $0x528] sm:$0xff]
  %v1816 = vld [vmem:[%s10 + $0x530] sm:$0xff]
  %v1817 = vld [vmem:[%s10 + $0x538] sm:$0xff]
  %v1818 = vld [vmem:[%s10 + $0x540] sm:$0xff]
  %v1819 = vld [vmem:[%s10 + $0x548] sm:$0xff]
  %v1820 = vld [vmem:[%s10 + $0x550] sm:$0xff]
  %v1821 = vld [vmem:[%s10 + $0x558] sm:$0xff]
  %v1822 = vld [vmem:[%s10 + $0x560] sm:$0xff]
  %v1823 = vld [vmem:[%s10 + $0x568] sm:$0xff]
  %v1824 = vld [vmem:[%s10 + $0x570] sm:$0xff]
  %v1825 = vld [vmem:[%s10 + $0x578] sm:$0xff]
  %v1826 = vld [vmem:[%s10 + $0x580] sm:$0xff]
  %v1827 = vld [vmem:[%s10 + $0x588] sm:$0xff]
  %v1828 = vld [vmem:[%s10 + $0x590] sm:$0xff]
  %v1829 = vld [vmem:[%s10 + $0x598] sm:$0xff]
  %v1830 = vld [vmem:[%s10 + $0x5a0] sm:$0xff]
  %v1831 = vld [vmem:[%s10 + $0x5a8] sm:$0xff]
  %v1832 = vld [vmem:[%s10 + $0x5b0] sm:$0xff]
  %v1833 = vld [vmem:[%s10 + $0x5b8] sm:$0xff]
  %v1834 = vld [vmem:[%s10 + $0x5c0] sm:$0xff]
  %v1835 = vld [vmem:[%s10 + $0x5c8] sm:$0xff]
  %v1836 = vld [vmem:[%s10 + $0x5d0] sm:$0xff]
  %v1837 = vld [vmem:[%s10 + $0x5d8] sm:$0xff]
  %v1838 = vld [vmem:[%s10 + $0x5e0] sm:$0xff]
  %v1839 = vld [vmem:[%s10 + $0x5e8] sm:$0xff]
  %v1840 = vld [vmem:[%s10 + $0x5f0] sm:$0xff]
  %v1841 = vld [vmem:[%s10 + $0x5f8] sm:$0xff]
  %v1842 = vld [vmem:[%s10 + $0x600] sm:$0xff]
  %v1843 = vld [vmem:[%s10 + $0x608] sm:$0xff]
  %v1844 = vld [vmem:[%s10 + $0x610] sm:$0xff]
  %v1845 = vld [vmem:[%s10 + $0x618] sm:$0xff]
  %v1846 = vld [vmem:[%s10 + $0x620] sm:$0xff]
  %v1847 = vld [vmem:[%s10 + $0x628] sm:$0xff]
  %v1848 = vld [vmem:[%s10 + $0x630] sm:$0xff]
  %v1849 = vld [vmem:[%s10 + $0x638] sm:$0xff]
  %v1850 = vld [vmem:[%s10 + $0x640] sm:$0xff]
  %v1851 = vld [vmem:[%s10 + $0x648] sm:$0xff]
  %v1852 = vld [vmem:[%s10 + $0x650] sm:$0xff]
  %v1853 = vld [vmem:[%s10 + $0x658] sm:$0xff]
  %v1854 = vld [vmem:[%s10 + $0x660] sm:$0xff]
  %v1855 = vld [vmem:[%s10 + $0x668] sm:$0xff]
  %v1856 = vld [vmem:[%s10 + $0x670] sm:$0xff]
  %v1857 = vld [vmem:[%s10 + $0x678] sm:$0xff]
  %v1858 = vld [vmem:[%s10 + $0x680] sm:$0xff]
  %v1859 = vld [vmem:[%s10 + $0x688] sm:$0xff]
  %v1860 = vld [vmem:[%s10 + $0x690] sm:$0xff]
  %v1861 = vld [vmem:[%s10 + $0x698] sm:$0xff]
  %v1862 = vld [vmem:[%s10 + $0x6a0] sm:$0xff]
  %v1863 = vld [vmem:[%s10 + $0x6a8] sm:$0xff]
  %v1864 = vld [vmem:[%s10 + $0x6b0] sm:$0xff]
  %v1865 = vld [vmem:[%s10 + $0x6b8] sm:$0xff]
  %v1866 = vld [vmem:[%s10 + $0x6c0] sm:$0xff]
  %v1867 = vld [vmem:[%s10 + $0x6c8] sm:$0xff]
  %v1868 = vld [vmem:[%s10 + $0x6d0] sm:$0xff]
  %v1869 = vld [vmem:[%s10 + $0x6d8] sm:$0xff]
  %v1870 = vld [vmem:[%s10 + $0x6e0] sm:$0xff]
  %v1871 = vld [vmem:[%s10 + $0x6e8] sm:$0xff]
  %v1872 = vld [vmem:[%s10 + $0x6f0] sm:$0xff]
  %v1873 = vld [vmem:[%s10 + $0x6f8] sm:$0xff]
  %v1874 = vld [vmem:[%s10 + $0x700] sm:$0xff]
  %v1875 = vld [vmem:[%s10 + $0x708] sm:$0xff]
  %v1876 = vld [vmem:[%s10 + $0x710] sm:$0xff]
  %v1877 = vld [vmem:[%s10 + $0x718] sm:$0xff]
  %v1878 = vld [vmem:[%s10 + $0x720] sm:$0xff]
  %v1879 = vld [vmem:[%s10 + $0x728] sm:$0xff]
  %v1880 = vld [vmem:[%s10 + $0x730] sm:$0xff]
  %v1881 = vld [vmem:[%s10 + $0x738] sm:$0xff]
  %v1882 = vld [vmem:[%s10 + $0x740] sm:$0xff]
  %v1883 = vld [vmem:[%s10 + $0x748] sm:$0xff]
  %v1884 = vld [vmem:[%s10 + $0x750] sm:$0xff]
  %v1885 = vld [vmem:[%s10 + $0x758] sm:$0xff]
  %v1886 = vld [vmem:[%s10 + $0x760] sm:$0xff]
  %v1887 = vld [vmem:[%s10 + $0x768] sm:$0xff]
  %v1888 = vld [vmem:[%s10 + $0x770] sm:$0xff]
  %v1889 = vld [vmem:[%s10 + $0x778] sm:$0xff]
  %v1890 = vld [vmem:[%s10 + $0x780] sm:$0xff]
  %v1891 = vld [vmem:[%s10 + $0x788] sm:$0xff]
  %v1892 = vld [vmem:[%s10 + $0x790] sm:$0xff]
  %v1893 = vld [vmem:[%s10 + $0x798] sm:$0xff]
  %v1894 = vld [vmem:[%s10 + $0x7a0] sm:$0xff]
  %v1895 = vld [vmem:[%s10 + $0x7a8] sm:$0xff]
  %v1896 = vld [vmem:[%s10 + $0x7b0] sm:$0xff]
  %v1897 = vld [vmem:[%s10 + $0x7b8] sm:$0xff]
  %v1898 = vld [vmem:[%s10 + $0x7c0] sm:$0xff]
  %v1899 = vld [vmem:[%s10 + $0x7c8] sm:$0xff]
  %v1900 = vld [vmem:[%s10 + $0x7d0] sm:$0xff]
  %v1901 = vld [vmem:[%s10 + $0x7d8] sm:$0xff]
  %v1902 = vld [vmem:[%s10 + $0x7e0] sm:$0xff]
  %v1903 = vld [vmem:[%s10 + $0x7e8] sm:$0xff]
  %v1904 = vld [vmem:[%s10 + $0x7f0] sm:$0xff]
  %v1905 = vld [vmem:[%s10 + $0x7f8] sm:$0xff]
  %v1906 = vld [vmem:[%s10 + $0x800] sm:$0xff]
  %v1907 = vld [vmem:[%s10 + $0x808] sm:$0xff]
  %v1908 = vld [vmem:[%s10 + $0x810] sm:$0xff]
  %v1909 = vld [vmem:[%s10 + $0x818] sm:$0xff]
  %v1910 = vld [vmem:[%s10 + $0x820] sm:$0xff]
  %v1911 = vld [vmem:[%s10 + $0x828] sm:$0xff]
  %v1912 = vld [vmem:[%s10 + $0x830] sm:$0xff]
  %v1913 = vld [vmem:[%s10 + $0x838] sm:$0xff]
  %v1914 = vld [vmem:[%s10 + $0x840] sm:$0xff]
  %v1915 = vld [vmem:[%s10 + $0x848] sm:$0xff]
  %v1916 = vld [vmem:[%s10 + $0x850] sm:$0xff]
  %v1917 = vld [vmem:[%s10 + $0x858] sm:$0xff]
  %v1918 = vld [vmem:[%s10 + $0x860] sm:$0xff]
  %v1919 = vld [vmem:[%s10 + $0x868] sm:$0xff]
  %v1920 = vld [vmem:[%s10 + $0x870] sm:$0xff]
  %v1921 = vld [vmem:[%s10 + $0x878] sm:$0xff]
  %v1922 = vld [vmem:[%s10 + $0x880] sm:$0xff]
  %v1923 = vld [vmem:[%s10 + $0x888] sm:$0xff]
  %v1924 = vld [vmem:[%s10 + $0x890] sm:$0xff]
  %v1925 = vld [vmem:[%s10 + $0x898] sm:$0xff]
  %v1926 = vld [vmem:[%s10 + $0x8a0] sm:$0xff]
  %v1927 = vld [vmem:[%s10 + $0x8a8] sm:$0xff]
  %v1928 = vld [vmem:[%s10 + $0x8b0] sm:$0xff]
  %v1929 = vld [vmem:[%s10 + $0x8b8] sm:$0xff]
  %v1930 = vld [vmem:[%s10 + $0x8c0] sm:$0xff]
  %v1931 = vld [vmem:[%s10 + $0x8c8] sm:$0xff]
  %v1932 = vld [vmem:[%s10 + $0x8d0] sm:$0xff]
  %v1933 = vld [vmem:[%s10 + $0x8d8] sm:$0xff]
  %v1934 = vld [vmem:[%s10 + $0x8e0] sm:$0xff]
  %v1935 = vld [vmem:[%s10 + $0x8e8] sm:$0xff]
  %v1936 = vld [vmem:[%s10 + $0x8f0] sm:$0xff]
  %v1937 = vld [vmem:[%s10 + $0x8f8] sm:$0xff]
  %v1938 = vld [vmem:[%s10 + $0x900] sm:$0xff]
  %v1939 = vld [vmem:[%s10 + $0x908] sm:$0xff]
  %v1940 = vld [vmem:[%s10 + $0x910] sm:$0xff]
  %v1941 = vld [vmem:[%s10 + $0x918] sm:$0xff]
  %v1942 = vld [vmem:[%s10 + $0x920] sm:$0xff]
  %v1943 = vld [vmem:[%s10 + $0x928] sm:$0xff]
  %v1944 = vld [vmem:[%s10 + $0x930] sm:$0xff]
  %v1945 = vld [vmem:[%s10 + $0x938] sm:$0xff]
  %v1946 = vld [vmem:[%s10 + $0x940] sm:$0xff]
  %v1947 = vld [vmem:[%s10 + $0x948] sm:$0xff]
  %v1948 = vld [vmem:[%s10 + $0x950] sm:$0xff]
  %v1949 = vld [vmem:[%s10 + $0x958] sm:$0xff]
  %v1950 = vld [vmem:[%s10 + $0x960] sm:$0xff]
  %v1951 = vld [vmem:[%s10 + $0x968] sm:$0xff]
  %v1952 = vld [vmem:[%s10 + $0x970] sm:$0xff]
  %v1953 = vld [vmem:[%s10 + $0x978] sm:$0xff]
  %v1954 = vld [vmem:[%s10 + $0x980] sm:$0xff]
  %v1955 = vld [vmem:[%s10 + $0x988] sm:$0xff]
  %v1956 = vld [vmem:[%s10 + $0x990] sm:$0xff]
  %v1957 = vld [vmem:[%s10 + $0x998] sm:$0xff]
  %v1958 = vld [vmem:[%s10 + $0x9a0] sm:$0xff]
  %v1959 = vld [vmem:[%s10 + $0x9a8] sm:$0xff]
  %v1960 = vld [vmem:[%s10 + $0x9b0] sm:$0xff]
  %v1961 = vld [vmem:[%s10 + $0x9b8] sm:$0xff]
  %v1962 = vld [vmem:[%s10 + $0x9c0] sm:$0xff]
  %v1963 = vld [vmem:[%s10 + $0x9c8] sm:$0xff]
  %v1964 = vld [vmem:[%s10 + $0x9d0] sm:$0xff]
  %v1965 = vld [vmem:[%s10 + $0x9d8] sm:$0xff]
  %v1966 = vld [vmem:[%s10 + $0x9e0] sm:$0xff]
  %v1967 = vld [vmem:[%s10 + $0x9e8] sm:$0xff]
  %v1968 = vld [vmem:[%s10 + $0x9f0] sm:$0xff]
  %v1969 = vld [vmem:[%s10 + $0x9f8] sm:$0xff]
  %v1970 = vld [vmem:[%s10 + $0xa00] sm:$0xff]
  %v1971 = vld [vmem:[%s10 + $0xa08] sm:$0xff]
  %v1972 = vld [vmem:[%s10 + $0xa10] sm:$0xff]
  %v1973 = vld [vmem:[%s10 + $0xa18] sm:$0xff]
  %v1974 = vld [vmem:[%s10 + $0xa20] sm:$0xff]
  %v1975 = vld [vmem:[%s10 + $0xa28] sm:$0xff]
  %v1976 = vld [vmem:[%s10 + $0xa30] sm:$0xff]
  %v1977 = vld [vmem:[%s10 + $0xa38] sm:$0xff]
  %v1978 = vld [vmem:[%s10 + $0xa40] sm:$0xff]
  %v1979 = vld [vmem:[%s10 + $0xa48] sm:$0xff]
  %v1980 = vld [vmem:[%s10 + $0xa50] sm:$0xff]
  %v1981 = vld [vmem:[%s10 + $0xa58] sm:$0xff]
  %v1982 = vld [vmem:[%s10 + $0xa60] sm:$0xff]
  %v1983 = vld [vmem:[%s10 + $0xa68] sm:$0xff]
  %v1984 = vld [vmem:[%s10 + $0xa70] sm:$0xff]
  %v1985 = vld [vmem:[%s10 + $0xa78] sm:$0xff]
  %v1986 = vld [vmem:[%s10 + $0xa80] sm:$0xff]
  %v1987 = vld [vmem:[%s10 + $0xa88] sm:$0xff]
  %v1988 = vld [vmem:[%s10 + $0xa90] sm:$0xff]
  %v1989 = vld [vmem:[%s10 + $0xa98] sm:$0xff]
  %v1990 = vld [vmem:[%s10 + $0xaa0] sm:$0xff]
  %v1991 = vld [vmem:[%s10 + $0xaa8] sm:$0xff]
  %v1992 = vld [vmem:[%s10 + $0xab0] sm:$0xff]
  %v1993 = vld [vmem:[%s10 + $0xab8] sm:$0xff]
  %v1994 = vld [vmem:[%s10 + $0xac0] sm:$0xff]
  %v1995 = vld [vmem:[%s10 + $0xac8] sm:$0xff]
  %v1996 = vld [vmem:[%s10 + $0xad0] sm:$0xff]
  %v1997 = vld [vmem:[%s10 + $0xad8] sm:$0xff]
  %v1998 = vld [vmem:[%s10 + $0xae0] sm:$0xff]
  %v1999 = vld [vmem:[%s10 + $0xae8] sm:$0xff]
  %v2000 = vld [vmem:[%s10 + $0xaf0] sm:$0xff]
  %v2001 = vld [vmem:[%s10 + $0xaf8] sm:$0xff]
  %v2002 = vld [vmem:[%s10 + $0xb00] sm:$0xff]
  %v2003 = vld [vmem:[%s10 + $0xb08] sm:$0xff]
  %v2004 = vld [vmem:[%s10 + $0xb10] sm:$0xff]
  %v2005 = vld [vmem:[%s10 + $0xb18] sm:$0xff]
  %v2006 = vld [vmem:[%s10 + $0xb20] sm:$0xff]
  %v2007 = vld [vmem:[%s10 + $0xb28] sm:$0xff]
  %v2008 = vld [vmem:[%s10 + $0xb30] sm:$0xff]
  %v2009 = vld [vmem:[%s10 + $0xb38] sm:$0xff]
  %v2010 = vld [vmem:[%s10 + $0xb40] sm:$0xff]
  %v2011 = vld [vmem:[%s10 + $0xb48] sm:$0xff]
  %v2012 = vld [vmem:[%s10 + $0xb50] sm:$0xff]
  %v2013 = vld [vmem:[%s10 + $0xb58] sm:$0xff]
  %v2014 = vld [vmem:[%s10 + $0xb60] sm:$0xff]
  %v2015 = vld [vmem:[%s10 + $0xb68] sm:$0xff]
  %v2016 = vld [vmem:[%s10 + $0xb70] sm:$0xff]
  %v2017 = vld [vmem:[%s10 + $0xb78] sm:$0xff]
  %v2018 = vld [vmem:[%s10 + $0xb80] sm:$0xff]
  %v2019 = vld [vmem:[%s10 + $0xb88] sm:$0xff]
  %v2020 = vld [vmem:[%s10 + $0xb90] sm:$0xff]
  %v2021 = vld [vmem:[%s10 + $0xb98] sm:$0xff]
  %v2022 = vld [vmem:[%s10 + $0xba0] sm:$0xff]
  %v2023 = vld [vmem:[%s10 + $0xba8] sm:$0xff]
  %v2024 = vld [vmem:[%s10 + $0xbb0] sm:$0xff]
  %v2025 = vld [vmem:[%s10 + $0xbb8] sm:$0xff]
  %v2026 = vld [vmem:[%s10 + $0xbc0] sm:$0xff]
  %v2027 = vld [vmem:[%s10 + $0xbc8] sm:$0xff]
  %v2028 = vld [vmem:[%s10 + $0xbd0] sm:$0xff]
  %v2029 = vld [vmem:[%s10 + $0xbd8] sm:$0xff]
  %v2030 = vld [vmem:[%s10 + $0xbe0] sm:$0xff]
  %v2031 = vld [vmem:[%s10 + $0xbe8] sm:$0xff]
  %v2032 = vld [vmem:[%s10 + $0xbf0] sm:$0xff]
  %v2033 = vld [vmem:[%s10 + $0xbf8] sm:$0xff]
  %v2034 = vld [vmem:[%s10 + $0xc00] sm:$0xff]
  %v2035 = vld [vmem:[%s10 + $0xc08] sm:$0xff]
  %v2036 = vld [vmem:[%s10 + $0xc10] sm:$0xff]
  %v2037 = vld [vmem:[%s10 + $0xc18] sm:$0xff]
  %v2038 = vld [vmem:[%s10 + $0xc20] sm:$0xff]
  %v2039 = vld [vmem:[%s10 + $0xc28] sm:$0xff]
  %v2040 = vld [vmem:[%s10 + $0xc30] sm:$0xff]
  %v2041 = vld [vmem:[%s10 + $0xc38] sm:$0xff]
  %v2042 = vld [vmem:[%s10 + $0xc40] sm:$0xff]
  %v2043 = vld [vmem:[%s10 + $0xc48] sm:$0xff]
  %v2044 = vld [vmem:[%s10 + $0xc50] sm:$0xff]
  %v2045 = vld [vmem:[%s10 + $0xc58] sm:$0xff]
  %v2046 = vld [vmem:[%s10 + $0xc60] sm:$0xff]
  %v2047 = vld [vmem:[%s10 + $0xc68] sm:$0xff]
  %v2048 = vld [vmem:[%s10 + $0xc70] sm:$0xff]
  %v2049 = vld [vmem:[%s10 + $0xc78] sm:$0xff]
  %v2050 = vld [vmem:[%s10 + $0xc80] sm:$0xff]
  %v2051 = vld [vmem:[%s10 + $0xc88] sm:$0xff]
  %v2052 = vld [vmem:[%s10 + $0xc90] sm:$0xff]
  %v2053 = vld [vmem:[%s10 + $0xc98] sm:$0xff]
  %v2054 = vld [vmem:[%s10 + $0xca0] sm:$0xff]
  %v2055 = vld [vmem:[%s10 + $0xca8] sm:$0xff]
  %v2056 = vld [vmem:[%s10 + $0xcb0] sm:$0xff]
  %v2057 = vld [vmem:[%s10 + $0xcb8] sm:$0xff]
  %v2058 = vld [vmem:[%s10 + $0xcc0] sm:$0xff]
  %v2059 = vld [vmem:[%s10 + $0xcc8] sm:$0xff]
  %v2060 = vld [vmem:[%s10 + $0xcd0] sm:$0xff]
  %v2061 = vld [vmem:[%s10 + $0xcd8] sm:$0xff]
  %v2062 = vld [vmem:[%s10 + $0xce0] sm:$0xff]
  %v2063 = vld [vmem:[%s10 + $0xce8] sm:$0xff]
  %v2064 = vld [vmem:[%s10 + $0xcf0] sm:$0xff]
  %v2065 = vld [vmem:[%s10 + $0xcf8] sm:$0xff]
  %v2066 = vld [vmem:[%s10 + $0xd00] sm:$0xff]
  %v2067 = vld [vmem:[%s10 + $0xd08] sm:$0xff]
  %v2068 = vld [vmem:[%s10 + $0xd10] sm:$0xff]
  %v2069 = vld [vmem:[%s10 + $0xd18] sm:$0xff]
  %v2070 = vld [vmem:[%s10 + $0xd20] sm:$0xff]
  %v2071 = vld [vmem:[%s10 + $0xd28] sm:$0xff]
  %v2072 = vld [vmem:[%s10 + $0xd30] sm:$0xff]
  %v2073 = vld [vmem:[%s10 + $0xd38] sm:$0xff]
  %v2074 = vld [vmem:[%s10 + $0xd40] sm:$0xff]
  %v2075 = vld [vmem:[%s10 + $0xd48] sm:$0xff]
  %v2076 = vld [vmem:[%s10 + $0xd50] sm:$0xff]
  %v2077 = vld [vmem:[%s10 + $0xd58] sm:$0xff]
  %v2078 = vld [vmem:[%s10 + $0xd60] sm:$0xff]
  %v2079 = vld [vmem:[%s10 + $0xd68] sm:$0xff]
  %v2080 = vld [vmem:[%s10 + $0xd70] sm:$0xff]
  %v2081 = vld [vmem:[%s10 + $0xd78] sm:$0xff]
  %v2082 = vld [vmem:[%s10 + $0xd80] sm:$0xff]
  %v2083 = vld [vmem:[%s10 + $0xd88] sm:$0xff]
  %v2084 = vld [vmem:[%s10 + $0xd90] sm:$0xff]
  %v2085 = vld [vmem:[%s10 + $0xd98] sm:$0xff]
  %v2086 = vld [vmem:[%s10 + $0xda0] sm:$0xff]
  %v2087 = vld [vmem:[%s10 + $0xda8] sm:$0xff]
  %v2088 = vld [vmem:[%s10 + $0xdb0] sm:$0xff]
  %v2089 = vld [vmem:[%s10 + $0xdb8] sm:$0xff]
  %v2090 = vld [vmem:[%s10 + $0xdc0] sm:$0xff]
  %v2091 = vld [vmem:[%s10 + $0xdc8] sm:$0xff]
  %v2092 = vld [vmem:[%s10 + $0xdd0] sm:$0xff]
  %v2093 = vld [vmem:[%s10 + $0xdd8] sm:$0xff]
  %v2094 = vld [vmem:[%s10 + $0xde0] sm:$0xff]
  %v2095 = vld [vmem:[%s10 + $0xde8] sm:$0xff]
  %v2096 = vld [vmem:[%s10 + $0xdf0] sm:$0xff]
  %v2097 = vld [vmem:[%s10 + $0xdf8] sm:$0xff]
  %v2098 = vld [vmem:[%s10 + $0xe00] sm:$0xff]
  %v2099 = vld [vmem:[%s10 + $0xe08] sm:$0xff]
  %v2100 = vld [vmem:[%s10 + $0xe10] sm:$0xff]
  %v2101 = vld [vmem:[%s10 + $0xe18] sm:$0xff]
  %v2102 = vld [vmem:[%s10 + $0xe20] sm:$0xff]
  %v2103 = vld [vmem:[%s10 + $0xe28] sm:$0xff]
  %v2104 = vld [vmem:[%s10 + $0xe30] sm:$0xff]
  %v2105 = vld [vmem:[%s10 + $0xe38] sm:$0xff]
  %v2106 = vld [vmem:[%s10 + $0xe40] sm:$0xff]
  %v2107 = vld [vmem:[%s10 + $0xe48] sm:$0xff]
  %v2108 = vld [vmem:[%s10 + $0xe50] sm:$0xff]
  %v2109 = vld [vmem:[%s10 + $0xe58] sm:$0xff]
  %v2110 = vld [vmem:[%s10 + $0xe60] sm:$0xff]
  %v2111 = vld [vmem:[%s10 + $0xe68] sm:$0xff]
  %v2112 = vld [vmem:[%s10 + $0xe70] sm:$0xff]
  %v2113 = vld [vmem:[%s10 + $0xe78] sm:$0xff]
  %v2114 = vld [vmem:[%s10 + $0xe80] sm:$0xff]
  %v2115 = vld [vmem:[%s10 + $0xe88] sm:$0xff]
  %v2116 = vld [vmem:[%s10 + $0xe90] sm:$0xff]
  %v2117 = vld [vmem:[%s10 + $0xe98] sm:$0xff]
  %v2118 = vld [vmem:[%s10 + $0xea0] sm:$0xff]
  %v2119 = vld [vmem:[%s10 + $0xea8] sm:$0xff]
  %v2120 = vld [vmem:[%s10 + $0xeb0] sm:$0xff]
  %v2121 = vld [vmem:[%s10 + $0xeb8] sm:$0xff]
  %v2122 = vld [vmem:[%s10 + $0xec0] sm:$0xff]
  %v2123 = vld [vmem:[%s10 + $0xec8] sm:$0xff]
  %v2124 = vld [vmem:[%s10 + $0xed0] sm:$0xff]
  %v2125 = vld [vmem:[%s10 + $0xed8] sm:$0xff]
  %v2126 = vld [vmem:[%s10 + $0xee0] sm:$0xff]
  %v2127 = vld [vmem:[%s10 + $0xee8] sm:$0xff]
  %v2128 = vld [vmem:[%s10 + $0xef0] sm:$0xff]
  %v2129 = vld [vmem:[%s10 + $0xef8] sm:$0xff]
  %v2130 = vld [vmem:[%s10 + $0xf00] sm:$0xff]
  %v2131 = vld [vmem:[%s10 + $0xf08] sm:$0xff]
  %v2132 = vld [vmem:[%s10 + $0xf10] sm:$0xff]
  %v2133 = vld [vmem:[%s10 + $0xf18] sm:$0xff]
  %v2134 = vld [vmem:[%s10 + $0xf20] sm:$0xff]
  %v2135 = vld [vmem:[%s10 + $0xf28] sm:$0xff]
  %v2136 = vld [vmem:[%s10 + $0xf30] sm:$0xff]
  %v2137 = vld [vmem:[%s10 + $0xf38] sm:$0xff]
  %v2138 = vld [vmem:[%s10 + $0xf40] sm:$0xff]
  %v2139 = vld [vmem:[%s10 + $0xf48] sm:$0xff]
  %v2140 = vld [vmem:[%s10 + $0xf50] sm:$0xff]
  %v2141 = vld [vmem:[%s10 + $0xf58] sm:$0xff]
  %v2142 = vld [vmem:[%s10 + $0xf60] sm:$0xff]
  %v2143 = vld [vmem:[%s10 + $0xf68] sm:$0xff]
  %v2144 = vld [vmem:[%s10 + $0xf70] sm:$0xff]
  %v2145 = vld [vmem:[%s10 + $0xf78] sm:$0xff]
  %v2146 = vld [vmem:[%s10 + $0xf80] sm:$0xff]
  %v2147 = vld [vmem:[%s10 + $0xf88] sm:$0xff]
  %v2148 = vld [vmem:[%s10 + $0xf90] sm:$0xff]
  %v2149 = vld [vmem:[%s10 + $0xf98] sm:$0xff]
  %v2150 = vld [vmem:[%s10 + $0xfa0] sm:$0xff]
  %v2151 = vld [vmem:[%s10 + $0xfa8] sm:$0xff]
  %v2152 = vld [vmem:[%s10 + $0xfb0] sm:$0xff]
  %v2153 = vld [vmem:[%s10 + $0xfb8] sm:$0xff]
  %v2154 = vld [vmem:[%s10 + $0xfc0] sm:$0xff]
  %v2155 = vld [vmem:[%s10 + $0xfc8] sm:$0xff]
  %v2156 = vld [vmem:[%s10 + $0xfd0] sm:$0xff]
  %v2157 = vld [vmem:[%s10 + $0xfd8] sm:$0xff]
  %v2158 = vld [vmem:[%s10 + $0xfe0] sm:$0xff]
  %v2159 = vld [vmem:[%s10 + $0xfe8] sm:$0xff]
  %v2160 = vld [vmem:[%s10 + $0xff0] sm:$0xff]
  %v2161 = vld [vmem:[%s10 + $0xff8] sm:$0xff]
  %2162 = vmatprep.subr.mxu0 %v1651
  %2163 = vmatpush1.msra.mxu0 %v1650
  %2164 = vmatprep.subr.mxu0 %v1667
  %2165 = vmatpush1.msra.mxu0 %v1666
  %2166 = vmatprep.subr.mxu0 %v1683
  %2167 = vmatpush1.msra.mxu0 %v1682
  %2168 = vmatprep.subr.mxu0 %v1699
  %2169 = vmatpush1.msra.mxu0 %v1698
  %2170 = vmatprep.subr.mxu0 %v1715
  %2171 = vmatpush1.msra.mxu0 %v1714
  %2172 = vmatprep.subr.mxu0 %v1731
  %2173 = vmatpush1.msra.mxu0 %v1730
  %2174 = vmatprep.subr.mxu0 %v1747
  %2175 = vmatpush1.msra.mxu0 %v1746
  %2176 = vmatprep.subr.mxu0 %v1763
  %2177 = vmatpush1.msra.mxu0 %v1762
  %2178 = vmatprep.subr.mxu0 %v1779
  %2179 = vmatpush1.msra.mxu0 %v1778
  %2180 = vmatprep.subr.mxu0 %v1795
  %2181 = vmatpush1.msra.mxu0 %v1794
  %2182 = vmatprep.subr.mxu0 %v1811
  %2183 = vmatpush1.msra.mxu0 %v1810
  %2184 = vmatprep.subr.mxu0 %v1827
  %2185 = vmatpush1.msra.mxu0 %v1826
  %2186 = vmatprep.subr.mxu0 %v1843
  %2187 = vmatpush1.msra.mxu0 %v1842
  %2188 = vmatprep.subr.mxu0 %v1859
  %2189 = vmatpush1.msra.mxu0 %v1858
  %2190 = vmatprep.subr.mxu0 %v1875
  %2191 = vmatpush1.msra.mxu0 %v1874
  %2192 = vmatprep.subr.mxu0 %v1891
  %2193 = vmatpush1.msra.mxu0 %v1890
  %2194 = vmatprep.subr.mxu0 %v1907
  %2195 = vmatpush1.msra.mxu0 %v1906
  %2196 = vmatprep.subr.mxu0 %v1923
  %2197 = vmatpush1.msra.mxu0 %v1922
  %2198 = vmatprep.subr.mxu0 %v1939
  %2199 = vmatpush1.msra.mxu0 %v1938
  %2200 = vmatprep.subr.mxu0 %v1955
  %2201 = vmatpush1.msra.mxu0 %v1954
  %2202 = vmatprep.subr.mxu0 %v1971
  %2203 = vmatpush1.msra.mxu0 %v1970
  %2204 = vmatprep.subr.mxu0 %v1987
  %2205 = vmatpush1.msra.mxu0 %v1986
  %2206 = vmatprep.subr.mxu0 %v2003
  %2207 = vmatpush1.msra.mxu0 %v2002
  %2208 = vmatprep.subr.mxu0 %v2019
  %2209 = vmatpush1.msra.mxu0 %v2018
  %2210 = vmatprep.subr.mxu0 %v2035
  %2211 = vmatpush1.msra.mxu0 %v2034
  %2212 = vmatprep.subr.mxu0 %v2051
  %2213 = vmatpush1.msra.mxu0 %v2050
  %2214 = vmatprep.subr.mxu0 %v2067
  %2215 = vmatpush1.msra.mxu0 %v2066
  %2216 = vmatprep.subr.mxu0 %v2083
  %2217 = vmatpush1.msra.mxu0 %v2082
  %2218 = vmatprep.subr.mxu0 %v2099
  %2219 = vmatpush1.msra.mxu0 %v2098
  %2220 = vmatprep.subr.mxu0 %v2115
  %2221 = vmatpush1.msra.mxu0 %v2114
  %2222 = vmatprep.subr.mxu0 %v2131
  %2223 = vmatpush1.msra.mxu0 %v2130
  %2224 = vmatprep.subr.mxu0 %v2147
  %2225 = vmatpush1.msra.mxu0 %v2146
  %2226 = vmatprep.mubr.f32.mxu0 %v1649
  %2227 = vmatmul.mubr.f32.gmra.mrb[0].mxu0 %v1647
  %v2228 = vpop.f32.mrb[0].mxu0
  %v2229 = vadd.f32 0.0, %v2228
  %v2230 = vpop.f32.mrb[0].mxu0
  %v2231 = vadd.f32 0.0, %v2230
  %2232 = vdwg.mxu0
  %2233 = vmatprep.subr.mxu0 %v1653
  %2234 = vmatpush1.msra.mxu0 %v1652
  %2235 = vmatprep.subr.mxu0 %v1669
  %2236 = vmatpush1.msra.mxu0 %v1668
  %2237 = vmatprep.subr.mxu0 %v1685
  %2238 = vmatpush1.msra.mxu0 %v1684
  %2239 = vmatprep.subr.mxu0 %v1701
  %2240 = vmatpush1.msra.mxu0 %v1700
  %2241 = vmatprep.subr.mxu0 %v1717
  %2242 = vmatpush1.msra.mxu0 %v1716
  %2243 = vmatprep.subr.mxu0 %v1733
  %2244 = vmatpush1.msra.mxu0 %v1732
  %2245 = vmatprep.subr.mxu0 %v1749
  %2246 = vmatpush1.msra.mxu0 %v1748
  %2247 = vmatprep.subr.mxu0 %v1765
  %2248 = vmatpush1.msra.mxu0 %v1764
  %2249 = vmatprep.subr.mxu0 %v1781
  %2250 = vmatpush1.msra.mxu0 %v1780
  %2251 = vmatprep.subr.mxu0 %v1797
  %2252 = vmatpush1.msra.mxu0 %v1796
  %2253 = vmatprep.subr.mxu0 %v1813
  %2254 = vmatpush1.msra.mxu0 %v1812
  %2255 = vmatprep.subr.mxu0 %v1829
  %2256 = vmatpush1.msra.mxu0 %v1828
  %2257 = vmatprep.subr.mxu0 %v1845
  %2258 = vmatpush1.msra.mxu0 %v1844
  %2259 = vmatprep.subr.mxu0 %v1861
  %2260 = vmatpush1.msra.mxu0 %v1860
  %2261 = vmatprep.subr.mxu0 %v1877
  %2262 = vmatpush1.msra.mxu0 %v1876
  %2263 = vmatprep.subr.mxu0 %v1893
  %2264 = vmatpush1.msra.mxu0 %v1892
  %2265 = vmatprep.subr.mxu0 %v1909
  %2266 = vmatpush1.msra.mxu0 %v1908
  %2267 = vmatprep.subr.mxu0 %v1925
  %2268 = vmatpush1.msra.mxu0 %v1924
  %2269 = vmatprep.subr.mxu0 %v1941
  %2270 = vmatpush1.msra.mxu0 %v1940
  %2271 = vmatprep.subr.mxu0 %v1957
  %2272 = vmatpush1.msra.mxu0 %v1956
  %2273 = vmatprep.subr.mxu0 %v1973
  %2274 = vmatpush1.msra.mxu0 %v1972
  %2275 = vmatprep.subr.mxu0 %v1989
  %2276 = vmatpush1.msra.mxu0 %v1988
  %2277 = vmatprep.subr.mxu0 %v2005
  %2278 = vmatpush1.msra.mxu0 %v2004
  %2279 = vmatprep.subr.mxu0 %v2021
  %2280 = vmatpush1.msra.mxu0 %v2020
  %2281 = vmatprep.subr.mxu0 %v2037
  %2282 = vmatpush1.msra.mxu0 %v2036
  %2283 = vmatprep.subr.mxu0 %v2053
  %2284 = vmatpush1.msra.mxu0 %v2052
  %2285 = vmatprep.subr.mxu0 %v2069
  %2286 = vmatpush1.msra.mxu0 %v2068
  %2287 = vmatprep.subr.mxu0 %v2085
  %2288 = vmatpush1.msra.mxu0 %v2084
  %2289 = vmatprep.subr.mxu0 %v2101
  %2290 = vmatpush1.msra.mxu0 %v2100
  %2291 = vmatprep.subr.mxu0 %v2117
  %2292 = vmatpush1.msra.mxu0 %v2116
  %2293 = vmatprep.subr.mxu0 %v2133
  %2294 = vmatpush1.msra.mxu0 %v2132
  %2295 = vmatprep.subr.mxu0 %v2149
  %2296 = vmatpush1.msra.mxu0 %v2148
  %2297 = vmatprep.mubr.f32.mxu0 %v1649
  %2298 = vmatmul.mubr.f32.gmra.mrb[0].mxu0 %v1647
  %v2299 = vpop.f32.mrb[0].mxu0
  %v2300 = vadd.f32 0.0, %v2299
  %v2301 = vpop.f32.mrb[0].mxu0
  %v2302 = vadd.f32 0.0, %v2301
  %2303 = vdwg.mxu0
  %2304 = vmatprep.subr.mxu0 %v1655
  %2305 = vmatpush1.msra.mxu0 %v1654
  %2306 = vmatprep.subr.mxu0 %v1671
  %2307 = vmatpush1.msra.mxu0 %v1670
  %2308 = vmatprep.subr.mxu0 %v1687
  %2309 = vmatpush1.msra.mxu0 %v1686
  %2310 = vmatprep.subr.mxu0 %v1703
  %2311 = vmatpush1.msra.mxu0 %v1702
  %2312 = vmatprep.subr.mxu0 %v1719
  %2313 = vmatpush1.msra.mxu0 %v1718
  %2314 = vmatprep.subr.mxu0 %v1735
  %2315 = vmatpush1.msra.mxu0 %v1734
  %2316 = vmatprep.subr.mxu0 %v1751
  %2317 = vmatpush1.msra.mxu0 %v1750
  %2318 = vmatprep.subr.mxu0 %v1767
  %2319 = vmatpush1.msra.mxu0 %v1766
  %2320 = vmatprep.subr.mxu0 %v1783
  %2321 = vmatpush1.msra.mxu0 %v1782
  %2322 = vmatprep.subr.mxu0 %v1799
  %2323 = vmatpush1.msra.mxu0 %v1798
  %2324 = vmatprep.subr.mxu0 %v1815
  %2325 = vmatpush1.msra.mxu0 %v1814
  %2326 = vmatprep.subr.mxu0 %v1831
  %2327 = vmatpush1.msra.mxu0 %v1830
  %2328 = vmatprep.subr.mxu0 %v1847
  %2329 = vmatpush1.msra.mxu0 %v1846
  %2330 = vmatprep.subr.mxu0 %v1863
  %2331 = vmatpush1.msra.mxu0 %v1862
  %2332 = vmatprep.subr.mxu0 %v1879
  %2333 = vmatpush1.msra.mxu0 %v1878
  %2334 = vmatprep.subr.mxu0 %v1895
  %2335 = vmatpush1.msra.mxu0 %v1894
  %2336 = vmatprep.subr.mxu0 %v1911
  %2337 = vmatpush1.msra.mxu0 %v1910
  %2338 = vmatprep.subr.mxu0 %v1927
  %2339 = vmatpush1.msra.mxu0 %v1926
  %2340 = vmatprep.subr.mxu0 %v1943
  %2341 = vmatpush1.msra.mxu0 %v1942
  %2342 = vmatprep.subr.mxu0 %v1959
  %2343 = vmatpush1.msra.mxu0 %v1958
  %2344 = vmatprep.subr.mxu0 %v1975
  %2345 = vmatpush1.msra.mxu0 %v1974
  %2346 = vmatprep.subr.mxu0 %v1991
  %2347 = vmatpush1.msra.mxu0 %v1990
  %2348 = vmatprep.subr.mxu0 %v2007
  %2349 = vmatpush1.msra.mxu0 %v2006
  %2350 = vmatprep.subr.mxu0 %v2023
  %2351 = vmatpush1.msra.mxu0 %v2022
  %2352 = vmatprep.subr.mxu0 %v2039
  %2353 = vmatpush1.msra.mxu0 %v2038
  %2354 = vmatprep.subr.mxu0 %v2055
  %2355 = vmatpush1.msra.mxu0 %v2054
  %2356 = vmatprep.subr.mxu0 %v2071
  %2357 = vmatpush1.msra.mxu0 %v2070
  %2358 = vmatprep.subr.mxu0 %v2087
  %2359 = vmatpush1.msra.mxu0 %v2086
  %2360 = vmatprep.subr.mxu0 %v2103
  %2361 = vmatpush1.msra.mxu0 %v2102
  %2362 = vmatprep.subr.mxu0 %v2119
  %2363 = vmatpush1.msra.mxu0 %v2118
  %2364 = vmatprep.subr.mxu0 %v2135
  %2365 = vmatpush1.msra.mxu0 %v2134
  %2366 = vmatprep.subr.mxu0 %v2151
  %2367 = vmatpush1.msra.mxu0 %v2150
  %2368 = vmatprep.mubr.f32.mxu0 %v1649
  %2369 = vmatmul.mubr.f32.gmra.mrb[0].mxu0 %v1647
  %v2370 = vpop.f32.mrb[0].mxu0
  %v2371 = vadd.f32 0.0, %v2370
  %v2372 = vpop.f32.mrb[0].mxu0
  %v2373 = vadd.f32 0.0, %v2372
  %2374 = vdwg.mxu0
  %2375 = vmatprep.subr.mxu0 %v1657
  %2376 = vmatpush1.msra.mxu0 %v1656
  %2377 = vmatprep.subr.mxu0 %v1673
  %2378 = vmatpush1.msra.mxu0 %v1672
  %2379 = vmatprep.subr.mxu0 %v1689
  %2380 = vmatpush1.msra.mxu0 %v1688
  %2381 = vmatprep.subr.mxu0 %v1705
  %2382 = vmatpush1.msra.mxu0 %v1704
  %2383 = vmatprep.subr.mxu0 %v1721
  %2384 = vmatpush1.msra.mxu0 %v1720
  %2385 = vmatprep.subr.mxu0 %v1737
  %2386 = vmatpush1.msra.mxu0 %v1736
  %2387 = vmatprep.subr.mxu0 %v1753
  %2388 = vmatpush1.msra.mxu0 %v1752
  %2389 = vmatprep.subr.mxu0 %v1769
  %2390 = vmatpush1.msra.mxu0 %v1768
  %2391 = vmatprep.subr.mxu0 %v1785
  %2392 = vmatpush1.msra.mxu0 %v1784
  %2393 = vmatprep.subr.mxu0 %v1801
  %2394 = vmatpush1.msra.mxu0 %v1800
  %2395 = vmatprep.subr.mxu0 %v1817
  %2396 = vmatpush1.msra.mxu0 %v1816
  %2397 = vmatprep.subr.mxu0 %v1833
  %2398 = vmatpush1.msra.mxu0 %v1832
  %2399 = vmatprep.subr.mxu0 %v1849
  %2400 = vmatpush1.msra.mxu0 %v1848
  %2401 = vmatprep.subr.mxu0 %v1865
  %2402 = vmatpush1.msra.mxu0 %v1864
  %2403 = vmatprep.subr.mxu0 %v1881
  %2404 = vmatpush1.msra.mxu0 %v1880
  %2405 = vmatprep.subr.mxu0 %v1897
  %2406 = vmatpush1.msra.mxu0 %v1896
  %2407 = vmatprep.subr.mxu0 %v1913
  %2408 = vmatpush1.msra.mxu0 %v1912
  %2409 = vmatprep.subr.mxu0 %v1929
  %2410 = vmatpush1.msra.mxu0 %v1928
  %2411 = vmatprep.subr.mxu0 %v1945
  %2412 = vmatpush1.msra.mxu0 %v1944
  %2413 = vmatprep.subr.mxu0 %v1961
  %2414 = vmatpush1.msra.mxu0 %v1960
  %2415 = vmatprep.subr.mxu0 %v1977
  %2416 = vmatpush1.msra.mxu0 %v1976
  %2417 = vmatprep.subr.mxu0 %v1993
  %2418 = vmatpush1.msra.mxu0 %v1992
  %2419 = vmatprep.subr.mxu0 %v2009
  %2420 = vmatpush1.msra.mxu0 %v2008
  %2421 = vmatprep.subr.mxu0 %v2025
  %2422 = vmatpush1.msra.mxu0 %v2024
  %2423 = vmatprep.subr.mxu0 %v2041
  %2424 = vmatpush1.msra.mxu0 %v2040
  %2425 = vmatprep.subr.mxu0 %v2057
  %2426 = vmatpush1.msra.mxu0 %v2056
  %2427 = vmatprep.subr.mxu0 %v2073
  %2428 = vmatpush1.msra.mxu0 %v2072
  %2429 = vmatprep.subr.mxu0 %v2089
  %2430 = vmatpush1.msra.mxu0 %v2088
  %2431 = vmatprep.subr.mxu0 %v2105
  %2432 = vmatpush1.msra.mxu0 %v2104
  %2433 = vmatprep.subr.mxu0 %v2121
  %2434 = vmatpush1.msra.mxu0 %v2120
  %2435 = vmatprep.subr.mxu0 %v2137
  %2436 = vmatpush1.msra.mxu0 %v2136
  %2437 = vmatprep.subr.mxu0 %v2153
  %2438 = vmatpush1.msra.mxu0 %v2152
  %2439 = vmatprep.mubr.f32.mxu0 %v1649
  %2440 = vmatmul.mubr.f32.gmra.mrb[0].mxu0 %v1647
  %v2441 = vpop.f32.mrb[0].mxu0
  %v2442 = vadd.f32 0.0, %v2441
  %v2443 = vpop.f32.mrb[0].mxu0
  %v2444 = vadd.f32 0.0, %v2443
  %2445 = vdwg.mxu0
  %2446 = vmatprep.subr.mxu0 %v1659
  %2447 = vmatpush1.msra.mxu0 %v1658
  %2448 = vmatprep.subr.mxu0 %v1675
  %2449 = vmatpush1.msra.mxu0 %v1674
  %2450 = vmatprep.subr.mxu0 %v1691
  %2451 = vmatpush1.msra.mxu0 %v1690
  %2452 = vmatprep.subr.mxu0 %v1707
  %2453 = vmatpush1.msra.mxu0 %v1706
  %2454 = vmatprep.subr.mxu0 %v1723
  %2455 = vmatpush1.msra.mxu0 %v1722
  %2456 = vmatprep.subr.mxu0 %v1739
  %2457 = vmatpush1.msra.mxu0 %v1738
  %2458 = vmatprep.subr.mxu0 %v1755
  %2459 = vmatpush1.msra.mxu0 %v1754
  %2460 = vmatprep.subr.mxu0 %v1771
  %2461 = vmatpush1.msra.mxu0 %v1770
  %2462 = vmatprep.subr.mxu0 %v1787
  %2463 = vmatpush1.msra.mxu0 %v1786
  %2464 = vmatprep.subr.mxu0 %v1803
  %2465 = vmatpush1.msra.mxu0 %v1802
  %2466 = vmatprep.subr.mxu0 %v1819
  %2467 = vmatpush1.msra.mxu0 %v1818
  %2468 = vmatprep.subr.mxu0 %v1835
  %2469 = vmatpush1.msra.mxu0 %v1834
  %2470 = vmatprep.subr.mxu0 %v1851
  %2471 = vmatpush1.msra.mxu0 %v1850
  %2472 = vmatprep.subr.mxu0 %v1867
  %2473 = vmatpush1.msra.mxu0 %v1866
  %2474 = vmatprep.subr.mxu0 %v1883
  %2475 = vmatpush1.msra.mxu0 %v1882
  %2476 = vmatprep.subr.mxu0 %v1899
  %2477 = vmatpush1.msra.mxu0 %v1898
  %2478 = vmatprep.subr.mxu0 %v1915
  %2479 = vmatpush1.msra.mxu0 %v1914
  %2480 = vmatprep.subr.mxu0 %v1931
  %2481 = vmatpush1.msra.mxu0 %v1930
  %2482 = vmatprep.subr.mxu0 %v1947
  %2483 = vmatpush1.msra.mxu0 %v1946
  %2484 = vmatprep.subr.mxu0 %v1963
  %2485 = vmatpush1.msra.mxu0 %v1962
  %2486 = vmatprep.subr.mxu0 %v1979
  %2487 = vmatpush1.msra.mxu0 %v1978
  %2488 = vmatprep.subr.mxu0 %v1995
  %2489 = vmatpush1.msra.mxu0 %v1994
  %2490 = vmatprep.subr.mxu0 %v2011
  %2491 = vmatpush1.msra.mxu0 %v2010
  %2492 = vmatprep.subr.mxu0 %v2027
  %2493 = vmatpush1.msra.mxu0 %v2026
  %2494 = vmatprep.subr.mxu0 %v2043
  %2495 = vmatpush1.msra.mxu0 %v2042
  %2496 = vmatprep.subr.mxu0 %v2059
  %2497 = vmatpush1.msra.mxu0 %v2058
  %2498 = vmatprep.subr.mxu0 %v2075
  %2499 = vmatpush1.msra.mxu0 %v2074
  %2500 = vmatprep.subr.mxu0 %v2091
  %2501 = vmatpush1.msra.mxu0 %v2090
  %2502 = vmatprep.subr.mxu0 %v2107
  %2503 = vmatpush1.msra.mxu0 %v2106
  %2504 = vmatprep.subr.mxu0 %v2123
  %2505 = vmatpush1.msra.mxu0 %v2122
  %2506 = vmatprep.subr.mxu0 %v2139
  %2507 = vmatpush1.msra.mxu0 %v2138
  %2508 = vmatprep.subr.mxu0 %v2155
  %2509 = vmatpush1.msra.mxu0 %v2154
  %2510 = vmatprep.mubr.f32.mxu0 %v1649
  %2511 = vmatmul.mubr.f32.gmra.mrb[0].mxu0 %v1647
  %v2512 = vpop.f32.mrb[0].mxu0
  %v2513 = vadd.f32 0.0, %v2512
  %v2514 = vpop.f32.mrb[0].mxu0
  %v2515 = vadd.f32 0.0, %v2514
  %2516 = vdwg.mxu0
  %2517 = vmatprep.subr.mxu0 %v1661
  %2518 = vmatpush1.msra.mxu0 %v1660
  %2519 = vmatprep.subr.mxu0 %v1677
  %2520 = vmatpush1.msra.mxu0 %v1676
  %2521 = vmatprep.subr.mxu0 %v1693
  %2522 = vmatpush1.msra.mxu0 %v1692
  %2523 = vmatprep.subr.mxu0 %v1709
  %2524 = vmatpush1.msra.mxu0 %v1708
  %2525 = vmatprep.subr.mxu0 %v1725
  %2526 = vmatpush1.msra.mxu0 %v1724
  %2527 = vmatprep.subr.mxu0 %v1741
  %2528 = vmatpush1.msra.mxu0 %v1740
  %2529 = vmatprep.subr.mxu0 %v1757
  %2530 = vmatpush1.msra.mxu0 %v1756
  %2531 = vmatprep.subr.mxu0 %v1773
  %2532 = vmatpush1.msra.mxu0 %v1772
  %2533 = vmatprep.subr.mxu0 %v1789
  %2534 = vmatpush1.msra.mxu0 %v1788
  %2535 = vmatprep.subr.mxu0 %v1805
  %2536 = vmatpush1.msra.mxu0 %v1804
  %2537 = vmatprep.subr.mxu0 %v1821
  %2538 = vmatpush1.msra.mxu0 %v1820
  %2539 = vmatprep.subr.mxu0 %v1837
  %2540 = vmatpush1.msra.mxu0 %v1836
  %2541 = vmatprep.subr.mxu0 %v1853
  %2542 = vmatpush1.msra.mxu0 %v1852
  %2543 = vmatprep.subr.mxu0 %v1869
  %2544 = vmatpush1.msra.mxu0 %v1868
  %2545 = vmatprep.subr.mxu0 %v1885
  %2546 = vmatpush1.msra.mxu0 %v1884
  %2547 = vmatprep.subr.mxu0 %v1901
  %2548 = vmatpush1.msra.mxu0 %v1900
  %2549 = vmatprep.subr.mxu0 %v1917
  %2550 = vmatpush1.msra.mxu0 %v1916
  %2551 = vmatprep.subr.mxu0 %v1933
  %2552 = vmatpush1.msra.mxu0 %v1932
  %2553 = vmatprep.subr.mxu0 %v1949
  %2554 = vmatpush1.msra.mxu0 %v1948
  %2555 = vmatprep.subr.mxu0 %v1965
  %2556 = vmatpush1.msra.mxu0 %v1964
  %2557 = vmatprep.subr.mxu0 %v1981
  %2558 = vmatpush1.msra.mxu0 %v1980
  %2559 = vmatprep.subr.mxu0 %v1997
  %2560 = vmatpush1.msra.mxu0 %v1996
  %2561 = vmatprep.subr.mxu0 %v2013
  %2562 = vmatpush1.msra.mxu0 %v2012
  %2563 = vmatprep.subr.mxu0 %v2029
  %2564 = vmatpush1.msra.mxu0 %v2028
  %2565 = vmatprep.subr.mxu0 %v2045
  %2566 = vmatpush1.msra.mxu0 %v2044
  %2567 = vmatprep.subr.mxu0 %v2061
  %2568 = vmatpush1.msra.mxu0 %v2060
  %2569 = vmatprep.subr.mxu0 %v2077
  %2570 = vmatpush1.msra.mxu0 %v2076
  %2571 = vmatprep.subr.mxu0 %v2093
  %2572 = vmatpush1.msra.mxu0 %v2092
  %2573 = vmatprep.subr.mxu0 %v2109
  %2574 = vmatpush1.msra.mxu0 %v2108
  %2575 = vmatprep.subr.mxu0 %v2125
  %2576 = vmatpush1.msra.mxu0 %v2124
  %2577 = vmatprep.subr.mxu0 %v2141
  %2578 = vmatpush1.msra.mxu0 %v2140
  %2579 = vmatprep.subr.mxu0 %v2157
  %2580 = vmatpush1.msra.mxu0 %v2156
  %2581 = vmatprep.mubr.f32.mxu0 %v1649
  %2582 = vmatmul.mubr.f32.gmra.mrb[0].mxu0 %v1647
  %v2583 = vpop.f32.mrb[0].mxu0
  %v2584 = vadd.f32 0.0, %v2583
  %v2585 = vpop.f32.mrb[0].mxu0
  %v2586 = vadd.f32 0.0, %v2585
  %2587 = vdwg.mxu0
  %2588 = vmatprep.subr.mxu0 %v1663
  %2589 = vmatpush1.msra.mxu0 %v1662
  %2590 = vmatprep.subr.mxu0 %v1679
  %2591 = vmatpush1.msra.mxu0 %v1678
  %2592 = vmatprep.subr.mxu0 %v1695
  %2593 = vmatpush1.msra.mxu0 %v1694
  %2594 = vmatprep.subr.mxu0 %v1711
  %2595 = vmatpush1.msra.mxu0 %v1710
  %2596 = vmatprep.subr.mxu0 %v1727
  %2597 = vmatpush1.msra.mxu0 %v1726
  %2598 = vmatprep.subr.mxu0 %v1743
  %2599 = vmatpush1.msra.mxu0 %v1742
  %2600 = vmatprep.subr.mxu0 %v1759
  %2601 = vmatpush1.msra.mxu0 %v1758
  %2602 = vmatprep.subr.mxu0 %v1775
  %2603 = vmatpush1.msra.mxu0 %v1774
  %2604 = vmatprep.subr.mxu0 %v1791
  %2605 = vmatpush1.msra.mxu0 %v1790
  %2606 = vmatprep.subr.mxu0 %v1807
  %2607 = vmatpush1.msra.mxu0 %v1806
  %2608 = vmatprep.subr.mxu0 %v1823
  %2609 = vmatpush1.msra.mxu0 %v1822
  %2610 = vmatprep.subr.mxu0 %v1839
  %2611 = vmatpush1.msra.mxu0 %v1838
  %2612 = vmatprep.subr.mxu0 %v1855
  %2613 = vmatpush1.msra.mxu0 %v1854
  %2614 = vmatprep.subr.mxu0 %v1871
  %2615 = vmatpush1.msra.mxu0 %v1870
  %2616 = vmatprep.subr.mxu0 %v1887
  %2617 = vmatpush1.msra.mxu0 %v1886
  %2618 = vmatprep.subr.mxu0 %v1903
  %2619 = vmatpush1.msra.mxu0 %v1902
  %2620 = vmatprep.subr.mxu0 %v1919
  %2621 = vmatpush1.msra.mxu0 %v1918
  %2622 = vmatprep.subr.mxu0 %v1935
  %2623 = vmatpush1.msra.mxu0 %v1934
  %2624 = vmatprep.subr.mxu0 %v1951
  %2625 = vmatpush1.msra.mxu0 %v1950
  %2626 = vmatprep.subr.mxu0 %v1967
  %2627 = vmatpush1.msra.mxu0 %v1966
  %2628 = vmatprep.subr.mxu0 %v1983
  %2629 = vmatpush1.msra.mxu0 %v1982
  %2630 = vmatprep.subr.mxu0 %v1999
  %2631 = vmatpush1.msra.mxu0 %v1998
  %2632 = vmatprep.subr.mxu0 %v2015
  %2633 = vmatpush1.msra.mxu0 %v2014
  %2634 = vmatprep.subr.mxu0 %v2031
  %2635 = vmatpush1.msra.mxu0 %v2030
  %2636 = vmatprep.subr.mxu0 %v2047
  %2637 = vmatpush1.msra.mxu0 %v2046
  %2638 = vmatprep.subr.mxu0 %v2063
  %2639 = vmatpush1.msra.mxu0 %v2062
  %2640 = vmatprep.subr.mxu0 %v2079
  %2641 = vmatpush1.msra.mxu0 %v2078
  %2642 = vmatprep.subr.mxu0 %v2095
  %2643 = vmatpush1.msra.mxu0 %v2094
  %2644 = vmatprep.subr.mxu0 %v2111
  %2645 = vmatpush1.msra.mxu0 %v2110
  %2646 = vmatprep.subr.mxu0 %v2127
  %2647 = vmatpush1.msra.mxu0 %v2126
  %2648 = vmatprep.subr.mxu0 %v2143
  %2649 = vmatpush1.msra.mxu0 %v2142
  %2650 = vmatprep.subr.mxu0 %v2159
  %2651 = vmatpush1.msra.mxu0 %v2158
  %2652 = vmatprep.mubr.f32.mxu0 %v1649
  %2653 = vmatmul.mubr.f32.gmra.mrb[0].mxu0 %v1647
  %v2654 = vpop.f32.mrb[0].mxu0
  %v2655 = vadd.f32 0.0, %v2654
  %v2656 = vpop.f32.mrb[0].mxu0
  %v2657 = vadd.f32 0.0, %v2656
  %2658 = vdwg.mxu0
  %2659 = vmatprep.subr.mxu0 %v1665
  %2660 = vmatpush1.msra.mxu0 %v1664
  %2661 = vmatprep.subr.mxu0 %v1681
  %2662 = vmatpush1.msra.mxu0 %v1680
  %2663 = vmatprep.subr.mxu0 %v1697
  %2664 = vmatpush1.msra.mxu0 %v1696
  %2665 = vmatprep.subr.mxu0 %v1713
  %2666 = vmatpush1.msra.mxu0 %v1712
  %2667 = vmatprep.subr.mxu0 %v1729
  %2668 = vmatpush1.msra.mxu0 %v1728
  %2669 = vmatprep.subr.mxu0 %v1745
  %2670 = vmatpush1.msra.mxu0 %v1744
  %2671 = vmatprep.subr.mxu0 %v1761
  %2672 = vmatpush1.msra.mxu0 %v1760
  %2673 = vmatprep.subr.mxu0 %v1777
  %2674 = vmatpush1.msra.mxu0 %v1776
  %2675 = vmatprep.subr.mxu0 %v1793
  %2676 = vmatpush1.msra.mxu0 %v1792
  %2677 = vmatprep.subr.mxu0 %v1809
  %2678 = vmatpush1.msra.mxu0 %v1808
  %2679 = vmatprep.subr.mxu0 %v1825
  %2680 = vmatpush1.msra.mxu0 %v1824
  %2681 = vmatprep.subr.mxu0 %v1841
  %2682 = vmatpush1.msra.mxu0 %v1840
  %2683 = vmatprep.subr.mxu0 %v1857
  %2684 = vmatpush1.msra.mxu0 %v1856
  %2685 = vmatprep.subr.mxu0 %v1873
  %2686 = vmatpush1.msra.mxu0 %v1872
  %2687 = vmatprep.subr.mxu0 %v1889
  %2688 = vmatpush1.msra.mxu0 %v1888
  %2689 = vmatprep.subr.mxu0 %v1905
  %2690 = vmatpush1.msra.mxu0 %v1904
  %2691 = vmatprep.subr.mxu0 %v1921
  %2692 = vmatpush1.msra.mxu0 %v1920
  %2693 = vmatprep.subr.mxu0 %v1937
  %2694 = vmatpush1.msra.mxu0 %v1936
  %2695 = vmatprep.subr.mxu0 %v1953
  %2696 = vmatpush1.msra.mxu0 %v1952
  %2697 = vmatprep.subr.mxu0 %v1969
  %2698 = vmatpush1.msra.mxu0 %v1968
  %2699 = vmatprep.subr.mxu0 %v1985
  %2700 = vmatpush1.msra.mxu0 %v1984
  %2701 = vmatprep.subr.mxu0 %v2001
  %2702 = vmatpush1.msra.mxu0 %v2000
  %2703 = vmatprep.subr.mxu0 %v2017
  %2704 = vmatpush1.msra.mxu0 %v2016
  %2705 = vmatprep.subr.mxu0 %v2033
  %2706 = vmatpush1.msra.mxu0 %v2032
  %2707 = vmatprep.subr.mxu0 %v2049
  %2708 = vmatpush1.msra.mxu0 %v2048
  %2709 = vmatprep.subr.mxu0 %v2065
  %2710 = vmatpush1.msra.mxu0 %v2064
  %2711 = vmatprep.subr.mxu0 %v2081
  %2712 = vmatpush1.msra.mxu0 %v2080
  %2713 = vmatprep.subr.mxu0 %v2097
  %2714 = vmatpush1.msra.mxu0 %v2096
  %2715 = vmatprep.subr.mxu0 %v2113
  %2716 = vmatpush1.msra.mxu0 %v2112
  %2717 = vmatprep.subr.mxu0 %v2129
  %2718 = vmatpush1.msra.mxu0 %v2128
  %2719 = vmatprep.subr.mxu0 %v2145
  %2720 = vmatpush1.msra.mxu0 %v2144
  %2721 = vmatprep.subr.mxu0 %v2161
  %2722 = vmatpush1.msra.mxu0 %v2160
  %2723 = vmatprep.mubr.f32.mxu0 %v1649
  %2724 = vmatmul.mubr.f32.gmra.mrb[0].mxu0 %v1647
  %v2725 = vpop.f32.mrb[0].mxu0
  %v2726 = vadd.f32 0.0, %v2725
  %v2727 = vpop.f32.mrb[0].mxu0
  %v2728 = vadd.f32 0.0, %v2727
  %2729 = vdwg.mxu0
  %v2730 = vld [vmem:[%s11] sm:$0x1]
  %v2731 = vld [vmem:[%s12] sm:$0x1]
  %v2732 = vadd.f32 %v2229, %v2231
  %v2733 = vadd.f32 %v2732, %v2300
  %v2734 = vadd.f32 %v2733, %v2302
  %v2735 = vadd.f32 %v2734, %v2371
  %v2736 = vadd.f32 %v2735, %v2373
  %v2737 = vadd.f32 %v2736, %v2442
  %v2738 = vadd.f32 %v2737, %v2444
  %v2739 = vadd.f32 %v2738, %v2513
  %v2740 = vadd.f32 %v2739, %v2515
  %v2741 = vadd.f32 %v2740, %v2584
  %v2742 = vadd.f32 %v2741, %v2586
  %v2743 = vadd.f32 %v2742, %v2655
  %v2744 = vadd.f32 %v2743, %v2657
  %v2745 = vadd.f32 %v2744, %v2726
  %v2746 = vadd.f32 %v2745, %v2728
  %vm2747 = vcmask 1041408
  %v2748 = vsel %vm2747, %v2746, 0.0
  %v2749 = vrot.slane %v2748, 4
  %v2750 = vadd.f32 %v2748, %v2749
  %v2751 = vrot.slane %v2750, 2
  %v2752 = vadd.f32 %v2750, %v2751
  %v2753 = vrot.slane %v2752, 1
  %v2754 = vadd.f32 %v2752, %v2753
  %v2755 = vmul.f32 %v2754, 0.03125
  %v2756 = vlaneseq
  %v2757 = vshrl.u32 %v2756, 7
  %v2758 = vsub.s32 0, %v2757
  %v2759 = vrot.slane %v2755, %v2758
  %v2760 = vsub.f32 %v2229, %v2759
  %v2761 = vsub.f32 %v2231, %v2759
  %v2762 = vsub.f32 %v2300, %v2759
  %v2763 = vsub.f32 %v2302, %v2759
  %v2764 = vsub.f32 %v2371, %v2759
  %v2765 = vsub.f32 %v2373, %v2759
  %v2766 = vsub.f32 %v2442, %v2759
  %v2767 = vsub.f32 %v2444, %v2759
  %v2768 = vsub.f32 %v2513, %v2759
  %v2769 = vsub.f32 %v2515, %v2759
  %v2770 = vsub.f32 %v2584, %v2759
  %v2771 = vsub.f32 %v2586, %v2759
  %v2772 = vsub.f32 %v2655, %v2759
  %v2773 = vsub.f32 %v2657, %v2759
  %v2774 = vsub.f32 %v2726, %v2759
  %v2775 = vsub.f32 %v2728, %v2759
  %v2776 = vmul.f32 %v2760, %v2760
  %v2777 = vmul.f32 %v2761, %v2761
  %v2778 = vmul.f32 %v2762, %v2762
  %v2779 = vmul.f32 %v2763, %v2763
  %v2780 = vmul.f32 %v2764, %v2764
  %v2781 = vmul.f32 %v2765, %v2765
  %v2782 = vmul.f32 %v2766, %v2766
  %v2783 = vmul.f32 %v2767, %v2767
  %v2784 = vmul.f32 %v2768, %v2768
  %v2785 = vmul.f32 %v2769, %v2769
  %v2786 = vmul.f32 %v2770, %v2770
  %v2787 = vmul.f32 %v2771, %v2771
  %v2788 = vmul.f32 %v2772, %v2772
  %v2789 = vmul.f32 %v2773, %v2773
  %v2790 = vmul.f32 %v2774, %v2774
  %v2791 = vmul.f32 %v2775, %v2775
  %v2792 = vadd.f32 %v2776, %v2777
  %v2793 = vadd.f32 %v2792, %v2778
  %v2794 = vadd.f32 %v2793, %v2779
  %v2795 = vadd.f32 %v2794, %v2780
  %v2796 = vadd.f32 %v2795, %v2781
  %v2797 = vadd.f32 %v2796, %v2782
  %v2798 = vadd.f32 %v2797, %v2783
  %v2799 = vadd.f32 %v2798, %v2784
  %v2800 = vadd.f32 %v2799, %v2785
  %v2801 = vadd.f32 %v2800, %v2786
  %v2802 = vadd.f32 %v2801, %v2787
  %v2803 = vadd.f32 %v2802, %v2788
  %v2804 = vadd.f32 %v2803, %v2789
  %v2805 = vadd.f32 %v2804, %v2790
  %v2806 = vadd.f32 %v2805, %v2791
  %v2807 = vsel %vm2747, %v2806, 0.0
  %v2808 = vrot.slane %v2807, 4
  %v2809 = vadd.f32 %v2807, %v2808
  %v2810 = vrot.slane %v2809, 2
  %v2811 = vadd.f32 %v2809, %v2810
  %v2812 = vrot.slane %v2811, 1
  %v2813 = vadd.f32 %v2811, %v2812
  %v2814 = vmul.f32 %v2813, 0.03125
  %v2815 = vadd.f32 %v2814, 1e-05
  %v2816 = vrsqrt.pop %v2815
  %v2817 = vmul.f32 %v2730, %v2816
  %v2818 = vlaneseq
  %v2819 = vshrl.u32 %v2818, 7
  %v2820 = vsub.s32 0, %v2819
  %v2821 = vrot.slane %v2817, %v2820
  %v2822 = vmul.f32 %v2760, %v2821
  %v2823 = vmul.f32 %v2761, %v2821
  %v2824 = vmul.f32 %v2762, %v2821
  %v2825 = vmul.f32 %v2763, %v2821
  %v2826 = vmul.f32 %v2764, %v2821
  %v2827 = vmul.f32 %v2765, %v2821
  %v2828 = vmul.f32 %v2766, %v2821
  %v2829 = vmul.f32 %v2767, %v2821
  %v2830 = vmul.f32 %v2768, %v2821
  %v2831 = vmul.f32 %v2769, %v2821
  %v2832 = vmul.f32 %v2770, %v2821
  %v2833 = vmul.f32 %v2771, %v2821
  %v2834 = vmul.f32 %v2772, %v2821
  %v2835 = vmul.f32 %v2773, %v2821
  %v2836 = vmul.f32 %v2774, %v2821
  %v2837 = vmul.f32 %v2775, %v2821
  %v2838 = vlaneseq
  %v2839 = vshrl.u32 %v2838, 7
  %v2840 = vsub.s32 0, %v2839
  %v2841 = vrot.slane %v2731, %v2840
  %v2842 = vadd.f32 %v2822, %v2841
  %v2843 = vadd.f32 %v2823, %v2841
  %v2844 = vadd.f32 %v2824, %v2841
  %v2845 = vadd.f32 %v2825, %v2841
  %v2846 = vadd.f32 %v2826, %v2841
  %v2847 = vadd.f32 %v2827, %v2841
  %v2848 = vadd.f32 %v2828, %v2841
  %v2849 = vadd.f32 %v2829, %v2841
  %v2850 = vadd.f32 %v2830, %v2841
  %v2851 = vadd.f32 %v2831, %v2841
  %v2852 = vadd.f32 %v2832, %v2841
  %v2853 = vadd.f32 %v2833, %v2841
  %v2854 = vadd.f32 %v2834, %v2841
  %v2855 = vadd.f32 %v2835, %v2841
  %v2856 = vadd.f32 %v2836, %v2841
  %v2857 = vadd.f32 %v2837, %v2841
  %v2858 = vmax.f32 %v2842, 0.0
  %v2859 = vmax.f32 %v2843, 0.0
  %v2860 = vmax.f32 %v2844, 0.0
  %v2861 = vmax.f32 %v2845, 0.0
  %v2862 = vmax.f32 %v2846, 0.0
  %v2863 = vmax.f32 %v2847, 0.0
  %v2864 = vmax.f32 %v2848, 0.0
  %v2865 = vmax.f32 %v2849, 0.0
  %v2866 = vmax.f32 %v2850, 0.0
  %v2867 = vmax.f32 %v2851, 0.0
  %v2868 = vmax.f32 %v2852, 0.0
  %v2869 = vmax.f32 %v2853, 0.0
  %v2870 = vmax.f32 %v2854, 0.0
  %v2871 = vmax.f32 %v2855, 0.0
  %v2872 = vmax.f32 %v2856, 0.0
  %v2873 = vmax.f32 %v2857, 0.0
  %v2890 = vcombine.low %v2858, %v2859
  %v2891 = vcombine.low %v2860, %v2861
  %v2893 = vunpack.c.l.s4 1983009808
  %v2894 = vunpack.c.0.s8 %v2893
  %v2895 = vlaneseq
  %v2896 = vshrl.u32 %v2895, 7
  %v2897 = vsub.s32 %v2894, %v2896
  %v2898 = vrot.slane %v2890, %v2897
  %v2900 = vunpack.c.l.s4 1983009808
  %v2901 = vunpack.c.0.s8 %v2900
  %v2902 = vlaneseq
  %v2903 = vshrl.u32 %v2902, 7
  %v2904 = vsub.s32 %v2901, %v2903
  %v2905 = vrot.slane %v2891, %v2904
  %v2906 = vcombine.low %v2898, %v2905
  %v2907 = vcombine.low %v2862, %v2863
  %v2908 = vcombine.low %v2864, %v2865
  %v2910 = vunpack.c.l.s4 1983009808
  %v2911 = vunpack.c.0.s8 %v2910
  %v2912 = vlaneseq
  %v2913 = vshrl.u32 %v2912, 7
  %v2914 = vsub.s32 %v2911, %v2913
  %v2915 = vrot.slane %v2907, %v2914
  %v2917 = vunpack.c.l.s4 1983009808
  %v2918 = vunpack.c.0.s8 %v2917
  %v2919 = vlaneseq
  %v2920 = vshrl.u32 %v2919, 7
  %v2921 = vsub.s32 %v2918, %v2920
  %v2922 = vrot.slane %v2908, %v2921
  %v2923 = vcombine.low %v2915, %v2922
  %v2924 = vcombine.low %v2866, %v2867
  %v2925 = vcombine.low %v2868, %v2869
  %v2927 = vunpack.c.l.s4 1983009808
  %v2928 = vunpack.c.0.s8 %v2927
  %v2929 = vlaneseq
  %v2930 = vshrl.u32 %v2929, 7
  %v2931 = vsub.s32 %v2928, %v2930
  %v2932 = vrot.slane %v2924, %v2931
  %v2934 = vunpack.c.l.s4 1983009808
  %v2935 = vunpack.c.0.s8 %v2934
  %v2936 = vlaneseq
  %v2937 = vshrl.u32 %v2936, 7
  %v2938 = vsub.s32 %v2935, %v2937
  %v2939 = vrot.slane %v2925, %v2938
  %v2940 = vcombine.low %v2932, %v2939
  %v2941 = vcombine.low %v2870, %v2871
  %v2942 = vcombine.low %v2872, %v2873
  %v2944 = vunpack.c.l.s4 1983009808
  %v2945 = vunpack.c.0.s8 %v2944
  %v2946 = vlaneseq
  %v2947 = vshrl.u32 %v2946, 7
  %v2948 = vsub.s32 %v2945, %v2947
  %v2949 = vrot.slane %v2941, %v2948
  %v2951 = vunpack.c.l.s4 1983009808
  %v2952 = vunpack.c.0.s8 %v2951
  %v2953 = vlaneseq
  %v2954 = vshrl.u32 %v2953, 7
  %v2955 = vsub.s32 %v2952, %v2954
  %v2956 = vrot.slane %v2942, %v2955
  %v2957 = vcombine.low %v2949, %v2956
  %2962 = vst [vmem:[%s13] sm:$0xff] %v2906
  %2963 = vst [vmem:[%s13 + $0x8] sm:$0xff] %v2923
  %2964 = vst [vmem:[%s13 + $0x10] sm:$0xff] %v2940
  %2965 = vst [vmem:[%s13 + $0x18] sm:$0xff] %v2957
  // Predicated region
  $region54: #{ae_vine2_forward.10} parent=0 // pred_check
    _
  $region55: #{ae_vine2_forward.10} parent=0 // pred_check_branch
    %2967 = sbr.rel (0) target = $region57
  $region56: #{ae_vine2_forward.10} parent=0 // pred_region
    _
  $region57: #{ae_vine2_forward.10} parent=0 // pred_fallthru
    _
  // Predicated region
  $region58: #{ae_vine2_forward.10} parent=0 // pred_check
    _
  $region59: #{ae_vine2_forward.10} parent=0 // pred_check_branch
    %2969 = sbr.rel (0) target = $region61
  $region60: #{ae_vine2_forward.10} parent=0 // pred_region
    _
  $region61: #{ae_vine2_forward.10} parent=0 // pred_fallthru
    _

</llo_original>
